<compile_context>
chip_gen: v5e
topology: v5e:2x2
jax: 0.10.0
libtpu: 0.0.40
codegen_flags: <defaults>
</compile_context>

<pallas_src>
import math

import jax
import jax.numpy as jnp
import numpy as np
from jax import lax
from jax.experimental import pallas as pl
from jax.experimental.pallas import tpu as pltpu

BN_EPS = 1e-5
BOARD = 8          # Reversi board is 8x8 (conv_l2 reduces 8 -> 4 -> 1)
IN_PLANES = 4
CPAD = 8           # input planes zero-padded 4 -> 8 (sublane-aligned patches)
K5 = 5             # 5x5 convs
K4 = 4             # final 4x4 conv


# ----------------------------- static metadata ------------------------------

def _same_conv_shifts(m1):
    """Lane-roll amount per tap for the pad=2 5x5 convs (flat position axis)."""
    out = []
    for di in range(K5):
        for dj in range(K5):
            off = (di - 2) * BOARD + (dj - 2)
            out.append((-off) % m1)
    return out


def _valid_conv_shifts(m1):
    out = []
    for di in range(K5):
        for dj in range(K5):
            off = di * BOARD + dj
            out.append((-off) % m1)
    return out


def _last_conv_shifts(m2):
    return [(-t) % m2 for t in range(K4 * K4)]


def _boundary_mask(batch):
    """(25, 1, B*64) 0/1 mask: tap t reads an in-board pixel at position (i,j)."""
    m1 = batch * BOARD * BOARD
    mask = np.zeros((K5 * K5, 1, m1), np.float32)
    for di in range(K5):
        for dj in range(K5):
            t = di * K5 + dj
            for i in range(BOARD):
                ii = i + di - 2
                if not (0 <= ii < BOARD):
                    continue
                for j in range(BOARD):
                    jj = j + dj - 2
                    if not (0 <= jj < BOARD):
                        continue
                    for b in range(batch):
                        mask[t, 0, b * BOARD * BOARD + i * BOARD + j] = 1.0
    return mask


def _valid_select(batch):
    """(B*64, B*16): gathers 8x8-grid columns with i<4, j<4 into 4x4 layout."""
    m1, m2 = batch * 64, batch * 16
    s = np.zeros((m1, m2), np.float32)
    for b in range(batch):
        for i in range(4):
            for j in range(4):
                s[b * 64 + i * 8 + j, b * 16 + i * 4 + j] = 1.0
    return s


def _image_pick(batch):
    """(B*16, B): picks the (0,0) anchor column of every image."""
    m2 = batch * 16
    s = np.zeros((m2, batch), np.float32)
    for b in range(batch):
        s[b * 16, b] = 1.0
    return s


# ------------------------------ fused kernel --------------------------------

def _make_kernel(batch):
    m1 = batch * BOARD * BOARD          # flattened 8x8 positions (batch-major)
    m2 = batch * 16                     # flattened 4x4 positions
    shifts_same = _same_conv_shifts(m1)
    shifts_valid = _valid_conv_shifts(m1)
    shifts_last = _last_conv_shifts(m2)
    bf16 = jnp.bfloat16

    def bn_tanh(y, gb):
        # Training-mode BatchNorm (biased variance, stats over the position
        # axis = lanes) + tanh, all in f32.
        gamma = gb[:, 0:1]
        beta = gb[:, 1:2]
        mean = jnp.mean(y, axis=1, keepdims=True)
        yc = y - mean
        var = jnp.mean(yc * yc, axis=1, keepdims=True)
        return jnp.tanh(yc * lax.rsqrt(var + BN_EPS) * gamma + beta)

    def patches(a, shifts, mask):
        # a: (C, M) f32 activations (channels x positions).  Each tap is a
        # lane roll (XLU) + 0/1 boundary mask (VPU); pieces are stacked along
        # the sublane axis (C is a multiple of 8 -> tile-aligned concat).
        blocks = []
        for t, s in enumerate(shifts):
            r = a if s == 0 else pltpu.roll(a, s, 1)
            if mask is not None:
                r = r * mask[t]
            blocks.append(r)
        return jnp.concatenate(blocks, axis=0).astype(bf16)   # (taps*C, M)

    def conv_same(a, mask, w_ref, gb_ref):
        # One fused MXU matmul: (Cout, 25*Cin) @ (25*Cin, m1), K = 200..800.
        p = patches(a, shifts_same, mask)
        y = jnp.dot(w_ref[...], p, preferred_element_type=jnp.float32)
        return bn_tanh(y, gb_ref[...])

    def kernel(x_ref, mask_ref, ssel_ref, spick_ref,
               w1a_ref, w1b_ref, wha_ref, whb_ref, w2a_ref, w2b_ref,
               gb1a_ref, gb1b_ref, gbha_ref, gbhb_ref, gb2a_ref, gb2b_ref,
               f1w_ref, f1b_ref, f2w_ref, f2b_ref,
               o_ref):
        mask = mask_ref[...]                 # (25, 1, m1) f32
        x = x_ref[...]                       # (8, m1)  f32 (planes 4..7 zero)

        # conv_l1
        a = conv_same(x, mask, w1a_ref, gb1a_ref)        # (16, m1)
        a = conv_same(a, mask, w1b_ref, gb1b_ref)        # (32, m1)

        # conv_highway applied twice (same weights), residual add each time.
        for _ in range(2):
            h1 = conv_same(a, mask, wha_ref, gbha_ref)
            h2 = conv_same(h1, mask, whb_ref, gbhb_ref)
            a = h2 + a

        # conv_l2 first conv: 5x5 valid, 8x8 -> 4x4.  Patch on the full grid
        # (surviving columns never read out-of-board pixels, so no mask),
        # gather the 16 valid columns per image with a tiny 0/1 matmul (row
        # selection is exact in bf16), then one K=800 matmul.
        p = patches(a, shifts_valid, None)                                   # (800, m1)
        p = jnp.dot(p, ssel_ref[...], preferred_element_type=jnp.float32)    # (800, m2)
        y = jnp.dot(w2a_ref[...], p.astype(bf16),
                    preferred_element_type=jnp.float32)                      # (64, m2)
        a = bn_tanh(y, gb2a_ref[...])

        # conv_l2 second conv: 4x4 valid = full contraction -> single K=1024
        # matmul; taps gathered with lane rolls, per-image anchor column
        # picked with a tiny 0/1 matmul.
        p = patches(a, shifts_last, None)                                    # (1024, m2)
        p = jnp.dot(p, spick_ref[...], preferred_element_type=jnp.float32)   # (1024, B)
        y = jnp.dot(w2b_ref[...], p.astype(bf16),
                    preferred_element_type=jnp.float32)                      # (256, B)
        a = bn_tanh(y, gb2b_ref[...])

        # linear_l1 -> linear_l2 -> tanh   (still transposed: features x batch)
        h = jnp.dot(f1w_ref[...], a.astype(bf16),
                    preferred_element_type=jnp.float32) + f1b_ref[...]       # (128, B)
        yy = jnp.sum(h * f2w_ref[...], axis=0, keepdims=True) + f2b_ref[...]  # (1, B)
        o_ref[...] = jnp.tanh(yy)

    return kernel


# ------------------------------- parameters ---------------------------------

def _conv_block(key, cin, cout, k, cin_pad=None):
    """Transposed/flattened conv weight (Cout, k*k*cin[_pad]) + BN (gamma|beta)."""
    bound = 1.0 / math.sqrt(cin * k * k)          # PyTorch Conv2d default init
    w = jax.random.uniform(key, (k * k, cin, cout), jnp.float32, -bound, bound)
    if cin_pad is not None and cin_pad > cin:
        w = jnp.pad(w, ((0, 0), (0, cin_pad - cin), (0, 0)))
    w_t = jnp.transpose(w, (2, 0, 1)).reshape(cout, -1)
    gb = jnp.concatenate([jnp.ones((cout, 1), jnp.float32),
                          jnp.zeros((cout, 1), jnp.float32)], axis=1)
    # Conv bias omitted: cancelled exactly by training-mode BN mean subtraction.
    return w_t.astype(jnp.bfloat16), gb


def _linear(key, fin, fout):
    k1, k2 = jax.random.split(key)
    bound = 1.0 / math.sqrt(fin)                  # PyTorch Linear default init
    w = jax.random.uniform(k1, (fout, fin), jnp.float32, -bound, bound)
    b = jax.random.uniform(k2, (fout, 1), jnp.float32, -bound, bound)
    return w, b


def init_inputs(key, batch):
    """All non-activation kernel operands, pre-cast ONCE (no per-call converts)."""
    keys = jax.random.split(key, 8)
    w1a, gb1a = _conv_block(keys[0], 4, 16, 5, cin_pad=CPAD)
    w1b, gb1b = _conv_block(keys[1], 16, 32, 5)
    wha, gbha = _conv_block(keys[2], 32, 32, 5)
    whb, gbhb = _conv_block(keys[3], 32, 32, 5)
    w2a, gb2a = _conv_block(keys[4], 32, 64, 5)
    w2b, gb2b = _conv_block(keys[5], 64, 256, 4)
    f1w, f1b = _linear(keys[6], 256, 128)
    f2w, f2b = _linear(keys[7], 128, 1)

    mask = jnp.asarray(_boundary_mask(batch))                     # f32
    ssel = jnp.asarray(_valid_select(batch), jnp.bfloat16)        # tiny (8 KB)
    spick = jnp.asarray(_image_pick(batch), jnp.bfloat16)

    return (mask, ssel, spick,
            w1a, w1b, wha, whb, w2a, w2b,
            gb1a, gb1b, gbha, gbhb, gb2a, gb2b,
            f1w.astype(jnp.bfloat16), f1b,
            f2w.reshape(128, 1), f2b.reshape(1, 1))


# ------------------------------ forward pass ---------------------------------

def make_forward(batch):
    m1 = batch * BOARD * BOARD
    vmem = pl.BlockSpec(memory_space=pltpu.MemorySpace.VMEM)
    call = pl.pallas_call(
        _make_kernel(batch),
        out_shape=jax.ShapeDtypeStruct((1, batch), jnp.float32),
        in_specs=[vmem] * 20,
        out_specs=vmem,
    )

    @jax.jit
    def forward(x_nchw, consts):
        # NCHW -> (planes, B*64): batch-major, row-major positions; pad 4 -> 8.
        x_t = jnp.transpose(x_nchw, (1, 0, 2, 3)).reshape(IN_PLANES, m1)
        x_t = jnp.pad(x_t, ((0, CPAD - IN_PLANES), (0, 0)))
        out = call(x_t, *consts)                 # (1, B), features x batch
        return out.reshape(batch, 1)

    return forward


# ----------------------------------- main ------------------------------------

if __name__ == "__main__":
    key = jax.random.PRNGKey(0)
    k_param, k_x = jax.random.split(key)

    B = 2
    consts = init_inputs(k_param, B)
    # Reversi board: batch=2, 4 feature planes, 8x8 board (NCHW like PyTorch).
    x = jax.random.normal(k_x, (B, IN_PLANES, BOARD, BOARD), dtype=jnp.float32)

    forward = make_forward(B)
    out = jax.block_until_ready(forward(x, consts))

    assert out.shape == (B, 1), out.shape
    assert bool(jnp.all(jnp.isfinite(out))), "non-finite output"
    assert bool(jnp.all(jnp.abs(out) <= 1.0 + 1e-6)), "tanh range violated"
    print("KERNEL_OK")
</pallas_src>

<mosaic_0001>
module attributes {stable_mosaic.version = 11 : i64} {
  func.func @kernel(%arg0: memref<8x128xf32, #tpu.memory_space<vmem>>, %arg1: memref<25x1x128xf32, #tpu.memory_space<vmem>>, %arg2: memref<128x32xbf16, #tpu.memory_space<vmem>>, %arg3: memref<32x2xbf16, #tpu.memory_space<vmem>>, %arg4: memref<16x200xbf16, #tpu.memory_space<vmem>>, %arg5: memref<32x400xbf16, #tpu.memory_space<vmem>>, %arg6: memref<32x800xbf16, #tpu.memory_space<vmem>>, %arg7: memref<32x800xbf16, #tpu.memory_space<vmem>>, %arg8: memref<64x800xbf16, #tpu.memory_space<vmem>>, %arg9: memref<256x1024xbf16, #tpu.memory_space<vmem>>, %arg10: memref<16x2xf32, #tpu.memory_space<vmem>>, %arg11: memref<32x2xf32, #tpu.memory_space<vmem>>, %arg12: memref<32x2xf32, #tpu.memory_space<vmem>>, %arg13: memref<32x2xf32, #tpu.memory_space<vmem>>, %arg14: memref<64x2xf32, #tpu.memory_space<vmem>>, %arg15: memref<256x2xf32, #tpu.memory_space<vmem>>, %arg16: memref<128x256xbf16, #tpu.memory_space<vmem>>, %arg17: memref<128x1xf32, #tpu.memory_space<vmem>>, %arg18: memref<128x1xf32, #tpu.memory_space<vmem>>, %arg19: memref<1x1xf32, #tpu.memory_space<vmem>>, %arg20: memref<1x2xf32, #tpu.memory_space<vmem>>) attributes {dimension_semantics = [], scalar_prefetch = 0 : i64, scratch_operands = 0 : i64, tpu.core_type = #tpu.core_type<tc>} {
    %c0 = arith.constant 0 : index
    %c0_0 = arith.constant 0 : index
    %c0_1 = arith.constant 0 : index
    %0 = vector.load %arg1[%c0, %c0_0, %c0_1] : memref<25x1x128xf32, #tpu.memory_space<vmem>>, vector<25x1x128xf32>
    %c0_2 = arith.constant 0 : index
    %c0_3 = arith.constant 0 : index
    %1 = vector.load %arg0[%c0_2, %c0_3] : memref<8x128xf32, #tpu.memory_space<vmem>>, vector<8x128xf32>
    %c18_i32 = arith.constant 18 : i32
    %2 = tpu.dynamic_rotate %1 by %c18_i32 dim 1 : vector<8x128xf32>, i32 -> vector<8x128xf32>
    %3 = vector.extract_strided_slice %0 {offsets = [0, 0, 0], sizes = [1, 1, 128], strides = [1, 1, 1]} : vector<25x1x128xf32> to vector<1x1x128xf32>
    %4 = vector.shape_cast %3 : vector<1x1x128xf32> to vector<1x128xf32>
    %5 = vector.broadcast %4 : vector<1x128xf32> to vector<8x128xf32>
    %6 = arith.mulf %2, %5 : vector<8x128xf32>
    %c17_i32 = arith.constant 17 : i32
    %7 = tpu.dynamic_rotate %1 by %c17_i32 dim 1 : vector<8x128xf32>, i32 -> vector<8x128xf32>
    %8 = vector.extract_strided_slice %0 {offsets = [1, 0, 0], sizes = [1, 1, 128], strides = [1, 1, 1]} : vector<25x1x128xf32> to vector<1x1x128xf32>
    %9 = vector.shape_cast %8 : vector<1x1x128xf32> to vector<1x128xf32>
    %10 = vector.broadcast %9 : vector<1x128xf32> to vector<8x128xf32>
    %11 = arith.mulf %7, %10 : vector<8x128xf32>
    %c16_i32 = arith.constant 16 : i32
    %12 = tpu.dynamic_rotate %1 by %c16_i32 dim 1 : vector<8x128xf32>, i32 -> vector<8x128xf32>
    %13 = vector.extract_strided_slice %0 {offsets = [2, 0, 0], sizes = [1, 1, 128], strides = [1, 1, 1]} : vector<25x1x128xf32> to vector<1x1x128xf32>
    %14 = vector.shape_cast %13 : vector<1x1x128xf32> to vector<1x128xf32>
    %15 = vector.broadcast %14 : vector<1x128xf32> to vector<8x128xf32>
    %16 = arith.mulf %12, %15 : vector<8x128xf32>
    %c15_i32 = arith.constant 15 : i32
    %17 = tpu.dynamic_rotate %1 by %c15_i32 dim 1 : vector<8x128xf32>, i32 -> vector<8x128xf32>
    %18 = vector.extract_strided_slice %0 {offsets = [3, 0, 0], sizes = [1, 1, 128], strides = [1, 1, 1]} : vector<25x1x128xf32> to vector<1x1x128xf32>
    %19 = vector.shape_cast %18 : vector<1x1x128xf32> to vector<1x128xf32>
    %20 = vector.broadcast %19 : vector<1x128xf32> to vector<8x128xf32>
    %21 = arith.mulf %17, %20 : vector<8x128xf32>
    %c14_i32 = arith.constant 14 : i32
    %22 = tpu.dynamic_rotate %1 by %c14_i32 dim 1 : vector<8x128xf32>, i32 -> vector<8x128xf32>
    %23 = vector.extract_strided_slice %0 {offsets = [4, 0, 0], sizes = [1, 1, 128], strides = [1, 1, 1]} : vector<25x1x128xf32> to vector<1x1x128xf32>
    %24 = vector.shape_cast %23 : vector<1x1x128xf32> to vector<1x128xf32>
    %25 = vector.broadcast %24 : vector<1x128xf32> to vector<8x128xf32>
    %26 = arith.mulf %22, %25 : vector<8x128xf32>
    %c10_i32 = arith.constant 10 : i32
    %27 = tpu.dynamic_rotate %1 by %c10_i32 dim 1 : vector<8x128xf32>, i32 -> vector<8x128xf32>
    %28 = vector.extract_strided_slice %0 {offsets = [5, 0, 0], sizes = [1, 1, 128], strides = [1, 1, 1]} : vector<25x1x128xf32> to vector<1x1x128xf32>
    %29 = vector.shape_cast %28 : vector<1x1x128xf32> to vector<1x128xf32>
    %30 = vector.broadcast %29 : vector<1x128xf32> to vector<8x128xf32>
    %31 = arith.mulf %27, %30 : vector<8x128xf32>
    %c9_i32 = arith.constant 9 : i32
    %32 = tpu.dynamic_rotate %1 by %c9_i32 dim 1 : vector<8x128xf32>, i32 -> vector<8x128xf32>
    %33 = vector.extract_strided_slice %0 {offsets = [6, 0, 0], sizes = [1, 1, 128], strides = [1, 1, 1]} : vector<25x1x128xf32> to vector<1x1x128xf32>
    %34 = vector.shape_cast %33 : vector<1x1x128xf32> to vector<1x128xf32>
    %35 = vector.broadcast %34 : vector<1x128xf32> to vector<8x128xf32>
    %36 = arith.mulf %32, %35 : vector<8x128xf32>
    %c8_i32 = arith.constant 8 : i32
    %37 = tpu.dynamic_rotate %1 by %c8_i32 dim 1 : vector<8x128xf32>, i32 -> vector<8x128xf32>
    %38 = vector.extract_strided_slice %0 {offsets = [7, 0, 0], sizes = [1, 1, 128], strides = [1, 1, 1]} : vector<25x1x128xf32> to vector<1x1x128xf32>
    %39 = vector.shape_cast %38 : vector<1x1x128xf32> to vector<1x128xf32>
    %40 = vector.broadcast %39 : vector<1x128xf32> to vector<8x128xf32>
    %41 = arith.mulf %37, %40 : vector<8x128xf32>
    %c7_i32 = arith.constant 7 : i32
    %42 = tpu.dynamic_rotate %1 by %c7_i32 dim 1 : vector<8x128xf32>, i32 -> vector<8x128xf32>
    %43 = vector.extract_strided_slice %0 {offsets = [8, 0, 0], sizes = [1, 1, 128], strides = [1, 1, 1]} : vector<25x1x128xf32> to vector<1x1x128xf32>
    %44 = vector.shape_cast %43 : vector<1x1x128xf32> to vector<1x128xf32>
    %45 = vector.broadcast %44 : vector<1x128xf32> to vector<8x128xf32>
    %46 = arith.mulf %42, %45 : vector<8x128xf32>
    %c6_i32 = arith.constant 6 : i32
    %47 = tpu.dynamic_rotate %1 by %c6_i32 dim 1 : vector<8x128xf32>, i32 -> vector<8x128xf32>
    %48 = vector.extract_strided_slice %0 {offsets = [9, 0, 0], sizes = [1, 1, 128], strides = [1, 1, 1]} : vector<25x1x128xf32> to vector<1x1x128xf32>
    %49 = vector.shape_cast %48 : vector<1x1x128xf32> to vector<1x128xf32>
    %50 = vector.broadcast %49 : vector<1x128xf32> to vector<8x128xf32>
    %51 = arith.mulf %47, %50 : vector<8x128xf32>
    %c2_i32 = arith.constant 2 : i32
    %52 = tpu.dynamic_rotate %1 by %c2_i32 dim 1 : vector<8x128xf32>, i32 -> vector<8x128xf32>
    %53 = vector.extract_strided_slice %0 {offsets = [10, 0, 0], sizes = [1, 1, 128], strides = [1, 1, 1]} : vector<25x1x128xf32> to vector<1x1x128xf32>
    %54 = vector.shape_cast %53 : vector<1x1x128xf32> to vector<1x128xf32>
    %55 = vector.broadcast %54 : vector<1x128xf32> to vector<8x128xf32>
    %56 = arith.mulf %52, %55 : vector<8x128xf32>
    %c1_i32 = arith.constant 1 : i32
    %57 = tpu.dynamic_rotate %1 by %c1_i32 dim 1 : vector<8x128xf32>, i32 -> vector<8x128xf32>
    %58 = vector.extract_strided_slice %0 {offsets = [11, 0, 0], sizes = [1, 1, 128], strides = [1, 1, 1]} : vector<25x1x128xf32> to vector<1x1x128xf32>
    %59 = vector.shape_cast %58 : vector<1x1x128xf32> to vector<1x128xf32>
    %60 = vector.broadcast %59 : vector<1x128xf32> to vector<8x128xf32>
    %61 = arith.mulf %57, %60 : vector<8x128xf32>
    %62 = vector.extract_strided_slice %0 {offsets = [12, 0, 0], sizes = [1, 1, 128], strides = [1, 1, 1]} : vector<25x1x128xf32> to vector<1x1x128xf32>
    %63 = vector.shape_cast %62 : vector<1x1x128xf32> to vector<1x128xf32>
    %64 = vector.broadcast %63 : vector<1x128xf32> to vector<8x128xf32>
    %65 = arith.mulf %1, %64 : vector<8x128xf32>
    %c127_i32 = arith.constant 127 : i32
    %66 = tpu.dynamic_rotate %1 by %c127_i32 dim 1 : vector<8x128xf32>, i32 -> vector<8x128xf32>
    %67 = vector.extract_strided_slice %0 {offsets = [13, 0, 0], sizes = [1, 1, 128], strides = [1, 1, 1]} : vector<25x1x128xf32> to vector<1x1x128xf32>
    %68 = vector.shape_cast %67 : vector<1x1x128xf32> to vector<1x128xf32>
    %69 = vector.broadcast %68 : vector<1x128xf32> to vector<8x128xf32>
    %70 = arith.mulf %66, %69 : vector<8x128xf32>
    %c126_i32 = arith.constant 126 : i32
    %71 = tpu.dynamic_rotate %1 by %c126_i32 dim 1 : vector<8x128xf32>, i32 -> vector<8x128xf32>
    %72 = vector.extract_strided_slice %0 {offsets = [14, 0, 0], sizes = [1, 1, 128], strides = [1, 1, 1]} : vector<25x1x128xf32> to vector<1x1x128xf32>
    %73 = vector.shape_cast %72 : vector<1x1x128xf32> to vector<1x128xf32>
    %74 = vector.broadcast %73 : vector<1x128xf32> to vector<8x128xf32>
    %75 = arith.mulf %71, %74 : vector<8x128xf32>
    %c122_i32 = arith.constant 122 : i32
    %76 = tpu.dynamic_rotate %1 by %c122_i32 dim 1 : vector<8x128xf32>, i32 -> vector<8x128xf32>
    %77 = vector.extract_strided_slice %0 {offsets = [15, 0, 0], sizes = [1, 1, 128], strides = [1, 1, 1]} : vector<25x1x128xf32> to vector<1x1x128xf32>
    %78 = vector.shape_cast %77 : vector<1x1x128xf32> to vector<1x128xf32>
    %79 = vector.broadcast %78 : vector<1x128xf32> to vector<8x128xf32>
    %80 = arith.mulf %76, %79 : vector<8x128xf32>
    %c121_i32 = arith.constant 121 : i32
    %81 = tpu.dynamic_rotate %1 by %c121_i32 dim 1 : vector<8x128xf32>, i32 -> vector<8x128xf32>
    %82 = vector.extract_strided_slice %0 {offsets = [16, 0, 0], sizes = [1, 1, 128], strides = [1, 1, 1]} : vector<25x1x128xf32> to vector<1x1x128xf32>
    %83 = vector.shape_cast %82 : vector<1x1x128xf32> to vector<1x128xf32>
    %84 = vector.broadcast %83 : vector<1x128xf32> to vector<8x128xf32>
    %85 = arith.mulf %81, %84 : vector<8x128xf32>
    %c120_i32 = arith.constant 120 : i32
    %86 = tpu.dynamic_rotate %1 by %c120_i32 dim 1 : vector<8x128xf32>, i32 -> vector<8x128xf32>
    %87 = vector.extract_strided_slice %0 {offsets = [17, 0, 0], sizes = [1, 1, 128], strides = [1, 1, 1]} : vector<25x1x128xf32> to vector<1x1x128xf32>
    %88 = vector.shape_cast %87 : vector<1x1x128xf32> to vector<1x128xf32>
    %89 = vector.broadcast %88 : vector<1x128xf32> to vector<8x128xf32>
    %90 = arith.mulf %86, %89 : vector<8x128xf32>
    %c119_i32 = arith.constant 119 : i32
    %91 = tpu.dynamic_rotate %1 by %c119_i32 dim 1 : vector<8x128xf32>, i32 -> vector<8x128xf32>
    %92 = vector.extract_strided_slice %0 {offsets = [18, 0, 0], sizes = [1, 1, 128], strides = [1, 1, 1]} : vector<25x1x128xf32> to vector<1x1x128xf32>
    %93 = vector.shape_cast %92 : vector<1x1x128xf32> to vector<1x128xf32>
    %94 = vector.broadcast %93 : vector<1x128xf32> to vector<8x128xf32>
    %95 = arith.mulf %91, %94 : vector<8x128xf32>
    %c118_i32 = arith.constant 118 : i32
    %96 = tpu.dynamic_rotate %1 by %c118_i32 dim 1 : vector<8x128xf32>, i32 -> vector<8x128xf32>
    %97 = vector.extract_strided_slice %0 {offsets = [19, 0, 0], sizes = [1, 1, 128], strides = [1, 1, 1]} : vector<25x1x128xf32> to vector<1x1x128xf32>
    %98 = vector.shape_cast %97 : vector<1x1x128xf32> to vector<1x128xf32>
    %99 = vector.broadcast %98 : vector<1x128xf32> to vector<8x128xf32>
    %100 = arith.mulf %96, %99 : vector<8x128xf32>
    %c114_i32 = arith.constant 114 : i32
    %101 = tpu.dynamic_rotate %1 by %c114_i32 dim 1 : vector<8x128xf32>, i32 -> vector<8x128xf32>
    %102 = vector.extract_strided_slice %0 {offsets = [20, 0, 0], sizes = [1, 1, 128], strides = [1, 1, 1]} : vector<25x1x128xf32> to vector<1x1x128xf32>
    %103 = vector.shape_cast %102 : vector<1x1x128xf32> to vector<1x128xf32>
    %104 = vector.broadcast %103 : vector<1x128xf32> to vector<8x128xf32>
    %105 = arith.mulf %101, %104 : vector<8x128xf32>
    %c113_i32 = arith.constant 113 : i32
    %106 = tpu.dynamic_rotate %1 by %c113_i32 dim 1 : vector<8x128xf32>, i32 -> vector<8x128xf32>
    %107 = vector.extract_strided_slice %0 {offsets = [21, 0, 0], sizes = [1, 1, 128], strides = [1, 1, 1]} : vector<25x1x128xf32> to vector<1x1x128xf32>
    %108 = vector.shape_cast %107 : vector<1x1x128xf32> to vector<1x128xf32>
    %109 = vector.broadcast %108 : vector<1x128xf32> to vector<8x128xf32>
    %110 = arith.mulf %106, %109 : vector<8x128xf32>
    %c112_i32 = arith.constant 112 : i32
    %111 = tpu.dynamic_rotate %1 by %c112_i32 dim 1 : vector<8x128xf32>, i32 -> vector<8x128xf32>
    %112 = vector.extract_strided_slice %0 {offsets = [22, 0, 0], sizes = [1, 1, 128], strides = [1, 1, 1]} : vector<25x1x128xf32> to vector<1x1x128xf32>
    %113 = vector.shape_cast %112 : vector<1x1x128xf32> to vector<1x128xf32>
    %114 = vector.broadcast %113 : vector<1x128xf32> to vector<8x128xf32>
    %115 = arith.mulf %111, %114 : vector<8x128xf32>
    %c111_i32 = arith.constant 111 : i32
    %116 = tpu.dynamic_rotate %1 by %c111_i32 dim 1 : vector<8x128xf32>, i32 -> vector<8x128xf32>
    %117 = vector.extract_strided_slice %0 {offsets = [23, 0, 0], sizes = [1, 1, 128], strides = [1, 1, 1]} : vector<25x1x128xf32> to vector<1x1x128xf32>
    %118 = vector.shape_cast %117 : vector<1x1x128xf32> to vector<1x128xf32>
    %119 = vector.broadcast %118 : vector<1x128xf32> to vector<8x128xf32>
    %120 = arith.mulf %116, %119 : vector<8x128xf32>
    %c110_i32 = arith.constant 110 : i32
    %121 = tpu.dynamic_rotate %1 by %c110_i32 dim 1 : vector<8x128xf32>, i32 -> vector<8x128xf32>
    %122 = vector.extract_strided_slice %0 {offsets = [24, 0, 0], sizes = [1, 1, 128], strides = [1, 1, 1]} : vector<25x1x128xf32> to vector<1x1x128xf32>
    %123 = vector.shape_cast %122 : vector<1x1x128xf32> to vector<1x128xf32>
    %124 = vector.broadcast %123 : vector<1x128xf32> to vector<8x128xf32>
    %125 = arith.mulf %121, %124 : vector<8x128xf32>
    %126 = tpu.concatenate %6, %11, %16, %21, %26, %31, %36, %41, %46, %51, %56, %61, %65, %70, %75, %80 in 0 : vector<8x128xf32>, vector<8x128xf32>, vector<8x128xf32>, vector<8x128xf32>, vector<8x128xf32>, vector<8x128xf32>, vector<8x128xf32>, vector<8x128xf32>, vector<8x128xf32>, vector<8x128xf32>, vector<8x128xf32>, vector<8x128xf32>, vector<8x128xf32>, vector<8x128xf32>, vector<8x128xf32>, vector<8x128xf32> -> vector<128x128xf32>
    %127 = tpu.concatenate %85, %90, %95, %100, %105, %110, %115, %120, %125 in 0 : vector<8x128xf32>, vector<8x128xf32>, vector<8x128xf32>, vector<8x128xf32>, vector<8x128xf32>, vector<8x128xf32>, vector<8x128xf32>, vector<8x128xf32>, vector<8x128xf32> -> vector<72x128xf32>
    %128 = tpu.concatenate %126, %127 in 0 : vector<128x128xf32>, vector<72x128xf32> -> vector<200x128xf32>
    %129 = arith.truncf %128 : vector<200x128xf32> to vector<200x128xbf16>
    %c0_4 = arith.constant 0 : index
    %c0_5 = arith.constant 0 : index
    %130 = vector.load %arg4[%c0_4, %c0_5] : memref<16x200xbf16, #tpu.memory_space<vmem>>, vector<16x200xbf16>
    %cst = arith.constant dense<0.000000e+00> : vector<16x128xf32>
    %131 = tpu.matmul %130, %129, %cst {dimension_numbers = #tpu.dot_dimension_numbers<[1], [0], [0], [1], [0, 0, 1, 1], [], []>} : vector<16x200xbf16>, vector<200x128xbf16>, vector<16x128xf32> -> vector<16x128xf32>
    %c0_6 = arith.constant 0 : index
    %c0_7 = arith.constant 0 : index
    %132 = vector.load %arg10[%c0_6, %c0_7] : memref<16x2xf32, #tpu.memory_space<vmem>>, vector<16x2xf32>
    %133 = vector.extract_strided_slice %132 {offsets = [0, 0], sizes = [16, 1], strides = [1, 1]} : vector<16x2xf32> to vector<16x1xf32>
    %134 = vector.extract_strided_slice %132 {offsets = [0, 1], sizes = [16, 1], strides = [1, 1]} : vector<16x2xf32> to vector<16x1xf32>
    %cst_8 = arith.constant dense<0.000000e+00> : vector<16xf32>
    %135 = vector.multi_reduction <add>, %131, %cst_8 [1] : vector<16x128xf32> to vector<16xf32>
    %136 = vector.shape_cast %135 : vector<16xf32> to vector<16x1xf32>
    %cst_9 = arith.constant 1.280000e+02 : f32
    %137 = vector.broadcast %cst_9 : f32 to vector<16x1xf32>
    %138 = arith.divf %136, %137 : vector<16x1xf32>
    %139 = vector.broadcast %138 : vector<16x1xf32> to vector<16x128xf32>
    %140 = arith.subf %131, %139 : vector<16x128xf32>
    %141 = arith.mulf %140, %140 : vector<16x128xf32>
    %cst_10 = arith.constant dense<0.000000e+00> : vector<16xf32>
    %142 = vector.multi_reduction <add>, %141, %cst_10 [1] : vector<16x128xf32> to vector<16xf32>
    %143 = vector.shape_cast %142 : vector<16xf32> to vector<16x1xf32>
    %cst_11 = arith.constant 1.280000e+02 : f32
    %144 = vector.broadcast %cst_11 : f32 to vector<16x1xf32>
    %145 = arith.divf %143, %144 : vector<16x1xf32>
    %cst_12 = arith.constant 9.99999974E-6 : f32
    %146 = vector.broadcast %cst_12 : f32 to vector<16x1xf32>
    %147 = arith.addf %145, %146 : vector<16x1xf32>
    %148 = math.rsqrt %147 : vector<16x1xf32>
    %149 = vector.broadcast %148 : vector<16x1xf32> to vector<16x128xf32>
    %150 = arith.mulf %140, %149 : vector<16x128xf32>
    %151 = vector.broadcast %133 : vector<16x1xf32> to vector<16x128xf32>
    %152 = arith.mulf %150, %151 : vector<16x128xf32>
    %153 = vector.broadcast %134 : vector<16x1xf32> to vector<16x128xf32>
    %154 = arith.addf %152, %153 : vector<16x128xf32>
    %155 = math.tanh %154 : vector<16x128xf32>
    %c18_i32_13 = arith.constant 18 : i32
    %156 = tpu.dynamic_rotate %155 by %c18_i32_13 dim 1 : vector<16x128xf32>, i32 -> vector<16x128xf32>
    %157 = vector.extract_strided_slice %0 {offsets = [0, 0, 0], sizes = [1, 1, 128], strides = [1, 1, 1]} : vector<25x1x128xf32> to vector<1x1x128xf32>
    %158 = vector.shape_cast %157 : vector<1x1x128xf32> to vector<1x128xf32>
    %159 = vector.broadcast %158 : vector<1x128xf32> to vector<16x128xf32>
    %160 = arith.mulf %156, %159 : vector<16x128xf32>
    %c17_i32_14 = arith.constant 17 : i32
    %161 = tpu.dynamic_rotate %155 by %c17_i32_14 dim 1 : vector<16x128xf32>, i32 -> vector<16x128xf32>
    %162 = vector.extract_strided_slice %0 {offsets = [1, 0, 0], sizes = [1, 1, 128], strides = [1, 1, 1]} : vector<25x1x128xf32> to vector<1x1x128xf32>
    %163 = vector.shape_cast %162 : vector<1x1x128xf32> to vector<1x128xf32>
    %164 = vector.broadcast %163 : vector<1x128xf32> to vector<16x128xf32>
    %165 = arith.mulf %161, %164 : vector<16x128xf32>
    %c16_i32_15 = arith.constant 16 : i32
    %166 = tpu.dynamic_rotate %155 by %c16_i32_15 dim 1 : vector<16x128xf32>, i32 -> vector<16x128xf32>
    %167 = vector.extract_strided_slice %0 {offsets = [2, 0, 0], sizes = [1, 1, 128], strides = [1, 1, 1]} : vector<25x1x128xf32> to vector<1x1x128xf32>
    %168 = vector.shape_cast %167 : vector<1x1x128xf32> to vector<1x128xf32>
    %169 = vector.broadcast %168 : vector<1x128xf32> to vector<16x128xf32>
    %170 = arith.mulf %166, %169 : vector<16x128xf32>
    %c15_i32_16 = arith.constant 15 : i32
    %171 = tpu.dynamic_rotate %155 by %c15_i32_16 dim 1 : vector<16x128xf32>, i32 -> vector<16x128xf32>
    %172 = vector.extract_strided_slice %0 {offsets = [3, 0, 0], sizes = [1, 1, 128], strides = [1, 1, 1]} : vector<25x1x128xf32> to vector<1x1x128xf32>
    %173 = vector.shape_cast %172 : vector<1x1x128xf32> to vector<1x128xf32>
    %174 = vector.broadcast %173 : vector<1x128xf32> to vector<16x128xf32>
    %175 = arith.mulf %171, %174 : vector<16x128xf32>
    %c14_i32_17 = arith.constant 14 : i32
    %176 = tpu.dynamic_rotate %155 by %c14_i32_17 dim 1 : vector<16x128xf32>, i32 -> vector<16x128xf32>
    %177 = vector.extract_strided_slice %0 {offsets = [4, 0, 0], sizes = [1, 1, 128], strides = [1, 1, 1]} : vector<25x1x128xf32> to vector<1x1x128xf32>
    %178 = vector.shape_cast %177 : vector<1x1x128xf32> to vector<1x128xf32>
    %179 = vector.broadcast %178 : vector<1x128xf32> to vector<16x128xf32>
    %180 = arith.mulf %176, %179 : vector<16x128xf32>
    %c10_i32_18 = arith.constant 10 : i32
    %181 = tpu.dynamic_rotate %155 by %c10_i32_18 dim 1 : vector<16x128xf32>, i32 -> vector<16x128xf32>
    %182 = vector.extract_strided_slice %0 {offsets = [5, 0, 0], sizes = [1, 1, 128], strides = [1, 1, 1]} : vector<25x1x128xf32> to vector<1x1x128xf32>
    %183 = vector.shape_cast %182 : vector<1x1x128xf32> to vector<1x128xf32>
    %184 = vector.broadcast %183 : vector<1x128xf32> to vector<16x128xf32>
    %185 = arith.mulf %181, %184 : vector<16x128xf32>
    %c9_i32_19 = arith.constant 9 : i32
    %186 = tpu.dynamic_rotate %155 by %c9_i32_19 dim 1 : vector<16x128xf32>, i32 -> vector<16x128xf32>
    %187 = vector.extract_strided_slice %0 {offsets = [6, 0, 0], sizes = [1, 1, 128], strides = [1, 1, 1]} : vector<25x1x128xf32> to vector<1x1x128xf32>
    %188 = vector.shape_cast %187 : vector<1x1x128xf32> to vector<1x128xf32>
    %189 = vector.broadcast %188 : vector<1x128xf32> to vector<16x128xf32>
    %190 = arith.mulf %186, %189 : vector<16x128xf32>
    %c8_i32_20 = arith.constant 8 : i32
    %191 = tpu.dynamic_rotate %155 by %c8_i32_20 dim 1 : vector<16x128xf32>, i32 -> vector<16x128xf32>
    %192 = vector.extract_strided_slice %0 {offsets = [7, 0, 0], sizes = [1, 1, 128], strides = [1, 1, 1]} : vector<25x1x128xf32> to vector<1x1x128xf32>
    %193 = vector.shape_cast %192 : vector<1x1x128xf32> to vector<1x128xf32>
    %194 = vector.broadcast %193 : vector<1x128xf32> to vector<16x128xf32>
    %195 = arith.mulf %191, %194 : vector<16x128xf32>
    %c7_i32_21 = arith.constant 7 : i32
    %196 = tpu.dynamic_rotate %155 by %c7_i32_21 dim 1 : vector<16x128xf32>, i32 -> vector<16x128xf32>
    %197 = vector.extract_strided_slice %0 {offsets = [8, 0, 0], sizes = [1, 1, 128], strides = [1, 1, 1]} : vector<25x1x128xf32> to vector<1x1x128xf32>
    %198 = vector.shape_cast %197 : vector<1x1x128xf32> to vector<1x128xf32>
    %199 = vector.broadcast %198 : vector<1x128xf32> to vector<16x128xf32>
    %200 = arith.mulf %196, %199 : vector<16x128xf32>
    %c6_i32_22 = arith.constant 6 : i32
    %201 = tpu.dynamic_rotate %155 by %c6_i32_22 dim 1 : vector<16x128xf32>, i32 -> vector<16x128xf32>
    %202 = vector.extract_strided_slice %0 {offsets = [9, 0, 0], sizes = [1, 1, 128], strides = [1, 1, 1]} : vector<25x1x128xf32> to vector<1x1x128xf32>
    %203 = vector.shape_cast %202 : vector<1x1x128xf32> to vector<1x128xf32>
    %204 = vector.broadcast %203 : vector<1x128xf32> to vector<16x128xf32>
    %205 = arith.mulf %201, %204 : vector<16x128xf32>
    %c2_i32_23 = arith.constant 2 : i32
    %206 = tpu.dynamic_rotate %155 by %c2_i32_23 dim 1 : vector<16x128xf32>, i32 -> vector<16x128xf32>
    %207 = vector.extract_strided_slice %0 {offsets = [10, 0, 0], sizes = [1, 1, 128], strides = [1, 1, 1]} : vector<25x1x128xf32> to vector<1x1x128xf32>
    %208 = vector.shape_cast %207 : vector<1x1x128xf32> to vector<1x128xf32>
    %209 = vector.broadcast %208 : vector<1x128xf32> to vector<16x128xf32>
    %210 = arith.mulf %206, %209 : vector<16x128xf32>
    %c1_i32_24 = arith.constant 1 : i32
    %211 = tpu.dynamic_rotate %155 by %c1_i32_24 dim 1 : vector<16x128xf32>, i32 -> vector<16x128xf32>
    %212 = vector.extract_strided_slice %0 {offsets = [11, 0, 0], sizes = [1, 1, 128], strides = [1, 1, 1]} : vector<25x1x128xf32> to vector<1x1x128xf32>
    %213 = vector.shape_cast %212 : vector<1x1x128xf32> to vector<1x128xf32>
    %214 = vector.broadcast %213 : vector<1x128xf32> to vector<16x128xf32>
    %215 = arith.mulf %211, %214 : vector<16x128xf32>
    %216 = vector.extract_strided_slice %0 {offsets = [12, 0, 0], sizes = [1, 1, 128], strides = [1, 1, 1]} : vector<25x1x128xf32> to vector<1x1x128xf32>
    %217 = vector.shape_cast %216 : vector<1x1x128xf32> to vector<1x128xf32>
    %218 = vector.broadcast %217 : vector<1x128xf32> to vector<16x128xf32>
    %219 = arith.mulf %155, %218 : vector<16x128xf32>
    %c127_i32_25 = arith.constant 127 : i32
    %220 = tpu.dynamic_rotate %155 by %c127_i32_25 dim 1 : vector<16x128xf32>, i32 -> vector<16x128xf32>
    %221 = vector.extract_strided_slice %0 {offsets = [13, 0, 0], sizes = [1, 1, 128], strides = [1, 1, 1]} : vector<25x1x128xf32> to vector<1x1x128xf32>
    %222 = vector.shape_cast %221 : vector<1x1x128xf32> to vector<1x128xf32>
    %223 = vector.broadcast %222 : vector<1x128xf32> to vector<16x128xf32>
    %224 = arith.mulf %220, %223 : vector<16x128xf32>
    %c126_i32_26 = arith.constant 126 : i32
    %225 = tpu.dynamic_rotate %155 by %c126_i32_26 dim 1 : vector<16x128xf32>, i32 -> vector<16x128xf32>
    %226 = vector.extract_strided_slice %0 {offsets = [14, 0, 0], sizes = [1, 1, 128], strides = [1, 1, 1]} : vector<25x1x128xf32> to vector<1x1x128xf32>
    %227 = vector.shape_cast %226 : vector<1x1x128xf32> to vector<1x128xf32>
    %228 = vector.broadcast %227 : vector<1x128xf32> to vector<16x128xf32>
    %229 = arith.mulf %225, %228 : vector<16x128xf32>
    %c122_i32_27 = arith.constant 122 : i32
    %230 = tpu.dynamic_rotate %155 by %c122_i32_27 dim 1 : vector<16x128xf32>, i32 -> vector<16x128xf32>
    %231 = vector.extract_strided_slice %0 {offsets = [15, 0, 0], sizes = [1, 1, 128], strides = [1, 1, 1]} : vector<25x1x128xf32> to vector<1x1x128xf32>
    %232 = vector.shape_cast %231 : vector<1x1x128xf32> to vector<1x128xf32>
    %233 = vector.broadcast %232 : vector<1x128xf32> to vector<16x128xf32>
    %234 = arith.mulf %230, %233 : vector<16x128xf32>
    %c121_i32_28 = arith.constant 121 : i32
    %235 = tpu.dynamic_rotate %155 by %c121_i32_28 dim 1 : vector<16x128xf32>, i32 -> vector<16x128xf32>
    %236 = vector.extract_strided_slice %0 {offsets = [16, 0, 0], sizes = [1, 1, 128], strides = [1, 1, 1]} : vector<25x1x128xf32> to vector<1x1x128xf32>
    %237 = vector.shape_cast %236 : vector<1x1x128xf32> to vector<1x128xf32>
    %238 = vector.broadcast %237 : vector<1x128xf32> to vector<16x128xf32>
    %239 = arith.mulf %235, %238 : vector<16x128xf32>
    %c120_i32_29 = arith.constant 120 : i32
    %240 = tpu.dynamic_rotate %155 by %c120_i32_29 dim 1 : vector<16x128xf32>, i32 -> vector<16x128xf32>
    %241 = vector.extract_strided_slice %0 {offsets = [17, 0, 0], sizes = [1, 1, 128], strides = [1, 1, 1]} : vector<25x1x128xf32> to vector<1x1x128xf32>
    %242 = vector.shape_cast %241 : vector<1x1x128xf32> to vector<1x128xf32>
    %243 = vector.broadcast %242 : vector<1x128xf32> to vector<16x128xf32>
    %244 = arith.mulf %240, %243 : vector<16x128xf32>
    %c119_i32_30 = arith.constant 119 : i32
    %245 = tpu.dynamic_rotate %155 by %c119_i32_30 dim 1 : vector<16x128xf32>, i32 -> vector<16x128xf32>
    %246 = vector.extract_strided_slice %0 {offsets = [18, 0, 0], sizes = [1, 1, 128], strides = [1, 1, 1]} : vector<25x1x128xf32> to vector<1x1x128xf32>
    %247 = vector.shape_cast %246 : vector<1x1x128xf32> to vector<1x128xf32>
    %248 = vector.broadcast %247 : vector<1x128xf32> to vector<16x128xf32>
    %249 = arith.mulf %245, %248 : vector<16x128xf32>
    %c118_i32_31 = arith.constant 118 : i32
    %250 = tpu.dynamic_rotate %155 by %c118_i32_31 dim 1 : vector<16x128xf32>, i32 -> vector<16x128xf32>
    %251 = vector.extract_strided_slice %0 {offsets = [19, 0, 0], sizes = [1, 1, 128], strides = [1, 1, 1]} : vector<25x1x128xf32> to vector<1x1x128xf32>
    %252 = vector.shape_cast %251 : vector<1x1x128xf32> to vector<1x128xf32>
    %253 = vector.broadcast %252 : vector<1x128xf32> to vector<16x128xf32>
    %254 = arith.mulf %250, %253 : vector<16x128xf32>
    %c114_i32_32 = arith.constant 114 : i32
    %255 = tpu.dynamic_rotate %155 by %c114_i32_32 dim 1 : vector<16x128xf32>, i32 -> vector<16x128xf32>
    %256 = vector.extract_strided_slice %0 {offsets = [20, 0, 0], sizes = [1, 1, 128], strides = [1, 1, 1]} : vector<25x1x128xf32> to vector<1x1x128xf32>
    %257 = vector.shape_cast %256 : vector<1x1x128xf32> to vector<1x128xf32>
    %258 = vector.broadcast %257 : vector<1x128xf32> to vector<16x128xf32>
    %259 = arith.mulf %255, %258 : vector<16x128xf32>
    %c113_i32_33 = arith.constant 113 : i32
    %260 = tpu.dynamic_rotate %155 by %c113_i32_33 dim 1 : vector<16x128xf32>, i32 -> vector<16x128xf32>
    %261 = vector.extract_strided_slice %0 {offsets = [21, 0, 0], sizes = [1, 1, 128], strides = [1, 1, 1]} : vector<25x1x128xf32> to vector<1x1x128xf32>
    %262 = vector.shape_cast %261 : vector<1x1x128xf32> to vector<1x128xf32>
    %263 = vector.broadcast %262 : vector<1x128xf32> to vector<16x128xf32>
    %264 = arith.mulf %260, %263 : vector<16x128xf32>
    %c112_i32_34 = arith.constant 112 : i32
    %265 = tpu.dynamic_rotate %155 by %c112_i32_34 dim 1 : vector<16x128xf32>, i32 -> vector<16x128xf32>
    %266 = vector.extract_strided_slice %0 {offsets = [22, 0, 0], sizes = [1, 1, 128], strides = [1, 1, 1]} : vector<25x1x128xf32> to vector<1x1x128xf32>
    %267 = vector.shape_cast %266 : vector<1x1x128xf32> to vector<1x128xf32>
    %268 = vector.broadcast %267 : vector<1x128xf32> to vector<16x128xf32>
    %269 = arith.mulf %265, %268 : vector<16x128xf32>
    %c111_i32_35 = arith.constant 111 : i32
    %270 = tpu.dynamic_rotate %155 by %c111_i32_35 dim 1 : vector<16x128xf32>, i32 -> vector<16x128xf32>
    %271 = vector.extract_strided_slice %0 {offsets = [23, 0, 0], sizes = [1, 1, 128], strides = [1, 1, 1]} : vector<25x1x128xf32> to vector<1x1x128xf32>
    %272 = vector.shape_cast %271 : vector<1x1x128xf32> to vector<1x128xf32>
    %273 = vector.broadcast %272 : vector<1x128xf32> to vector<16x128xf32>
    %274 = arith.mulf %270, %273 : vector<16x128xf32>
    %c110_i32_36 = arith.constant 110 : i32
    %275 = tpu.dynamic_rotate %155 by %c110_i32_36 dim 1 : vector<16x128xf32>, i32 -> vector<16x128xf32>
    %276 = vector.extract_strided_slice %0 {offsets = [24, 0, 0], sizes = [1, 1, 128], strides = [1, 1, 1]} : vector<25x1x128xf32> to vector<1x1x128xf32>
    %277 = vector.shape_cast %276 : vector<1x1x128xf32> to vector<1x128xf32>
    %278 = vector.broadcast %277 : vector<1x128xf32> to vector<16x128xf32>
    %279 = arith.mulf %275, %278 : vector<16x128xf32>
    %280 = tpu.concatenate %160, %165, %170, %175, %180, %185, %190, %195, %200, %205, %210, %215, %219, %224, %229, %234 in 0 : vector<16x128xf32>, vector<16x128xf32>, vector<16x128xf32>, vector<16x128xf32>, vector<16x128xf32>, vector<16x128xf32>, vector<16x128xf32>, vector<16x128xf32>, vector<16x128xf32>, vector<16x128xf32>, vector<16x128xf32>, vector<16x128xf32>, vector<16x128xf32>, vector<16x128xf32>, vector<16x128xf32>, vector<16x128xf32> -> vector<256x128xf32>
    %281 = tpu.concatenate %239, %244, %249, %254, %259, %264, %269, %274, %279 in 0 : vector<16x128xf32>, vector<16x128xf32>, vector<16x128xf32>, vector<16x128xf32>, vector<16x128xf32>, vector<16x128xf32>, vector<16x128xf32>, vector<16x128xf32>, vector<16x128xf32> -> vector<144x128xf32>
    %282 = tpu.concatenate %280, %281 in 0 : vector<256x128xf32>, vector<144x128xf32> -> vector<400x128xf32>
    %283 = arith.truncf %282 : vector<400x128xf32> to vector<400x128xbf16>
    %c0_37 = arith.constant 0 : index
    %c0_38 = arith.constant 0 : index
    %284 = vector.load %arg5[%c0_37, %c0_38] : memref<32x400xbf16, #tpu.memory_space<vmem>>, vector<32x400xbf16>
    %cst_39 = arith.constant dense<0.000000e+00> : vector<32x128xf32>
    %285 = tpu.matmul %284, %283, %cst_39 {dimension_numbers = #tpu.dot_dimension_numbers<[1], [0], [0], [1], [0, 0, 1, 1], [], []>} : vector<32x400xbf16>, vector<400x128xbf16>, vector<32x128xf32> -> vector<32x128xf32>
    %c0_40 = arith.constant 0 : index
    %c0_41 = arith.constant 0 : index
    %286 = vector.load %arg11[%c0_40, %c0_41] : memref<32x2xf32, #tpu.memory_space<vmem>>, vector<32x2xf32>
    %287 = vector.extract_strided_slice %286 {offsets = [0, 0], sizes = [32, 1], strides = [1, 1]} : vector<32x2xf32> to vector<32x1xf32>
    %288 = vector.extract_strided_slice %286 {offsets = [0, 1], sizes = [32, 1], strides = [1, 1]} : vector<32x2xf32> to vector<32x1xf32>
    %cst_42 = arith.constant dense<0.000000e+00> : vector<32xf32>
    %289 = vector.multi_reduction <add>, %285, %cst_42 [1] : vector<32x128xf32> to vector<32xf32>
    %290 = vector.shape_cast %289 : vector<32xf32> to vector<32x1xf32>
    %cst_43 = arith.constant 1.280000e+02 : f32
    %291 = vector.broadcast %cst_43 : f32 to vector<32x1xf32>
    %292 = arith.divf %290, %291 : vector<32x1xf32>
    %293 = vector.broadcast %292 : vector<32x1xf32> to vector<32x128xf32>
    %294 = arith.subf %285, %293 : vector<32x128xf32>
    %295 = arith.mulf %294, %294 : vector<32x128xf32>
    %cst_44 = arith.constant dense<0.000000e+00> : vector<32xf32>
    %296 = vector.multi_reduction <add>, %295, %cst_44 [1] : vector<32x128xf32> to vector<32xf32>
    %297 = vector.shape_cast %296 : vector<32xf32> to vector<32x1xf32>
    %cst_45 = arith.constant 1.280000e+02 : f32
    %298 = vector.broadcast %cst_45 : f32 to vector<32x1xf32>
    %299 = arith.divf %297, %298 : vector<32x1xf32>
    %cst_46 = arith.constant 9.99999974E-6 : f32
    %300 = vector.broadcast %cst_46 : f32 to vector<32x1xf32>
    %301 = arith.addf %299, %300 : vector<32x1xf32>
    %302 = math.rsqrt %301 : vector<32x1xf32>
    %303 = vector.broadcast %302 : vector<32x1xf32> to vector<32x128xf32>
    %304 = arith.mulf %294, %303 : vector<32x128xf32>
    %305 = vector.broadcast %287 : vector<32x1xf32> to vector<32x128xf32>
    %306 = arith.mulf %304, %305 : vector<32x128xf32>
    %307 = vector.broadcast %288 : vector<32x1xf32> to vector<32x128xf32>
    %308 = arith.addf %306, %307 : vector<32x128xf32>
    %309 = math.tanh %308 : vector<32x128xf32>
    %c18_i32_47 = arith.constant 18 : i32
    %310 = tpu.dynamic_rotate %309 by %c18_i32_47 dim 1 : vector<32x128xf32>, i32 -> vector<32x128xf32>
    %311 = vector.extract_strided_slice %0 {offsets = [0, 0, 0], sizes = [1, 1, 128], strides = [1, 1, 1]} : vector<25x1x128xf32> to vector<1x1x128xf32>
    %312 = vector.shape_cast %311 : vector<1x1x128xf32> to vector<1x128xf32>
    %313 = vector.broadcast %312 : vector<1x128xf32> to vector<32x128xf32>
    %314 = arith.mulf %310, %313 : vector<32x128xf32>
    %c17_i32_48 = arith.constant 17 : i32
    %315 = tpu.dynamic_rotate %309 by %c17_i32_48 dim 1 : vector<32x128xf32>, i32 -> vector<32x128xf32>
    %316 = vector.extract_strided_slice %0 {offsets = [1, 0, 0], sizes = [1, 1, 128], strides = [1, 1, 1]} : vector<25x1x128xf32> to vector<1x1x128xf32>
    %317 = vector.shape_cast %316 : vector<1x1x128xf32> to vector<1x128xf32>
    %318 = vector.broadcast %317 : vector<1x128xf32> to vector<32x128xf32>
    %319 = arith.mulf %315, %318 : vector<32x128xf32>
    %c16_i32_49 = arith.constant 16 : i32
    %320 = tpu.dynamic_rotate %309 by %c16_i32_49 dim 1 : vector<32x128xf32>, i32 -> vector<32x128xf32>
    %321 = vector.extract_strided_slice %0 {offsets = [2, 0, 0], sizes = [1, 1, 128], strides = [1, 1, 1]} : vector<25x1x128xf32> to vector<1x1x128xf32>
    %322 = vector.shape_cast %321 : vector<1x1x128xf32> to vector<1x128xf32>
    %323 = vector.broadcast %322 : vector<1x128xf32> to vector<32x128xf32>
    %324 = arith.mulf %320, %323 : vector<32x128xf32>
    %c15_i32_50 = arith.constant 15 : i32
    %325 = tpu.dynamic_rotate %309 by %c15_i32_50 dim 1 : vector<32x128xf32>, i32 -> vector<32x128xf32>
    %326 = vector.extract_strided_slice %0 {offsets = [3, 0, 0], sizes = [1, 1, 128], strides = [1, 1, 1]} : vector<25x1x128xf32> to vector<1x1x128xf32>
    %327 = vector.shape_cast %326 : vector<1x1x128xf32> to vector<1x128xf32>
    %328 = vector.broadcast %327 : vector<1x128xf32> to vector<32x128xf32>
    %329 = arith.mulf %325, %328 : vector<32x128xf32>
    %c14_i32_51 = arith.constant 14 : i32
    %330 = tpu.dynamic_rotate %309 by %c14_i32_51 dim 1 : vector<32x128xf32>, i32 -> vector<32x128xf32>
    %331 = vector.extract_strided_slice %0 {offsets = [4, 0, 0], sizes = [1, 1, 128], strides = [1, 1, 1]} : vector<25x1x128xf32> to vector<1x1x128xf32>
    %332 = vector.shape_cast %331 : vector<1x1x128xf32> to vector<1x128xf32>
    %333 = vector.broadcast %332 : vector<1x128xf32> to vector<32x128xf32>
    %334 = arith.mulf %330, %333 : vector<32x128xf32>
    %c10_i32_52 = arith.constant 10 : i32
    %335 = tpu.dynamic_rotate %309 by %c10_i32_52 dim 1 : vector<32x128xf32>, i32 -> vector<32x128xf32>
    %336 = vector.extract_strided_slice %0 {offsets = [5, 0, 0], sizes = [1, 1, 128], strides = [1, 1, 1]} : vector<25x1x128xf32> to vector<1x1x128xf32>
    %337 = vector.shape_cast %336 : vector<1x1x128xf32> to vector<1x128xf32>
    %338 = vector.broadcast %337 : vector<1x128xf32> to vector<32x128xf32>
    %339 = arith.mulf %335, %338 : vector<32x128xf32>
    %c9_i32_53 = arith.constant 9 : i32
    %340 = tpu.dynamic_rotate %309 by %c9_i32_53 dim 1 : vector<32x128xf32>, i32 -> vector<32x128xf32>
    %341 = vector.extract_strided_slice %0 {offsets = [6, 0, 0], sizes = [1, 1, 128], strides = [1, 1, 1]} : vector<25x1x128xf32> to vector<1x1x128xf32>
    %342 = vector.shape_cast %341 : vector<1x1x128xf32> to vector<1x128xf32>
    %343 = vector.broadcast %342 : vector<1x128xf32> to vector<32x128xf32>
    %344 = arith.mulf %340, %343 : vector<32x128xf32>
    %c8_i32_54 = arith.constant 8 : i32
    %345 = tpu.dynamic_rotate %309 by %c8_i32_54 dim 1 : vector<32x128xf32>, i32 -> vector<32x128xf32>
    %346 = vector.extract_strided_slice %0 {offsets = [7, 0, 0], sizes = [1, 1, 128], strides = [1, 1, 1]} : vector<25x1x128xf32> to vector<1x1x128xf32>
    %347 = vector.shape_cast %346 : vector<1x1x128xf32> to vector<1x128xf32>
    %348 = vector.broadcast %347 : vector<1x128xf32> to vector<32x128xf32>
    %349 = arith.mulf %345, %348 : vector<32x128xf32>
    %c7_i32_55 = arith.constant 7 : i32
    %350 = tpu.dynamic_rotate %309 by %c7_i32_55 dim 1 : vector<32x128xf32>, i32 -> vector<32x128xf32>
    %351 = vector.extract_strided_slice %0 {offsets = [8, 0, 0], sizes = [1, 1, 128], strides = [1, 1, 1]} : vector<25x1x128xf32> to vector<1x1x128xf32>
    %352 = vector.shape_cast %351 : vector<1x1x128xf32> to vector<1x128xf32>
    %353 = vector.broadcast %352 : vector<1x128xf32> to vector<32x128xf32>
    %354 = arith.mulf %350, %353 : vector<32x128xf32>
    %c6_i32_56 = arith.constant 6 : i32
    %355 = tpu.dynamic_rotate %309 by %c6_i32_56 dim 1 : vector<32x128xf32>, i32 -> vector<32x128xf32>
    %356 = vector.extract_strided_slice %0 {offsets = [9, 0, 0], sizes = [1, 1, 128], strides = [1, 1, 1]} : vector<25x1x128xf32> to vector<1x1x128xf32>
    %357 = vector.shape_cast %356 : vector<1x1x128xf32> to vector<1x128xf32>
    %358 = vector.broadcast %357 : vector<1x128xf32> to vector<32x128xf32>
    %359 = arith.mulf %355, %358 : vector<32x128xf32>
    %c2_i32_57 = arith.constant 2 : i32
    %360 = tpu.dynamic_rotate %309 by %c2_i32_57 dim 1 : vector<32x128xf32>, i32 -> vector<32x128xf32>
    %361 = vector.extract_strided_slice %0 {offsets = [10, 0, 0], sizes = [1, 1, 128], strides = [1, 1, 1]} : vector<25x1x128xf32> to vector<1x1x128xf32>
    %362 = vector.shape_cast %361 : vector<1x1x128xf32> to vector<1x128xf32>
    %363 = vector.broadcast %362 : vector<1x128xf32> to vector<32x128xf32>
    %364 = arith.mulf %360, %363 : vector<32x128xf32>
    %c1_i32_58 = arith.constant 1 : i32
    %365 = tpu.dynamic_rotate %309 by %c1_i32_58 dim 1 : vector<32x128xf32>, i32 -> vector<32x128xf32>
    %366 = vector.extract_strided_slice %0 {offsets = [11, 0, 0], sizes = [1, 1, 128], strides = [1, 1, 1]} : vector<25x1x128xf32> to vector<1x1x128xf32>
    %367 = vector.shape_cast %366 : vector<1x1x128xf32> to vector<1x128xf32>
    %368 = vector.broadcast %367 : vector<1x128xf32> to vector<32x128xf32>
    %369 = arith.mulf %365, %368 : vector<32x128xf32>
    %370 = vector.extract_strided_slice %0 {offsets = [12, 0, 0], sizes = [1, 1, 128], strides = [1, 1, 1]} : vector<25x1x128xf32> to vector<1x1x128xf32>
    %371 = vector.shape_cast %370 : vector<1x1x128xf32> to vector<1x128xf32>
    %372 = vector.broadcast %371 : vector<1x128xf32> to vector<32x128xf32>
    %373 = arith.mulf %309, %372 : vector<32x128xf32>
    %c127_i32_59 = arith.constant 127 : i32
    %374 = tpu.dynamic_rotate %309 by %c127_i32_59 dim 1 : vector<32x128xf32>, i32 -> vector<32x128xf32>
    %375 = vector.extract_strided_slice %0 {offsets = [13, 0, 0], sizes = [1, 1, 128], strides = [1, 1, 1]} : vector<25x1x128xf32> to vector<1x1x128xf32>
    %376 = vector.shape_cast %375 : vector<1x1x128xf32> to vector<1x128xf32>
    %377 = vector.broadcast %376 : vector<1x128xf32> to vector<32x128xf32>
    %378 = arith.mulf %374, %377 : vector<32x128xf32>
    %c126_i32_60 = arith.constant 126 : i32
    %379 = tpu.dynamic_rotate %309 by %c126_i32_60 dim 1 : vector<32x128xf32>, i32 -> vector<32x128xf32>
    %380 = vector.extract_strided_slice %0 {offsets = [14, 0, 0], sizes = [1, 1, 128], strides = [1, 1, 1]} : vector<25x1x128xf32> to vector<1x1x128xf32>
    %381 = vector.shape_cast %380 : vector<1x1x128xf32> to vector<1x128xf32>
    %382 = vector.broadcast %381 : vector<1x128xf32> to vector<32x128xf32>
    %383 = arith.mulf %379, %382 : vector<32x128xf32>
    %c122_i32_61 = arith.constant 122 : i32
    %384 = tpu.dynamic_rotate %309 by %c122_i32_61 dim 1 : vector<32x128xf32>, i32 -> vector<32x128xf32>
    %385 = vector.extract_strided_slice %0 {offsets = [15, 0, 0], sizes = [1, 1, 128], strides = [1, 1, 1]} : vector<25x1x128xf32> to vector<1x1x128xf32>
    %386 = vector.shape_cast %385 : vector<1x1x128xf32> to vector<1x128xf32>
    %387 = vector.broadcast %386 : vector<1x128xf32> to vector<32x128xf32>
    %388 = arith.mulf %384, %387 : vector<32x128xf32>
    %c121_i32_62 = arith.constant 121 : i32
    %389 = tpu.dynamic_rotate %309 by %c121_i32_62 dim 1 : vector<32x128xf32>, i32 -> vector<32x128xf32>
    %390 = vector.extract_strided_slice %0 {offsets = [16, 0, 0], sizes = [1, 1, 128], strides = [1, 1, 1]} : vector<25x1x128xf32> to vector<1x1x128xf32>
    %391 = vector.shape_cast %390 : vector<1x1x128xf32> to vector<1x128xf32>
    %392 = vector.broadcast %391 : vector<1x128xf32> to vector<32x128xf32>
    %393 = arith.mulf %389, %392 : vector<32x128xf32>
    %c120_i32_63 = arith.constant 120 : i32
    %394 = tpu.dynamic_rotate %309 by %c120_i32_63 dim 1 : vector<32x128xf32>, i32 -> vector<32x128xf32>
    %395 = vector.extract_strided_slice %0 {offsets = [17, 0, 0], sizes = [1, 1, 128], strides = [1, 1, 1]} : vector<25x1x128xf32> to vector<1x1x128xf32>
    %396 = vector.shape_cast %395 : vector<1x1x128xf32> to vector<1x128xf32>
    %397 = vector.broadcast %396 : vector<1x128xf32> to vector<32x128xf32>
    %398 = arith.mulf %394, %397 : vector<32x128xf32>
    %c119_i32_64 = arith.constant 119 : i32
    %399 = tpu.dynamic_rotate %309 by %c119_i32_64 dim 1 : vector<32x128xf32>, i32 -> vector<32x128xf32>
    %400 = vector.extract_strided_slice %0 {offsets = [18, 0, 0], sizes = [1, 1, 128], strides = [1, 1, 1]} : vector<25x1x128xf32> to vector<1x1x128xf32>
    %401 = vector.shape_cast %400 : vector<1x1x128xf32> to vector<1x128xf32>
    %402 = vector.broadcast %401 : vector<1x128xf32> to vector<32x128xf32>
    %403 = arith.mulf %399, %402 : vector<32x128xf32>
    %c118_i32_65 = arith.constant 118 : i32
    %404 = tpu.dynamic_rotate %309 by %c118_i32_65 dim 1 : vector<32x128xf32>, i32 -> vector<32x128xf32>
    %405 = vector.extract_strided_slice %0 {offsets = [19, 0, 0], sizes = [1, 1, 128], strides = [1, 1, 1]} : vector<25x1x128xf32> to vector<1x1x128xf32>
    %406 = vector.shape_cast %405 : vector<1x1x128xf32> to vector<1x128xf32>
    %407 = vector.broadcast %406 : vector<1x128xf32> to vector<32x128xf32>
    %408 = arith.mulf %404, %407 : vector<32x128xf32>
    %c114_i32_66 = arith.constant 114 : i32
    %409 = tpu.dynamic_rotate %309 by %c114_i32_66 dim 1 : vector<32x128xf32>, i32 -> vector<32x128xf32>
    %410 = vector.extract_strided_slice %0 {offsets = [20, 0, 0], sizes = [1, 1, 128], strides = [1, 1, 1]} : vector<25x1x128xf32> to vector<1x1x128xf32>
    %411 = vector.shape_cast %410 : vector<1x1x128xf32> to vector<1x128xf32>
    %412 = vector.broadcast %411 : vector<1x128xf32> to vector<32x128xf32>
    %413 = arith.mulf %409, %412 : vector<32x128xf32>
    %c113_i32_67 = arith.constant 113 : i32
    %414 = tpu.dynamic_rotate %309 by %c113_i32_67 dim 1 : vector<32x128xf32>, i32 -> vector<32x128xf32>
    %415 = vector.extract_strided_slice %0 {offsets = [21, 0, 0], sizes = [1, 1, 128], strides = [1, 1, 1]} : vector<25x1x128xf32> to vector<1x1x128xf32>
    %416 = vector.shape_cast %415 : vector<1x1x128xf32> to vector<1x128xf32>
    %417 = vector.broadcast %416 : vector<1x128xf32> to vector<32x128xf32>
    %418 = arith.mulf %414, %417 : vector<32x128xf32>
    %c112_i32_68 = arith.constant 112 : i32
    %419 = tpu.dynamic_rotate %309 by %c112_i32_68 dim 1 : vector<32x128xf32>, i32 -> vector<32x128xf32>
    %420 = vector.extract_strided_slice %0 {offsets = [22, 0, 0], sizes = [1, 1, 128], strides = [1, 1, 1]} : vector<25x1x128xf32> to vector<1x1x128xf32>
    %421 = vector.shape_cast %420 : vector<1x1x128xf32> to vector<1x128xf32>
    %422 = vector.broadcast %421 : vector<1x128xf32> to vector<32x128xf32>
    %423 = arith.mulf %419, %422 : vector<32x128xf32>
    %c111_i32_69 = arith.constant 111 : i32
    %424 = tpu.dynamic_rotate %309 by %c111_i32_69 dim 1 : vector<32x128xf32>, i32 -> vector<32x128xf32>
    %425 = vector.extract_strided_slice %0 {offsets = [23, 0, 0], sizes = [1, 1, 128], strides = [1, 1, 1]} : vector<25x1x128xf32> to vector<1x1x128xf32>
    %426 = vector.shape_cast %425 : vector<1x1x128xf32> to vector<1x128xf32>
    %427 = vector.broadcast %426 : vector<1x128xf32> to vector<32x128xf32>
    %428 = arith.mulf %424, %427 : vector<32x128xf32>
    %c110_i32_70 = arith.constant 110 : i32
    %429 = tpu.dynamic_rotate %309 by %c110_i32_70 dim 1 : vector<32x128xf32>, i32 -> vector<32x128xf32>
    %430 = vector.extract_strided_slice %0 {offsets = [24, 0, 0], sizes = [1, 1, 128], strides = [1, 1, 1]} : vector<25x1x128xf32> to vector<1x1x128xf32>
    %431 = vector.shape_cast %430 : vector<1x1x128xf32> to vector<1x128xf32>
    %432 = vector.broadcast %431 : vector<1x128xf32> to vector<32x128xf32>
    %433 = arith.mulf %429, %432 : vector<32x128xf32>
    %434 = tpu.concatenate %314, %319, %324, %329, %334, %339, %344, %349, %354, %359, %364, %369, %373, %378, %383, %388 in 0 : vector<32x128xf32>, vector<32x128xf32>, vector<32x128xf32>, vector<32x128xf32>, vector<32x128xf32>, vector<32x128xf32>, vector<32x128xf32>, vector<32x128xf32>, vector<32x128xf32>, vector<32x128xf32>, vector<32x128xf32>, vector<32x128xf32>, vector<32x128xf32>, vector<32x128xf32>, vector<32x128xf32>, vector<32x128xf32> -> vector<512x128xf32>
    %435 = tpu.concatenate %393, %398, %403, %408, %413, %418, %423, %428, %433 in 0 : vector<32x128xf32>, vector<32x128xf32>, vector<32x128xf32>, vector<32x128xf32>, vector<32x128xf32>, vector<32x128xf32>, vector<32x128xf32>, vector<32x128xf32>, vector<32x128xf32> -> vector<288x128xf32>
    %436 = tpu.concatenate %434, %435 in 0 : vector<512x128xf32>, vector<288x128xf32> -> vector<800x128xf32>
    %437 = arith.truncf %436 : vector<800x128xf32> to vector<800x128xbf16>
    %c0_71 = arith.constant 0 : index
    %c0_72 = arith.constant 0 : index
    %438 = vector.load %arg6[%c0_71, %c0_72] : memref<32x800xbf16, #tpu.memory_space<vmem>>, vector<32x800xbf16>
    %cst_73 = arith.constant dense<0.000000e+00> : vector<32x128xf32>
    %439 = tpu.matmul %438, %437, %cst_73 {dimension_numbers = #tpu.dot_dimension_numbers<[1], [0], [0], [1], [0, 0, 1, 1], [], []>} : vector<32x800xbf16>, vector<800x128xbf16>, vector<32x128xf32> -> vector<32x128xf32>
    %c0_74 = arith.constant 0 : index
    %c0_75 = arith.constant 0 : index
    %440 = vector.load %arg12[%c0_74, %c0_75] : memref<32x2xf32, #tpu.memory_space<vmem>>, vector<32x2xf32>
    %441 = vector.extract_strided_slice %440 {offsets = [0, 0], sizes = [32, 1], strides = [1, 1]} : vector<32x2xf32> to vector<32x1xf32>
    %442 = vector.extract_strided_slice %440 {offsets = [0, 1], sizes = [32, 1], strides = [1, 1]} : vector<32x2xf32> to vector<32x1xf32>
    %cst_76 = arith.constant dense<0.000000e+00> : vector<32xf32>
    %443 = vector.multi_reduction <add>, %439, %cst_76 [1] : vector<32x128xf32> to vector<32xf32>
    %444 = vector.shape_cast %443 : vector<32xf32> to vector<32x1xf32>
    %cst_77 = arith.constant 1.280000e+02 : f32
    %445 = vector.broadcast %cst_77 : f32 to vector<32x1xf32>
    %446 = arith.divf %444, %445 : vector<32x1xf32>
    %447 = vector.broadcast %446 : vector<32x1xf32> to vector<32x128xf32>
    %448 = arith.subf %439, %447 : vector<32x128xf32>
    %449 = arith.mulf %448, %448 : vector<32x128xf32>
    %cst_78 = arith.constant dense<0.000000e+00> : vector<32xf32>
    %450 = vector.multi_reduction <add>, %449, %cst_78 [1] : vector<32x128xf32> to vector<32xf32>
    %451 = vector.shape_cast %450 : vector<32xf32> to vector<32x1xf32>
    %cst_79 = arith.constant 1.280000e+02 : f32
    %452 = vector.broadcast %cst_79 : f32 to vector<32x1xf32>
    %453 = arith.divf %451, %452 : vector<32x1xf32>
    %cst_80 = arith.constant 9.99999974E-6 : f32
    %454 = vector.broadcast %cst_80 : f32 to vector<32x1xf32>
    %455 = arith.addf %453, %454 : vector<32x1xf32>
    %456 = math.rsqrt %455 : vector<32x1xf32>
    %457 = vector.broadcast %456 : vector<32x1xf32> to vector<32x128xf32>
    %458 = arith.mulf %448, %457 : vector<32x128xf32>
    %459 = vector.broadcast %441 : vector<32x1xf32> to vector<32x128xf32>
    %460 = arith.mulf %458, %459 : vector<32x128xf32>
    %461 = vector.broadcast %442 : vector<32x1xf32> to vector<32x128xf32>
    %462 = arith.addf %460, %461 : vector<32x128xf32>
    %463 = math.tanh %462 : vector<32x128xf32>
    %c18_i32_81 = arith.constant 18 : i32
    %464 = tpu.dynamic_rotate %463 by %c18_i32_81 dim 1 : vector<32x128xf32>, i32 -> vector<32x128xf32>
    %465 = vector.extract_strided_slice %0 {offsets = [0, 0, 0], sizes = [1, 1, 128], strides = [1, 1, 1]} : vector<25x1x128xf32> to vector<1x1x128xf32>
    %466 = vector.shape_cast %465 : vector<1x1x128xf32> to vector<1x128xf32>
    %467 = vector.broadcast %466 : vector<1x128xf32> to vector<32x128xf32>
    %468 = arith.mulf %464, %467 : vector<32x128xf32>
    %c17_i32_82 = arith.constant 17 : i32
    %469 = tpu.dynamic_rotate %463 by %c17_i32_82 dim 1 : vector<32x128xf32>, i32 -> vector<32x128xf32>
    %470 = vector.extract_strided_slice %0 {offsets = [1, 0, 0], sizes = [1, 1, 128], strides = [1, 1, 1]} : vector<25x1x128xf32> to vector<1x1x128xf32>
    %471 = vector.shape_cast %470 : vector<1x1x128xf32> to vector<1x128xf32>
    %472 = vector.broadcast %471 : vector<1x128xf32> to vector<32x128xf32>
    %473 = arith.mulf %469, %472 : vector<32x128xf32>
    %c16_i32_83 = arith.constant 16 : i32
    %474 = tpu.dynamic_rotate %463 by %c16_i32_83 dim 1 : vector<32x128xf32>, i32 -> vector<32x128xf32>
    %475 = vector.extract_strided_slice %0 {offsets = [2, 0, 0], sizes = [1, 1, 128], strides = [1, 1, 1]} : vector<25x1x128xf32> to vector<1x1x128xf32>
    %476 = vector.shape_cast %475 : vector<1x1x128xf32> to vector<1x128xf32>
    %477 = vector.broadcast %476 : vector<1x128xf32> to vector<32x128xf32>
    %478 = arith.mulf %474, %477 : vector<32x128xf32>
    %c15_i32_84 = arith.constant 15 : i32
    %479 = tpu.dynamic_rotate %463 by %c15_i32_84 dim 1 : vector<32x128xf32>, i32 -> vector<32x128xf32>
    %480 = vector.extract_strided_slice %0 {offsets = [3, 0, 0], sizes = [1, 1, 128], strides = [1, 1, 1]} : vector<25x1x128xf32> to vector<1x1x128xf32>
    %481 = vector.shape_cast %480 : vector<1x1x128xf32> to vector<1x128xf32>
    %482 = vector.broadcast %481 : vector<1x128xf32> to vector<32x128xf32>
    %483 = arith.mulf %479, %482 : vector<32x128xf32>
    %c14_i32_85 = arith.constant 14 : i32
    %484 = tpu.dynamic_rotate %463 by %c14_i32_85 dim 1 : vector<32x128xf32>, i32 -> vector<32x128xf32>
    %485 = vector.extract_strided_slice %0 {offsets = [4, 0, 0], sizes = [1, 1, 128], strides = [1, 1, 1]} : vector<25x1x128xf32> to vector<1x1x128xf32>
    %486 = vector.shape_cast %485 : vector<1x1x128xf32> to vector<1x128xf32>
    %487 = vector.broadcast %486 : vector<1x128xf32> to vector<32x128xf32>
    %488 = arith.mulf %484, %487 : vector<32x128xf32>
    %c10_i32_86 = arith.constant 10 : i32
    %489 = tpu.dynamic_rotate %463 by %c10_i32_86 dim 1 : vector<32x128xf32>, i32 -> vector<32x128xf32>
    %490 = vector.extract_strided_slice %0 {offsets = [5, 0, 0], sizes = [1, 1, 128], strides = [1, 1, 1]} : vector<25x1x128xf32> to vector<1x1x128xf32>
    %491 = vector.shape_cast %490 : vector<1x1x128xf32> to vector<1x128xf32>
    %492 = vector.broadcast %491 : vector<1x128xf32> to vector<32x128xf32>
    %493 = arith.mulf %489, %492 : vector<32x128xf32>
    %c9_i32_87 = arith.constant 9 : i32
    %494 = tpu.dynamic_rotate %463 by %c9_i32_87 dim 1 : vector<32x128xf32>, i32 -> vector<32x128xf32>
    %495 = vector.extract_strided_slice %0 {offsets = [6, 0, 0], sizes = [1, 1, 128], strides = [1, 1, 1]} : vector<25x1x128xf32> to vector<1x1x128xf32>
    %496 = vector.shape_cast %495 : vector<1x1x128xf32> to vector<1x128xf32>
    %497 = vector.broadcast %496 : vector<1x128xf32> to vector<32x128xf32>
    %498 = arith.mulf %494, %497 : vector<32x128xf32>
    %c8_i32_88 = arith.constant 8 : i32
    %499 = tpu.dynamic_rotate %463 by %c8_i32_88 dim 1 : vector<32x128xf32>, i32 -> vector<32x128xf32>
    %500 = vector.extract_strided_slice %0 {offsets = [7, 0, 0], sizes = [1, 1, 128], strides = [1, 1, 1]} : vector<25x1x128xf32> to vector<1x1x128xf32>
    %501 = vector.shape_cast %500 : vector<1x1x128xf32> to vector<1x128xf32>
    %502 = vector.broadcast %501 : vector<1x128xf32> to vector<32x128xf32>
    %503 = arith.mulf %499, %502 : vector<32x128xf32>
    %c7_i32_89 = arith.constant 7 : i32
    %504 = tpu.dynamic_rotate %463 by %c7_i32_89 dim 1 : vector<32x128xf32>, i32 -> vector<32x128xf32>
    %505 = vector.extract_strided_slice %0 {offsets = [8, 0, 0], sizes = [1, 1, 128], strides = [1, 1, 1]} : vector<25x1x128xf32> to vector<1x1x128xf32>
    %506 = vector.shape_cast %505 : vector<1x1x128xf32> to vector<1x128xf32>
    %507 = vector.broadcast %506 : vector<1x128xf32> to vector<32x128xf32>
    %508 = arith.mulf %504, %507 : vector<32x128xf32>
    %c6_i32_90 = arith.constant 6 : i32
    %509 = tpu.dynamic_rotate %463 by %c6_i32_90 dim 1 : vector<32x128xf32>, i32 -> vector<32x128xf32>
    %510 = vector.extract_strided_slice %0 {offsets = [9, 0, 0], sizes = [1, 1, 128], strides = [1, 1, 1]} : vector<25x1x128xf32> to vector<1x1x128xf32>
    %511 = vector.shape_cast %510 : vector<1x1x128xf32> to vector<1x128xf32>
    %512 = vector.broadcast %511 : vector<1x128xf32> to vector<32x128xf32>
    %513 = arith.mulf %509, %512 : vector<32x128xf32>
    %c2_i32_91 = arith.constant 2 : i32
    %514 = tpu.dynamic_rotate %463 by %c2_i32_91 dim 1 : vector<32x128xf32>, i32 -> vector<32x128xf32>
    %515 = vector.extract_strided_slice %0 {offsets = [10, 0, 0], sizes = [1, 1, 128], strides = [1, 1, 1]} : vector<25x1x128xf32> to vector<1x1x128xf32>
    %516 = vector.shape_cast %515 : vector<1x1x128xf32> to vector<1x128xf32>
    %517 = vector.broadcast %516 : vector<1x128xf32> to vector<32x128xf32>
    %518 = arith.mulf %514, %517 : vector<32x128xf32>
    %c1_i32_92 = arith.constant 1 : i32
    %519 = tpu.dynamic_rotate %463 by %c1_i32_92 dim 1 : vector<32x128xf32>, i32 -> vector<32x128xf32>
    %520 = vector.extract_strided_slice %0 {offsets = [11, 0, 0], sizes = [1, 1, 128], strides = [1, 1, 1]} : vector<25x1x128xf32> to vector<1x1x128xf32>
    %521 = vector.shape_cast %520 : vector<1x1x128xf32> to vector<1x128xf32>
    %522 = vector.broadcast %521 : vector<1x128xf32> to vector<32x128xf32>
    %523 = arith.mulf %519, %522 : vector<32x128xf32>
    %524 = vector.extract_strided_slice %0 {offsets = [12, 0, 0], sizes = [1, 1, 128], strides = [1, 1, 1]} : vector<25x1x128xf32> to vector<1x1x128xf32>
    %525 = vector.shape_cast %524 : vector<1x1x128xf32> to vector<1x128xf32>
    %526 = vector.broadcast %525 : vector<1x128xf32> to vector<32x128xf32>
    %527 = arith.mulf %463, %526 : vector<32x128xf32>
    %c127_i32_93 = arith.constant 127 : i32
    %528 = tpu.dynamic_rotate %463 by %c127_i32_93 dim 1 : vector<32x128xf32>, i32 -> vector<32x128xf32>
    %529 = vector.extract_strided_slice %0 {offsets = [13, 0, 0], sizes = [1, 1, 128], strides = [1, 1, 1]} : vector<25x1x128xf32> to vector<1x1x128xf32>
    %530 = vector.shape_cast %529 : vector<1x1x128xf32> to vector<1x128xf32>
    %531 = vector.broadcast %530 : vector<1x128xf32> to vector<32x128xf32>
    %532 = arith.mulf %528, %531 : vector<32x128xf32>
    %c126_i32_94 = arith.constant 126 : i32
    %533 = tpu.dynamic_rotate %463 by %c126_i32_94 dim 1 : vector<32x128xf32>, i32 -> vector<32x128xf32>
    %534 = vector.extract_strided_slice %0 {offsets = [14, 0, 0], sizes = [1, 1, 128], strides = [1, 1, 1]} : vector<25x1x128xf32> to vector<1x1x128xf32>
    %535 = vector.shape_cast %534 : vector<1x1x128xf32> to vector<1x128xf32>
    %536 = vector.broadcast %535 : vector<1x128xf32> to vector<32x128xf32>
    %537 = arith.mulf %533, %536 : vector<32x128xf32>
    %c122_i32_95 = arith.constant 122 : i32
    %538 = tpu.dynamic_rotate %463 by %c122_i32_95 dim 1 : vector<32x128xf32>, i32 -> vector<32x128xf32>
    %539 = vector.extract_strided_slice %0 {offsets = [15, 0, 0], sizes = [1, 1, 128], strides = [1, 1, 1]} : vector<25x1x128xf32> to vector<1x1x128xf32>
    %540 = vector.shape_cast %539 : vector<1x1x128xf32> to vector<1x128xf32>
    %541 = vector.broadcast %540 : vector<1x128xf32> to vector<32x128xf32>
    %542 = arith.mulf %538, %541 : vector<32x128xf32>
    %c121_i32_96 = arith.constant 121 : i32
    %543 = tpu.dynamic_rotate %463 by %c121_i32_96 dim 1 : vector<32x128xf32>, i32 -> vector<32x128xf32>
    %544 = vector.extract_strided_slice %0 {offsets = [16, 0, 0], sizes = [1, 1, 128], strides = [1, 1, 1]} : vector<25x1x128xf32> to vector<1x1x128xf32>
    %545 = vector.shape_cast %544 : vector<1x1x128xf32> to vector<1x128xf32>
    %546 = vector.broadcast %545 : vector<1x128xf32> to vector<32x128xf32>
    %547 = arith.mulf %543, %546 : vector<32x128xf32>
    %c120_i32_97 = arith.constant 120 : i32
    %548 = tpu.dynamic_rotate %463 by %c120_i32_97 dim 1 : vector<32x128xf32>, i32 -> vector<32x128xf32>
    %549 = vector.extract_strided_slice %0 {offsets = [17, 0, 0], sizes = [1, 1, 128], strides = [1, 1, 1]} : vector<25x1x128xf32> to vector<1x1x128xf32>
    %550 = vector.shape_cast %549 : vector<1x1x128xf32> to vector<1x128xf32>
    %551 = vector.broadcast %550 : vector<1x128xf32> to vector<32x128xf32>
    %552 = arith.mulf %548, %551 : vector<32x128xf32>
    %c119_i32_98 = arith.constant 119 : i32
    %553 = tpu.dynamic_rotate %463 by %c119_i32_98 dim 1 : vector<32x128xf32>, i32 -> vector<32x128xf32>
    %554 = vector.extract_strided_slice %0 {offsets = [18, 0, 0], sizes = [1, 1, 128], strides = [1, 1, 1]} : vector<25x1x128xf32> to vector<1x1x128xf32>
    %555 = vector.shape_cast %554 : vector<1x1x128xf32> to vector<1x128xf32>
    %556 = vector.broadcast %555 : vector<1x128xf32> to vector<32x128xf32>
    %557 = arith.mulf %553, %556 : vector<32x128xf32>
    %c118_i32_99 = arith.constant 118 : i32
    %558 = tpu.dynamic_rotate %463 by %c118_i32_99 dim 1 : vector<32x128xf32>, i32 -> vector<32x128xf32>
    %559 = vector.extract_strided_slice %0 {offsets = [19, 0, 0], sizes = [1, 1, 128], strides = [1, 1, 1]} : vector<25x1x128xf32> to vector<1x1x128xf32>
    %560 = vector.shape_cast %559 : vector<1x1x128xf32> to vector<1x128xf32>
    %561 = vector.broadcast %560 : vector<1x128xf32> to vector<32x128xf32>
    %562 = arith.mulf %558, %561 : vector<32x128xf32>
    %c114_i32_100 = arith.constant 114 : i32
    %563 = tpu.dynamic_rotate %463 by %c114_i32_100 dim 1 : vector<32x128xf32>, i32 -> vector<32x128xf32>
    %564 = vector.extract_strided_slice %0 {offsets = [20, 0, 0], sizes = [1, 1, 128], strides = [1, 1, 1]} : vector<25x1x128xf32> to vector<1x1x128xf32>
    %565 = vector.shape_cast %564 : vector<1x1x128xf32> to vector<1x128xf32>
    %566 = vector.broadcast %565 : vector<1x128xf32> to vector<32x128xf32>
    %567 = arith.mulf %563, %566 : vector<32x128xf32>
    %c113_i32_101 = arith.constant 113 : i32
    %568 = tpu.dynamic_rotate %463 by %c113_i32_101 dim 1 : vector<32x128xf32>, i32 -> vector<32x128xf32>
    %569 = vector.extract_strided_slice %0 {offsets = [21, 0, 0], sizes = [1, 1, 128], strides = [1, 1, 1]} : vector<25x1x128xf32> to vector<1x1x128xf32>
    %570 = vector.shape_cast %569 : vector<1x1x128xf32> to vector<1x128xf32>
    %571 = vector.broadcast %570 : vector<1x128xf32> to vector<32x128xf32>
    %572 = arith.mulf %568, %571 : vector<32x128xf32>
    %c112_i32_102 = arith.constant 112 : i32
    %573 = tpu.dynamic_rotate %463 by %c112_i32_102 dim 1 : vector<32x128xf32>, i32 -> vector<32x128xf32>
    %574 = vector.extract_strided_slice %0 {offsets = [22, 0, 0], sizes = [1, 1, 128], strides = [1, 1, 1]} : vector<25x1x128xf32> to vector<1x1x128xf32>
    %575 = vector.shape_cast %574 : vector<1x1x128xf32> to vector<1x128xf32>
    %576 = vector.broadcast %575 : vector<1x128xf32> to vector<32x128xf32>
    %577 = arith.mulf %573, %576 : vector<32x128xf32>
    %c111_i32_103 = arith.constant 111 : i32
    %578 = tpu.dynamic_rotate %463 by %c111_i32_103 dim 1 : vector<32x128xf32>, i32 -> vector<32x128xf32>
    %579 = vector.extract_strided_slice %0 {offsets = [23, 0, 0], sizes = [1, 1, 128], strides = [1, 1, 1]} : vector<25x1x128xf32> to vector<1x1x128xf32>
    %580 = vector.shape_cast %579 : vector<1x1x128xf32> to vector<1x128xf32>
    %581 = vector.broadcast %580 : vector<1x128xf32> to vector<32x128xf32>
    %582 = arith.mulf %578, %581 : vector<32x128xf32>
    %c110_i32_104 = arith.constant 110 : i32
    %583 = tpu.dynamic_rotate %463 by %c110_i32_104 dim 1 : vector<32x128xf32>, i32 -> vector<32x128xf32>
    %584 = vector.extract_strided_slice %0 {offsets = [24, 0, 0], sizes = [1, 1, 128], strides = [1, 1, 1]} : vector<25x1x128xf32> to vector<1x1x128xf32>
    %585 = vector.shape_cast %584 : vector<1x1x128xf32> to vector<1x128xf32>
    %586 = vector.broadcast %585 : vector<1x128xf32> to vector<32x128xf32>
    %587 = arith.mulf %583, %586 : vector<32x128xf32>
    %588 = tpu.concatenate %468, %473, %478, %483, %488, %493, %498, %503, %508, %513, %518, %523, %527, %532, %537, %542 in 0 : vector<32x128xf32>, vector<32x128xf32>, vector<32x128xf32>, vector<32x128xf32>, vector<32x128xf32>, vector<32x128xf32>, vector<32x128xf32>, vector<32x128xf32>, vector<32x128xf32>, vector<32x128xf32>, vector<32x128xf32>, vector<32x128xf32>, vector<32x128xf32>, vector<32x128xf32>, vector<32x128xf32>, vector<32x128xf32> -> vector<512x128xf32>
    %589 = tpu.concatenate %547, %552, %557, %562, %567, %572, %577, %582, %587 in 0 : vector<32x128xf32>, vector<32x128xf32>, vector<32x128xf32>, vector<32x128xf32>, vector<32x128xf32>, vector<32x128xf32>, vector<32x128xf32>, vector<32x128xf32>, vector<32x128xf32> -> vector<288x128xf32>
    %590 = tpu.concatenate %588, %589 in 0 : vector<512x128xf32>, vector<288x128xf32> -> vector<800x128xf32>
    %591 = arith.truncf %590 : vector<800x128xf32> to vector<800x128xbf16>
    %c0_105 = arith.constant 0 : index
    %c0_106 = arith.constant 0 : index
    %592 = vector.load %arg7[%c0_105, %c0_106] : memref<32x800xbf16, #tpu.memory_space<vmem>>, vector<32x800xbf16>
    %cst_107 = arith.constant dense<0.000000e+00> : vector<32x128xf32>
    %593 = tpu.matmul %592, %591, %cst_107 {dimension_numbers = #tpu.dot_dimension_numbers<[1], [0], [0], [1], [0, 0, 1, 1], [], []>} : vector<32x800xbf16>, vector<800x128xbf16>, vector<32x128xf32> -> vector<32x128xf32>
    %c0_108 = arith.constant 0 : index
    %c0_109 = arith.constant 0 : index
    %594 = vector.load %arg13[%c0_108, %c0_109] : memref<32x2xf32, #tpu.memory_space<vmem>>, vector<32x2xf32>
    %595 = vector.extract_strided_slice %594 {offsets = [0, 0], sizes = [32, 1], strides = [1, 1]} : vector<32x2xf32> to vector<32x1xf32>
    %596 = vector.extract_strided_slice %594 {offsets = [0, 1], sizes = [32, 1], strides = [1, 1]} : vector<32x2xf32> to vector<32x1xf32>
    %cst_110 = arith.constant dense<0.000000e+00> : vector<32xf32>
    %597 = vector.multi_reduction <add>, %593, %cst_110 [1] : vector<32x128xf32> to vector<32xf32>
    %598 = vector.shape_cast %597 : vector<32xf32> to vector<32x1xf32>
    %cst_111 = arith.constant 1.280000e+02 : f32
    %599 = vector.broadcast %cst_111 : f32 to vector<32x1xf32>
    %600 = arith.divf %598, %599 : vector<32x1xf32>
    %601 = vector.broadcast %600 : vector<32x1xf32> to vector<32x128xf32>
    %602 = arith.subf %593, %601 : vector<32x128xf32>
    %603 = arith.mulf %602, %602 : vector<32x128xf32>
    %cst_112 = arith.constant dense<0.000000e+00> : vector<32xf32>
    %604 = vector.multi_reduction <add>, %603, %cst_112 [1] : vector<32x128xf32> to vector<32xf32>
    %605 = vector.shape_cast %604 : vector<32xf32> to vector<32x1xf32>
    %cst_113 = arith.constant 1.280000e+02 : f32
    %606 = vector.broadcast %cst_113 : f32 to vector<32x1xf32>
    %607 = arith.divf %605, %606 : vector<32x1xf32>
    %cst_114 = arith.constant 9.99999974E-6 : f32
    %608 = vector.broadcast %cst_114 : f32 to vector<32x1xf32>
    %609 = arith.addf %607, %608 : vector<32x1xf32>
    %610 = math.rsqrt %609 : vector<32x1xf32>
    %611 = vector.broadcast %610 : vector<32x1xf32> to vector<32x128xf32>
    %612 = arith.mulf %602, %611 : vector<32x128xf32>
    %613 = vector.broadcast %595 : vector<32x1xf32> to vector<32x128xf32>
    %614 = arith.mulf %612, %613 : vector<32x128xf32>
    %615 = vector.broadcast %596 : vector<32x1xf32> to vector<32x128xf32>
    %616 = arith.addf %614, %615 : vector<32x128xf32>
    %617 = math.tanh %616 : vector<32x128xf32>
    %618 = arith.addf %617, %309 : vector<32x128xf32>
    %c18_i32_115 = arith.constant 18 : i32
    %619 = tpu.dynamic_rotate %618 by %c18_i32_115 dim 1 : vector<32x128xf32>, i32 -> vector<32x128xf32>
    %620 = vector.extract_strided_slice %0 {offsets = [0, 0, 0], sizes = [1, 1, 128], strides = [1, 1, 1]} : vector<25x1x128xf32> to vector<1x1x128xf32>
    %621 = vector.shape_cast %620 : vector<1x1x128xf32> to vector<1x128xf32>
    %622 = vector.broadcast %621 : vector<1x128xf32> to vector<32x128xf32>
    %623 = arith.mulf %619, %622 : vector<32x128xf32>
    %c17_i32_116 = arith.constant 17 : i32
    %624 = tpu.dynamic_rotate %618 by %c17_i32_116 dim 1 : vector<32x128xf32>, i32 -> vector<32x128xf32>
    %625 = vector.extract_strided_slice %0 {offsets = [1, 0, 0], sizes = [1, 1, 128], strides = [1, 1, 1]} : vector<25x1x128xf32> to vector<1x1x128xf32>
    %626 = vector.shape_cast %625 : vector<1x1x128xf32> to vector<1x128xf32>
    %627 = vector.broadcast %626 : vector<1x128xf32> to vector<32x128xf32>
    %628 = arith.mulf %624, %627 : vector<32x128xf32>
    %c16_i32_117 = arith.constant 16 : i32
    %629 = tpu.dynamic_rotate %618 by %c16_i32_117 dim 1 : vector<32x128xf32>, i32 -> vector<32x128xf32>
    %630 = vector.extract_strided_slice %0 {offsets = [2, 0, 0], sizes = [1, 1, 128], strides = [1, 1, 1]} : vector<25x1x128xf32> to vector<1x1x128xf32>
    %631 = vector.shape_cast %630 : vector<1x1x128xf32> to vector<1x128xf32>
    %632 = vector.broadcast %631 : vector<1x128xf32> to vector<32x128xf32>
    %633 = arith.mulf %629, %632 : vector<32x128xf32>
    %c15_i32_118 = arith.constant 15 : i32
    %634 = tpu.dynamic_rotate %618 by %c15_i32_118 dim 1 : vector<32x128xf32>, i32 -> vector<32x128xf32>
    %635 = vector.extract_strided_slice %0 {offsets = [3, 0, 0], sizes = [1, 1, 128], strides = [1, 1, 1]} : vector<25x1x128xf32> to vector<1x1x128xf32>
    %636 = vector.shape_cast %635 : vector<1x1x128xf32> to vector<1x128xf32>
    %637 = vector.broadcast %636 : vector<1x128xf32> to vector<32x128xf32>
    %638 = arith.mulf %634, %637 : vector<32x128xf32>
    %c14_i32_119 = arith.constant 14 : i32
    %639 = tpu.dynamic_rotate %618 by %c14_i32_119 dim 1 : vector<32x128xf32>, i32 -> vector<32x128xf32>
    %640 = vector.extract_strided_slice %0 {offsets = [4, 0, 0], sizes = [1, 1, 128], strides = [1, 1, 1]} : vector<25x1x128xf32> to vector<1x1x128xf32>
    %641 = vector.shape_cast %640 : vector<1x1x128xf32> to vector<1x128xf32>
    %642 = vector.broadcast %641 : vector<1x128xf32> to vector<32x128xf32>
    %643 = arith.mulf %639, %642 : vector<32x128xf32>
    %c10_i32_120 = arith.constant 10 : i32
    %644 = tpu.dynamic_rotate %618 by %c10_i32_120 dim 1 : vector<32x128xf32>, i32 -> vector<32x128xf32>
    %645 = vector.extract_strided_slice %0 {offsets = [5, 0, 0], sizes = [1, 1, 128], strides = [1, 1, 1]} : vector<25x1x128xf32> to vector<1x1x128xf32>
    %646 = vector.shape_cast %645 : vector<1x1x128xf32> to vector<1x128xf32>
    %647 = vector.broadcast %646 : vector<1x128xf32> to vector<32x128xf32>
    %648 = arith.mulf %644, %647 : vector<32x128xf32>
    %c9_i32_121 = arith.constant 9 : i32
    %649 = tpu.dynamic_rotate %618 by %c9_i32_121 dim 1 : vector<32x128xf32>, i32 -> vector<32x128xf32>
    %650 = vector.extract_strided_slice %0 {offsets = [6, 0, 0], sizes = [1, 1, 128], strides = [1, 1, 1]} : vector<25x1x128xf32> to vector<1x1x128xf32>
    %651 = vector.shape_cast %650 : vector<1x1x128xf32> to vector<1x128xf32>
    %652 = vector.broadcast %651 : vector<1x128xf32> to vector<32x128xf32>
    %653 = arith.mulf %649, %652 : vector<32x128xf32>
    %c8_i32_122 = arith.constant 8 : i32
    %654 = tpu.dynamic_rotate %618 by %c8_i32_122 dim 1 : vector<32x128xf32>, i32 -> vector<32x128xf32>
    %655 = vector.extract_strided_slice %0 {offsets = [7, 0, 0], sizes = [1, 1, 128], strides = [1, 1, 1]} : vector<25x1x128xf32> to vector<1x1x128xf32>
    %656 = vector.shape_cast %655 : vector<1x1x128xf32> to vector<1x128xf32>
    %657 = vector.broadcast %656 : vector<1x128xf32> to vector<32x128xf32>
    %658 = arith.mulf %654, %657 : vector<32x128xf32>
    %c7_i32_123 = arith.constant 7 : i32
    %659 = tpu.dynamic_rotate %618 by %c7_i32_123 dim 1 : vector<32x128xf32>, i32 -> vector<32x128xf32>
    %660 = vector.extract_strided_slice %0 {offsets = [8, 0, 0], sizes = [1, 1, 128], strides = [1, 1, 1]} : vector<25x1x128xf32> to vector<1x1x128xf32>
    %661 = vector.shape_cast %660 : vector<1x1x128xf32> to vector<1x128xf32>
    %662 = vector.broadcast %661 : vector<1x128xf32> to vector<32x128xf32>
    %663 = arith.mulf %659, %662 : vector<32x128xf32>
    %c6_i32_124 = arith.constant 6 : i32
    %664 = tpu.dynamic_rotate %618 by %c6_i32_124 dim 1 : vector<32x128xf32>, i32 -> vector<32x128xf32>
    %665 = vector.extract_strided_slice %0 {offsets = [9, 0, 0], sizes = [1, 1, 128], strides = [1, 1, 1]} : vector<25x1x128xf32> to vector<1x1x128xf32>
    %666 = vector.shape_cast %665 : vector<1x1x128xf32> to vector<1x128xf32>
    %667 = vector.broadcast %666 : vector<1x128xf32> to vector<32x128xf32>
    %668 = arith.mulf %664, %667 : vector<32x128xf32>
    %c2_i32_125 = arith.constant 2 : i32
    %669 = tpu.dynamic_rotate %618 by %c2_i32_125 dim 1 : vector<32x128xf32>, i32 -> vector<32x128xf32>
    %670 = vector.extract_strided_slice %0 {offsets = [10, 0, 0], sizes = [1, 1, 128], strides = [1, 1, 1]} : vector<25x1x128xf32> to vector<1x1x128xf32>
    %671 = vector.shape_cast %670 : vector<1x1x128xf32> to vector<1x128xf32>
    %672 = vector.broadcast %671 : vector<1x128xf32> to vector<32x128xf32>
    %673 = arith.mulf %669, %672 : vector<32x128xf32>
    %c1_i32_126 = arith.constant 1 : i32
    %674 = tpu.dynamic_rotate %618 by %c1_i32_126 dim 1 : vector<32x128xf32>, i32 -> vector<32x128xf32>
    %675 = vector.extract_strided_slice %0 {offsets = [11, 0, 0], sizes = [1, 1, 128], strides = [1, 1, 1]} : vector<25x1x128xf32> to vector<1x1x128xf32>
    %676 = vector.shape_cast %675 : vector<1x1x128xf32> to vector<1x128xf32>
    %677 = vector.broadcast %676 : vector<1x128xf32> to vector<32x128xf32>
    %678 = arith.mulf %674, %677 : vector<32x128xf32>
    %679 = vector.extract_strided_slice %0 {offsets = [12, 0, 0], sizes = [1, 1, 128], strides = [1, 1, 1]} : vector<25x1x128xf32> to vector<1x1x128xf32>
    %680 = vector.shape_cast %679 : vector<1x1x128xf32> to vector<1x128xf32>
    %681 = vector.broadcast %680 : vector<1x128xf32> to vector<32x128xf32>
    %682 = arith.mulf %618, %681 : vector<32x128xf32>
    %c127_i32_127 = arith.constant 127 : i32
    %683 = tpu.dynamic_rotate %618 by %c127_i32_127 dim 1 : vector<32x128xf32>, i32 -> vector<32x128xf32>
    %684 = vector.extract_strided_slice %0 {offsets = [13, 0, 0], sizes = [1, 1, 128], strides = [1, 1, 1]} : vector<25x1x128xf32> to vector<1x1x128xf32>
    %685 = vector.shape_cast %684 : vector<1x1x128xf32> to vector<1x128xf32>
    %686 = vector.broadcast %685 : vector<1x128xf32> to vector<32x128xf32>
    %687 = arith.mulf %683, %686 : vector<32x128xf32>
    %c126_i32_128 = arith.constant 126 : i32
    %688 = tpu.dynamic_rotate %618 by %c126_i32_128 dim 1 : vector<32x128xf32>, i32 -> vector<32x128xf32>
    %689 = vector.extract_strided_slice %0 {offsets = [14, 0, 0], sizes = [1, 1, 128], strides = [1, 1, 1]} : vector<25x1x128xf32> to vector<1x1x128xf32>
    %690 = vector.shape_cast %689 : vector<1x1x128xf32> to vector<1x128xf32>
    %691 = vector.broadcast %690 : vector<1x128xf32> to vector<32x128xf32>
    %692 = arith.mulf %688, %691 : vector<32x128xf32>
    %c122_i32_129 = arith.constant 122 : i32
    %693 = tpu.dynamic_rotate %618 by %c122_i32_129 dim 1 : vector<32x128xf32>, i32 -> vector<32x128xf32>
    %694 = vector.extract_strided_slice %0 {offsets = [15, 0, 0], sizes = [1, 1, 128], strides = [1, 1, 1]} : vector<25x1x128xf32> to vector<1x1x128xf32>
    %695 = vector.shape_cast %694 : vector<1x1x128xf32> to vector<1x128xf32>
    %696 = vector.broadcast %695 : vector<1x128xf32> to vector<32x128xf32>
    %697 = arith.mulf %693, %696 : vector<32x128xf32>
    %c121_i32_130 = arith.constant 121 : i32
    %698 = tpu.dynamic_rotate %618 by %c121_i32_130 dim 1 : vector<32x128xf32>, i32 -> vector<32x128xf32>
    %699 = vector.extract_strided_slice %0 {offsets = [16, 0, 0], sizes = [1, 1, 128], strides = [1, 1, 1]} : vector<25x1x128xf32> to vector<1x1x128xf32>
    %700 = vector.shape_cast %699 : vector<1x1x128xf32> to vector<1x128xf32>
    %701 = vector.broadcast %700 : vector<1x128xf32> to vector<32x128xf32>
    %702 = arith.mulf %698, %701 : vector<32x128xf32>
    %c120_i32_131 = arith.constant 120 : i32
    %703 = tpu.dynamic_rotate %618 by %c120_i32_131 dim 1 : vector<32x128xf32>, i32 -> vector<32x128xf32>
    %704 = vector.extract_strided_slice %0 {offsets = [17, 0, 0], sizes = [1, 1, 128], strides = [1, 1, 1]} : vector<25x1x128xf32> to vector<1x1x128xf32>
    %705 = vector.shape_cast %704 : vector<1x1x128xf32> to vector<1x128xf32>
    %706 = vector.broadcast %705 : vector<1x128xf32> to vector<32x128xf32>
    %707 = arith.mulf %703, %706 : vector<32x128xf32>
    %c119_i32_132 = arith.constant 119 : i32
    %708 = tpu.dynamic_rotate %618 by %c119_i32_132 dim 1 : vector<32x128xf32>, i32 -> vector<32x128xf32>
    %709 = vector.extract_strided_slice %0 {offsets = [18, 0, 0], sizes = [1, 1, 128], strides = [1, 1, 1]} : vector<25x1x128xf32> to vector<1x1x128xf32>
    %710 = vector.shape_cast %709 : vector<1x1x128xf32> to vector<1x128xf32>
    %711 = vector.broadcast %710 : vector<1x128xf32> to vector<32x128xf32>
    %712 = arith.mulf %708, %711 : vector<32x128xf32>
    %c118_i32_133 = arith.constant 118 : i32
    %713 = tpu.dynamic_rotate %618 by %c118_i32_133 dim 1 : vector<32x128xf32>, i32 -> vector<32x128xf32>
    %714 = vector.extract_strided_slice %0 {offsets = [19, 0, 0], sizes = [1, 1, 128], strides = [1, 1, 1]} : vector<25x1x128xf32> to vector<1x1x128xf32>
    %715 = vector.shape_cast %714 : vector<1x1x128xf32> to vector<1x128xf32>
    %716 = vector.broadcast %715 : vector<1x128xf32> to vector<32x128xf32>
    %717 = arith.mulf %713, %716 : vector<32x128xf32>
    %c114_i32_134 = arith.constant 114 : i32
    %718 = tpu.dynamic_rotate %618 by %c114_i32_134 dim 1 : vector<32x128xf32>, i32 -> vector<32x128xf32>
    %719 = vector.extract_strided_slice %0 {offsets = [20, 0, 0], sizes = [1, 1, 128], strides = [1, 1, 1]} : vector<25x1x128xf32> to vector<1x1x128xf32>
    %720 = vector.shape_cast %719 : vector<1x1x128xf32> to vector<1x128xf32>
    %721 = vector.broadcast %720 : vector<1x128xf32> to vector<32x128xf32>
    %722 = arith.mulf %718, %721 : vector<32x128xf32>
    %c113_i32_135 = arith.constant 113 : i32
    %723 = tpu.dynamic_rotate %618 by %c113_i32_135 dim 1 : vector<32x128xf32>, i32 -> vector<32x128xf32>
    %724 = vector.extract_strided_slice %0 {offsets = [21, 0, 0], sizes = [1, 1, 128], strides = [1, 1, 1]} : vector<25x1x128xf32> to vector<1x1x128xf32>
    %725 = vector.shape_cast %724 : vector<1x1x128xf32> to vector<1x128xf32>
    %726 = vector.broadcast %725 : vector<1x128xf32> to vector<32x128xf32>
    %727 = arith.mulf %723, %726 : vector<32x128xf32>
    %c112_i32_136 = arith.constant 112 : i32
    %728 = tpu.dynamic_rotate %618 by %c112_i32_136 dim 1 : vector<32x128xf32>, i32 -> vector<32x128xf32>
    %729 = vector.extract_strided_slice %0 {offsets = [22, 0, 0], sizes = [1, 1, 128], strides = [1, 1, 1]} : vector<25x1x128xf32> to vector<1x1x128xf32>
    %730 = vector.shape_cast %729 : vector<1x1x128xf32> to vector<1x128xf32>
    %731 = vector.broadcast %730 : vector<1x128xf32> to vector<32x128xf32>
    %732 = arith.mulf %728, %731 : vector<32x128xf32>
    %c111_i32_137 = arith.constant 111 : i32
    %733 = tpu.dynamic_rotate %618 by %c111_i32_137 dim 1 : vector<32x128xf32>, i32 -> vector<32x128xf32>
    %734 = vector.extract_strided_slice %0 {offsets = [23, 0, 0], sizes = [1, 1, 128], strides = [1, 1, 1]} : vector<25x1x128xf32> to vector<1x1x128xf32>
    %735 = vector.shape_cast %734 : vector<1x1x128xf32> to vector<1x128xf32>
    %736 = vector.broadcast %735 : vector<1x128xf32> to vector<32x128xf32>
    %737 = arith.mulf %733, %736 : vector<32x128xf32>
    %c110_i32_138 = arith.constant 110 : i32
    %738 = tpu.dynamic_rotate %618 by %c110_i32_138 dim 1 : vector<32x128xf32>, i32 -> vector<32x128xf32>
    %739 = vector.extract_strided_slice %0 {offsets = [24, 0, 0], sizes = [1, 1, 128], strides = [1, 1, 1]} : vector<25x1x128xf32> to vector<1x1x128xf32>
    %740 = vector.shape_cast %739 : vector<1x1x128xf32> to vector<1x128xf32>
    %741 = vector.broadcast %740 : vector<1x128xf32> to vector<32x128xf32>
    %742 = arith.mulf %738, %741 : vector<32x128xf32>
    %743 = tpu.concatenate %623, %628, %633, %638, %643, %648, %653, %658, %663, %668, %673, %678, %682, %687, %692, %697 in 0 : vector<32x128xf32>, vector<32x128xf32>, vector<32x128xf32>, vector<32x128xf32>, vector<32x128xf32>, vector<32x128xf32>, vector<32x128xf32>, vector<32x128xf32>, vector<32x128xf32>, vector<32x128xf32>, vector<32x128xf32>, vector<32x128xf32>, vector<32x128xf32>, vector<32x128xf32>, vector<32x128xf32>, vector<32x128xf32> -> vector<512x128xf32>
    %744 = tpu.concatenate %702, %707, %712, %717, %722, %727, %732, %737, %742 in 0 : vector<32x128xf32>, vector<32x128xf32>, vector<32x128xf32>, vector<32x128xf32>, vector<32x128xf32>, vector<32x128xf32>, vector<32x128xf32>, vector<32x128xf32>, vector<32x128xf32> -> vector<288x128xf32>
    %745 = tpu.concatenate %743, %744 in 0 : vector<512x128xf32>, vector<288x128xf32> -> vector<800x128xf32>
    %746 = arith.truncf %745 : vector<800x128xf32> to vector<800x128xbf16>
    %c0_139 = arith.constant 0 : index
    %c0_140 = arith.constant 0 : index
    %747 = vector.load %arg6[%c0_139, %c0_140] : memref<32x800xbf16, #tpu.memory_space<vmem>>, vector<32x800xbf16>
    %cst_141 = arith.constant dense<0.000000e+00> : vector<32x128xf32>
    %748 = tpu.matmul %747, %746, %cst_141 {dimension_numbers = #tpu.dot_dimension_numbers<[1], [0], [0], [1], [0, 0, 1, 1], [], []>} : vector<32x800xbf16>, vector<800x128xbf16>, vector<32x128xf32> -> vector<32x128xf32>
    %c0_142 = arith.constant 0 : index
    %c0_143 = arith.constant 0 : index
    %749 = vector.load %arg12[%c0_142, %c0_143] : memref<32x2xf32, #tpu.memory_space<vmem>>, vector<32x2xf32>
    %750 = vector.extract_strided_slice %749 {offsets = [0, 0], sizes = [32, 1], strides = [1, 1]} : vector<32x2xf32> to vector<32x1xf32>
    %751 = vector.extract_strided_slice %749 {offsets = [0, 1], sizes = [32, 1], strides = [1, 1]} : vector<32x2xf32> to vector<32x1xf32>
    %cst_144 = arith.constant dense<0.000000e+00> : vector<32xf32>
    %752 = vector.multi_reduction <add>, %748, %cst_144 [1] : vector<32x128xf32> to vector<32xf32>
    %753 = vector.shape_cast %752 : vector<32xf32> to vector<32x1xf32>
    %cst_145 = arith.constant 1.280000e+02 : f32
    %754 = vector.broadcast %cst_145 : f32 to vector<32x1xf32>
    %755 = arith.divf %753, %754 : vector<32x1xf32>
    %756 = vector.broadcast %755 : vector<32x1xf32> to vector<32x128xf32>
    %757 = arith.subf %748, %756 : vector<32x128xf32>
    %758 = arith.mulf %757, %757 : vector<32x128xf32>
    %cst_146 = arith.constant dense<0.000000e+00> : vector<32xf32>
    %759 = vector.multi_reduction <add>, %758, %cst_146 [1] : vector<32x128xf32> to vector<32xf32>
    %760 = vector.shape_cast %759 : vector<32xf32> to vector<32x1xf32>
    %cst_147 = arith.constant 1.280000e+02 : f32
    %761 = vector.broadcast %cst_147 : f32 to vector<32x1xf32>
    %762 = arith.divf %760, %761 : vector<32x1xf32>
    %cst_148 = arith.constant 9.99999974E-6 : f32
    %763 = vector.broadcast %cst_148 : f32 to vector<32x1xf32>
    %764 = arith.addf %762, %763 : vector<32x1xf32>
    %765 = math.rsqrt %764 : vector<32x1xf32>
    %766 = vector.broadcast %765 : vector<32x1xf32> to vector<32x128xf32>
    %767 = arith.mulf %757, %766 : vector<32x128xf32>
    %768 = vector.broadcast %750 : vector<32x1xf32> to vector<32x128xf32>
    %769 = arith.mulf %767, %768 : vector<32x128xf32>
    %770 = vector.broadcast %751 : vector<32x1xf32> to vector<32x128xf32>
    %771 = arith.addf %769, %770 : vector<32x128xf32>
    %772 = math.tanh %771 : vector<32x128xf32>
    %c18_i32_149 = arith.constant 18 : i32
    %773 = tpu.dynamic_rotate %772 by %c18_i32_149 dim 1 : vector<32x128xf32>, i32 -> vector<32x128xf32>
    %774 = vector.extract_strided_slice %0 {offsets = [0, 0, 0], sizes = [1, 1, 128], strides = [1, 1, 1]} : vector<25x1x128xf32> to vector<1x1x128xf32>
    %775 = vector.shape_cast %774 : vector<1x1x128xf32> to vector<1x128xf32>
    %776 = vector.broadcast %775 : vector<1x128xf32> to vector<32x128xf32>
    %777 = arith.mulf %773, %776 : vector<32x128xf32>
    %c17_i32_150 = arith.constant 17 : i32
    %778 = tpu.dynamic_rotate %772 by %c17_i32_150 dim 1 : vector<32x128xf32>, i32 -> vector<32x128xf32>
    %779 = vector.extract_strided_slice %0 {offsets = [1, 0, 0], sizes = [1, 1, 128], strides = [1, 1, 1]} : vector<25x1x128xf32> to vector<1x1x128xf32>
    %780 = vector.shape_cast %779 : vector<1x1x128xf32> to vector<1x128xf32>
    %781 = vector.broadcast %780 : vector<1x128xf32> to vector<32x128xf32>
    %782 = arith.mulf %778, %781 : vector<32x128xf32>
    %c16_i32_151 = arith.constant 16 : i32
    %783 = tpu.dynamic_rotate %772 by %c16_i32_151 dim 1 : vector<32x128xf32>, i32 -> vector<32x128xf32>
    %784 = vector.extract_strided_slice %0 {offsets = [2, 0, 0], sizes = [1, 1, 128], strides = [1, 1, 1]} : vector<25x1x128xf32> to vector<1x1x128xf32>
    %785 = vector.shape_cast %784 : vector<1x1x128xf32> to vector<1x128xf32>
    %786 = vector.broadcast %785 : vector<1x128xf32> to vector<32x128xf32>
    %787 = arith.mulf %783, %786 : vector<32x128xf32>
    %c15_i32_152 = arith.constant 15 : i32
    %788 = tpu.dynamic_rotate %772 by %c15_i32_152 dim 1 : vector<32x128xf32>, i32 -> vector<32x128xf32>
    %789 = vector.extract_strided_slice %0 {offsets = [3, 0, 0], sizes = [1, 1, 128], strides = [1, 1, 1]} : vector<25x1x128xf32> to vector<1x1x128xf32>
    %790 = vector.shape_cast %789 : vector<1x1x128xf32> to vector<1x128xf32>
    %791 = vector.broadcast %790 : vector<1x128xf32> to vector<32x128xf32>
    %792 = arith.mulf %788, %791 : vector<32x128xf32>
    %c14_i32_153 = arith.constant 14 : i32
    %793 = tpu.dynamic_rotate %772 by %c14_i32_153 dim 1 : vector<32x128xf32>, i32 -> vector<32x128xf32>
    %794 = vector.extract_strided_slice %0 {offsets = [4, 0, 0], sizes = [1, 1, 128], strides = [1, 1, 1]} : vector<25x1x128xf32> to vector<1x1x128xf32>
    %795 = vector.shape_cast %794 : vector<1x1x128xf32> to vector<1x128xf32>
    %796 = vector.broadcast %795 : vector<1x128xf32> to vector<32x128xf32>
    %797 = arith.mulf %793, %796 : vector<32x128xf32>
    %c10_i32_154 = arith.constant 10 : i32
    %798 = tpu.dynamic_rotate %772 by %c10_i32_154 dim 1 : vector<32x128xf32>, i32 -> vector<32x128xf32>
    %799 = vector.extract_strided_slice %0 {offsets = [5, 0, 0], sizes = [1, 1, 128], strides = [1, 1, 1]} : vector<25x1x128xf32> to vector<1x1x128xf32>
    %800 = vector.shape_cast %799 : vector<1x1x128xf32> to vector<1x128xf32>
    %801 = vector.broadcast %800 : vector<1x128xf32> to vector<32x128xf32>
    %802 = arith.mulf %798, %801 : vector<32x128xf32>
    %c9_i32_155 = arith.constant 9 : i32
    %803 = tpu.dynamic_rotate %772 by %c9_i32_155 dim 1 : vector<32x128xf32>, i32 -> vector<32x128xf32>
    %804 = vector.extract_strided_slice %0 {offsets = [6, 0, 0], sizes = [1, 1, 128], strides = [1, 1, 1]} : vector<25x1x128xf32> to vector<1x1x128xf32>
    %805 = vector.shape_cast %804 : vector<1x1x128xf32> to vector<1x128xf32>
    %806 = vector.broadcast %805 : vector<1x128xf32> to vector<32x128xf32>
    %807 = arith.mulf %803, %806 : vector<32x128xf32>
    %c8_i32_156 = arith.constant 8 : i32
    %808 = tpu.dynamic_rotate %772 by %c8_i32_156 dim 1 : vector<32x128xf32>, i32 -> vector<32x128xf32>
    %809 = vector.extract_strided_slice %0 {offsets = [7, 0, 0], sizes = [1, 1, 128], strides = [1, 1, 1]} : vector<25x1x128xf32> to vector<1x1x128xf32>
    %810 = vector.shape_cast %809 : vector<1x1x128xf32> to vector<1x128xf32>
    %811 = vector.broadcast %810 : vector<1x128xf32> to vector<32x128xf32>
    %812 = arith.mulf %808, %811 : vector<32x128xf32>
    %c7_i32_157 = arith.constant 7 : i32
    %813 = tpu.dynamic_rotate %772 by %c7_i32_157 dim 1 : vector<32x128xf32>, i32 -> vector<32x128xf32>
    %814 = vector.extract_strided_slice %0 {offsets = [8, 0, 0], sizes = [1, 1, 128], strides = [1, 1, 1]} : vector<25x1x128xf32> to vector<1x1x128xf32>
    %815 = vector.shape_cast %814 : vector<1x1x128xf32> to vector<1x128xf32>
    %816 = vector.broadcast %815 : vector<1x128xf32> to vector<32x128xf32>
    %817 = arith.mulf %813, %816 : vector<32x128xf32>
    %c6_i32_158 = arith.constant 6 : i32
    %818 = tpu.dynamic_rotate %772 by %c6_i32_158 dim 1 : vector<32x128xf32>, i32 -> vector<32x128xf32>
    %819 = vector.extract_strided_slice %0 {offsets = [9, 0, 0], sizes = [1, 1, 128], strides = [1, 1, 1]} : vector<25x1x128xf32> to vector<1x1x128xf32>
    %820 = vector.shape_cast %819 : vector<1x1x128xf32> to vector<1x128xf32>
    %821 = vector.broadcast %820 : vector<1x128xf32> to vector<32x128xf32>
    %822 = arith.mulf %818, %821 : vector<32x128xf32>
    %c2_i32_159 = arith.constant 2 : i32
    %823 = tpu.dynamic_rotate %772 by %c2_i32_159 dim 1 : vector<32x128xf32>, i32 -> vector<32x128xf32>
    %824 = vector.extract_strided_slice %0 {offsets = [10, 0, 0], sizes = [1, 1, 128], strides = [1, 1, 1]} : vector<25x1x128xf32> to vector<1x1x128xf32>
    %825 = vector.shape_cast %824 : vector<1x1x128xf32> to vector<1x128xf32>
    %826 = vector.broadcast %825 : vector<1x128xf32> to vector<32x128xf32>
    %827 = arith.mulf %823, %826 : vector<32x128xf32>
    %c1_i32_160 = arith.constant 1 : i32
    %828 = tpu.dynamic_rotate %772 by %c1_i32_160 dim 1 : vector<32x128xf32>, i32 -> vector<32x128xf32>
    %829 = vector.extract_strided_slice %0 {offsets = [11, 0, 0], sizes = [1, 1, 128], strides = [1, 1, 1]} : vector<25x1x128xf32> to vector<1x1x128xf32>
    %830 = vector.shape_cast %829 : vector<1x1x128xf32> to vector<1x128xf32>
    %831 = vector.broadcast %830 : vector<1x128xf32> to vector<32x128xf32>
    %832 = arith.mulf %828, %831 : vector<32x128xf32>
    %833 = vector.extract_strided_slice %0 {offsets = [12, 0, 0], sizes = [1, 1, 128], strides = [1, 1, 1]} : vector<25x1x128xf32> to vector<1x1x128xf32>
    %834 = vector.shape_cast %833 : vector<1x1x128xf32> to vector<1x128xf32>
    %835 = vector.broadcast %834 : vector<1x128xf32> to vector<32x128xf32>
    %836 = arith.mulf %772, %835 : vector<32x128xf32>
    %c127_i32_161 = arith.constant 127 : i32
    %837 = tpu.dynamic_rotate %772 by %c127_i32_161 dim 1 : vector<32x128xf32>, i32 -> vector<32x128xf32>
    %838 = vector.extract_strided_slice %0 {offsets = [13, 0, 0], sizes = [1, 1, 128], strides = [1, 1, 1]} : vector<25x1x128xf32> to vector<1x1x128xf32>
    %839 = vector.shape_cast %838 : vector<1x1x128xf32> to vector<1x128xf32>
    %840 = vector.broadcast %839 : vector<1x128xf32> to vector<32x128xf32>
    %841 = arith.mulf %837, %840 : vector<32x128xf32>
    %c126_i32_162 = arith.constant 126 : i32
    %842 = tpu.dynamic_rotate %772 by %c126_i32_162 dim 1 : vector<32x128xf32>, i32 -> vector<32x128xf32>
    %843 = vector.extract_strided_slice %0 {offsets = [14, 0, 0], sizes = [1, 1, 128], strides = [1, 1, 1]} : vector<25x1x128xf32> to vector<1x1x128xf32>
    %844 = vector.shape_cast %843 : vector<1x1x128xf32> to vector<1x128xf32>
    %845 = vector.broadcast %844 : vector<1x128xf32> to vector<32x128xf32>
    %846 = arith.mulf %842, %845 : vector<32x128xf32>
    %c122_i32_163 = arith.constant 122 : i32
    %847 = tpu.dynamic_rotate %772 by %c122_i32_163 dim 1 : vector<32x128xf32>, i32 -> vector<32x128xf32>
    %848 = vector.extract_strided_slice %0 {offsets = [15, 0, 0], sizes = [1, 1, 128], strides = [1, 1, 1]} : vector<25x1x128xf32> to vector<1x1x128xf32>
    %849 = vector.shape_cast %848 : vector<1x1x128xf32> to vector<1x128xf32>
    %850 = vector.broadcast %849 : vector<1x128xf32> to vector<32x128xf32>
    %851 = arith.mulf %847, %850 : vector<32x128xf32>
    %c121_i32_164 = arith.constant 121 : i32
    %852 = tpu.dynamic_rotate %772 by %c121_i32_164 dim 1 : vector<32x128xf32>, i32 -> vector<32x128xf32>
    %853 = vector.extract_strided_slice %0 {offsets = [16, 0, 0], sizes = [1, 1, 128], strides = [1, 1, 1]} : vector<25x1x128xf32> to vector<1x1x128xf32>
    %854 = vector.shape_cast %853 : vector<1x1x128xf32> to vector<1x128xf32>
    %855 = vector.broadcast %854 : vector<1x128xf32> to vector<32x128xf32>
    %856 = arith.mulf %852, %855 : vector<32x128xf32>
    %c120_i32_165 = arith.constant 120 : i32
    %857 = tpu.dynamic_rotate %772 by %c120_i32_165 dim 1 : vector<32x128xf32>, i32 -> vector<32x128xf32>
    %858 = vector.extract_strided_slice %0 {offsets = [17, 0, 0], sizes = [1, 1, 128], strides = [1, 1, 1]} : vector<25x1x128xf32> to vector<1x1x128xf32>
    %859 = vector.shape_cast %858 : vector<1x1x128xf32> to vector<1x128xf32>
    %860 = vector.broadcast %859 : vector<1x128xf32> to vector<32x128xf32>
    %861 = arith.mulf %857, %860 : vector<32x128xf32>
    %c119_i32_166 = arith.constant 119 : i32
    %862 = tpu.dynamic_rotate %772 by %c119_i32_166 dim 1 : vector<32x128xf32>, i32 -> vector<32x128xf32>
    %863 = vector.extract_strided_slice %0 {offsets = [18, 0, 0], sizes = [1, 1, 128], strides = [1, 1, 1]} : vector<25x1x128xf32> to vector<1x1x128xf32>
    %864 = vector.shape_cast %863 : vector<1x1x128xf32> to vector<1x128xf32>
    %865 = vector.broadcast %864 : vector<1x128xf32> to vector<32x128xf32>
    %866 = arith.mulf %862, %865 : vector<32x128xf32>
    %c118_i32_167 = arith.constant 118 : i32
    %867 = tpu.dynamic_rotate %772 by %c118_i32_167 dim 1 : vector<32x128xf32>, i32 -> vector<32x128xf32>
    %868 = vector.extract_strided_slice %0 {offsets = [19, 0, 0], sizes = [1, 1, 128], strides = [1, 1, 1]} : vector<25x1x128xf32> to vector<1x1x128xf32>
    %869 = vector.shape_cast %868 : vector<1x1x128xf32> to vector<1x128xf32>
    %870 = vector.broadcast %869 : vector<1x128xf32> to vector<32x128xf32>
    %871 = arith.mulf %867, %870 : vector<32x128xf32>
    %c114_i32_168 = arith.constant 114 : i32
    %872 = tpu.dynamic_rotate %772 by %c114_i32_168 dim 1 : vector<32x128xf32>, i32 -> vector<32x128xf32>
    %873 = vector.extract_strided_slice %0 {offsets = [20, 0, 0], sizes = [1, 1, 128], strides = [1, 1, 1]} : vector<25x1x128xf32> to vector<1x1x128xf32>
    %874 = vector.shape_cast %873 : vector<1x1x128xf32> to vector<1x128xf32>
    %875 = vector.broadcast %874 : vector<1x128xf32> to vector<32x128xf32>
    %876 = arith.mulf %872, %875 : vector<32x128xf32>
    %c113_i32_169 = arith.constant 113 : i32
    %877 = tpu.dynamic_rotate %772 by %c113_i32_169 dim 1 : vector<32x128xf32>, i32 -> vector<32x128xf32>
    %878 = vector.extract_strided_slice %0 {offsets = [21, 0, 0], sizes = [1, 1, 128], strides = [1, 1, 1]} : vector<25x1x128xf32> to vector<1x1x128xf32>
    %879 = vector.shape_cast %878 : vector<1x1x128xf32> to vector<1x128xf32>
    %880 = vector.broadcast %879 : vector<1x128xf32> to vector<32x128xf32>
    %881 = arith.mulf %877, %880 : vector<32x128xf32>
    %c112_i32_170 = arith.constant 112 : i32
    %882 = tpu.dynamic_rotate %772 by %c112_i32_170 dim 1 : vector<32x128xf32>, i32 -> vector<32x128xf32>
    %883 = vector.extract_strided_slice %0 {offsets = [22, 0, 0], sizes = [1, 1, 128], strides = [1, 1, 1]} : vector<25x1x128xf32> to vector<1x1x128xf32>
    %884 = vector.shape_cast %883 : vector<1x1x128xf32> to vector<1x128xf32>
    %885 = vector.broadcast %884 : vector<1x128xf32> to vector<32x128xf32>
    %886 = arith.mulf %882, %885 : vector<32x128xf32>
    %c111_i32_171 = arith.constant 111 : i32
    %887 = tpu.dynamic_rotate %772 by %c111_i32_171 dim 1 : vector<32x128xf32>, i32 -> vector<32x128xf32>
    %888 = vector.extract_strided_slice %0 {offsets = [23, 0, 0], sizes = [1, 1, 128], strides = [1, 1, 1]} : vector<25x1x128xf32> to vector<1x1x128xf32>
    %889 = vector.shape_cast %888 : vector<1x1x128xf32> to vector<1x128xf32>
    %890 = vector.broadcast %889 : vector<1x128xf32> to vector<32x128xf32>
    %891 = arith.mulf %887, %890 : vector<32x128xf32>
    %c110_i32_172 = arith.constant 110 : i32
    %892 = tpu.dynamic_rotate %772 by %c110_i32_172 dim 1 : vector<32x128xf32>, i32 -> vector<32x128xf32>
    %893 = vector.extract_strided_slice %0 {offsets = [24, 0, 0], sizes = [1, 1, 128], strides = [1, 1, 1]} : vector<25x1x128xf32> to vector<1x1x128xf32>
    %894 = vector.shape_cast %893 : vector<1x1x128xf32> to vector<1x128xf32>
    %895 = vector.broadcast %894 : vector<1x128xf32> to vector<32x128xf32>
    %896 = arith.mulf %892, %895 : vector<32x128xf32>
    %897 = tpu.concatenate %777, %782, %787, %792, %797, %802, %807, %812, %817, %822, %827, %832, %836, %841, %846, %851 in 0 : vector<32x128xf32>, vector<32x128xf32>, vector<32x128xf32>, vector<32x128xf32>, vector<32x128xf32>, vector<32x128xf32>, vector<32x128xf32>, vector<32x128xf32>, vector<32x128xf32>, vector<32x128xf32>, vector<32x128xf32>, vector<32x128xf32>, vector<32x128xf32>, vector<32x128xf32>, vector<32x128xf32>, vector<32x128xf32> -> vector<512x128xf32>
    %898 = tpu.concatenate %856, %861, %866, %871, %876, %881, %886, %891, %896 in 0 : vector<32x128xf32>, vector<32x128xf32>, vector<32x128xf32>, vector<32x128xf32>, vector<32x128xf32>, vector<32x128xf32>, vector<32x128xf32>, vector<32x128xf32>, vector<32x128xf32> -> vector<288x128xf32>
    %899 = tpu.concatenate %897, %898 in 0 : vector<512x128xf32>, vector<288x128xf32> -> vector<800x128xf32>
    %900 = arith.truncf %899 : vector<800x128xf32> to vector<800x128xbf16>
    %c0_173 = arith.constant 0 : index
    %c0_174 = arith.constant 0 : index
    %901 = vector.load %arg7[%c0_173, %c0_174] : memref<32x800xbf16, #tpu.memory_space<vmem>>, vector<32x800xbf16>
    %cst_175 = arith.constant dense<0.000000e+00> : vector<32x128xf32>
    %902 = tpu.matmul %901, %900, %cst_175 {dimension_numbers = #tpu.dot_dimension_numbers<[1], [0], [0], [1], [0, 0, 1, 1], [], []>} : vector<32x800xbf16>, vector<800x128xbf16>, vector<32x128xf32> -> vector<32x128xf32>
    %c0_176 = arith.constant 0 : index
    %c0_177 = arith.constant 0 : index
    %903 = vector.load %arg13[%c0_176, %c0_177] : memref<32x2xf32, #tpu.memory_space<vmem>>, vector<32x2xf32>
    %904 = vector.extract_strided_slice %903 {offsets = [0, 0], sizes = [32, 1], strides = [1, 1]} : vector<32x2xf32> to vector<32x1xf32>
    %905 = vector.extract_strided_slice %903 {offsets = [0, 1], sizes = [32, 1], strides = [1, 1]} : vector<32x2xf32> to vector<32x1xf32>
    %cst_178 = arith.constant dense<0.000000e+00> : vector<32xf32>
    %906 = vector.multi_reduction <add>, %902, %cst_178 [1] : vector<32x128xf32> to vector<32xf32>
    %907 = vector.shape_cast %906 : vector<32xf32> to vector<32x1xf32>
    %cst_179 = arith.constant 1.280000e+02 : f32
    %908 = vector.broadcast %cst_179 : f32 to vector<32x1xf32>
    %909 = arith.divf %907, %908 : vector<32x1xf32>
    %910 = vector.broadcast %909 : vector<32x1xf32> to vector<32x128xf32>
    %911 = arith.subf %902, %910 : vector<32x128xf32>
    %912 = arith.mulf %911, %911 : vector<32x128xf32>
    %cst_180 = arith.constant dense<0.000000e+00> : vector<32xf32>
    %913 = vector.multi_reduction <add>, %912, %cst_180 [1] : vector<32x128xf32> to vector<32xf32>
    %914 = vector.shape_cast %913 : vector<32xf32> to vector<32x1xf32>
    %cst_181 = arith.constant 1.280000e+02 : f32
    %915 = vector.broadcast %cst_181 : f32 to vector<32x1xf32>
    %916 = arith.divf %914, %915 : vector<32x1xf32>
    %cst_182 = arith.constant 9.99999974E-6 : f32
    %917 = vector.broadcast %cst_182 : f32 to vector<32x1xf32>
    %918 = arith.addf %916, %917 : vector<32x1xf32>
    %919 = math.rsqrt %918 : vector<32x1xf32>
    %920 = vector.broadcast %919 : vector<32x1xf32> to vector<32x128xf32>
    %921 = arith.mulf %911, %920 : vector<32x128xf32>
    %922 = vector.broadcast %904 : vector<32x1xf32> to vector<32x128xf32>
    %923 = arith.mulf %921, %922 : vector<32x128xf32>
    %924 = vector.broadcast %905 : vector<32x1xf32> to vector<32x128xf32>
    %925 = arith.addf %923, %924 : vector<32x128xf32>
    %926 = math.tanh %925 : vector<32x128xf32>
    %927 = arith.addf %926, %618 : vector<32x128xf32>
    %c127_i32_183 = arith.constant 127 : i32
    %928 = tpu.dynamic_rotate %927 by %c127_i32_183 dim 1 : vector<32x128xf32>, i32 -> vector<32x128xf32>
    %c126_i32_184 = arith.constant 126 : i32
    %929 = tpu.dynamic_rotate %927 by %c126_i32_184 dim 1 : vector<32x128xf32>, i32 -> vector<32x128xf32>
    %c125_i32 = arith.constant 125 : i32
    %930 = tpu.dynamic_rotate %927 by %c125_i32 dim 1 : vector<32x128xf32>, i32 -> vector<32x128xf32>
    %c124_i32 = arith.constant 124 : i32
    %931 = tpu.dynamic_rotate %927 by %c124_i32 dim 1 : vector<32x128xf32>, i32 -> vector<32x128xf32>
    %c120_i32_185 = arith.constant 120 : i32
    %932 = tpu.dynamic_rotate %927 by %c120_i32_185 dim 1 : vector<32x128xf32>, i32 -> vector<32x128xf32>
    %c119_i32_186 = arith.constant 119 : i32
    %933 = tpu.dynamic_rotate %927 by %c119_i32_186 dim 1 : vector<32x128xf32>, i32 -> vector<32x128xf32>
    %c118_i32_187 = arith.constant 118 : i32
    %934 = tpu.dynamic_rotate %927 by %c118_i32_187 dim 1 : vector<32x128xf32>, i32 -> vector<32x128xf32>
    %c117_i32 = arith.constant 117 : i32
    %935 = tpu.dynamic_rotate %927 by %c117_i32 dim 1 : vector<32x128xf32>, i32 -> vector<32x128xf32>
    %c116_i32 = arith.constant 116 : i32
    %936 = tpu.dynamic_rotate %927 by %c116_i32 dim 1 : vector<32x128xf32>, i32 -> vector<32x128xf32>
    %c112_i32_188 = arith.constant 112 : i32
    %937 = tpu.dynamic_rotate %927 by %c112_i32_188 dim 1 : vector<32x128xf32>, i32 -> vector<32x128xf32>
    %c111_i32_189 = arith.constant 111 : i32
    %938 = tpu.dynamic_rotate %927 by %c111_i32_189 dim 1 : vector<32x128xf32>, i32 -> vector<32x128xf32>
    %c110_i32_190 = arith.constant 110 : i32
    %939 = tpu.dynamic_rotate %927 by %c110_i32_190 dim 1 : vector<32x128xf32>, i32 -> vector<32x128xf32>
    %c109_i32 = arith.constant 109 : i32
    %940 = tpu.dynamic_rotate %927 by %c109_i32 dim 1 : vector<32x128xf32>, i32 -> vector<32x128xf32>
    %c108_i32 = arith.constant 108 : i32
    %941 = tpu.dynamic_rotate %927 by %c108_i32 dim 1 : vector<32x128xf32>, i32 -> vector<32x128xf32>
    %c104_i32 = arith.constant 104 : i32
    %942 = tpu.dynamic_rotate %927 by %c104_i32 dim 1 : vector<32x128xf32>, i32 -> vector<32x128xf32>
    %c103_i32 = arith.constant 103 : i32
    %943 = tpu.dynamic_rotate %927 by %c103_i32 dim 1 : vector<32x128xf32>, i32 -> vector<32x128xf32>
    %c102_i32 = arith.constant 102 : i32
    %944 = tpu.dynamic_rotate %927 by %c102_i32 dim 1 : vector<32x128xf32>, i32 -> vector<32x128xf32>
    %c101_i32 = arith.constant 101 : i32
    %945 = tpu.dynamic_rotate %927 by %c101_i32 dim 1 : vector<32x128xf32>, i32 -> vector<32x128xf32>
    %c100_i32 = arith.constant 100 : i32
    %946 = tpu.dynamic_rotate %927 by %c100_i32 dim 1 : vector<32x128xf32>, i32 -> vector<32x128xf32>
    %c96_i32 = arith.constant 96 : i32
    %947 = tpu.dynamic_rotate %927 by %c96_i32 dim 1 : vector<32x128xf32>, i32 -> vector<32x128xf32>
    %c95_i32 = arith.constant 95 : i32
    %948 = tpu.dynamic_rotate %927 by %c95_i32 dim 1 : vector<32x128xf32>, i32 -> vector<32x128xf32>
    %c94_i32 = arith.constant 94 : i32
    %949 = tpu.dynamic_rotate %927 by %c94_i32 dim 1 : vector<32x128xf32>, i32 -> vector<32x128xf32>
    %c93_i32 = arith.constant 93 : i32
    %950 = tpu.dynamic_rotate %927 by %c93_i32 dim 1 : vector<32x128xf32>, i32 -> vector<32x128xf32>
    %c92_i32 = arith.constant 92 : i32
    %951 = tpu.dynamic_rotate %927 by %c92_i32 dim 1 : vector<32x128xf32>, i32 -> vector<32x128xf32>
    %952 = tpu.concatenate %927, %928, %929, %930, %931, %932, %933, %934, %935, %936, %937, %938, %939, %940, %941, %942 in 0 : vector<32x128xf32>, vector<32x128xf32>, vector<32x128xf32>, vector<32x128xf32>, vector<32x128xf32>, vector<32x128xf32>, vector<32x128xf32>, vector<32x128xf32>, vector<32x128xf32>, vector<32x128xf32>, vector<32x128xf32>, vector<32x128xf32>, vector<32x128xf32>, vector<32x128xf32>, vector<32x128xf32>, vector<32x128xf32> -> vector<512x128xf32>
    %953 = tpu.concatenate %943, %944, %945, %946, %947, %948, %949, %950, %951 in 0 : vector<32x128xf32>, vector<32x128xf32>, vector<32x128xf32>, vector<32x128xf32>, vector<32x128xf32>, vector<32x128xf32>, vector<32x128xf32>, vector<32x128xf32>, vector<32x128xf32> -> vector<288x128xf32>
    %954 = tpu.concatenate %952, %953 in 0 : vector<512x128xf32>, vector<288x128xf32> -> vector<800x128xf32>
    %955 = arith.truncf %954 : vector<800x128xf32> to vector<800x128xbf16>
    %c0_191 = arith.constant 0 : index
    %c0_192 = arith.constant 0 : index
    %956 = vector.load %arg2[%c0_191, %c0_192] : memref<128x32xbf16, #tpu.memory_space<vmem>>, vector<128x32xbf16>
    %cst_193 = arith.constant dense<0.000000e+00> : vector<800x32xf32>
    %957 = tpu.matmul %955, %956, %cst_193 {dimension_numbers = #tpu.dot_dimension_numbers<[1], [0], [0], [1], [0, 0, 1, 1], [], []>} : vector<800x128xbf16>, vector<128x32xbf16>, vector<800x32xf32> -> vector<800x32xf32>
    %c0_194 = arith.constant 0 : index
    %c0_195 = arith.constant 0 : index
    %958 = vector.load %arg8[%c0_194, %c0_195] : memref<64x800xbf16, #tpu.memory_space<vmem>>, vector<64x800xbf16>
    %959 = arith.truncf %957 : vector<800x32xf32> to vector<800x32xbf16>
    %cst_196 = arith.constant dense<0.000000e+00> : vector<64x32xf32>
    %960 = tpu.matmul %958, %959, %cst_196 {dimension_numbers = #tpu.dot_dimension_numbers<[1], [0], [0], [1], [0, 0, 1, 1], [], []>} : vector<64x800xbf16>, vector<800x32xbf16>, vector<64x32xf32> -> vector<64x32xf32>
    %c0_197 = arith.constant 0 : index
    %c0_198 = arith.constant 0 : index
    %961 = vector.load %arg14[%c0_197, %c0_198] : memref<64x2xf32, #tpu.memory_space<vmem>>, vector<64x2xf32>
    %962 = vector.extract_strided_slice %961 {offsets = [0, 0], sizes = [64, 1], strides = [1, 1]} : vector<64x2xf32> to vector<64x1xf32>
    %963 = vector.extract_strided_slice %961 {offsets = [0, 1], sizes = [64, 1], strides = [1, 1]} : vector<64x2xf32> to vector<64x1xf32>
    %cst_199 = arith.constant dense<0.000000e+00> : vector<64xf32>
    %964 = vector.multi_reduction <add>, %960, %cst_199 [1] : vector<64x32xf32> to vector<64xf32>
    %965 = vector.shape_cast %964 : vector<64xf32> to vector<64x1xf32>
    %cst_200 = arith.constant 3.200000e+01 : f32
    %966 = vector.broadcast %cst_200 : f32 to vector<64x1xf32>
    %967 = arith.divf %965, %966 : vector<64x1xf32>
    %968 = vector.broadcast %967 : vector<64x1xf32> to vector<64x32xf32>
    %969 = arith.subf %960, %968 : vector<64x32xf32>
    %970 = arith.mulf %969, %969 : vector<64x32xf32>
    %cst_201 = arith.constant dense<0.000000e+00> : vector<64xf32>
    %971 = vector.multi_reduction <add>, %970, %cst_201 [1] : vector<64x32xf32> to vector<64xf32>
    %972 = vector.shape_cast %971 : vector<64xf32> to vector<64x1xf32>
    %cst_202 = arith.constant 3.200000e+01 : f32
    %973 = vector.broadcast %cst_202 : f32 to vector<64x1xf32>
    %974 = arith.divf %972, %973 : vector<64x1xf32>
    %cst_203 = arith.constant 9.99999974E-6 : f32
    %975 = vector.broadcast %cst_203 : f32 to vector<64x1xf32>
    %976 = arith.addf %974, %975 : vector<64x1xf32>
    %977 = math.rsqrt %976 : vector<64x1xf32>
    %978 = vector.broadcast %977 : vector<64x1xf32> to vector<64x32xf32>
    %979 = arith.mulf %969, %978 : vector<64x32xf32>
    %980 = vector.broadcast %962 : vector<64x1xf32> to vector<64x32xf32>
    %981 = arith.mulf %979, %980 : vector<64x32xf32>
    %982 = vector.broadcast %963 : vector<64x1xf32> to vector<64x32xf32>
    %983 = arith.addf %981, %982 : vector<64x32xf32>
    %984 = math.tanh %983 : vector<64x32xf32>
    %c31_i32 = arith.constant 31 : i32
    %985 = tpu.dynamic_rotate %984 by %c31_i32 dim 1 : vector<64x32xf32>, i32 -> vector<64x32xf32>
    %c30_i32 = arith.constant 30 : i32
    %986 = tpu.dynamic_rotate %984 by %c30_i32 dim 1 : vector<64x32xf32>, i32 -> vector<64x32xf32>
    %c29_i32 = arith.constant 29 : i32
    %987 = tpu.dynamic_rotate %984 by %c29_i32 dim 1 : vector<64x32xf32>, i32 -> vector<64x32xf32>
    %c28_i32 = arith.constant 28 : i32
    %988 = tpu.dynamic_rotate %984 by %c28_i32 dim 1 : vector<64x32xf32>, i32 -> vector<64x32xf32>
    %c27_i32 = arith.constant 27 : i32
    %989 = tpu.dynamic_rotate %984 by %c27_i32 dim 1 : vector<64x32xf32>, i32 -> vector<64x32xf32>
    %c26_i32 = arith.constant 26 : i32
    %990 = tpu.dynamic_rotate %984 by %c26_i32 dim 1 : vector<64x32xf32>, i32 -> vector<64x32xf32>
    %c25_i32 = arith.constant 25 : i32
    %991 = tpu.dynamic_rotate %984 by %c25_i32 dim 1 : vector<64x32xf32>, i32 -> vector<64x32xf32>
    %c24_i32 = arith.constant 24 : i32
    %992 = tpu.dynamic_rotate %984 by %c24_i32 dim 1 : vector<64x32xf32>, i32 -> vector<64x32xf32>
    %c23_i32 = arith.constant 23 : i32
    %993 = tpu.dynamic_rotate %984 by %c23_i32 dim 1 : vector<64x32xf32>, i32 -> vector<64x32xf32>
    %c22_i32 = arith.constant 22 : i32
    %994 = tpu.dynamic_rotate %984 by %c22_i32 dim 1 : vector<64x32xf32>, i32 -> vector<64x32xf32>
    %c21_i32 = arith.constant 21 : i32
    %995 = tpu.dynamic_rotate %984 by %c21_i32 dim 1 : vector<64x32xf32>, i32 -> vector<64x32xf32>
    %c20_i32 = arith.constant 20 : i32
    %996 = tpu.dynamic_rotate %984 by %c20_i32 dim 1 : vector<64x32xf32>, i32 -> vector<64x32xf32>
    %c19_i32 = arith.constant 19 : i32
    %997 = tpu.dynamic_rotate %984 by %c19_i32 dim 1 : vector<64x32xf32>, i32 -> vector<64x32xf32>
    %c18_i32_204 = arith.constant 18 : i32
    %998 = tpu.dynamic_rotate %984 by %c18_i32_204 dim 1 : vector<64x32xf32>, i32 -> vector<64x32xf32>
    %c17_i32_205 = arith.constant 17 : i32
    %999 = tpu.dynamic_rotate %984 by %c17_i32_205 dim 1 : vector<64x32xf32>, i32 -> vector<64x32xf32>
    %1000 = tpu.concatenate %984, %985, %986, %987, %988, %989, %990, %991, %992, %993, %994, %995, %996, %997, %998, %999 in 0 : vector<64x32xf32>, vector<64x32xf32>, vector<64x32xf32>, vector<64x32xf32>, vector<64x32xf32>, vector<64x32xf32>, vector<64x32xf32>, vector<64x32xf32>, vector<64x32xf32>, vector<64x32xf32>, vector<64x32xf32>, vector<64x32xf32>, vector<64x32xf32>, vector<64x32xf32>, vector<64x32xf32>, vector<64x32xf32> -> vector<1024x32xf32>
    %1001 = arith.truncf %1000 : vector<1024x32xf32> to vector<1024x32xbf16>
    %c0_206 = arith.constant 0 : index
    %c0_207 = arith.constant 0 : index
    %1002 = vector.load %arg3[%c0_206, %c0_207] : memref<32x2xbf16, #tpu.memory_space<vmem>>, vector<32x2xbf16>
    %cst_208 = arith.constant dense<0.000000e+00> : vector<1024x2xf32>
    %1003 = tpu.matmul %1001, %1002, %cst_208 {dimension_numbers = #tpu.dot_dimension_numbers<[1], [0], [0], [1], [0, 0, 1, 1], [], []>} : vector<1024x32xbf16>, vector<32x2xbf16>, vector<1024x2xf32> -> vector<1024x2xf32>
    %c0_209 = arith.constant 0 : index
    %c0_210 = arith.constant 0 : index
    %1004 = vector.load %arg9[%c0_209, %c0_210] : memref<256x1024xbf16, #tpu.memory_space<vmem>>, vector<256x1024xbf16>
    %1005 = arith.truncf %1003 : vector<1024x2xf32> to vector<1024x2xbf16>
    %cst_211 = arith.constant dense<0.000000e+00> : vector<256x2xf32>
    %1006 = tpu.matmul %1004, %1005, %cst_211 {dimension_numbers = #tpu.dot_dimension_numbers<[1], [0], [0], [1], [0, 0, 1, 1], [], []>} : vector<256x1024xbf16>, vector<1024x2xbf16>, vector<256x2xf32> -> vector<256x2xf32>
    %c0_212 = arith.constant 0 : index
    %c0_213 = arith.constant 0 : index
    %1007 = vector.load %arg15[%c0_212, %c0_213] : memref<256x2xf32, #tpu.memory_space<vmem>>, vector<256x2xf32>
    %1008 = vector.extract_strided_slice %1007 {offsets = [0, 0], sizes = [256, 1], strides = [1, 1]} : vector<256x2xf32> to vector<256x1xf32>
    %1009 = vector.extract_strided_slice %1007 {offsets = [0, 1], sizes = [256, 1], strides = [1, 1]} : vector<256x2xf32> to vector<256x1xf32>
    %cst_214 = arith.constant dense<0.000000e+00> : vector<256xf32>
    %1010 = vector.multi_reduction <add>, %1006, %cst_214 [1] : vector<256x2xf32> to vector<256xf32>
    %1011 = vector.shape_cast %1010 : vector<256xf32> to vector<256x1xf32>
    %cst_215 = arith.constant 2.000000e+00 : f32
    %1012 = vector.broadcast %cst_215 : f32 to vector<256x1xf32>
    %1013 = arith.divf %1011, %1012 : vector<256x1xf32>
    %1014 = vector.broadcast %1013 : vector<256x1xf32> to vector<256x2xf32>
    %1015 = arith.subf %1006, %1014 : vector<256x2xf32>
    %1016 = arith.mulf %1015, %1015 : vector<256x2xf32>
    %cst_216 = arith.constant dense<0.000000e+00> : vector<256xf32>
    %1017 = vector.multi_reduction <add>, %1016, %cst_216 [1] : vector<256x2xf32> to vector<256xf32>
    %1018 = vector.shape_cast %1017 : vector<256xf32> to vector<256x1xf32>
    %cst_217 = arith.constant 2.000000e+00 : f32
    %1019 = vector.broadcast %cst_217 : f32 to vector<256x1xf32>
    %1020 = arith.divf %1018, %1019 : vector<256x1xf32>
    %cst_218 = arith.constant 9.99999974E-6 : f32
    %1021 = vector.broadcast %cst_218 : f32 to vector<256x1xf32>
    %1022 = arith.addf %1020, %1021 : vector<256x1xf32>
    %1023 = math.rsqrt %1022 : vector<256x1xf32>
    %1024 = vector.broadcast %1023 : vector<256x1xf32> to vector<256x2xf32>
    %1025 = arith.mulf %1015, %1024 : vector<256x2xf32>
    %1026 = vector.broadcast %1008 : vector<256x1xf32> to vector<256x2xf32>
    %1027 = arith.mulf %1025, %1026 : vector<256x2xf32>
    %1028 = vector.broadcast %1009 : vector<256x1xf32> to vector<256x2xf32>
    %1029 = arith.addf %1027, %1028 : vector<256x2xf32>
    %1030 = math.tanh %1029 : vector<256x2xf32>
    %c0_219 = arith.constant 0 : index
    %c0_220 = arith.constant 0 : index
    %1031 = vector.load %arg16[%c0_219, %c0_220] : memref<128x256xbf16, #tpu.memory_space<vmem>>, vector<128x256xbf16>
    %1032 = arith.truncf %1030 : vector<256x2xf32> to vector<256x2xbf16>
    %cst_221 = arith.constant dense<0.000000e+00> : vector<128x2xf32>
    %1033 = tpu.matmul %1031, %1032, %cst_221 {dimension_numbers = #tpu.dot_dimension_numbers<[1], [0], [0], [1], [0, 0, 1, 1], [], []>} : vector<128x256xbf16>, vector<256x2xbf16>, vector<128x2xf32> -> vector<128x2xf32>
    %c0_222 = arith.constant 0 : index
    %c0_223 = arith.constant 0 : index
    %1034 = vector.load %arg17[%c0_222, %c0_223] : memref<128x1xf32, #tpu.memory_space<vmem>>, vector<128x1xf32>
    %1035 = vector.broadcast %1034 : vector<128x1xf32> to vector<128x2xf32>
    %1036 = arith.addf %1033, %1035 : vector<128x2xf32>
    %c0_224 = arith.constant 0 : index
    %c0_225 = arith.constant 0 : index
    %1037 = vector.load %arg18[%c0_224, %c0_225] : memref<128x1xf32, #tpu.memory_space<vmem>>, vector<128x1xf32>
    %1038 = vector.broadcast %1037 : vector<128x1xf32> to vector<128x2xf32>
    %1039 = arith.mulf %1036, %1038 : vector<128x2xf32>
    %cst_226 = arith.constant dense<0.000000e+00> : vector<2xf32>
    %1040 = vector.multi_reduction <add>, %1039, %cst_226 [0] : vector<128x2xf32> to vector<2xf32>
    %1041 = vector.shape_cast %1040 : vector<2xf32> to vector<1x2xf32>
    %c0_227 = arith.constant 0 : index
    %c0_228 = arith.constant 0 : index
    %1042 = vector.load %arg19[%c0_227, %c0_228] : memref<1x1xf32, #tpu.memory_space<vmem>>, vector<1x1xf32>
    %1043 = vector.broadcast %1042 : vector<1x1xf32> to vector<1x2xf32>
    %1044 = arith.addf %1041, %1043 : vector<1x2xf32>
    %1045 = math.tanh %1044 : vector<1x2xf32>
    %c0_229 = arith.constant 0 : index
    %c0_230 = arith.constant 0 : index
    %1046 = vector.load %arg20[%c0_229, %c0_230] : memref<1x2xf32, #tpu.memory_space<vmem>>, vector<1x2xf32>
    tpu.vector_store %arg20[%c0_229, %c0_230], %1045 {strides = array<i32>} : memref<1x2xf32, #tpu.memory_space<vmem>>, vector<1x2xf32>,
    return
  }
}

</mosaic_0001>

<llo_original>
// kernel: forward.1
$region0: #{forward.1}
  #allocation0 [shape = 'u32[]', space=smem, size = 0x4, offset = 0x4, fixed_abs, tag = 'smem constant byte address 0x4 - core index']
  #allocation1 [shape = 'u32[72,128]{1,0:T(1,128)}', space=vmem, size = 0x9000, scoped, tag = 'internal scratch']
  #allocation2 [shape = 'f32[1,1]{1,0:T(1,128)S(1)}', space=vmem, size = 0x200, scoped, tag = 'scoped memory for forward.1']
  %s0 = inlined_call_operand.vmem [shape: f32[8,128], index: 0, kind: input, shape index: {}]
  %s1 = inlined_call_operand.vmem [shape: f32[25,1,128], index: 1, kind: input, shape index: {}]
  %s2 = inlined_call_operand.vmem [shape: bf16[128,32], index: 2, kind: input, shape index: {}]
  %s3 = inlined_call_operand.vmem [shape: bf16[32,2], index: 3, kind: input, shape index: {}]
  %s4 = inlined_call_operand.vmem [shape: bf16[16,200], index: 4, kind: input, shape index: {}]
  %s5 = inlined_call_operand.vmem [shape: bf16[32,400], index: 5, kind: input, shape index: {}]
  %s6 = inlined_call_operand.vmem [shape: bf16[32,800], index: 6, kind: input, shape index: {}]
  %s7 = inlined_call_operand.vmem [shape: bf16[32,800], index: 7, kind: input, shape index: {}]
  %s8 = inlined_call_operand.vmem [shape: bf16[64,800], index: 8, kind: input, shape index: {}]
  %s9 = inlined_call_operand.hbm [shape: bf16[256,1024], index: 9, kind: input, shape index: {}]
  %s10 = inlined_call_operand.vmem [shape: f32[16,2], index: 10, kind: input, shape index: {}]
  %s11 = inlined_call_operand.vmem [shape: f32[32,2], index: 11, kind: input, shape index: {}]
  %s12 = inlined_call_operand.vmem [shape: f32[32,2], index: 12, kind: input, shape index: {}]
  %s13 = inlined_call_operand.vmem [shape: f32[32,2], index: 13, kind: input, shape index: {}]
  %s14 = inlined_call_operand.vmem [shape: f32[64,2], index: 14, kind: input, shape index: {}]
  %s15 = inlined_call_operand.vmem [shape: f32[256,2], index: 15, kind: input, shape index: {}]
  %s16 = inlined_call_operand.vmem [shape: bf16[128,256], index: 16, kind: input, shape index: {}]
  %s17 = inlined_call_operand.vmem [shape: f32[128,1], index: 17, kind: input, shape index: {}]
  %s18 = inlined_call_operand.vmem [shape: f32[128,1], index: 18, kind: input, shape index: {}]
  %s19 = inlined_call_operand.<no memory space> [shape: f32[1,1], index: 19, kind: input, shape index: {}]
  %s20 = inlined_call_operand.hbm [shape: f32[1,2], index: 20, kind: output, shape index: {}]
  %s21 = sld [smem:[#allocation0]]
  $region94: #{forward.1} parent=0
    _
  %s23 = ssub.s32 1, %s21
  %s24 = scalar_select 0, %s23, %s21
  %v25 = vstv %s19
  %26 = vst [vmem:[#allocation2] sm:$0x1] %v25
  $region1: #{forward.1} parent=0
    #allocation3 [shape = 'u8[524288]{0}', space=vmem, size = 0x80000, scoped, tag = 'input window, operand 9, single buffered']
    #allocation4 [shape = 's32[1]{0}', space=sflag, size = 0x4, scoped, tag = 'scoped memory for forward.1']
    #allocation5 [shape = 's32[1]{0}', space=sflag, size = 0x4, scoped, tag = 'scoped memory for forward.1']
    #allocation6 [shape = 'u8[512]{0}', space=vmem, size = 0x400, scoped, tag = 'output window, operand 0, single buffered']
    %27 = vsyncpa [#allocation4], 0
    %28 = vsyncpa [#allocation5], 0
    // Predicated region
    $region2: #{forward.1} parent=1 // pred_check
      _
    $region3: #{forward.1} parent=1 // pred_check_branch
      %30 = sbr.rel (0) target = $region5
    $region4: #{forward.1} parent=1 // pred_region
      _
    $region5: #{forward.1} parent=1 // pred_fallthru
      _
    // Predicated region
    $region6: #{forward.1} parent=1 // pred_check
      _
    $region7: #{forward.1} parent=1 // pred_check_branch
      %32 = sbr.rel (0) target = $region9
    $region8: #{forward.1} parent=1 // pred_region
      _
    $region9: #{forward.1} parent=1 // pred_fallthru
      _
    // Predicated region
    $region10: #{forward.1} parent=1 // pred_check
      _
    $region11: #{forward.1} parent=1 // pred_check_branch
      %34 = sbr.rel (0) target = $region13
    $region12: #{forward.1} parent=1 // pred_region
      _
    $region13: #{forward.1} parent=1 // pred_fallthru
      _
    // Predicated region
    $region14: #{forward.1} parent=1 // pred_check
      _
    $region15: #{forward.1} parent=1 // pred_check_branch
      %36 = sbr.rel (0) target = $region17
    $region16: #{forward.1} parent=1 // pred_region
      _
    $region17: #{forward.1} parent=1 // pred_fallthru
      _
    // Predicated region
    $region18: #{forward.1} parent=1 // pred_check
      _
    $region19: #{forward.1} parent=1 // pred_check_branch
      %38 = sbr.rel (0) target = $region21
    $region20: #{forward.1} parent=1 // pred_region
      _
    $region21: #{forward.1} parent=1 // pred_fallthru
      _
    // Predicated region
    $region22: #{forward.1} parent=1 // pred_check
      _
    $region23: #{forward.1} parent=1 // pred_check_branch
      %40 = sbr.rel (0) target = $region25
    $region24: #{forward.1} parent=1 // pred_region
      _
    $region25: #{forward.1} parent=1 // pred_fallthru
      _
    // Predicated region
    $region26: #{forward.1} parent=1 // pred_check
      _
    $region27: #{forward.1} parent=1 // pred_check_branch
      %42 = sbr.rel (0) target = $region29
    $region28: #{forward.1} parent=1 // pred_region
      _
    $region29: #{forward.1} parent=1 // pred_fallthru
      _
    // Predicated region
    $region30: #{forward.1} parent=1 // pred_check
      _
    $region31: #{forward.1} parent=1 // pred_check_branch
      %44 = sbr.rel (0) target = $region33
    $region32: #{forward.1} parent=1 // pred_region
      _
    $region33: #{forward.1} parent=1 // pred_fallthru
      _
    // Predicated region
    $region34: #{forward.1} parent=1 // pred_check
      _
    $region35: #{forward.1} parent=1 // pred_check_branch
      %46 = sbr.rel (0) target = $region37
    $region36: #{forward.1} parent=1 // pred_region
      _
    $region37: #{forward.1} parent=1 // pred_fallthru
      _
    // Predicated region
    $region38: #{forward.1} parent=1 // pred_check
      _
    $region39: #{forward.1} parent=1 // pred_check_branch
      %48 = sbr.rel (0) target = $region41
    $region40: #{forward.1} parent=1 // pred_region
      %50 = vsyncadd [#allocation4], 0
      %s51 = sshll.u32 %s9, 4
      %s52 = int_to_ptr.hbm [resolvable:$true] %s51
      %s53 = sshll.u32 [#allocation3], 4
      %s54 = int_to_ptr.vmem [resolvable:$true] %s53
      %59 = dma.hbm_to_vmem [thread:$0]  %s52, 16384, %s54, [#allocation4], 512, 512, 32
    $region41: #{forward.1} parent=1 // pred_fallthru
      _
    // Predicated region
    $region42: #{forward.1} parent=1 // pred_check
      _
    $region43: #{forward.1} parent=1 // pred_check_branch
      %61 = sbr.rel (0) target = $region45
    $region44: #{forward.1} parent=1 // pred_region
      _
    $region45: #{forward.1} parent=1 // pred_fallthru
      _
    // Predicated region
    $region46: #{forward.1} parent=1 // pred_check
      _
    $region47: #{forward.1} parent=1 // pred_check_branch
      %63 = sbr.rel (0) target = $region49
    $region48: #{forward.1} parent=1 // pred_region
      _
    $region49: #{forward.1} parent=1 // pred_fallthru
      _
    // Predicated region
    $region50: #{forward.1} parent=1 // pred_check
      _
    $region51: #{forward.1} parent=1 // pred_check_branch
      %65 = sbr.rel (0) target = $region53
    $region52: #{forward.1} parent=1 // pred_region
      _
    $region53: #{forward.1} parent=1 // pred_fallthru
      _
    // Predicated region
    $region54: #{forward.1} parent=1 // pred_check
      _
    $region55: #{forward.1} parent=1 // pred_check_branch
      %67 = sbr.rel (0) target = $region57
    $region56: #{forward.1} parent=1 // pred_region
      _
    $region57: #{forward.1} parent=1 // pred_fallthru
      _
    // Predicated region
    $region58: #{forward.1} parent=1 // pred_check
      _
    $region59: #{forward.1} parent=1 // pred_check_branch
      %69 = sbr.rel (0) target = $region61
    $region60: #{forward.1} parent=1 // pred_region
      _
    $region61: #{forward.1} parent=1 // pred_fallthru
      _
    // Predicated region
    $region62: #{forward.1} parent=1 // pred_check
      _
    $region63: #{forward.1} parent=1 // pred_check_branch
      %71 = sbr.rel (0) target = $region65
    $region64: #{forward.1} parent=1 // pred_region
      _
    $region65: #{forward.1} parent=1 // pred_fallthru
      _
    // Predicated region
    $region66: #{forward.1} parent=1 // pred_check
      _
    $region67: #{forward.1} parent=1 // pred_check_branch
      %73 = sbr.rel (0) target = $region69
    $region68: #{forward.1} parent=1 // pred_region
      _
    $region69: #{forward.1} parent=1 // pred_fallthru
      _
    // Predicated region
    $region70: #{forward.1} parent=1 // pred_check
      _
    $region71: #{forward.1} parent=1 // pred_check_branch
      %75 = sbr.rel (0) target = $region73
    $region72: #{forward.1} parent=1 // pred_region
      _
    $region73: #{forward.1} parent=1 // pred_fallthru
      _
    // Predicated region
    $region74: #{forward.1} parent=1 // pred_check
      _
    $region75: #{forward.1} parent=1 // pred_check_branch
      %77 = sbr.rel (0) target = $region77
    $region76: #{forward.1} parent=1 // pred_region
      _
    $region77: #{forward.1} parent=1 // pred_fallthru
      _
    // Predicated region
    $region78: #{forward.1} parent=1 // pred_check
      _
    $region79: #{forward.1} parent=1 // pred_check_branch
      %79 = sbr.rel (0) target = $region81
    $region80: #{forward.1} parent=1 // pred_region
      _
    $region81: #{forward.1} parent=1 // pred_fallthru
      _
    // Predicated region
    $region82: #{forward.1} parent=1 // pred_check
      _
    $region83: #{forward.1} parent=1 // pred_check_branch
      %81 = sbr.rel (0) target = $region85
    $region84: #{forward.1} parent=1 // pred_region
      %83 = dma.done [#allocation4], 16384
    $region85: #{forward.1} parent=1 // pred_fallthru
      _
    %v85 = vld [vmem:[%s1] sm:$0x1]
    %v86 = vld [vmem:[%s1 + $0x1] sm:$0x1]
    %v87 = vld [vmem:[%s1 + $0x2] sm:$0x1]
    %v88 = vld [vmem:[%s1 + $0x3] sm:$0x1]
    %v89 = vld [vmem:[%s1 + $0x4] sm:$0x1]
    %v90 = vld [vmem:[%s1 + $0x5] sm:$0x1]
    %v91 = vld [vmem:[%s1 + $0x6] sm:$0x1]
    %v92 = vld [vmem:[%s1 + $0x7] sm:$0x1]
    %v93 = vld [vmem:[%s1 + $0x8] sm:$0x1]
    %v94 = vld [vmem:[%s1 + $0x9] sm:$0x1]
    %v95 = vld [vmem:[%s1 + $0xa] sm:$0x1]
    %v96 = vld [vmem:[%s1 + $0xb] sm:$0x1]
    %v97 = vld [vmem:[%s1 + $0xc] sm:$0x1]
    %v98 = vld [vmem:[%s1 + $0xd] sm:$0x1]
    %v99 = vld [vmem:[%s1 + $0xe] sm:$0x1]
    %v100 = vld [vmem:[%s1 + $0xf] sm:$0x1]
    %v101 = vld [vmem:[%s1 + $0x10] sm:$0x1]
    %v102 = vld [vmem:[%s1 + $0x11] sm:$0x1]
    %v103 = vld [vmem:[%s1 + $0x12] sm:$0x1]
    %v104 = vld [vmem:[%s1 + $0x13] sm:$0x1]
    %v105 = vld [vmem:[%s1 + $0x14] sm:$0x1]
    %v106 = vld [vmem:[%s1 + $0x15] sm:$0x1]
    %v107 = vld [vmem:[%s1 + $0x16] sm:$0x1]
    %v108 = vld [vmem:[%s1 + $0x17] sm:$0x1]
    %v109 = vld [vmem:[%s1 + $0x18] sm:$0x1]
    %v110 = vld [vmem:[%s0] sm:$0xff]
    %111 = vrot.lane.b32.xlu0 %v110, 18
    %v112 = vpop.permute.xlu0 %111
    %v114 = vperm.slane %v85, 0
    %v116 = vmul.f32 %v112, %v114
    %117 = vrot.lane.b32.xlu0 %v110, 17
    %v118 = vpop.permute.xlu0 %117
    %v120 = vperm.slane %v86, 0
    %v122 = vmul.f32 %v118, %v120
    %123 = vrot.lane.b32.xlu0 %v110, 16
    %v124 = vpop.permute.xlu0 %123
    %v126 = vperm.slane %v87, 0
    %v128 = vmul.f32 %v124, %v126
    %129 = vrot.lane.b32.xlu0 %v110, 15
    %v130 = vpop.permute.xlu0 %129
    %v132 = vperm.slane %v88, 0
    %v134 = vmul.f32 %v130, %v132
    %135 = vrot.lane.b32.xlu0 %v110, 14
    %v136 = vpop.permute.xlu0 %135
    %v138 = vperm.slane %v89, 0
    %v140 = vmul.f32 %v136, %v138
    %141 = vrot.lane.b32.xlu0 %v110, 10
    %v142 = vpop.permute.xlu0 %141
    %v144 = vperm.slane %v90, 0
    %v146 = vmul.f32 %v142, %v144
    %147 = vrot.lane.b32.xlu0 %v110, 9
    %v148 = vpop.permute.xlu0 %147
    %v150 = vperm.slane %v91, 0
    %v152 = vmul.f32 %v148, %v150
    %153 = vrot.lane.b32.xlu0 %v110, 8
    %v154 = vpop.permute.xlu0 %153
    %v156 = vperm.slane %v92, 0
    %v158 = vmul.f32 %v154, %v156
    %159 = vrot.lane.b32.xlu0 %v110, 7
    %v160 = vpop.permute.xlu0 %159
    %v162 = vperm.slane %v93, 0
    %v164 = vmul.f32 %v160, %v162
    %165 = vrot.lane.b32.xlu0 %v110, 6
    %v166 = vpop.permute.xlu0 %165
    %v168 = vperm.slane %v94, 0
    %v170 = vmul.f32 %v166, %v168
    %171 = vrot.lane.b32.xlu0 %v110, 2
    %v172 = vpop.permute.xlu0 %171
    %v174 = vperm.slane %v95, 0
    %v176 = vmul.f32 %v172, %v174
    %177 = vrot.lane.b32.xlu0 %v110, 1
    %v178 = vpop.permute.xlu0 %177
    %v180 = vperm.slane %v96, 0
    %v182 = vmul.f32 %v178, %v180
    %v184 = vperm.slane %v97, 0
    %v186 = vmul.f32 %v110, %v184
    %187 = vrot.lane.b32.xlu0 %v110, 127
    %v188 = vpop.permute.xlu0 %187
    %v190 = vperm.slane %v98, 0
    %v192 = vmul.f32 %v188, %v190
    %193 = vrot.lane.b32.xlu0 %v110, 126
    %v194 = vpop.permute.xlu0 %193
    %v196 = vperm.slane %v99, 0
    %v198 = vmul.f32 %v194, %v196
    %199 = vrot.lane.b32.xlu0 %v110, 122
    %v200 = vpop.permute.xlu0 %199
    %v202 = vperm.slane %v100, 0
    %v204 = vmul.f32 %v200, %v202
    %205 = vrot.lane.b32.xlu0 %v110, 121
    %v206 = vpop.permute.xlu0 %205
    %v208 = vperm.slane %v101, 0
    %v210 = vmul.f32 %v206, %v208
    %211 = vrot.lane.b32.xlu0 %v110, 120
    %v212 = vpop.permute.xlu0 %211
    %v214 = vperm.slane %v102, 0
    %v216 = vmul.f32 %v212, %v214
    %217 = vrot.lane.b32.xlu0 %v110, 119
    %v218 = vpop.permute.xlu0 %217
    %v220 = vperm.slane %v103, 0
    %v222 = vmul.f32 %v218, %v220
    %223 = vrot.lane.b32.xlu0 %v110, 118
    %v224 = vpop.permute.xlu0 %223
    %v226 = vperm.slane %v104, 0
    %v228 = vmul.f32 %v224, %v226
    %229 = vrot.lane.b32.xlu0 %v110, 114
    %v230 = vpop.permute.xlu0 %229
    %v232 = vperm.slane %v105, 0
    %v234 = vmul.f32 %v230, %v232
    %235 = vrot.lane.b32.xlu0 %v110, 113
    %v236 = vpop.permute.xlu0 %235
    %v238 = vperm.slane %v106, 0
    %v240 = vmul.f32 %v236, %v238
    %241 = vrot.lane.b32.xlu0 %v110, 112
    %v242 = vpop.permute.xlu0 %241
    %v244 = vperm.slane %v107, 0
    %v246 = vmul.f32 %v242, %v244
    %247 = vrot.lane.b32.xlu0 %v110, 111
    %v248 = vpop.permute.xlu0 %247
    %v250 = vperm.slane %v108, 0
    %v252 = vmul.f32 %v248, %v250
    %253 = vrot.lane.b32.xlu0 %v110, 110
    %v254 = vpop.permute.xlu0 %253
    %v256 = vperm.slane %v109, 0
    %v258 = vmul.f32 %v254, %v256
    %v259 = vpack.c.bf16 %v122, %v116
    %v260 = vpack.c.bf16 %v134, %v128
    %v261 = vpack.c.bf16 %v146, %v140
    %v262 = vpack.c.bf16 %v158, %v152
    %v263 = vpack.c.bf16 %v170, %v164
    %v264 = vpack.c.bf16 %v182, %v176
    %v265 = vpack.c.bf16 %v192, %v186
    %v266 = vpack.c.bf16 %v204, %v198
    %v267 = vpack.c.bf16 %v216, %v210
    %v268 = vpack.c.bf16 %v228, %v222
    %v269 = vpack.c.bf16 %v240, %v234
    %v270 = vpack.c.bf16 %v252, %v246
    %v271 = vpack.c.bf16 %v258, %v258
    %v272 = vld [vmem:[%s4] sm:$0xff]
    %v273 = vld [vmem:[%s4 + $0x8] sm:$0xff]
    %v276 = vunpack.c.l.b16 %v272
    %v277 = vunpack.c.h.b16 %v272
    %v278 = vunpack.c.l.b16 %v273
    %v279 = vunpack.c.h.b16 %v273
    %v280 = vpack.c.b16 %v278, %v276
    %v281 = vpack.c.b16 %v279, %v277
    %vm283 = vcmask 588800
    %v285 = vsel %vm283, %v281, 0
    %vm287 = vcmask 1043456
    %v289 = vsel %vm287, %v271, 0
    %291 = vmatpush.bf16.msra.mxu0 %v266
    %292 = vmatpush.bf16.msra.mxu0 %v265
    %293 = vmatpush.bf16.msra.mxu0 %v264
    %294 = vmatpush.bf16.msra.mxu0 %v263
    %295 = vmatpush.bf16.msra.mxu0 %v262
    %296 = vmatpush.bf16.msra.mxu0 %v261
    %297 = vmatpush.bf16.msra.mxu0 %v260
    %298 = vmatpush.bf16.msra.mxu0 %v259
    %299 = vmatmul.bf16.gmra.mxu0 %v280
    %v300 = vpop.f32.mrf.mxu0
    %v301 = vadd.f32 0.0, %v300
    %v302 = vpop.f32.mrf.mxu0
    %v303 = vadd.f32 0.0, %v302
    %304 = vdwg.mxu0
    %305 = vmatpush.bf16.msra.mxu0 0
    %306 = vmatpush.bf16.msra.mxu0 0
    %307 = vmatpush.bf16.msra.mxu0 0
    %308 = vmatpush.bf16.msra.mxu0 %v289
    %309 = vmatpush.bf16.msra.mxu0 %v270
    %310 = vmatpush.bf16.msra.mxu0 %v269
    %311 = vmatpush.bf16.msra.mxu0 %v268
    %312 = vmatpush.bf16.msra.mxu0 %v267
    %313 = vmatmul.bf16.gmra.mxu0 %v285
    %v314 = vpop.f32.mrf.mxu0
    %v315 = vadd.f32 %v301, %v314
    %v316 = vpop.f32.mrf.mxu0
    %v317 = vadd.f32 %v303, %v316
    %318 = vdwg.mxu0
    %v319 = vld [vmem:[%s10] sm:$0xff]
    %v320 = vld [vmem:[%s10 + $0x8] sm:$0xff]
    %321 = vadd.xlane.f32.xlu0 %v315
    %v322 = vpop.xlane.xlu0 %321
    %323 = vadd.xlane.f32.xlu0 %v317
    %v324 = vpop.xlane.xlu0 %323
    %v325 = vrcp.pop 128.0
    %v326 = vmul.f32 128.0, %v325
    %v327 = vsub.f32 1.0, %v326
    %v328 = vmul.f32 %v325, %v327
    %v329 = vadd.f32 %v325, %v328
    %vm330 = vweird.f32 %v325
    %v331 = vsel %vm330, %v325, %v329
    %v332 = vmul.f32 %v322, %v331
    %v333 = vmul.f32 %v324, %v331
    %v334 = vsub.f32 %v315, %v332
    %v335 = vsub.f32 %v317, %v333
    %v336 = vmul.f32 %v334, %v334
    %v337 = vmul.f32 %v335, %v335
    %338 = vadd.xlane.f32.xlu0 %v336
    %v339 = vpop.xlane.xlu0 %338
    %340 = vadd.xlane.f32.xlu0 %v337
    %v341 = vpop.xlane.xlu0 %340
    %v342 = vmul.f32 %v339, %v331
    %v343 = vmul.f32 %v341, %v331
    %v344 = vadd.f32 %v342, 1e-05
    %v345 = vadd.f32 %v343, 1e-05
    %v346 = vrsqrt.pop %v344
    %v347 = vmul.f32 %v346, %v344
    %v348 = vmul.f32 %v347, %v346
    %v349 = vmul.f32 0.5, %v348
    %v350 = vsub.f32 1.5, %v349
    %v351 = vmul.f32 %v346, %v350
    %vm352 = vweird.f32 %v344
    %vm353 = vweird.f32 %v346
    %vm354 = vmor %vm352, %vm353
    %v355 = vsel %vm354, %v346, %v351
    %v356 = vrsqrt.pop %v345
    %v357 = vmul.f32 %v356, %v345
    %v358 = vmul.f32 %v357, %v356
    %v359 = vmul.f32 0.5, %v358
    %v360 = vsub.f32 1.5, %v359
    %v361 = vmul.f32 %v356, %v360
    %vm362 = vweird.f32 %v345
    %vm363 = vweird.f32 %v356
    %vm364 = vmor %vm362, %vm363
    %v365 = vsel %vm364, %v356, %v361
    %v366 = vmul.f32 %v334, %v355
    %v367 = vmul.f32 %v335, %v365
    %369 = vset.pattern.permute.xlu0 0
    %370 = vperm.xlu0 %369, %v319
    %v371 = vpop.permute.xlu0 %370
    %374 = vset.pattern.permute.xlu0 0
    %375 = vperm.xlu0 %374, %v320
    %v376 = vpop.permute.xlu0 %375
    %v378 = vmul.f32 %v366, %v371
    %v379 = vmul.f32 %v367, %v376
    %380 = vset.pattern.permute.xlu0 1
    %381 = vperm.xlu0 %380, %v319
    %v382 = vpop.permute.xlu0 %381
    %384 = vset.pattern.permute.xlu0 1
    %385 = vperm.xlu0 %384, %v320
    %v386 = vpop.permute.xlu0 %385
    %v388 = vadd.f32 %v378, %v382
    %v389 = vadd.f32 %v379, %v386
    %v390 = vtanh.pop %v388
    %v391 = vtanh.pop %v389
    %392 = vrot.lane.b32.xlu0 %v390, 18
    %v393 = vpop.permute.xlu0 %392
    %394 = vrot.lane.b32.xlu0 %v391, 18
    %v395 = vpop.permute.xlu0 %394
    %v396 = vmul.f32 %v393, %v114
    %v397 = vmul.f32 %v395, %v114
    %398 = vrot.lane.b32.xlu0 %v390, 17
    %v399 = vpop.permute.xlu0 %398
    %400 = vrot.lane.b32.xlu0 %v391, 17
    %v401 = vpop.permute.xlu0 %400
    %v402 = vmul.f32 %v399, %v120
    %v403 = vmul.f32 %v401, %v120
    %404 = vrot.lane.b32.xlu0 %v390, 16
    %v405 = vpop.permute.xlu0 %404
    %406 = vrot.lane.b32.xlu0 %v391, 16
    %v407 = vpop.permute.xlu0 %406
    %v408 = vmul.f32 %v405, %v126
    %v409 = vmul.f32 %v407, %v126
    %410 = vrot.lane.b32.xlu0 %v390, 15
    %v411 = vpop.permute.xlu0 %410
    %412 = vrot.lane.b32.xlu0 %v391, 15
    %v413 = vpop.permute.xlu0 %412
    %v414 = vmul.f32 %v411, %v132
    %v415 = vmul.f32 %v413, %v132
    %416 = vrot.lane.b32.xlu0 %v390, 14
    %v417 = vpop.permute.xlu0 %416
    %418 = vrot.lane.b32.xlu0 %v391, 14
    %v419 = vpop.permute.xlu0 %418
    %v420 = vmul.f32 %v417, %v138
    %v421 = vmul.f32 %v419, %v138
    %422 = vrot.lane.b32.xlu0 %v390, 10
    %v423 = vpop.permute.xlu0 %422
    %424 = vrot.lane.b32.xlu0 %v391, 10
    %v425 = vpop.permute.xlu0 %424
    %v426 = vmul.f32 %v423, %v144
    %v427 = vmul.f32 %v425, %v144
    %428 = vrot.lane.b32.xlu0 %v390, 9
    %v429 = vpop.permute.xlu0 %428
    %430 = vrot.lane.b32.xlu0 %v391, 9
    %v431 = vpop.permute.xlu0 %430
    %v432 = vmul.f32 %v429, %v150
    %v433 = vmul.f32 %v431, %v150
    %434 = vrot.lane.b32.xlu0 %v390, 8
    %v435 = vpop.permute.xlu0 %434
    %436 = vrot.lane.b32.xlu0 %v391, 8
    %v437 = vpop.permute.xlu0 %436
    %v438 = vmul.f32 %v435, %v156
    %v439 = vmul.f32 %v437, %v156
    %440 = vrot.lane.b32.xlu0 %v390, 7
    %v441 = vpop.permute.xlu0 %440
    %442 = vrot.lane.b32.xlu0 %v391, 7
    %v443 = vpop.permute.xlu0 %442
    %v444 = vmul.f32 %v441, %v162
    %v445 = vmul.f32 %v443, %v162
    %446 = vrot.lane.b32.xlu0 %v390, 6
    %v447 = vpop.permute.xlu0 %446
    %448 = vrot.lane.b32.xlu0 %v391, 6
    %v449 = vpop.permute.xlu0 %448
    %v450 = vmul.f32 %v447, %v168
    %v451 = vmul.f32 %v449, %v168
    %452 = vrot.lane.b32.xlu0 %v390, 2
    %v453 = vpop.permute.xlu0 %452
    %454 = vrot.lane.b32.xlu0 %v391, 2
    %v455 = vpop.permute.xlu0 %454
    %v456 = vmul.f32 %v453, %v174
    %v457 = vmul.f32 %v455, %v174
    %458 = vrot.lane.b32.xlu0 %v390, 1
    %v459 = vpop.permute.xlu0 %458
    %460 = vrot.lane.b32.xlu0 %v391, 1
    %v461 = vpop.permute.xlu0 %460
    %v462 = vmul.f32 %v459, %v180
    %v463 = vmul.f32 %v461, %v180
    %v464 = vmul.f32 %v390, %v184
    %v465 = vmul.f32 %v391, %v184
    %466 = vrot.lane.b32.xlu0 %v390, 127
    %v467 = vpop.permute.xlu0 %466
    %468 = vrot.lane.b32.xlu0 %v391, 127
    %v469 = vpop.permute.xlu0 %468
    %v470 = vmul.f32 %v467, %v190
    %v471 = vmul.f32 %v469, %v190
    %472 = vrot.lane.b32.xlu0 %v390, 126
    %v473 = vpop.permute.xlu0 %472
    %474 = vrot.lane.b32.xlu0 %v391, 126
    %v475 = vpop.permute.xlu0 %474
    %v476 = vmul.f32 %v473, %v196
    %v477 = vmul.f32 %v475, %v196
    %478 = vrot.lane.b32.xlu0 %v390, 122
    %v479 = vpop.permute.xlu0 %478
    %480 = vrot.lane.b32.xlu0 %v391, 122
    %v481 = vpop.permute.xlu0 %480
    %v482 = vmul.f32 %v479, %v202
    %v483 = vmul.f32 %v481, %v202
    %484 = vrot.lane.b32.xlu0 %v390, 121
    %v485 = vpop.permute.xlu0 %484
    %486 = vrot.lane.b32.xlu0 %v391, 121
    %v487 = vpop.permute.xlu0 %486
    %v488 = vmul.f32 %v485, %v208
    %v489 = vmul.f32 %v487, %v208
    %490 = vrot.lane.b32.xlu0 %v390, 120
    %v491 = vpop.permute.xlu0 %490
    %492 = vrot.lane.b32.xlu0 %v391, 120
    %v493 = vpop.permute.xlu0 %492
    %v494 = vmul.f32 %v491, %v214
    %v495 = vmul.f32 %v493, %v214
    %496 = vrot.lane.b32.xlu0 %v390, 119
    %v497 = vpop.permute.xlu0 %496
    %498 = vrot.lane.b32.xlu0 %v391, 119
    %v499 = vpop.permute.xlu0 %498
    %v500 = vmul.f32 %v497, %v220
    %v501 = vmul.f32 %v499, %v220
    %502 = vrot.lane.b32.xlu0 %v390, 118
    %v503 = vpop.permute.xlu0 %502
    %504 = vrot.lane.b32.xlu0 %v391, 118
    %v505 = vpop.permute.xlu0 %504
    %v506 = vmul.f32 %v503, %v226
    %v507 = vmul.f32 %v505, %v226
    %508 = vrot.lane.b32.xlu0 %v390, 114
    %v509 = vpop.permute.xlu0 %508
    %510 = vrot.lane.b32.xlu0 %v391, 114
    %v511 = vpop.permute.xlu0 %510
    %v512 = vmul.f32 %v509, %v232
    %v513 = vmul.f32 %v511, %v232
    %514 = vrot.lane.b32.xlu0 %v390, 113
    %v515 = vpop.permute.xlu0 %514
    %516 = vrot.lane.b32.xlu0 %v391, 113
    %v517 = vpop.permute.xlu0 %516
    %v518 = vmul.f32 %v515, %v238
    %v519 = vmul.f32 %v517, %v238
    %520 = vrot.lane.b32.xlu0 %v390, 112
    %v521 = vpop.permute.xlu0 %520
    %522 = vrot.lane.b32.xlu0 %v391, 112
    %v523 = vpop.permute.xlu0 %522
    %v524 = vmul.f32 %v521, %v244
    %v525 = vmul.f32 %v523, %v244
    %526 = vrot.lane.b32.xlu0 %v390, 111
    %v527 = vpop.permute.xlu0 %526
    %528 = vrot.lane.b32.xlu0 %v391, 111
    %v529 = vpop.permute.xlu0 %528
    %v530 = vmul.f32 %v527, %v250
    %v531 = vmul.f32 %v529, %v250
    %532 = vrot.lane.b32.xlu0 %v390, 110
    %v533 = vpop.permute.xlu0 %532
    %534 = vrot.lane.b32.xlu0 %v391, 110
    %v535 = vpop.permute.xlu0 %534
    %v536 = vmul.f32 %v533, %v256
    %v537 = vmul.f32 %v535, %v256
    %v538 = vpack.c.bf16 %v397, %v396
    %v539 = vpack.c.bf16 %v403, %v402
    %v540 = vpack.c.bf16 %v409, %v408
    %v541 = vpack.c.bf16 %v415, %v414
    %v542 = vpack.c.bf16 %v421, %v420
    %v543 = vpack.c.bf16 %v427, %v426
    %v544 = vpack.c.bf16 %v433, %v432
    %v545 = vpack.c.bf16 %v439, %v438
    %v546 = vpack.c.bf16 %v445, %v444
    %v547 = vpack.c.bf16 %v451, %v450
    %v548 = vpack.c.bf16 %v457, %v456
    %v549 = vpack.c.bf16 %v463, %v462
    %v550 = vpack.c.bf16 %v465, %v464
    %v551 = vpack.c.bf16 %v471, %v470
    %v552 = vpack.c.bf16 %v477, %v476
    %v553 = vpack.c.bf16 %v483, %v482
    %v554 = vpack.c.bf16 %v489, %v488
    %v555 = vpack.c.bf16 %v495, %v494
    %v556 = vpack.c.bf16 %v501, %v500
    %v557 = vpack.c.bf16 %v507, %v506
    %v558 = vpack.c.bf16 %v513, %v512
    %v559 = vpack.c.bf16 %v519, %v518
    %v560 = vpack.c.bf16 %v525, %v524
    %v561 = vpack.c.bf16 %v531, %v530
    %v562 = vpack.c.bf16 %v537, %v536
    %v563 = vld [vmem:[%s5] sm:$0xff]
    %v564 = vld [vmem:[%s5 + $0x8] sm:$0xff]
    %v565 = vld [vmem:[%s5 + $0x10] sm:$0xff]
    %v566 = vld [vmem:[%s5 + $0x18] sm:$0xff]
    %v567 = vld [vmem:[%s5 + $0x20] sm:$0xff]
    %v568 = vld [vmem:[%s5 + $0x28] sm:$0xff]
    %v569 = vld [vmem:[%s5 + $0x30] sm:$0xff]
    %v570 = vld [vmem:[%s5 + $0x38] sm:$0xff]
    %v579 = vunpack.c.l.b16 %v563
    %v580 = vunpack.c.h.b16 %v563
    %v581 = vunpack.c.l.b16 %v564
    %v582 = vunpack.c.h.b16 %v564
    %v583 = vunpack.c.l.b16 %v565
    %v584 = vunpack.c.h.b16 %v565
    %v585 = vunpack.c.l.b16 %v566
    %v586 = vunpack.c.h.b16 %v566
    %v587 = vunpack.c.l.b16 %v567
    %v588 = vunpack.c.h.b16 %v567
    %v589 = vunpack.c.l.b16 %v568
    %v590 = vunpack.c.h.b16 %v568
    %v591 = vunpack.c.l.b16 %v569
    %v592 = vunpack.c.h.b16 %v569
    %v593 = vunpack.c.l.b16 %v570
    %v594 = vunpack.c.h.b16 %v570
    %v595 = vpack.c.b16 %v583, %v579
    %v596 = vpack.c.b16 %v584, %v580
    %v597 = vpack.c.b16 %v585, %v581
    %v598 = vpack.c.b16 %v586, %v582
    %v599 = vpack.c.b16 %v591, %v587
    %v600 = vpack.c.b16 %v592, %v588
    %v601 = vpack.c.b16 %v593, %v589
    %v602 = vpack.c.b16 %v594, %v590
    %vm609 = vcmask 130048
    %v611 = vsel %vm609, %v598, 0
    %v614 = vsel %vm609, %v602, 0
    %616 = vmatpush.bf16.msra.mxu0 %v545
    %617 = vmatpush.bf16.msra.mxu0 %v544
    %618 = vmatpush.bf16.msra.mxu0 %v543
    %619 = vmatpush.bf16.msra.mxu0 %v542
    %620 = vmatpush.bf16.msra.mxu0 %v541
    %621 = vmatpush.bf16.msra.mxu0 %v540
    %622 = vmatpush.bf16.msra.mxu0 %v539
    %623 = vmatpush.bf16.msra.mxu0 %v538
    %624 = vmatmul.bf16.gmra.mxu0 %v595
    %v625 = vpop.f32.mrf.mxu0
    %v626 = vadd.f32 0.0, %v625
    %v627 = vpop.f32.mrf.mxu0
    %v628 = vadd.f32 0.0, %v627
    %629 = vmatmul.bf16.gmra.mxu0 %v599
    %v630 = vpop.f32.mrf.mxu0
    %v631 = vadd.f32 0.0, %v630
    %v632 = vpop.f32.mrf.mxu0
    %v633 = vadd.f32 0.0, %v632
    %634 = vdwg.mxu0
    %635 = vmatpush.bf16.msra.mxu0 %v553
    %636 = vmatpush.bf16.msra.mxu0 %v552
    %637 = vmatpush.bf16.msra.mxu0 %v551
    %638 = vmatpush.bf16.msra.mxu0 %v550
    %639 = vmatpush.bf16.msra.mxu0 %v549
    %640 = vmatpush.bf16.msra.mxu0 %v548
    %641 = vmatpush.bf16.msra.mxu0 %v547
    %642 = vmatpush.bf16.msra.mxu0 %v546
    %643 = vmatmul.bf16.gmra.mxu0 %v596
    %v644 = vpop.f32.mrf.mxu0
    %v645 = vadd.f32 %v626, %v644
    %v646 = vpop.f32.mrf.mxu0
    %v647 = vadd.f32 %v628, %v646
    %648 = vmatmul.bf16.gmra.mxu0 %v600
    %v649 = vpop.f32.mrf.mxu0
    %v650 = vadd.f32 %v631, %v649
    %v651 = vpop.f32.mrf.mxu0
    %v652 = vadd.f32 %v633, %v651
    %653 = vdwg.mxu0
    %654 = vmatpush.bf16.msra.mxu0 %v561
    %655 = vmatpush.bf16.msra.mxu0 %v560
    %656 = vmatpush.bf16.msra.mxu0 %v559
    %657 = vmatpush.bf16.msra.mxu0 %v558
    %658 = vmatpush.bf16.msra.mxu0 %v557
    %659 = vmatpush.bf16.msra.mxu0 %v556
    %660 = vmatpush.bf16.msra.mxu0 %v555
    %661 = vmatpush.bf16.msra.mxu0 %v554
    %662 = vmatmul.bf16.gmra.mxu0 %v597
    %v663 = vpop.f32.mrf.mxu0
    %v664 = vadd.f32 %v645, %v663
    %v665 = vpop.f32.mrf.mxu0
    %v666 = vadd.f32 %v647, %v665
    %667 = vmatmul.bf16.gmra.mxu0 %v601
    %v668 = vpop.f32.mrf.mxu0
    %v669 = vadd.f32 %v650, %v668
    %v670 = vpop.f32.mrf.mxu0
    %v671 = vadd.f32 %v652, %v670
    %672 = vdwg.mxu0
    %673 = vmatpush.bf16.msra.mxu0 0
    %674 = vmatpush.bf16.msra.mxu0 0
    %675 = vmatpush.bf16.msra.mxu0 0
    %676 = vmatpush.bf16.msra.mxu0 0
    %677 = vmatpush.bf16.msra.mxu0 0
    %678 = vmatpush.bf16.msra.mxu0 0
    %679 = vmatpush.bf16.msra.mxu0 0
    %680 = vmatpush.bf16.msra.mxu0 %v562
    %681 = vmatmul.bf16.gmra.mxu0 %v611
    %v682 = vpop.f32.mrf.mxu0
    %v683 = vadd.f32 %v664, %v682
    %v684 = vpop.f32.mrf.mxu0
    %v685 = vadd.f32 %v666, %v684
    %686 = vmatmul.bf16.gmra.mxu0 %v614
    %v687 = vpop.f32.mrf.mxu0
    %v688 = vadd.f32 %v669, %v687
    %v689 = vpop.f32.mrf.mxu0
    %v690 = vadd.f32 %v671, %v689
    %691 = vdwg.mxu0
    %v692 = vld [vmem:[%s11] sm:$0xff]
    %v693 = vld [vmem:[%s11 + $0x8] sm:$0xff]
    %v694 = vld [vmem:[%s11 + $0x10] sm:$0xff]
    %v695 = vld [vmem:[%s11 + $0x18] sm:$0xff]
    %696 = vadd.xlane.f32.xlu0 %v683
    %v697 = vpop.xlane.xlu0 %696
    %698 = vadd.xlane.f32.xlu0 %v685
    %v699 = vpop.xlane.xlu0 %698
    %700 = vadd.xlane.f32.xlu0 %v688
    %v701 = vpop.xlane.xlu0 %700
    %702 = vadd.xlane.f32.xlu0 %v690
    %v703 = vpop.xlane.xlu0 %702
    %v704 = vmul.f32 %v697, %v331
    %v705 = vmul.f32 %v699, %v331
    %v706 = vmul.f32 %v701, %v331
    %v707 = vmul.f32 %v703, %v331
    %v708 = vsub.f32 %v683, %v704
    %v709 = vsub.f32 %v685, %v705
    %v710 = vsub.f32 %v688, %v706
    %v711 = vsub.f32 %v690, %v707
    %v712 = vmul.f32 %v708, %v708
    %v713 = vmul.f32 %v709, %v709
    %v714 = vmul.f32 %v710, %v710
    %v715 = vmul.f32 %v711, %v711
    %716 = vadd.xlane.f32.xlu0 %v712
    %v717 = vpop.xlane.xlu0 %716
    %718 = vadd.xlane.f32.xlu0 %v713
    %v719 = vpop.xlane.xlu0 %718
    %720 = vadd.xlane.f32.xlu0 %v714
    %v721 = vpop.xlane.xlu0 %720
    %722 = vadd.xlane.f32.xlu0 %v715
    %v723 = vpop.xlane.xlu0 %722
    %v724 = vmul.f32 %v717, %v331
    %v725 = vmul.f32 %v719, %v331
    %v726 = vmul.f32 %v721, %v331
    %v727 = vmul.f32 %v723, %v331
    %v728 = vadd.f32 %v724, 1e-05
    %v729 = vadd.f32 %v725, 1e-05
    %v730 = vadd.f32 %v726, 1e-05
    %v731 = vadd.f32 %v727, 1e-05
    %v732 = vrsqrt.pop %v728
    %v733 = vmul.f32 %v732, %v728
    %v734 = vmul.f32 %v733, %v732
    %v735 = vmul.f32 0.5, %v734
    %v736 = vsub.f32 1.5, %v735
    %v737 = vmul.f32 %v732, %v736
    %vm738 = vweird.f32 %v728
    %vm739 = vweird.f32 %v732
    %vm740 = vmor %vm738, %vm739
    %v741 = vsel %vm740, %v732, %v737
    %v742 = vrsqrt.pop %v729
    %v743 = vmul.f32 %v742, %v729
    %v744 = vmul.f32 %v743, %v742
    %v745 = vmul.f32 0.5, %v744
    %v746 = vsub.f32 1.5, %v745
    %v747 = vmul.f32 %v742, %v746
    %vm748 = vweird.f32 %v729
    %vm749 = vweird.f32 %v742
    %vm750 = vmor %vm748, %vm749
    %v751 = vsel %vm750, %v742, %v747
    %v752 = vrsqrt.pop %v730
    %v753 = vmul.f32 %v752, %v730
    %v754 = vmul.f32 %v753, %v752
    %v755 = vmul.f32 0.5, %v754
    %v756 = vsub.f32 1.5, %v755
    %v757 = vmul.f32 %v752, %v756
    %vm758 = vweird.f32 %v730
    %vm759 = vweird.f32 %v752
    %vm760 = vmor %vm758, %vm759
    %v761 = vsel %vm760, %v752, %v757
    %v762 = vrsqrt.pop %v731
    %v763 = vmul.f32 %v762, %v731
    %v764 = vmul.f32 %v763, %v762
    %v765 = vmul.f32 0.5, %v764
    %v766 = vsub.f32 1.5, %v765
    %v767 = vmul.f32 %v762, %v766
    %vm768 = vweird.f32 %v731
    %vm769 = vweird.f32 %v762
    %vm770 = vmor %vm768, %vm769
    %v771 = vsel %vm770, %v762, %v767
    %v772 = vmul.f32 %v708, %v741
    %v773 = vmul.f32 %v709, %v751
    %v774 = vmul.f32 %v710, %v761
    %v775 = vmul.f32 %v711, %v771
    %777 = vset.pattern.permute.xlu0 0
    %778 = vperm.xlu0 %777, %v692
    %v779 = vpop.permute.xlu0 %778
    %782 = vset.pattern.permute.xlu0 0
    %783 = vperm.xlu0 %782, %v693
    %v784 = vpop.permute.xlu0 %783
    %787 = vset.pattern.permute.xlu0 0
    %788 = vperm.xlu0 %787, %v694
    %v789 = vpop.permute.xlu0 %788
    %792 = vset.pattern.permute.xlu0 0
    %793 = vperm.xlu0 %792, %v695
    %v794 = vpop.permute.xlu0 %793
    %v796 = vmul.f32 %v772, %v779
    %v797 = vmul.f32 %v773, %v784
    %v798 = vmul.f32 %v774, %v789
    %v799 = vmul.f32 %v775, %v794
    %800 = vset.pattern.permute.xlu0 1
    %801 = vperm.xlu0 %800, %v692
    %v802 = vpop.permute.xlu0 %801
    %804 = vset.pattern.permute.xlu0 1
    %805 = vperm.xlu0 %804, %v693
    %v806 = vpop.permute.xlu0 %805
    %808 = vset.pattern.permute.xlu0 1
    %809 = vperm.xlu0 %808, %v694
    %v810 = vpop.permute.xlu0 %809
    %812 = vset.pattern.permute.xlu0 1
    %813 = vperm.xlu0 %812, %v695
    %v814 = vpop.permute.xlu0 %813
    %v816 = vadd.f32 %v796, %v802
    %v817 = vadd.f32 %v797, %v806
    %v818 = vadd.f32 %v798, %v810
    %v819 = vadd.f32 %v799, %v814
    %v820 = vtanh.pop %v816
    %v821 = vtanh.pop %v817
    %v822 = vtanh.pop %v818
    %v823 = vtanh.pop %v819
    %824 = vrot.lane.b32.xlu0 %v820, 18
    %v825 = vpop.permute.xlu0 %824
    %826 = vrot.lane.b32.xlu0 %v821, 18
    %v827 = vpop.permute.xlu0 %826
    %828 = vrot.lane.b32.xlu0 %v822, 18
    %v829 = vpop.permute.xlu0 %828
    %830 = vrot.lane.b32.xlu0 %v823, 18
    %v831 = vpop.permute.xlu0 %830
    %v832 = vmul.f32 %v825, %v114
    %v833 = vmul.f32 %v827, %v114
    %v834 = vmul.f32 %v829, %v114
    %v835 = vmul.f32 %v831, %v114
    %836 = vrot.lane.b32.xlu0 %v820, 17
    %v837 = vpop.permute.xlu0 %836
    %838 = vrot.lane.b32.xlu0 %v821, 17
    %v839 = vpop.permute.xlu0 %838
    %840 = vrot.lane.b32.xlu0 %v822, 17
    %v841 = vpop.permute.xlu0 %840
    %842 = vrot.lane.b32.xlu0 %v823, 17
    %v843 = vpop.permute.xlu0 %842
    %v844 = vmul.f32 %v837, %v120
    %v845 = vmul.f32 %v839, %v120
    %v846 = vmul.f32 %v841, %v120
    %v847 = vmul.f32 %v843, %v120
    %848 = vrot.lane.b32.xlu0 %v820, 16
    %v849 = vpop.permute.xlu0 %848
    %850 = vrot.lane.b32.xlu0 %v821, 16
    %v851 = vpop.permute.xlu0 %850
    %852 = vrot.lane.b32.xlu0 %v822, 16
    %v853 = vpop.permute.xlu0 %852
    %854 = vrot.lane.b32.xlu0 %v823, 16
    %v855 = vpop.permute.xlu0 %854
    %v856 = vmul.f32 %v849, %v126
    %v857 = vmul.f32 %v851, %v126
    %v858 = vmul.f32 %v853, %v126
    %v859 = vmul.f32 %v855, %v126
    %860 = vrot.lane.b32.xlu0 %v820, 15
    %v861 = vpop.permute.xlu0 %860
    %862 = vrot.lane.b32.xlu0 %v821, 15
    %v863 = vpop.permute.xlu0 %862
    %864 = vrot.lane.b32.xlu0 %v822, 15
    %v865 = vpop.permute.xlu0 %864
    %866 = vrot.lane.b32.xlu0 %v823, 15
    %v867 = vpop.permute.xlu0 %866
    %v868 = vmul.f32 %v861, %v132
    %v869 = vmul.f32 %v863, %v132
    %v870 = vmul.f32 %v865, %v132
    %v871 = vmul.f32 %v867, %v132
    %872 = vrot.lane.b32.xlu0 %v820, 14
    %v873 = vpop.permute.xlu0 %872
    %874 = vrot.lane.b32.xlu0 %v821, 14
    %v875 = vpop.permute.xlu0 %874
    %876 = vrot.lane.b32.xlu0 %v822, 14
    %v877 = vpop.permute.xlu0 %876
    %878 = vrot.lane.b32.xlu0 %v823, 14
    %v879 = vpop.permute.xlu0 %878
    %v880 = vmul.f32 %v873, %v138
    %v881 = vmul.f32 %v875, %v138
    %v882 = vmul.f32 %v877, %v138
    %v883 = vmul.f32 %v879, %v138
    %884 = vrot.lane.b32.xlu0 %v820, 10
    %v885 = vpop.permute.xlu0 %884
    %886 = vrot.lane.b32.xlu0 %v821, 10
    %v887 = vpop.permute.xlu0 %886
    %888 = vrot.lane.b32.xlu0 %v822, 10
    %v889 = vpop.permute.xlu0 %888
    %890 = vrot.lane.b32.xlu0 %v823, 10
    %v891 = vpop.permute.xlu0 %890
    %v892 = vmul.f32 %v885, %v144
    %v893 = vmul.f32 %v887, %v144
    %v894 = vmul.f32 %v889, %v144
    %v895 = vmul.f32 %v891, %v144
    %896 = vrot.lane.b32.xlu0 %v820, 9
    %v897 = vpop.permute.xlu0 %896
    %898 = vrot.lane.b32.xlu0 %v821, 9
    %v899 = vpop.permute.xlu0 %898
    %900 = vrot.lane.b32.xlu0 %v822, 9
    %v901 = vpop.permute.xlu0 %900
    %902 = vrot.lane.b32.xlu0 %v823, 9
    %v903 = vpop.permute.xlu0 %902
    %v904 = vmul.f32 %v897, %v150
    %v905 = vmul.f32 %v899, %v150
    %v906 = vmul.f32 %v901, %v150
    %v907 = vmul.f32 %v903, %v150
    %908 = vrot.lane.b32.xlu0 %v820, 8
    %v909 = vpop.permute.xlu0 %908
    %910 = vrot.lane.b32.xlu0 %v821, 8
    %v911 = vpop.permute.xlu0 %910
    %912 = vrot.lane.b32.xlu0 %v822, 8
    %v913 = vpop.permute.xlu0 %912
    %914 = vrot.lane.b32.xlu0 %v823, 8
    %v915 = vpop.permute.xlu0 %914
    %v916 = vmul.f32 %v909, %v156
    %v917 = vmul.f32 %v911, %v156
    %v918 = vmul.f32 %v913, %v156
    %v919 = vmul.f32 %v915, %v156
    %920 = vrot.lane.b32.xlu0 %v820, 7
    %v921 = vpop.permute.xlu0 %920
    %922 = vrot.lane.b32.xlu0 %v821, 7
    %v923 = vpop.permute.xlu0 %922
    %924 = vrot.lane.b32.xlu0 %v822, 7
    %v925 = vpop.permute.xlu0 %924
    %926 = vrot.lane.b32.xlu0 %v823, 7
    %v927 = vpop.permute.xlu0 %926
    %v928 = vmul.f32 %v921, %v162
    %v929 = vmul.f32 %v923, %v162
    %v930 = vmul.f32 %v925, %v162
    %v931 = vmul.f32 %v927, %v162
    %932 = vrot.lane.b32.xlu0 %v820, 6
    %v933 = vpop.permute.xlu0 %932
    %934 = vrot.lane.b32.xlu0 %v821, 6
    %v935 = vpop.permute.xlu0 %934
    %936 = vrot.lane.b32.xlu0 %v822, 6
    %v937 = vpop.permute.xlu0 %936
    %938 = vrot.lane.b32.xlu0 %v823, 6
    %v939 = vpop.permute.xlu0 %938
    %v940 = vmul.f32 %v933, %v168
    %v941 = vmul.f32 %v935, %v168
    %v942 = vmul.f32 %v937, %v168
    %v943 = vmul.f32 %v939, %v168
    %944 = vrot.lane.b32.xlu0 %v820, 2
    %v945 = vpop.permute.xlu0 %944
    %946 = vrot.lane.b32.xlu0 %v821, 2
    %v947 = vpop.permute.xlu0 %946
    %948 = vrot.lane.b32.xlu0 %v822, 2
    %v949 = vpop.permute.xlu0 %948
    %950 = vrot.lane.b32.xlu0 %v823, 2
    %v951 = vpop.permute.xlu0 %950
    %v952 = vmul.f32 %v945, %v174
    %v953 = vmul.f32 %v947, %v174
    %v954 = vmul.f32 %v949, %v174
    %v955 = vmul.f32 %v951, %v174
    %956 = vrot.lane.b32.xlu0 %v820, 1
    %v957 = vpop.permute.xlu0 %956
    %958 = vrot.lane.b32.xlu0 %v821, 1
    %v959 = vpop.permute.xlu0 %958
    %960 = vrot.lane.b32.xlu0 %v822, 1
    %v961 = vpop.permute.xlu0 %960
    %962 = vrot.lane.b32.xlu0 %v823, 1
    %v963 = vpop.permute.xlu0 %962
    %v964 = vmul.f32 %v957, %v180
    %v965 = vmul.f32 %v959, %v180
    %v966 = vmul.f32 %v961, %v180
    %v967 = vmul.f32 %v963, %v180
    %v968 = vmul.f32 %v820, %v184
    %v969 = vmul.f32 %v821, %v184
    %v970 = vmul.f32 %v822, %v184
    %v971 = vmul.f32 %v823, %v184
    %972 = vrot.lane.b32.xlu0 %v820, 127
    %v973 = vpop.permute.xlu0 %972
    %974 = vrot.lane.b32.xlu0 %v821, 127
    %v975 = vpop.permute.xlu0 %974
    %976 = vrot.lane.b32.xlu0 %v822, 127
    %v977 = vpop.permute.xlu0 %976
    %978 = vrot.lane.b32.xlu0 %v823, 127
    %v979 = vpop.permute.xlu0 %978
    %v980 = vmul.f32 %v973, %v190
    %v981 = vmul.f32 %v975, %v190
    %v982 = vmul.f32 %v977, %v190
    %v983 = vmul.f32 %v979, %v190
    %984 = vrot.lane.b32.xlu0 %v820, 126
    %v985 = vpop.permute.xlu0 %984
    %986 = vrot.lane.b32.xlu0 %v821, 126
    %v987 = vpop.permute.xlu0 %986
    %988 = vrot.lane.b32.xlu0 %v822, 126
    %v989 = vpop.permute.xlu0 %988
    %990 = vrot.lane.b32.xlu0 %v823, 126
    %v991 = vpop.permute.xlu0 %990
    %v992 = vmul.f32 %v985, %v196
    %v993 = vmul.f32 %v987, %v196
    %v994 = vmul.f32 %v989, %v196
    %v995 = vmul.f32 %v991, %v196
    %996 = vrot.lane.b32.xlu0 %v820, 122
    %v997 = vpop.permute.xlu0 %996
    %998 = vrot.lane.b32.xlu0 %v821, 122
    %v999 = vpop.permute.xlu0 %998
    %1000 = vrot.lane.b32.xlu0 %v822, 122
    %v1001 = vpop.permute.xlu0 %1000
    %1002 = vrot.lane.b32.xlu0 %v823, 122
    %v1003 = vpop.permute.xlu0 %1002
    %v1004 = vmul.f32 %v997, %v202
    %v1005 = vmul.f32 %v999, %v202
    %v1006 = vmul.f32 %v1001, %v202
    %v1007 = vmul.f32 %v1003, %v202
    %1008 = vrot.lane.b32.xlu0 %v820, 121
    %v1009 = vpop.permute.xlu0 %1008
    %1010 = vrot.lane.b32.xlu0 %v821, 121
    %v1011 = vpop.permute.xlu0 %1010
    %1012 = vrot.lane.b32.xlu0 %v822, 121
    %v1013 = vpop.permute.xlu0 %1012
    %1014 = vrot.lane.b32.xlu0 %v823, 121
    %v1015 = vpop.permute.xlu0 %1014
    %v1016 = vmul.f32 %v1009, %v208
    %v1017 = vmul.f32 %v1011, %v208
    %v1018 = vmul.f32 %v1013, %v208
    %v1019 = vmul.f32 %v1015, %v208
    %1020 = vrot.lane.b32.xlu0 %v820, 120
    %v1021 = vpop.permute.xlu0 %1020
    %1022 = vrot.lane.b32.xlu0 %v821, 120
    %v1023 = vpop.permute.xlu0 %1022
    %1024 = vrot.lane.b32.xlu0 %v822, 120
    %v1025 = vpop.permute.xlu0 %1024
    %1026 = vrot.lane.b32.xlu0 %v823, 120
    %v1027 = vpop.permute.xlu0 %1026
    %v1028 = vmul.f32 %v1021, %v214
    %v1029 = vmul.f32 %v1023, %v214
    %v1030 = vmul.f32 %v1025, %v214
    %v1031 = vmul.f32 %v1027, %v214
    %1032 = vrot.lane.b32.xlu0 %v820, 119
    %v1033 = vpop.permute.xlu0 %1032
    %1034 = vrot.lane.b32.xlu0 %v821, 119
    %v1035 = vpop.permute.xlu0 %1034
    %1036 = vrot.lane.b32.xlu0 %v822, 119
    %v1037 = vpop.permute.xlu0 %1036
    %1038 = vrot.lane.b32.xlu0 %v823, 119
    %v1039 = vpop.permute.xlu0 %1038
    %v1040 = vmul.f32 %v1033, %v220
    %v1041 = vmul.f32 %v1035, %v220
    %v1042 = vmul.f32 %v1037, %v220
    %v1043 = vmul.f32 %v1039, %v220
    %1044 = vrot.lane.b32.xlu0 %v820, 118
    %v1045 = vpop.permute.xlu0 %1044
    %1046 = vrot.lane.b32.xlu0 %v821, 118
    %v1047 = vpop.permute.xlu0 %1046
    %1048 = vrot.lane.b32.xlu0 %v822, 118
    %v1049 = vpop.permute.xlu0 %1048
    %1050 = vrot.lane.b32.xlu0 %v823, 118
    %v1051 = vpop.permute.xlu0 %1050
    %v1052 = vmul.f32 %v1045, %v226
    %v1053 = vmul.f32 %v1047, %v226
    %v1054 = vmul.f32 %v1049, %v226
    %v1055 = vmul.f32 %v1051, %v226
    %1056 = vrot.lane.b32.xlu0 %v820, 114
    %v1057 = vpop.permute.xlu0 %1056
    %1058 = vrot.lane.b32.xlu0 %v821, 114
    %v1059 = vpop.permute.xlu0 %1058
    %1060 = vrot.lane.b32.xlu0 %v822, 114
    %v1061 = vpop.permute.xlu0 %1060
    %1062 = vrot.lane.b32.xlu0 %v823, 114
    %v1063 = vpop.permute.xlu0 %1062
    %v1064 = vmul.f32 %v1057, %v232
    %v1065 = vmul.f32 %v1059, %v232
    %v1066 = vmul.f32 %v1061, %v232
    %v1067 = vmul.f32 %v1063, %v232
    %1068 = vrot.lane.b32.xlu0 %v820, 113
    %v1069 = vpop.permute.xlu0 %1068
    %1070 = vrot.lane.b32.xlu0 %v821, 113
    %v1071 = vpop.permute.xlu0 %1070
    %1072 = vrot.lane.b32.xlu0 %v822, 113
    %v1073 = vpop.permute.xlu0 %1072
    %1074 = vrot.lane.b32.xlu0 %v823, 113
    %v1075 = vpop.permute.xlu0 %1074
    %v1076 = vmul.f32 %v1069, %v238
    %v1077 = vmul.f32 %v1071, %v238
    %v1078 = vmul.f32 %v1073, %v238
    %v1079 = vmul.f32 %v1075, %v238
    %1080 = vrot.lane.b32.xlu0 %v820, 112
    %v1081 = vpop.permute.xlu0 %1080
    %1082 = vrot.lane.b32.xlu0 %v821, 112
    %v1083 = vpop.permute.xlu0 %1082
    %1084 = vrot.lane.b32.xlu0 %v822, 112
    %v1085 = vpop.permute.xlu0 %1084
    %1086 = vrot.lane.b32.xlu0 %v823, 112
    %v1087 = vpop.permute.xlu0 %1086
    %v1088 = vmul.f32 %v1081, %v244
    %v1089 = vmul.f32 %v1083, %v244
    %v1090 = vmul.f32 %v1085, %v244
    %v1091 = vmul.f32 %v1087, %v244
    %1092 = vrot.lane.b32.xlu0 %v820, 111
    %v1093 = vpop.permute.xlu0 %1092
    %1094 = vrot.lane.b32.xlu0 %v821, 111
    %v1095 = vpop.permute.xlu0 %1094
    %1096 = vrot.lane.b32.xlu0 %v822, 111
    %v1097 = vpop.permute.xlu0 %1096
    %1098 = vrot.lane.b32.xlu0 %v823, 111
    %v1099 = vpop.permute.xlu0 %1098
    %v1100 = vmul.f32 %v1093, %v250
    %v1101 = vmul.f32 %v1095, %v250
    %v1102 = vmul.f32 %v1097, %v250
    %v1103 = vmul.f32 %v1099, %v250
    %1104 = vrot.lane.b32.xlu0 %v820, 110
    %v1105 = vpop.permute.xlu0 %1104
    %1106 = vrot.lane.b32.xlu0 %v821, 110
    %v1107 = vpop.permute.xlu0 %1106
    %1108 = vrot.lane.b32.xlu0 %v822, 110
    %v1109 = vpop.permute.xlu0 %1108
    %1110 = vrot.lane.b32.xlu0 %v823, 110
    %v1111 = vpop.permute.xlu0 %1110
    %v1112 = vmul.f32 %v1105, %v256
    %v1113 = vmul.f32 %v1107, %v256
    %v1114 = vmul.f32 %v1109, %v256
    %v1115 = vmul.f32 %v1111, %v256
    %v1116 = vpack.c.bf16 %v833, %v832
    %v1117 = vpack.c.bf16 %v835, %v834
    %v1118 = vpack.c.bf16 %v845, %v844
    %v1119 = vpack.c.bf16 %v847, %v846
    %v1120 = vpack.c.bf16 %v857, %v856
    %v1121 = vpack.c.bf16 %v859, %v858
    %v1122 = vpack.c.bf16 %v869, %v868
    %v1123 = vpack.c.bf16 %v871, %v870
    %v1124 = vpack.c.bf16 %v881, %v880
    %v1125 = vpack.c.bf16 %v883, %v882
    %v1126 = vpack.c.bf16 %v893, %v892
    %v1127 = vpack.c.bf16 %v895, %v894
    %v1128 = vpack.c.bf16 %v905, %v904
    %v1129 = vpack.c.bf16 %v907, %v906
    %v1130 = vpack.c.bf16 %v917, %v916
    %v1131 = vpack.c.bf16 %v919, %v918
    %v1132 = vpack.c.bf16 %v929, %v928
    %v1133 = vpack.c.bf16 %v931, %v930
    %v1134 = vpack.c.bf16 %v941, %v940
    %v1135 = vpack.c.bf16 %v943, %v942
    %v1136 = vpack.c.bf16 %v953, %v952
    %v1137 = vpack.c.bf16 %v955, %v954
    %v1138 = vpack.c.bf16 %v965, %v964
    %v1139 = vpack.c.bf16 %v967, %v966
    %v1140 = vpack.c.bf16 %v969, %v968
    %v1141 = vpack.c.bf16 %v971, %v970
    %v1142 = vpack.c.bf16 %v981, %v980
    %v1143 = vpack.c.bf16 %v983, %v982
    %v1144 = vpack.c.bf16 %v993, %v992
    %v1145 = vpack.c.bf16 %v995, %v994
    %v1146 = vpack.c.bf16 %v1005, %v1004
    %v1147 = vpack.c.bf16 %v1007, %v1006
    %v1148 = vpack.c.bf16 %v1017, %v1016
    %v1149 = vpack.c.bf16 %v1019, %v1018
    %v1150 = vpack.c.bf16 %v1029, %v1028
    %v1151 = vpack.c.bf16 %v1031, %v1030
    %v1152 = vpack.c.bf16 %v1041, %v1040
    %v1153 = vpack.c.bf16 %v1043, %v1042
    %v1154 = vpack.c.bf16 %v1053, %v1052
    %v1155 = vpack.c.bf16 %v1055, %v1054
    %v1156 = vpack.c.bf16 %v1065, %v1064
    %v1157 = vpack.c.bf16 %v1067, %v1066
    %v1158 = vpack.c.bf16 %v1077, %v1076
    %v1159 = vpack.c.bf16 %v1079, %v1078
    %v1160 = vpack.c.bf16 %v1089, %v1088
    %v1161 = vpack.c.bf16 %v1091, %v1090
    %v1162 = vpack.c.bf16 %v1101, %v1100
    %v1163 = vpack.c.bf16 %v1103, %v1102
    %v1164 = vpack.c.bf16 %v1113, %v1112
    %v1165 = vpack.c.bf16 %v1115, %v1114
    %v1166 = vld [vmem:[%s6] sm:$0xff]
    %v1167 = vld [vmem:[%s6 + $0x8] sm:$0xff]
    %v1168 = vld [vmem:[%s6 + $0x10] sm:$0xff]
    %v1169 = vld [vmem:[%s6 + $0x18] sm:$0xf]
    %v1170 = vld [vmem:[%s6 + $0x1c] sm:$0xff]
    %v1171 = vld [vmem:[%s6 + $0x24] sm:$0xff]
    %v1172 = vld [vmem:[%s6 + $0x2c] sm:$0xff]
    %v1173 = vld [vmem:[%s6 + $0x34] sm:$0xf]
    %v1174 = vld [vmem:[%s6 + $0x38] sm:$0xff]
    %v1175 = vld [vmem:[%s6 + $0x40] sm:$0xff]
    %v1176 = vld [vmem:[%s6 + $0x48] sm:$0xff]
    %v1177 = vld [vmem:[%s6 + $0x50] sm:$0xf]
    %v1178 = vld [vmem:[%s6 + $0x54] sm:$0xff]
    %v1179 = vld [vmem:[%s6 + $0x5c] sm:$0xff]
    %v1180 = vld [vmem:[%s6 + $0x64] sm:$0xff]
    %v1181 = vld [vmem:[%s6 + $0x6c] sm:$0xf]
    %v1198 = vunpack.c.l.b16 %v1166
    %v1199 = vunpack.c.h.b16 %v1166
    %v1200 = vunpack.c.l.b16 %v1167
    %v1201 = vunpack.c.h.b16 %v1167
    %v1202 = vunpack.c.l.b16 %v1168
    %v1203 = vunpack.c.h.b16 %v1168
    %v1204 = vunpack.c.l.b16 %v1169
    %v1205 = vunpack.c.l.b16 %v1170
    %v1206 = vunpack.c.h.b16 %v1170
    %v1207 = vunpack.c.l.b16 %v1171
    %v1208 = vunpack.c.h.b16 %v1171
    %v1209 = vunpack.c.l.b16 %v1172
    %v1210 = vunpack.c.h.b16 %v1172
    %v1211 = vunpack.c.l.b16 %v1173
    %v1212 = vunpack.c.l.b16 %v1174
    %v1213 = vunpack.c.h.b16 %v1174
    %v1214 = vunpack.c.l.b16 %v1175
    %v1215 = vunpack.c.h.b16 %v1175
    %v1216 = vunpack.c.l.b16 %v1176
    %v1217 = vunpack.c.h.b16 %v1176
    %v1218 = vunpack.c.l.b16 %v1177
    %v1219 = vunpack.c.l.b16 %v1178
    %v1220 = vunpack.c.h.b16 %v1178
    %v1221 = vunpack.c.l.b16 %v1179
    %v1222 = vunpack.c.h.b16 %v1179
    %v1223 = vunpack.c.l.b16 %v1180
    %v1224 = vunpack.c.h.b16 %v1180
    %v1225 = vunpack.c.l.b16 %v1181
    %v1226 = vpack.c.b16 %v1205, %v1198
    %v1227 = vpack.c.b16 %v1206, %v1199
    %v1228 = vpack.c.b16 %v1207, %v1200
    %v1229 = vpack.c.b16 %v1208, %v1201
    %v1230 = vpack.c.b16 %v1209, %v1202
    %v1231 = vpack.c.b16 %v1210, %v1203
    %v1232 = vpack.c.b16 %v1211, %v1204
    %v1233 = vpack.c.b16 %v1219, %v1212
    %v1234 = vpack.c.b16 %v1220, %v1213
    %v1235 = vpack.c.b16 %v1221, %v1214
    %v1236 = vpack.c.b16 %v1222, %v1215
    %v1237 = vpack.c.b16 %v1223, %v1216
    %v1238 = vpack.c.b16 %v1224, %v1217
    %v1239 = vpack.c.b16 %v1225, %v1218
    %vm1252 = vcmask 261120
    %v1254 = vsel %vm1252, %v1232, 0
    %v1257 = vsel %vm1252, %v1239, 0
    %1259 = vmatpush.bf16.msra.mxu0 %v1123
    %1260 = vmatpush.bf16.msra.mxu0 %v1122
    %1261 = vmatpush.bf16.msra.mxu0 %v1121
    %1262 = vmatpush.bf16.msra.mxu0 %v1120
    %1263 = vmatpush.bf16.msra.mxu0 %v1119
    %1264 = vmatpush.bf16.msra.mxu0 %v1118
    %1265 = vmatpush.bf16.msra.mxu0 %v1117
    %1266 = vmatpush.bf16.msra.mxu0 %v1116
    %1267 = vmatmul.bf16.gmra.mxu0 %v1226
    %v1268 = vpop.f32.mrf.mxu0
    %v1269 = vadd.f32 0.0, %v1268
    %v1270 = vpop.f32.mrf.mxu0
    %v1271 = vadd.f32 0.0, %v1270
    %1272 = vmatmul.bf16.gmra.mxu0 %v1233
    %v1273 = vpop.f32.mrf.mxu0
    %v1274 = vadd.f32 0.0, %v1273
    %v1275 = vpop.f32.mrf.mxu0
    %v1276 = vadd.f32 0.0, %v1275
    %1277 = vdwg.mxu0
    %1278 = vmatpush.bf16.msra.mxu0 %v1131
    %1279 = vmatpush.bf16.msra.mxu0 %v1130
    %1280 = vmatpush.bf16.msra.mxu0 %v1129
    %1281 = vmatpush.bf16.msra.mxu0 %v1128
    %1282 = vmatpush.bf16.msra.mxu0 %v1127
    %1283 = vmatpush.bf16.msra.mxu0 %v1126
    %1284 = vmatpush.bf16.msra.mxu0 %v1125
    %1285 = vmatpush.bf16.msra.mxu0 %v1124
    %1286 = vmatmul.bf16.gmra.mxu0 %v1227
    %v1287 = vpop.f32.mrf.mxu0
    %v1288 = vadd.f32 %v1269, %v1287
    %v1289 = vpop.f32.mrf.mxu0
    %v1290 = vadd.f32 %v1271, %v1289
    %1291 = vmatmul.bf16.gmra.mxu0 %v1234
    %v1292 = vpop.f32.mrf.mxu0
    %v1293 = vadd.f32 %v1274, %v1292
    %v1294 = vpop.f32.mrf.mxu0
    %v1295 = vadd.f32 %v1276, %v1294
    %1296 = vdwg.mxu0
    %1297 = vmatpush.bf16.msra.mxu0 %v1139
    %1298 = vmatpush.bf16.msra.mxu0 %v1138
    %1299 = vmatpush.bf16.msra.mxu0 %v1137
    %1300 = vmatpush.bf16.msra.mxu0 %v1136
    %1301 = vmatpush.bf16.msra.mxu0 %v1135
    %1302 = vmatpush.bf16.msra.mxu0 %v1134
    %1303 = vmatpush.bf16.msra.mxu0 %v1133
    %1304 = vmatpush.bf16.msra.mxu0 %v1132
    %1305 = vmatmul.bf16.gmra.mxu0 %v1228
    %v1306 = vpop.f32.mrf.mxu0
    %v1307 = vadd.f32 %v1288, %v1306
    %v1308 = vpop.f32.mrf.mxu0
    %v1309 = vadd.f32 %v1290, %v1308
    %1310 = vmatmul.bf16.gmra.mxu0 %v1235
    %v1311 = vpop.f32.mrf.mxu0
    %v1312 = vadd.f32 %v1293, %v1311
    %v1313 = vpop.f32.mrf.mxu0
    %v1314 = vadd.f32 %v1295, %v1313
    %1315 = vdwg.mxu0
    %1316 = vmatpush.bf16.msra.mxu0 %v1147
    %1317 = vmatpush.bf16.msra.mxu0 %v1146
    %1318 = vmatpush.bf16.msra.mxu0 %v1145
    %1319 = vmatpush.bf16.msra.mxu0 %v1144
    %1320 = vmatpush.bf16.msra.mxu0 %v1143
    %1321 = vmatpush.bf16.msra.mxu0 %v1142
    %1322 = vmatpush.bf16.msra.mxu0 %v1141
    %1323 = vmatpush.bf16.msra.mxu0 %v1140
    %1324 = vmatmul.bf16.gmra.mxu0 %v1229
    %v1325 = vpop.f32.mrf.mxu0
    %v1326 = vadd.f32 %v1307, %v1325
    %v1327 = vpop.f32.mrf.mxu0
    %v1328 = vadd.f32 %v1309, %v1327
    %1329 = vmatmul.bf16.gmra.mxu0 %v1236
    %v1330 = vpop.f32.mrf.mxu0
    %v1331 = vadd.f32 %v1312, %v1330
    %v1332 = vpop.f32.mrf.mxu0
    %v1333 = vadd.f32 %v1314, %v1332
    %1334 = vdwg.mxu0
    %1335 = vmatpush.bf16.msra.mxu0 %v1155
    %1336 = vmatpush.bf16.msra.mxu0 %v1154
    %1337 = vmatpush.bf16.msra.mxu0 %v1153
    %1338 = vmatpush.bf16.msra.mxu0 %v1152
    %1339 = vmatpush.bf16.msra.mxu0 %v1151
    %1340 = vmatpush.bf16.msra.mxu0 %v1150
    %1341 = vmatpush.bf16.msra.mxu0 %v1149
    %1342 = vmatpush.bf16.msra.mxu0 %v1148
    %1343 = vmatmul.bf16.gmra.mxu0 %v1230
    %v1344 = vpop.f32.mrf.mxu0
    %v1345 = vadd.f32 %v1326, %v1344
    %v1346 = vpop.f32.mrf.mxu0
    %v1347 = vadd.f32 %v1328, %v1346
    %1348 = vmatmul.bf16.gmra.mxu0 %v1237
    %v1349 = vpop.f32.mrf.mxu0
    %v1350 = vadd.f32 %v1331, %v1349
    %v1351 = vpop.f32.mrf.mxu0
    %v1352 = vadd.f32 %v1333, %v1351
    %1353 = vdwg.mxu0
    %1354 = vmatpush.bf16.msra.mxu0 %v1163
    %1355 = vmatpush.bf16.msra.mxu0 %v1162
    %1356 = vmatpush.bf16.msra.mxu0 %v1161
    %1357 = vmatpush.bf16.msra.mxu0 %v1160
    %1358 = vmatpush.bf16.msra.mxu0 %v1159
    %1359 = vmatpush.bf16.msra.mxu0 %v1158
    %1360 = vmatpush.bf16.msra.mxu0 %v1157
    %1361 = vmatpush.bf16.msra.mxu0 %v1156
    %1362 = vmatmul.bf16.gmra.mxu0 %v1231
    %v1363 = vpop.f32.mrf.mxu0
    %v1364 = vadd.f32 %v1345, %v1363
    %v1365 = vpop.f32.mrf.mxu0
    %v1366 = vadd.f32 %v1347, %v1365
    %1367 = vmatmul.bf16.gmra.mxu0 %v1238
    %v1368 = vpop.f32.mrf.mxu0
    %v1369 = vadd.f32 %v1350, %v1368
    %v1370 = vpop.f32.mrf.mxu0
    %v1371 = vadd.f32 %v1352, %v1370
    %1372 = vdwg.mxu0
    %1373 = vmatpush.bf16.msra.mxu0 0
    %1374 = vmatpush.bf16.msra.mxu0 0
    %1375 = vmatpush.bf16.msra.mxu0 0
    %1376 = vmatpush.bf16.msra.mxu0 0
    %1377 = vmatpush.bf16.msra.mxu0 0
    %1378 = vmatpush.bf16.msra.mxu0 0
    %1379 = vmatpush.bf16.msra.mxu0 %v1165
    %1380 = vmatpush.bf16.msra.mxu0 %v1164
    %1381 = vmatmul.bf16.gmra.mxu0 %v1254
    %v1382 = vpop.f32.mrf.mxu0
    %v1383 = vadd.f32 %v1364, %v1382
    %v1384 = vpop.f32.mrf.mxu0
    %v1385 = vadd.f32 %v1366, %v1384
    %1386 = vmatmul.bf16.gmra.mxu0 %v1257
    %v1387 = vpop.f32.mrf.mxu0
    %v1388 = vadd.f32 %v1369, %v1387
    %v1389 = vpop.f32.mrf.mxu0
    %v1390 = vadd.f32 %v1371, %v1389
    %1391 = vdwg.mxu0
    %v1392 = vld [vmem:[%s12] sm:$0xff]
    %v1393 = vld [vmem:[%s12 + $0x8] sm:$0xff]
    %v1394 = vld [vmem:[%s12 + $0x10] sm:$0xff]
    %v1395 = vld [vmem:[%s12 + $0x18] sm:$0xff]
    %1396 = vadd.xlane.f32.xlu0 %v1383
    %v1397 = vpop.xlane.xlu0 %1396
    %1398 = vadd.xlane.f32.xlu0 %v1385
    %v1399 = vpop.xlane.xlu0 %1398
    %1400 = vadd.xlane.f32.xlu0 %v1388
    %v1401 = vpop.xlane.xlu0 %1400
    %1402 = vadd.xlane.f32.xlu0 %v1390
    %v1403 = vpop.xlane.xlu0 %1402
    %v1404 = vmul.f32 %v1397, %v331
    %v1405 = vmul.f32 %v1399, %v331
    %v1406 = vmul.f32 %v1401, %v331
    %v1407 = vmul.f32 %v1403, %v331
    %v1408 = vsub.f32 %v1383, %v1404
    %v1409 = vsub.f32 %v1385, %v1405
    %v1410 = vsub.f32 %v1388, %v1406
    %v1411 = vsub.f32 %v1390, %v1407
    %v1412 = vmul.f32 %v1408, %v1408
    %v1413 = vmul.f32 %v1409, %v1409
    %v1414 = vmul.f32 %v1410, %v1410
    %v1415 = vmul.f32 %v1411, %v1411
    %1416 = vadd.xlane.f32.xlu0 %v1412
    %v1417 = vpop.xlane.xlu0 %1416
    %1418 = vadd.xlane.f32.xlu0 %v1413
    %v1419 = vpop.xlane.xlu0 %1418
    %1420 = vadd.xlane.f32.xlu0 %v1414
    %v1421 = vpop.xlane.xlu0 %1420
    %1422 = vadd.xlane.f32.xlu0 %v1415
    %v1423 = vpop.xlane.xlu0 %1422
    %v1424 = vmul.f32 %v1417, %v331
    %v1425 = vmul.f32 %v1419, %v331
    %v1426 = vmul.f32 %v1421, %v331
    %v1427 = vmul.f32 %v1423, %v331
    %v1428 = vadd.f32 %v1424, 1e-05
    %v1429 = vadd.f32 %v1425, 1e-05
    %v1430 = vadd.f32 %v1426, 1e-05
    %v1431 = vadd.f32 %v1427, 1e-05
    %v1432 = vrsqrt.pop %v1428
    %v1433 = vmul.f32 %v1432, %v1428
    %v1434 = vmul.f32 %v1433, %v1432
    %v1435 = vmul.f32 0.5, %v1434
    %v1436 = vsub.f32 1.5, %v1435
    %v1437 = vmul.f32 %v1432, %v1436
    %vm1438 = vweird.f32 %v1428
    %vm1439 = vweird.f32 %v1432
    %vm1440 = vmor %vm1438, %vm1439
    %v1441 = vsel %vm1440, %v1432, %v1437
    %v1442 = vrsqrt.pop %v1429
    %v1443 = vmul.f32 %v1442, %v1429
    %v1444 = vmul.f32 %v1443, %v1442
    %v1445 = vmul.f32 0.5, %v1444
    %v1446 = vsub.f32 1.5, %v1445
    %v1447 = vmul.f32 %v1442, %v1446
    %vm1448 = vweird.f32 %v1429
    %vm1449 = vweird.f32 %v1442
    %vm1450 = vmor %vm1448, %vm1449
    %v1451 = vsel %vm1450, %v1442, %v1447
    %v1452 = vrsqrt.pop %v1430
    %v1453 = vmul.f32 %v1452, %v1430
    %v1454 = vmul.f32 %v1453, %v1452
    %v1455 = vmul.f32 0.5, %v1454
    %v1456 = vsub.f32 1.5, %v1455
    %v1457 = vmul.f32 %v1452, %v1456
    %vm1458 = vweird.f32 %v1430
    %vm1459 = vweird.f32 %v1452
    %vm1460 = vmor %vm1458, %vm1459
    %v1461 = vsel %vm1460, %v1452, %v1457
    %v1462 = vrsqrt.pop %v1431
    %v1463 = vmul.f32 %v1462, %v1431
    %v1464 = vmul.f32 %v1463, %v1462
    %v1465 = vmul.f32 0.5, %v1464
    %v1466 = vsub.f32 1.5, %v1465
    %v1467 = vmul.f32 %v1462, %v1466
    %vm1468 = vweird.f32 %v1431
    %vm1469 = vweird.f32 %v1462
    %vm1470 = vmor %vm1468, %vm1469
    %v1471 = vsel %vm1470, %v1462, %v1467
    %v1472 = vmul.f32 %v1408, %v1441
    %v1473 = vmul.f32 %v1409, %v1451
    %v1474 = vmul.f32 %v1410, %v1461
    %v1475 = vmul.f32 %v1411, %v1471
    %1477 = vset.pattern.permute.xlu0 0
    %1478 = vperm.xlu0 %1477, %v1392
    %v1479 = vpop.permute.xlu0 %1478
    %1482 = vset.pattern.permute.xlu0 0
    %1483 = vperm.xlu0 %1482, %v1393
    %v1484 = vpop.permute.xlu0 %1483
    %1487 = vset.pattern.permute.xlu0 0
    %1488 = vperm.xlu0 %1487, %v1394
    %v1489 = vpop.permute.xlu0 %1488
    %1492 = vset.pattern.permute.xlu0 0
    %1493 = vperm.xlu0 %1492, %v1395
    %v1494 = vpop.permute.xlu0 %1493
    %v1496 = vmul.f32 %v1472, %v1479
    %v1497 = vmul.f32 %v1473, %v1484
    %v1498 = vmul.f32 %v1474, %v1489
    %v1499 = vmul.f32 %v1475, %v1494
    %1500 = vset.pattern.permute.xlu0 1
    %1501 = vperm.xlu0 %1500, %v1392
    %v1502 = vpop.permute.xlu0 %1501
    %1504 = vset.pattern.permute.xlu0 1
    %1505 = vperm.xlu0 %1504, %v1393
    %v1506 = vpop.permute.xlu0 %1505
    %1508 = vset.pattern.permute.xlu0 1
    %1509 = vperm.xlu0 %1508, %v1394
    %v1510 = vpop.permute.xlu0 %1509
    %1512 = vset.pattern.permute.xlu0 1
    %1513 = vperm.xlu0 %1512, %v1395
    %v1514 = vpop.permute.xlu0 %1513
    %v1516 = vadd.f32 %v1496, %v1502
    %v1517 = vadd.f32 %v1497, %v1506
    %v1518 = vadd.f32 %v1498, %v1510
    %v1519 = vadd.f32 %v1499, %v1514
    %v1520 = vtanh.pop %v1516
    %v1521 = vtanh.pop %v1517
    %v1522 = vtanh.pop %v1518
    %v1523 = vtanh.pop %v1519
    %1524 = vrot.lane.b32.xlu0 %v1520, 18
    %v1525 = vpop.permute.xlu0 %1524
    %1526 = vrot.lane.b32.xlu0 %v1521, 18
    %v1527 = vpop.permute.xlu0 %1526
    %1528 = vrot.lane.b32.xlu0 %v1522, 18
    %v1529 = vpop.permute.xlu0 %1528
    %1530 = vrot.lane.b32.xlu0 %v1523, 18
    %v1531 = vpop.permute.xlu0 %1530
    %v1532 = vmul.f32 %v1525, %v114
    %v1533 = vmul.f32 %v1527, %v114
    %v1534 = vmul.f32 %v1529, %v114
    %v1535 = vmul.f32 %v1531, %v114
    %1536 = vrot.lane.b32.xlu0 %v1520, 17
    %v1537 = vpop.permute.xlu0 %1536
    %1538 = vrot.lane.b32.xlu0 %v1521, 17
    %v1539 = vpop.permute.xlu0 %1538
    %1540 = vrot.lane.b32.xlu0 %v1522, 17
    %v1541 = vpop.permute.xlu0 %1540
    %1542 = vrot.lane.b32.xlu0 %v1523, 17
    %v1543 = vpop.permute.xlu0 %1542
    %v1544 = vmul.f32 %v1537, %v120
    %v1545 = vmul.f32 %v1539, %v120
    %v1546 = vmul.f32 %v1541, %v120
    %v1547 = vmul.f32 %v1543, %v120
    %1548 = vrot.lane.b32.xlu0 %v1520, 16
    %v1549 = vpop.permute.xlu0 %1548
    %1550 = vrot.lane.b32.xlu0 %v1521, 16
    %v1551 = vpop.permute.xlu0 %1550
    %1552 = vrot.lane.b32.xlu0 %v1522, 16
    %v1553 = vpop.permute.xlu0 %1552
    %1554 = vrot.lane.b32.xlu0 %v1523, 16
    %v1555 = vpop.permute.xlu0 %1554
    %v1556 = vmul.f32 %v1549, %v126
    %v1557 = vmul.f32 %v1551, %v126
    %v1558 = vmul.f32 %v1553, %v126
    %v1559 = vmul.f32 %v1555, %v126
    %1560 = vrot.lane.b32.xlu0 %v1520, 15
    %v1561 = vpop.permute.xlu0 %1560
    %1562 = vrot.lane.b32.xlu0 %v1521, 15
    %v1563 = vpop.permute.xlu0 %1562
    %1564 = vrot.lane.b32.xlu0 %v1522, 15
    %v1565 = vpop.permute.xlu0 %1564
    %1566 = vrot.lane.b32.xlu0 %v1523, 15
    %v1567 = vpop.permute.xlu0 %1566
    %v1568 = vmul.f32 %v1561, %v132
    %v1569 = vmul.f32 %v1563, %v132
    %v1570 = vmul.f32 %v1565, %v132
    %v1571 = vmul.f32 %v1567, %v132
    %1572 = vrot.lane.b32.xlu0 %v1520, 14
    %v1573 = vpop.permute.xlu0 %1572
    %1574 = vrot.lane.b32.xlu0 %v1521, 14
    %v1575 = vpop.permute.xlu0 %1574
    %1576 = vrot.lane.b32.xlu0 %v1522, 14
    %v1577 = vpop.permute.xlu0 %1576
    %1578 = vrot.lane.b32.xlu0 %v1523, 14
    %v1579 = vpop.permute.xlu0 %1578
    %v1580 = vmul.f32 %v1573, %v138
    %v1581 = vmul.f32 %v1575, %v138
    %v1582 = vmul.f32 %v1577, %v138
    %v1583 = vmul.f32 %v1579, %v138
    %1584 = vrot.lane.b32.xlu0 %v1520, 10
    %v1585 = vpop.permute.xlu0 %1584
    %1586 = vrot.lane.b32.xlu0 %v1521, 10
    %v1587 = vpop.permute.xlu0 %1586
    %1588 = vrot.lane.b32.xlu0 %v1522, 10
    %v1589 = vpop.permute.xlu0 %1588
    %1590 = vrot.lane.b32.xlu0 %v1523, 10
    %v1591 = vpop.permute.xlu0 %1590
    %v1592 = vmul.f32 %v1585, %v144
    %v1593 = vmul.f32 %v1587, %v144
    %v1594 = vmul.f32 %v1589, %v144
    %v1595 = vmul.f32 %v1591, %v144
    %1596 = vrot.lane.b32.xlu0 %v1520, 9
    %v1597 = vpop.permute.xlu0 %1596
    %1598 = vrot.lane.b32.xlu0 %v1521, 9
    %v1599 = vpop.permute.xlu0 %1598
    %1600 = vrot.lane.b32.xlu0 %v1522, 9
    %v1601 = vpop.permute.xlu0 %1600
    %1602 = vrot.lane.b32.xlu0 %v1523, 9
    %v1603 = vpop.permute.xlu0 %1602
    %v1604 = vmul.f32 %v1597, %v150
    %v1605 = vmul.f32 %v1599, %v150
    %v1606 = vmul.f32 %v1601, %v150
    %v1607 = vmul.f32 %v1603, %v150
    %1608 = vrot.lane.b32.xlu0 %v1520, 8
    %v1609 = vpop.permute.xlu0 %1608
    %1610 = vrot.lane.b32.xlu0 %v1521, 8
    %v1611 = vpop.permute.xlu0 %1610
    %1612 = vrot.lane.b32.xlu0 %v1522, 8
    %v1613 = vpop.permute.xlu0 %1612
    %1614 = vrot.lane.b32.xlu0 %v1523, 8
    %v1615 = vpop.permute.xlu0 %1614
    %v1616 = vmul.f32 %v1609, %v156
    %v1617 = vmul.f32 %v1611, %v156
    %v1618 = vmul.f32 %v1613, %v156
    %v1619 = vmul.f32 %v1615, %v156
    %1620 = vrot.lane.b32.xlu0 %v1520, 7
    %v1621 = vpop.permute.xlu0 %1620
    %1622 = vrot.lane.b32.xlu0 %v1521, 7
    %v1623 = vpop.permute.xlu0 %1622
    %1624 = vrot.lane.b32.xlu0 %v1522, 7
    %v1625 = vpop.permute.xlu0 %1624
    %1626 = vrot.lane.b32.xlu0 %v1523, 7
    %v1627 = vpop.permute.xlu0 %1626
    %v1628 = vmul.f32 %v1621, %v162
    %v1629 = vmul.f32 %v1623, %v162
    %v1630 = vmul.f32 %v1625, %v162
    %v1631 = vmul.f32 %v1627, %v162
    %1632 = vrot.lane.b32.xlu0 %v1520, 6
    %v1633 = vpop.permute.xlu0 %1632
    %1634 = vrot.lane.b32.xlu0 %v1521, 6
    %v1635 = vpop.permute.xlu0 %1634
    %1636 = vrot.lane.b32.xlu0 %v1522, 6
    %v1637 = vpop.permute.xlu0 %1636
    %1638 = vrot.lane.b32.xlu0 %v1523, 6
    %v1639 = vpop.permute.xlu0 %1638
    %v1640 = vmul.f32 %v1633, %v168
    %v1641 = vmul.f32 %v1635, %v168
    %v1642 = vmul.f32 %v1637, %v168
    %v1643 = vmul.f32 %v1639, %v168
    %1644 = vrot.lane.b32.xlu0 %v1520, 2
    %v1645 = vpop.permute.xlu0 %1644
    %1646 = vrot.lane.b32.xlu0 %v1521, 2
    %v1647 = vpop.permute.xlu0 %1646
    %1648 = vrot.lane.b32.xlu0 %v1522, 2
    %v1649 = vpop.permute.xlu0 %1648
    %1650 = vrot.lane.b32.xlu0 %v1523, 2
    %v1651 = vpop.permute.xlu0 %1650
    %v1652 = vmul.f32 %v1645, %v174
    %v1653 = vmul.f32 %v1647, %v174
    %v1654 = vmul.f32 %v1649, %v174
    %v1655 = vmul.f32 %v1651, %v174
    %1656 = vrot.lane.b32.xlu0 %v1520, 1
    %v1657 = vpop.permute.xlu0 %1656
    %1658 = vrot.lane.b32.xlu0 %v1521, 1
    %v1659 = vpop.permute.xlu0 %1658
    %1660 = vrot.lane.b32.xlu0 %v1522, 1
    %v1661 = vpop.permute.xlu0 %1660
    %1662 = vrot.lane.b32.xlu0 %v1523, 1
    %v1663 = vpop.permute.xlu0 %1662
    %v1664 = vmul.f32 %v1657, %v180
    %v1665 = vmul.f32 %v1659, %v180
    %v1666 = vmul.f32 %v1661, %v180
    %v1667 = vmul.f32 %v1663, %v180
    %v1668 = vmul.f32 %v1520, %v184
    %v1669 = vmul.f32 %v1521, %v184
    %v1670 = vmul.f32 %v1522, %v184
    %v1671 = vmul.f32 %v1523, %v184
    %1672 = vrot.lane.b32.xlu0 %v1520, 127
    %v1673 = vpop.permute.xlu0 %1672
    %1674 = vrot.lane.b32.xlu0 %v1521, 127
    %v1675 = vpop.permute.xlu0 %1674
    %1676 = vrot.lane.b32.xlu0 %v1522, 127
    %v1677 = vpop.permute.xlu0 %1676
    %1678 = vrot.lane.b32.xlu0 %v1523, 127
    %v1679 = vpop.permute.xlu0 %1678
    %v1680 = vmul.f32 %v1673, %v190
    %v1681 = vmul.f32 %v1675, %v190
    %v1682 = vmul.f32 %v1677, %v190
    %v1683 = vmul.f32 %v1679, %v190
    %1684 = vrot.lane.b32.xlu0 %v1520, 126
    %v1685 = vpop.permute.xlu0 %1684
    %1686 = vrot.lane.b32.xlu0 %v1521, 126
    %v1687 = vpop.permute.xlu0 %1686
    %1688 = vrot.lane.b32.xlu0 %v1522, 126
    %v1689 = vpop.permute.xlu0 %1688
    %1690 = vrot.lane.b32.xlu0 %v1523, 126
    %v1691 = vpop.permute.xlu0 %1690
    %v1692 = vmul.f32 %v1685, %v196
    %v1693 = vmul.f32 %v1687, %v196
    %v1694 = vmul.f32 %v1689, %v196
    %v1695 = vmul.f32 %v1691, %v196
    %1696 = vrot.lane.b32.xlu0 %v1520, 122
    %v1697 = vpop.permute.xlu0 %1696
    %1698 = vrot.lane.b32.xlu0 %v1521, 122
    %v1699 = vpop.permute.xlu0 %1698
    %1700 = vrot.lane.b32.xlu0 %v1522, 122
    %v1701 = vpop.permute.xlu0 %1700
    %1702 = vrot.lane.b32.xlu0 %v1523, 122
    %v1703 = vpop.permute.xlu0 %1702
    %v1704 = vmul.f32 %v1697, %v202
    %v1705 = vmul.f32 %v1699, %v202
    %v1706 = vmul.f32 %v1701, %v202
    %v1707 = vmul.f32 %v1703, %v202
    %1708 = vrot.lane.b32.xlu0 %v1520, 121
    %v1709 = vpop.permute.xlu0 %1708
    %1710 = vrot.lane.b32.xlu0 %v1521, 121
    %v1711 = vpop.permute.xlu0 %1710
    %1712 = vrot.lane.b32.xlu0 %v1522, 121
    %v1713 = vpop.permute.xlu0 %1712
    %1714 = vrot.lane.b32.xlu0 %v1523, 121
    %v1715 = vpop.permute.xlu0 %1714
    %v1716 = vmul.f32 %v1709, %v208
    %v1717 = vmul.f32 %v1711, %v208
    %v1718 = vmul.f32 %v1713, %v208
    %v1719 = vmul.f32 %v1715, %v208
    %1720 = vrot.lane.b32.xlu0 %v1520, 120
    %v1721 = vpop.permute.xlu0 %1720
    %1722 = vrot.lane.b32.xlu0 %v1521, 120
    %v1723 = vpop.permute.xlu0 %1722
    %1724 = vrot.lane.b32.xlu0 %v1522, 120
    %v1725 = vpop.permute.xlu0 %1724
    %1726 = vrot.lane.b32.xlu0 %v1523, 120
    %v1727 = vpop.permute.xlu0 %1726
    %v1728 = vmul.f32 %v1721, %v214
    %v1729 = vmul.f32 %v1723, %v214
    %v1730 = vmul.f32 %v1725, %v214
    %v1731 = vmul.f32 %v1727, %v214
    %1732 = vrot.lane.b32.xlu0 %v1520, 119
    %v1733 = vpop.permute.xlu0 %1732
    %1734 = vrot.lane.b32.xlu0 %v1521, 119
    %v1735 = vpop.permute.xlu0 %1734
    %1736 = vrot.lane.b32.xlu0 %v1522, 119
    %v1737 = vpop.permute.xlu0 %1736
    %1738 = vrot.lane.b32.xlu0 %v1523, 119
    %v1739 = vpop.permute.xlu0 %1738
    %v1740 = vmul.f32 %v1733, %v220
    %v1741 = vmul.f32 %v1735, %v220
    %v1742 = vmul.f32 %v1737, %v220
    %v1743 = vmul.f32 %v1739, %v220
    %1744 = vrot.lane.b32.xlu0 %v1520, 118
    %v1745 = vpop.permute.xlu0 %1744
    %1746 = vrot.lane.b32.xlu0 %v1521, 118
    %v1747 = vpop.permute.xlu0 %1746
    %1748 = vrot.lane.b32.xlu0 %v1522, 118
    %v1749 = vpop.permute.xlu0 %1748
    %1750 = vrot.lane.b32.xlu0 %v1523, 118
    %v1751 = vpop.permute.xlu0 %1750
    %v1752 = vmul.f32 %v1745, %v226
    %v1753 = vmul.f32 %v1747, %v226
    %v1754 = vmul.f32 %v1749, %v226
    %v1755 = vmul.f32 %v1751, %v226
    %1756 = vrot.lane.b32.xlu0 %v1520, 114
    %v1757 = vpop.permute.xlu0 %1756
    %1758 = vrot.lane.b32.xlu0 %v1521, 114
    %v1759 = vpop.permute.xlu0 %1758
    %1760 = vrot.lane.b32.xlu0 %v1522, 114
    %v1761 = vpop.permute.xlu0 %1760
    %1762 = vrot.lane.b32.xlu0 %v1523, 114
    %v1763 = vpop.permute.xlu0 %1762
    %v1764 = vmul.f32 %v1757, %v232
    %v1765 = vmul.f32 %v1759, %v232
    %v1766 = vmul.f32 %v1761, %v232
    %v1767 = vmul.f32 %v1763, %v232
    %1768 = vrot.lane.b32.xlu0 %v1520, 113
    %v1769 = vpop.permute.xlu0 %1768
    %1770 = vrot.lane.b32.xlu0 %v1521, 113
    %v1771 = vpop.permute.xlu0 %1770
    %1772 = vrot.lane.b32.xlu0 %v1522, 113
    %v1773 = vpop.permute.xlu0 %1772
    %1774 = vrot.lane.b32.xlu0 %v1523, 113
    %v1775 = vpop.permute.xlu0 %1774
    %v1776 = vmul.f32 %v1769, %v238
    %v1777 = vmul.f32 %v1771, %v238
    %v1778 = vmul.f32 %v1773, %v238
    %v1779 = vmul.f32 %v1775, %v238
    %1780 = vrot.lane.b32.xlu0 %v1520, 112
    %v1781 = vpop.permute.xlu0 %1780
    %1782 = vrot.lane.b32.xlu0 %v1521, 112
    %v1783 = vpop.permute.xlu0 %1782
    %1784 = vrot.lane.b32.xlu0 %v1522, 112
    %v1785 = vpop.permute.xlu0 %1784
    %1786 = vrot.lane.b32.xlu0 %v1523, 112
    %v1787 = vpop.permute.xlu0 %1786
    %v1788 = vmul.f32 %v1781, %v244
    %v1789 = vmul.f32 %v1783, %v244
    %v1790 = vmul.f32 %v1785, %v244
    %v1791 = vmul.f32 %v1787, %v244
    %1792 = vrot.lane.b32.xlu0 %v1520, 111
    %v1793 = vpop.permute.xlu0 %1792
    %1794 = vrot.lane.b32.xlu0 %v1521, 111
    %v1795 = vpop.permute.xlu0 %1794
    %1796 = vrot.lane.b32.xlu0 %v1522, 111
    %v1797 = vpop.permute.xlu0 %1796
    %1798 = vrot.lane.b32.xlu0 %v1523, 111
    %v1799 = vpop.permute.xlu0 %1798
    %v1800 = vmul.f32 %v1793, %v250
    %v1801 = vmul.f32 %v1795, %v250
    %v1802 = vmul.f32 %v1797, %v250
    %v1803 = vmul.f32 %v1799, %v250
    %1804 = vrot.lane.b32.xlu0 %v1520, 110
    %v1805 = vpop.permute.xlu0 %1804
    %1806 = vrot.lane.b32.xlu0 %v1521, 110
    %v1807 = vpop.permute.xlu0 %1806
    %1808 = vrot.lane.b32.xlu0 %v1522, 110
    %v1809 = vpop.permute.xlu0 %1808
    %1810 = vrot.lane.b32.xlu0 %v1523, 110
    %v1811 = vpop.permute.xlu0 %1810
    %v1812 = vmul.f32 %v1805, %v256
    %v1813 = vmul.f32 %v1807, %v256
    %v1814 = vmul.f32 %v1809, %v256
    %v1815 = vmul.f32 %v1811, %v256
    %v1816 = vpack.c.bf16 %v1533, %v1532
    %v1817 = vpack.c.bf16 %v1535, %v1534
    %v1818 = vpack.c.bf16 %v1545, %v1544
    %v1819 = vpack.c.bf16 %v1547, %v1546
    %v1820 = vpack.c.bf16 %v1557, %v1556
    %v1821 = vpack.c.bf16 %v1559, %v1558
    %v1822 = vpack.c.bf16 %v1569, %v1568
    %v1823 = vpack.c.bf16 %v1571, %v1570
    %v1824 = vpack.c.bf16 %v1581, %v1580
    %v1825 = vpack.c.bf16 %v1583, %v1582
    %v1826 = vpack.c.bf16 %v1593, %v1592
    %v1827 = vpack.c.bf16 %v1595, %v1594
    %v1828 = vpack.c.bf16 %v1605, %v1604
    %v1829 = vpack.c.bf16 %v1607, %v1606
    %v1830 = vpack.c.bf16 %v1617, %v1616
    %v1831 = vpack.c.bf16 %v1619, %v1618
    %v1832 = vpack.c.bf16 %v1629, %v1628
    %v1833 = vpack.c.bf16 %v1631, %v1630
    %v1834 = vpack.c.bf16 %v1641, %v1640
    %v1835 = vpack.c.bf16 %v1643, %v1642
    %v1836 = vpack.c.bf16 %v1653, %v1652
    %v1837 = vpack.c.bf16 %v1655, %v1654
    %v1838 = vpack.c.bf16 %v1665, %v1664
    %v1839 = vpack.c.bf16 %v1667, %v1666
    %v1840 = vpack.c.bf16 %v1669, %v1668
    %v1841 = vpack.c.bf16 %v1671, %v1670
    %v1842 = vpack.c.bf16 %v1681, %v1680
    %v1843 = vpack.c.bf16 %v1683, %v1682
    %v1844 = vpack.c.bf16 %v1693, %v1692
    %v1845 = vpack.c.bf16 %v1695, %v1694
    %v1846 = vpack.c.bf16 %v1705, %v1704
    %v1847 = vpack.c.bf16 %v1707, %v1706
    %v1848 = vpack.c.bf16 %v1717, %v1716
    %v1849 = vpack.c.bf16 %v1719, %v1718
    %v1850 = vpack.c.bf16 %v1729, %v1728
    %v1851 = vpack.c.bf16 %v1731, %v1730
    %v1852 = vpack.c.bf16 %v1741, %v1740
    %v1853 = vpack.c.bf16 %v1743, %v1742
    %v1854 = vpack.c.bf16 %v1753, %v1752
    %v1855 = vpack.c.bf16 %v1755, %v1754
    %v1856 = vpack.c.bf16 %v1765, %v1764
    %v1857 = vpack.c.bf16 %v1767, %v1766
    %v1858 = vpack.c.bf16 %v1777, %v1776
    %v1859 = vpack.c.bf16 %v1779, %v1778
    %v1860 = vpack.c.bf16 %v1789, %v1788
    %v1861 = vpack.c.bf16 %v1791, %v1790
    %v1862 = vpack.c.bf16 %v1801, %v1800
    %v1863 = vpack.c.bf16 %v1803, %v1802
    %v1864 = vpack.c.bf16 %v1813, %v1812
    %v1865 = vpack.c.bf16 %v1815, %v1814
    %v1866 = vld [vmem:[%s7] sm:$0xff]
    %v1867 = vld [vmem:[%s7 + $0x8] sm:$0xff]
    %v1868 = vld [vmem:[%s7 + $0x10] sm:$0xff]
    %v1869 = vld [vmem:[%s7 + $0x18] sm:$0xf]
    %v1870 = vld [vmem:[%s7 + $0x1c] sm:$0xff]
    %v1871 = vld [vmem:[%s7 + $0x24] sm:$0xff]
    %v1872 = vld [vmem:[%s7 + $0x2c] sm:$0xff]
    %v1873 = vld [vmem:[%s7 + $0x34] sm:$0xf]
    %v1874 = vld [vmem:[%s7 + $0x38] sm:$0xff]
    %v1875 = vld [vmem:[%s7 + $0x40] sm:$0xff]
    %v1876 = vld [vmem:[%s7 + $0x48] sm:$0xff]
    %v1877 = vld [vmem:[%s7 + $0x50] sm:$0xf]
    %v1878 = vld [vmem:[%s7 + $0x54] sm:$0xff]
    %v1879 = vld [vmem:[%s7 + $0x5c] sm:$0xff]
    %v1880 = vld [vmem:[%s7 + $0x64] sm:$0xff]
    %v1881 = vld [vmem:[%s7 + $0x6c] sm:$0xf]
    %v1898 = vunpack.c.l.b16 %v1866
    %v1899 = vunpack.c.h.b16 %v1866
    %v1900 = vunpack.c.l.b16 %v1867
    %v1901 = vunpack.c.h.b16 %v1867
    %v1902 = vunpack.c.l.b16 %v1868
    %v1903 = vunpack.c.h.b16 %v1868
    %v1904 = vunpack.c.l.b16 %v1869
    %v1905 = vunpack.c.l.b16 %v1870
    %v1906 = vunpack.c.h.b16 %v1870
    %v1907 = vunpack.c.l.b16 %v1871
    %v1908 = vunpack.c.h.b16 %v1871
    %v1909 = vunpack.c.l.b16 %v1872
    %v1910 = vunpack.c.h.b16 %v1872
    %v1911 = vunpack.c.l.b16 %v1873
    %v1912 = vunpack.c.l.b16 %v1874
    %v1913 = vunpack.c.h.b16 %v1874
    %v1914 = vunpack.c.l.b16 %v1875
    %v1915 = vunpack.c.h.b16 %v1875
    %v1916 = vunpack.c.l.b16 %v1876
    %v1917 = vunpack.c.h.b16 %v1876
    %v1918 = vunpack.c.l.b16 %v1877
    %v1919 = vunpack.c.l.b16 %v1878
    %v1920 = vunpack.c.h.b16 %v1878
    %v1921 = vunpack.c.l.b16 %v1879
    %v1922 = vunpack.c.h.b16 %v1879
    %v1923 = vunpack.c.l.b16 %v1880
    %v1924 = vunpack.c.h.b16 %v1880
    %v1925 = vunpack.c.l.b16 %v1881
    %v1926 = vpack.c.b16 %v1905, %v1898
    %v1927 = vpack.c.b16 %v1906, %v1899
    %v1928 = vpack.c.b16 %v1907, %v1900
    %v1929 = vpack.c.b16 %v1908, %v1901
    %v1930 = vpack.c.b16 %v1909, %v1902
    %v1931 = vpack.c.b16 %v1910, %v1903
    %v1932 = vpack.c.b16 %v1911, %v1904
    %v1933 = vpack.c.b16 %v1919, %v1912
    %v1934 = vpack.c.b16 %v1920, %v1913
    %v1935 = vpack.c.b16 %v1921, %v1914
    %v1936 = vpack.c.b16 %v1922, %v1915
    %v1937 = vpack.c.b16 %v1923, %v1916
    %v1938 = vpack.c.b16 %v1924, %v1917
    %v1939 = vpack.c.b16 %v1925, %v1918
    %v1953 = vsel %vm1252, %v1932, 0
    %v1956 = vsel %vm1252, %v1939, 0
    %1958 = vmatpush.bf16.msra.mxu0 %v1823
    %1959 = vmatpush.bf16.msra.mxu0 %v1822
    %1960 = vmatpush.bf16.msra.mxu0 %v1821
    %1961 = vmatpush.bf16.msra.mxu0 %v1820
    %1962 = vmatpush.bf16.msra.mxu0 %v1819
    %1963 = vmatpush.bf16.msra.mxu0 %v1818
    %1964 = vmatpush.bf16.msra.mxu0 %v1817
    %1965 = vmatpush.bf16.msra.mxu0 %v1816
    %1966 = vmatmul.bf16.gmra.mxu0 %v1926
    %v1967 = vpop.f32.mrf.mxu0
    %v1968 = vadd.f32 0.0, %v1967
    %v1969 = vpop.f32.mrf.mxu0
    %v1970 = vadd.f32 0.0, %v1969
    %1971 = vmatmul.bf16.gmra.mxu0 %v1933
    %v1972 = vpop.f32.mrf.mxu0
    %v1973 = vadd.f32 0.0, %v1972
    %v1974 = vpop.f32.mrf.mxu0
    %v1975 = vadd.f32 0.0, %v1974
    %1976 = vdwg.mxu0
    %1977 = vmatpush.bf16.msra.mxu0 %v1831
    %1978 = vmatpush.bf16.msra.mxu0 %v1830
    %1979 = vmatpush.bf16.msra.mxu0 %v1829
    %1980 = vmatpush.bf16.msra.mxu0 %v1828
    %1981 = vmatpush.bf16.msra.mxu0 %v1827
    %1982 = vmatpush.bf16.msra.mxu0 %v1826
    %1983 = vmatpush.bf16.msra.mxu0 %v1825
    %1984 = vmatpush.bf16.msra.mxu0 %v1824
    %1985 = vmatmul.bf16.gmra.mxu0 %v1927
    %v1986 = vpop.f32.mrf.mxu0
    %v1987 = vadd.f32 %v1968, %v1986
    %v1988 = vpop.f32.mrf.mxu0
    %v1989 = vadd.f32 %v1970, %v1988
    %1990 = vmatmul.bf16.gmra.mxu0 %v1934
    %v1991 = vpop.f32.mrf.mxu0
    %v1992 = vadd.f32 %v1973, %v1991
    %v1993 = vpop.f32.mrf.mxu0
    %v1994 = vadd.f32 %v1975, %v1993
    %1995 = vdwg.mxu0
    %1996 = vmatpush.bf16.msra.mxu0 %v1839
    %1997 = vmatpush.bf16.msra.mxu0 %v1838
    %1998 = vmatpush.bf16.msra.mxu0 %v1837
    %1999 = vmatpush.bf16.msra.mxu0 %v1836
    %2000 = vmatpush.bf16.msra.mxu0 %v1835
    %2001 = vmatpush.bf16.msra.mxu0 %v1834
    %2002 = vmatpush.bf16.msra.mxu0 %v1833
    %2003 = vmatpush.bf16.msra.mxu0 %v1832
    %2004 = vmatmul.bf16.gmra.mxu0 %v1928
    %v2005 = vpop.f32.mrf.mxu0
    %v2006 = vadd.f32 %v1987, %v2005
    %v2007 = vpop.f32.mrf.mxu0
    %v2008 = vadd.f32 %v1989, %v2007
    %2009 = vmatmul.bf16.gmra.mxu0 %v1935
    %v2010 = vpop.f32.mrf.mxu0
    %v2011 = vadd.f32 %v1992, %v2010
    %v2012 = vpop.f32.mrf.mxu0
    %v2013 = vadd.f32 %v1994, %v2012
    %2014 = vdwg.mxu0
    %2015 = vmatpush.bf16.msra.mxu0 %v1847
    %2016 = vmatpush.bf16.msra.mxu0 %v1846
    %2017 = vmatpush.bf16.msra.mxu0 %v1845
    %2018 = vmatpush.bf16.msra.mxu0 %v1844
    %2019 = vmatpush.bf16.msra.mxu0 %v1843
    %2020 = vmatpush.bf16.msra.mxu0 %v1842
    %2021 = vmatpush.bf16.msra.mxu0 %v1841
    %2022 = vmatpush.bf16.msra.mxu0 %v1840
    %2023 = vmatmul.bf16.gmra.mxu0 %v1929
    %v2024 = vpop.f32.mrf.mxu0
    %v2025 = vadd.f32 %v2006, %v2024
    %v2026 = vpop.f32.mrf.mxu0
    %v2027 = vadd.f32 %v2008, %v2026
    %2028 = vmatmul.bf16.gmra.mxu0 %v1936
    %v2029 = vpop.f32.mrf.mxu0
    %v2030 = vadd.f32 %v2011, %v2029
    %v2031 = vpop.f32.mrf.mxu0
    %v2032 = vadd.f32 %v2013, %v2031
    %2033 = vdwg.mxu0
    %2034 = vmatpush.bf16.msra.mxu0 %v1855
    %2035 = vmatpush.bf16.msra.mxu0 %v1854
    %2036 = vmatpush.bf16.msra.mxu0 %v1853
    %2037 = vmatpush.bf16.msra.mxu0 %v1852
    %2038 = vmatpush.bf16.msra.mxu0 %v1851
    %2039 = vmatpush.bf16.msra.mxu0 %v1850
    %2040 = vmatpush.bf16.msra.mxu0 %v1849
    %2041 = vmatpush.bf16.msra.mxu0 %v1848
    %2042 = vmatmul.bf16.gmra.mxu0 %v1930
    %v2043 = vpop.f32.mrf.mxu0
    %v2044 = vadd.f32 %v2025, %v2043
    %v2045 = vpop.f32.mrf.mxu0
    %v2046 = vadd.f32 %v2027, %v2045
    %2047 = vmatmul.bf16.gmra.mxu0 %v1937
    %v2048 = vpop.f32.mrf.mxu0
    %v2049 = vadd.f32 %v2030, %v2048
    %v2050 = vpop.f32.mrf.mxu0
    %v2051 = vadd.f32 %v2032, %v2050
    %2052 = vdwg.mxu0
    %2053 = vmatpush.bf16.msra.mxu0 %v1863
    %2054 = vmatpush.bf16.msra.mxu0 %v1862
    %2055 = vmatpush.bf16.msra.mxu0 %v1861
    %2056 = vmatpush.bf16.msra.mxu0 %v1860
    %2057 = vmatpush.bf16.msra.mxu0 %v1859
    %2058 = vmatpush.bf16.msra.mxu0 %v1858
    %2059 = vmatpush.bf16.msra.mxu0 %v1857
    %2060 = vmatpush.bf16.msra.mxu0 %v1856
    %2061 = vmatmul.bf16.gmra.mxu0 %v1931
    %v2062 = vpop.f32.mrf.mxu0
    %v2063 = vadd.f32 %v2044, %v2062
    %v2064 = vpop.f32.mrf.mxu0
    %v2065 = vadd.f32 %v2046, %v2064
    %2066 = vmatmul.bf16.gmra.mxu0 %v1938
    %v2067 = vpop.f32.mrf.mxu0
    %v2068 = vadd.f32 %v2049, %v2067
    %v2069 = vpop.f32.mrf.mxu0
    %v2070 = vadd.f32 %v2051, %v2069
    %2071 = vdwg.mxu0
    %2072 = vmatpush.bf16.msra.mxu0 0
    %2073 = vmatpush.bf16.msra.mxu0 0
    %2074 = vmatpush.bf16.msra.mxu0 0
    %2075 = vmatpush.bf16.msra.mxu0 0
    %2076 = vmatpush.bf16.msra.mxu0 0
    %2077 = vmatpush.bf16.msra.mxu0 0
    %2078 = vmatpush.bf16.msra.mxu0 %v1865
    %2079 = vmatpush.bf16.msra.mxu0 %v1864
    %2080 = vmatmul.bf16.gmra.mxu0 %v1953
    %v2081 = vpop.f32.mrf.mxu0
    %v2082 = vadd.f32 %v2063, %v2081
    %v2083 = vpop.f32.mrf.mxu0
    %v2084 = vadd.f32 %v2065, %v2083
    %2085 = vmatmul.bf16.gmra.mxu0 %v1956
    %v2086 = vpop.f32.mrf.mxu0
    %v2087 = vadd.f32 %v2068, %v2086
    %v2088 = vpop.f32.mrf.mxu0
    %v2089 = vadd.f32 %v2070, %v2088
    %2090 = vdwg.mxu0
    %v2091 = vld [vmem:[%s13] sm:$0xff]
    %v2092 = vld [vmem:[%s13 + $0x8] sm:$0xff]
    %v2093 = vld [vmem:[%s13 + $0x10] sm:$0xff]
    %v2094 = vld [vmem:[%s13 + $0x18] sm:$0xff]
    %2095 = vadd.xlane.f32.xlu0 %v2082
    %v2096 = vpop.xlane.xlu0 %2095
    %2097 = vadd.xlane.f32.xlu0 %v2084
    %v2098 = vpop.xlane.xlu0 %2097
    %2099 = vadd.xlane.f32.xlu0 %v2087
    %v2100 = vpop.xlane.xlu0 %2099
    %2101 = vadd.xlane.f32.xlu0 %v2089
    %v2102 = vpop.xlane.xlu0 %2101
    %v2103 = vmul.f32 %v2096, %v331
    %v2104 = vmul.f32 %v2098, %v331
    %v2105 = vmul.f32 %v2100, %v331
    %v2106 = vmul.f32 %v2102, %v331
    %v2107 = vsub.f32 %v2082, %v2103
    %v2108 = vsub.f32 %v2084, %v2104
    %v2109 = vsub.f32 %v2087, %v2105
    %v2110 = vsub.f32 %v2089, %v2106
    %v2111 = vmul.f32 %v2107, %v2107
    %v2112 = vmul.f32 %v2108, %v2108
    %v2113 = vmul.f32 %v2109, %v2109
    %v2114 = vmul.f32 %v2110, %v2110
    %2115 = vadd.xlane.f32.xlu0 %v2111
    %v2116 = vpop.xlane.xlu0 %2115
    %2117 = vadd.xlane.f32.xlu0 %v2112
    %v2118 = vpop.xlane.xlu0 %2117
    %2119 = vadd.xlane.f32.xlu0 %v2113
    %v2120 = vpop.xlane.xlu0 %2119
    %2121 = vadd.xlane.f32.xlu0 %v2114
    %v2122 = vpop.xlane.xlu0 %2121
    %v2123 = vmul.f32 %v2116, %v331
    %v2124 = vmul.f32 %v2118, %v331
    %v2125 = vmul.f32 %v2120, %v331
    %v2126 = vmul.f32 %v2122, %v331
    %v2127 = vadd.f32 %v2123, 1e-05
    %v2128 = vadd.f32 %v2124, 1e-05
    %v2129 = vadd.f32 %v2125, 1e-05
    %v2130 = vadd.f32 %v2126, 1e-05
    %v2131 = vrsqrt.pop %v2127
    %v2132 = vmul.f32 %v2131, %v2127
    %v2133 = vmul.f32 %v2132, %v2131
    %v2134 = vmul.f32 0.5, %v2133
    %v2135 = vsub.f32 1.5, %v2134
    %v2136 = vmul.f32 %v2131, %v2135
    %vm2137 = vweird.f32 %v2127
    %vm2138 = vweird.f32 %v2131
    %vm2139 = vmor %vm2137, %vm2138
    %v2140 = vsel %vm2139, %v2131, %v2136
    %v2141 = vrsqrt.pop %v2128
    %v2142 = vmul.f32 %v2141, %v2128
    %v2143 = vmul.f32 %v2142, %v2141
    %v2144 = vmul.f32 0.5, %v2143
    %v2145 = vsub.f32 1.5, %v2144
    %v2146 = vmul.f32 %v2141, %v2145
    %vm2147 = vweird.f32 %v2128
    %vm2148 = vweird.f32 %v2141
    %vm2149 = vmor %vm2147, %vm2148
    %v2150 = vsel %vm2149, %v2141, %v2146
    %v2151 = vrsqrt.pop %v2129
    %v2152 = vmul.f32 %v2151, %v2129
    %v2153 = vmul.f32 %v2152, %v2151
    %v2154 = vmul.f32 0.5, %v2153
    %v2155 = vsub.f32 1.5, %v2154
    %v2156 = vmul.f32 %v2151, %v2155
    %vm2157 = vweird.f32 %v2129
    %vm2158 = vweird.f32 %v2151
    %vm2159 = vmor %vm2157, %vm2158
    %v2160 = vsel %vm2159, %v2151, %v2156
    %v2161 = vrsqrt.pop %v2130
    %v2162 = vmul.f32 %v2161, %v2130
    %v2163 = vmul.f32 %v2162, %v2161
    %v2164 = vmul.f32 0.5, %v2163
    %v2165 = vsub.f32 1.5, %v2164
    %v2166 = vmul.f32 %v2161, %v2165
    %vm2167 = vweird.f32 %v2130
    %vm2168 = vweird.f32 %v2161
    %vm2169 = vmor %vm2167, %vm2168
    %v2170 = vsel %vm2169, %v2161, %v2166
    %v2171 = vmul.f32 %v2107, %v2140
    %v2172 = vmul.f32 %v2108, %v2150
    %v2173 = vmul.f32 %v2109, %v2160
    %v2174 = vmul.f32 %v2110, %v2170
    %2176 = vset.pattern.permute.xlu0 0
    %2177 = vperm.xlu0 %2176, %v2091
    %v2178 = vpop.permute.xlu0 %2177
    %2181 = vset.pattern.permute.xlu0 0
    %2182 = vperm.xlu0 %2181, %v2092
    %v2183 = vpop.permute.xlu0 %2182
    %2186 = vset.pattern.permute.xlu0 0
    %2187 = vperm.xlu0 %2186, %v2093
    %v2188 = vpop.permute.xlu0 %2187
    %2191 = vset.pattern.permute.xlu0 0
    %2192 = vperm.xlu0 %2191, %v2094
    %v2193 = vpop.permute.xlu0 %2192
    %v2195 = vmul.f32 %v2171, %v2178
    %v2196 = vmul.f32 %v2172, %v2183
    %v2197 = vmul.f32 %v2173, %v2188
    %v2198 = vmul.f32 %v2174, %v2193
    %2199 = vset.pattern.permute.xlu0 1
    %2200 = vperm.xlu0 %2199, %v2091
    %v2201 = vpop.permute.xlu0 %2200
    %2203 = vset.pattern.permute.xlu0 1
    %2204 = vperm.xlu0 %2203, %v2092
    %v2205 = vpop.permute.xlu0 %2204
    %2207 = vset.pattern.permute.xlu0 1
    %2208 = vperm.xlu0 %2207, %v2093
    %v2209 = vpop.permute.xlu0 %2208
    %2211 = vset.pattern.permute.xlu0 1
    %2212 = vperm.xlu0 %2211, %v2094
    %v2213 = vpop.permute.xlu0 %2212
    %v2215 = vadd.f32 %v2195, %v2201
    %v2216 = vadd.f32 %v2196, %v2205
    %v2217 = vadd.f32 %v2197, %v2209
    %v2218 = vadd.f32 %v2198, %v2213
    %v2219 = vtanh.pop %v2215
    %v2220 = vtanh.pop %v2216
    %v2221 = vtanh.pop %v2217
    %v2222 = vtanh.pop %v2218
    %v2223 = vadd.f32 %v2219, %v820
    %v2224 = vadd.f32 %v2220, %v821
    %v2225 = vadd.f32 %v2221, %v822
    %v2226 = vadd.f32 %v2222, %v823
    %2227 = vrot.lane.b32.xlu0 %v2223, 18
    %v2228 = vpop.permute.xlu0 %2227
    %2229 = vrot.lane.b32.xlu0 %v2224, 18
    %v2230 = vpop.permute.xlu0 %2229
    %2231 = vrot.lane.b32.xlu0 %v2225, 18
    %v2232 = vpop.permute.xlu0 %2231
    %2233 = vrot.lane.b32.xlu0 %v2226, 18
    %v2234 = vpop.permute.xlu0 %2233
    %v2235 = vmul.f32 %v2228, %v114
    %v2236 = vmul.f32 %v2230, %v114
    %v2237 = vmul.f32 %v2232, %v114
    %v2238 = vmul.f32 %v2234, %v114
    %2239 = vrot.lane.b32.xlu0 %v2223, 17
    %v2240 = vpop.permute.xlu0 %2239
    %2241 = vrot.lane.b32.xlu0 %v2224, 17
    %v2242 = vpop.permute.xlu0 %2241
    %2243 = vrot.lane.b32.xlu0 %v2225, 17
    %v2244 = vpop.permute.xlu0 %2243
    %2245 = vrot.lane.b32.xlu0 %v2226, 17
    %v2246 = vpop.permute.xlu0 %2245
    %v2247 = vmul.f32 %v2240, %v120
    %v2248 = vmul.f32 %v2242, %v120
    %v2249 = vmul.f32 %v2244, %v120
    %v2250 = vmul.f32 %v2246, %v120
    %2251 = vrot.lane.b32.xlu0 %v2223, 16
    %v2252 = vpop.permute.xlu0 %2251
    %2253 = vrot.lane.b32.xlu0 %v2224, 16
    %v2254 = vpop.permute.xlu0 %2253
    %2255 = vrot.lane.b32.xlu0 %v2225, 16
    %v2256 = vpop.permute.xlu0 %2255
    %2257 = vrot.lane.b32.xlu0 %v2226, 16
    %v2258 = vpop.permute.xlu0 %2257
    %v2259 = vmul.f32 %v2252, %v126
    %v2260 = vmul.f32 %v2254, %v126
    %v2261 = vmul.f32 %v2256, %v126
    %v2262 = vmul.f32 %v2258, %v126
    %2263 = vrot.lane.b32.xlu0 %v2223, 15
    %v2264 = vpop.permute.xlu0 %2263
    %2265 = vrot.lane.b32.xlu0 %v2224, 15
    %v2266 = vpop.permute.xlu0 %2265
    %2267 = vrot.lane.b32.xlu0 %v2225, 15
    %v2268 = vpop.permute.xlu0 %2267
    %2269 = vrot.lane.b32.xlu0 %v2226, 15
    %v2270 = vpop.permute.xlu0 %2269
    %v2271 = vmul.f32 %v2264, %v132
    %v2272 = vmul.f32 %v2266, %v132
    %v2273 = vmul.f32 %v2268, %v132
    %v2274 = vmul.f32 %v2270, %v132
    %2275 = vrot.lane.b32.xlu0 %v2223, 14
    %v2276 = vpop.permute.xlu0 %2275
    %2277 = vrot.lane.b32.xlu0 %v2224, 14
    %v2278 = vpop.permute.xlu0 %2277
    %2279 = vrot.lane.b32.xlu0 %v2225, 14
    %v2280 = vpop.permute.xlu0 %2279
    %2281 = vrot.lane.b32.xlu0 %v2226, 14
    %v2282 = vpop.permute.xlu0 %2281
    %v2283 = vmul.f32 %v2276, %v138
    %v2284 = vmul.f32 %v2278, %v138
    %v2285 = vmul.f32 %v2280, %v138
    %v2286 = vmul.f32 %v2282, %v138
    %2287 = vrot.lane.b32.xlu0 %v2223, 10
    %v2288 = vpop.permute.xlu0 %2287
    %2289 = vrot.lane.b32.xlu0 %v2224, 10
    %v2290 = vpop.permute.xlu0 %2289
    %2291 = vrot.lane.b32.xlu0 %v2225, 10
    %v2292 = vpop.permute.xlu0 %2291
    %2293 = vrot.lane.b32.xlu0 %v2226, 10
    %v2294 = vpop.permute.xlu0 %2293
    %v2295 = vmul.f32 %v2288, %v144
    %v2296 = vmul.f32 %v2290, %v144
    %v2297 = vmul.f32 %v2292, %v144
    %v2298 = vmul.f32 %v2294, %v144
    %2299 = vrot.lane.b32.xlu0 %v2223, 9
    %v2300 = vpop.permute.xlu0 %2299
    %2301 = vrot.lane.b32.xlu0 %v2224, 9
    %v2302 = vpop.permute.xlu0 %2301
    %2303 = vrot.lane.b32.xlu0 %v2225, 9
    %v2304 = vpop.permute.xlu0 %2303
    %2305 = vrot.lane.b32.xlu0 %v2226, 9
    %v2306 = vpop.permute.xlu0 %2305
    %v2307 = vmul.f32 %v2300, %v150
    %v2308 = vmul.f32 %v2302, %v150
    %v2309 = vmul.f32 %v2304, %v150
    %v2310 = vmul.f32 %v2306, %v150
    %2311 = vrot.lane.b32.xlu0 %v2223, 8
    %v2312 = vpop.permute.xlu0 %2311
    %2313 = vrot.lane.b32.xlu0 %v2224, 8
    %v2314 = vpop.permute.xlu0 %2313
    %2315 = vrot.lane.b32.xlu0 %v2225, 8
    %v2316 = vpop.permute.xlu0 %2315
    %2317 = vrot.lane.b32.xlu0 %v2226, 8
    %v2318 = vpop.permute.xlu0 %2317
    %v2319 = vmul.f32 %v2312, %v156
    %v2320 = vmul.f32 %v2314, %v156
    %v2321 = vmul.f32 %v2316, %v156
    %v2322 = vmul.f32 %v2318, %v156
    %2323 = vrot.lane.b32.xlu0 %v2223, 7
    %v2324 = vpop.permute.xlu0 %2323
    %2325 = vrot.lane.b32.xlu0 %v2224, 7
    %v2326 = vpop.permute.xlu0 %2325
    %2327 = vrot.lane.b32.xlu0 %v2225, 7
    %v2328 = vpop.permute.xlu0 %2327
    %2329 = vrot.lane.b32.xlu0 %v2226, 7
    %v2330 = vpop.permute.xlu0 %2329
    %v2331 = vmul.f32 %v2324, %v162
    %v2332 = vmul.f32 %v2326, %v162
    %v2333 = vmul.f32 %v2328, %v162
    %v2334 = vmul.f32 %v2330, %v162
    %2335 = vrot.lane.b32.xlu0 %v2223, 6
    %v2336 = vpop.permute.xlu0 %2335
    %2337 = vrot.lane.b32.xlu0 %v2224, 6
    %v2338 = vpop.permute.xlu0 %2337
    %2339 = vrot.lane.b32.xlu0 %v2225, 6
    %v2340 = vpop.permute.xlu0 %2339
    %2341 = vrot.lane.b32.xlu0 %v2226, 6
    %v2342 = vpop.permute.xlu0 %2341
    %v2343 = vmul.f32 %v2336, %v168
    %v2344 = vmul.f32 %v2338, %v168
    %v2345 = vmul.f32 %v2340, %v168
    %v2346 = vmul.f32 %v2342, %v168
    %2347 = vrot.lane.b32.xlu0 %v2223, 2
    %v2348 = vpop.permute.xlu0 %2347
    %2349 = vrot.lane.b32.xlu0 %v2224, 2
    %v2350 = vpop.permute.xlu0 %2349
    %2351 = vrot.lane.b32.xlu0 %v2225, 2
    %v2352 = vpop.permute.xlu0 %2351
    %2353 = vrot.lane.b32.xlu0 %v2226, 2
    %v2354 = vpop.permute.xlu0 %2353
    %v2355 = vmul.f32 %v2348, %v174
    %v2356 = vmul.f32 %v2350, %v174
    %v2357 = vmul.f32 %v2352, %v174
    %v2358 = vmul.f32 %v2354, %v174
    %2359 = vrot.lane.b32.xlu0 %v2223, 1
    %v2360 = vpop.permute.xlu0 %2359
    %2361 = vrot.lane.b32.xlu0 %v2224, 1
    %v2362 = vpop.permute.xlu0 %2361
    %2363 = vrot.lane.b32.xlu0 %v2225, 1
    %v2364 = vpop.permute.xlu0 %2363
    %2365 = vrot.lane.b32.xlu0 %v2226, 1
    %v2366 = vpop.permute.xlu0 %2365
    %v2367 = vmul.f32 %v2360, %v180
    %v2368 = vmul.f32 %v2362, %v180
    %v2369 = vmul.f32 %v2364, %v180
    %v2370 = vmul.f32 %v2366, %v180
    %v2371 = vmul.f32 %v2223, %v184
    %v2372 = vmul.f32 %v2224, %v184
    %v2373 = vmul.f32 %v2225, %v184
    %v2374 = vmul.f32 %v2226, %v184
    %2375 = vrot.lane.b32.xlu0 %v2223, 127
    %v2376 = vpop.permute.xlu0 %2375
    %2377 = vrot.lane.b32.xlu0 %v2224, 127
    %v2378 = vpop.permute.xlu0 %2377
    %2379 = vrot.lane.b32.xlu0 %v2225, 127
    %v2380 = vpop.permute.xlu0 %2379
    %2381 = vrot.lane.b32.xlu0 %v2226, 127
    %v2382 = vpop.permute.xlu0 %2381
    %v2383 = vmul.f32 %v2376, %v190
    %v2384 = vmul.f32 %v2378, %v190
    %v2385 = vmul.f32 %v2380, %v190
    %v2386 = vmul.f32 %v2382, %v190
    %2387 = vrot.lane.b32.xlu0 %v2223, 126
    %v2388 = vpop.permute.xlu0 %2387
    %2389 = vrot.lane.b32.xlu0 %v2224, 126
    %v2390 = vpop.permute.xlu0 %2389
    %2391 = vrot.lane.b32.xlu0 %v2225, 126
    %v2392 = vpop.permute.xlu0 %2391
    %2393 = vrot.lane.b32.xlu0 %v2226, 126
    %v2394 = vpop.permute.xlu0 %2393
    %v2395 = vmul.f32 %v2388, %v196
    %v2396 = vmul.f32 %v2390, %v196
    %v2397 = vmul.f32 %v2392, %v196
    %v2398 = vmul.f32 %v2394, %v196
    %2399 = vrot.lane.b32.xlu0 %v2223, 122
    %v2400 = vpop.permute.xlu0 %2399
    %2401 = vrot.lane.b32.xlu0 %v2224, 122
    %v2402 = vpop.permute.xlu0 %2401
    %2403 = vrot.lane.b32.xlu0 %v2225, 122
    %v2404 = vpop.permute.xlu0 %2403
    %2405 = vrot.lane.b32.xlu0 %v2226, 122
    %v2406 = vpop.permute.xlu0 %2405
    %v2407 = vmul.f32 %v2400, %v202
    %v2408 = vmul.f32 %v2402, %v202
    %v2409 = vmul.f32 %v2404, %v202
    %v2410 = vmul.f32 %v2406, %v202
    %2411 = vrot.lane.b32.xlu0 %v2223, 121
    %v2412 = vpop.permute.xlu0 %2411
    %2413 = vrot.lane.b32.xlu0 %v2224, 121
    %v2414 = vpop.permute.xlu0 %2413
    %2415 = vrot.lane.b32.xlu0 %v2225, 121
    %v2416 = vpop.permute.xlu0 %2415
    %2417 = vrot.lane.b32.xlu0 %v2226, 121
    %v2418 = vpop.permute.xlu0 %2417
    %v2419 = vmul.f32 %v2412, %v208
    %v2420 = vmul.f32 %v2414, %v208
    %v2421 = vmul.f32 %v2416, %v208
    %v2422 = vmul.f32 %v2418, %v208
    %2423 = vrot.lane.b32.xlu0 %v2223, 120
    %v2424 = vpop.permute.xlu0 %2423
    %2425 = vrot.lane.b32.xlu0 %v2224, 120
    %v2426 = vpop.permute.xlu0 %2425
    %2427 = vrot.lane.b32.xlu0 %v2225, 120
    %v2428 = vpop.permute.xlu0 %2427
    %2429 = vrot.lane.b32.xlu0 %v2226, 120
    %v2430 = vpop.permute.xlu0 %2429
    %v2431 = vmul.f32 %v2424, %v214
    %v2432 = vmul.f32 %v2426, %v214
    %v2433 = vmul.f32 %v2428, %v214
    %v2434 = vmul.f32 %v2430, %v214
    %2435 = vrot.lane.b32.xlu0 %v2223, 119
    %v2436 = vpop.permute.xlu0 %2435
    %2437 = vrot.lane.b32.xlu0 %v2224, 119
    %v2438 = vpop.permute.xlu0 %2437
    %2439 = vrot.lane.b32.xlu0 %v2225, 119
    %v2440 = vpop.permute.xlu0 %2439
    %2441 = vrot.lane.b32.xlu0 %v2226, 119
    %v2442 = vpop.permute.xlu0 %2441
    %v2443 = vmul.f32 %v2436, %v220
    %v2444 = vmul.f32 %v2438, %v220
    %v2445 = vmul.f32 %v2440, %v220
    %v2446 = vmul.f32 %v2442, %v220
    %2447 = vrot.lane.b32.xlu0 %v2223, 118
    %v2448 = vpop.permute.xlu0 %2447
    %2449 = vrot.lane.b32.xlu0 %v2224, 118
    %v2450 = vpop.permute.xlu0 %2449
    %2451 = vrot.lane.b32.xlu0 %v2225, 118
    %v2452 = vpop.permute.xlu0 %2451
    %2453 = vrot.lane.b32.xlu0 %v2226, 118
    %v2454 = vpop.permute.xlu0 %2453
    %v2455 = vmul.f32 %v2448, %v226
    %v2456 = vmul.f32 %v2450, %v226
    %v2457 = vmul.f32 %v2452, %v226
    %v2458 = vmul.f32 %v2454, %v226
    %2459 = vrot.lane.b32.xlu0 %v2223, 114
    %v2460 = vpop.permute.xlu0 %2459
    %2461 = vrot.lane.b32.xlu0 %v2224, 114
    %v2462 = vpop.permute.xlu0 %2461
    %2463 = vrot.lane.b32.xlu0 %v2225, 114
    %v2464 = vpop.permute.xlu0 %2463
    %2465 = vrot.lane.b32.xlu0 %v2226, 114
    %v2466 = vpop.permute.xlu0 %2465
    %v2467 = vmul.f32 %v2460, %v232
    %v2468 = vmul.f32 %v2462, %v232
    %v2469 = vmul.f32 %v2464, %v232
    %v2470 = vmul.f32 %v2466, %v232
    %2471 = vrot.lane.b32.xlu0 %v2223, 113
    %v2472 = vpop.permute.xlu0 %2471
    %2473 = vrot.lane.b32.xlu0 %v2224, 113
    %v2474 = vpop.permute.xlu0 %2473
    %2475 = vrot.lane.b32.xlu0 %v2225, 113
    %v2476 = vpop.permute.xlu0 %2475
    %2477 = vrot.lane.b32.xlu0 %v2226, 113
    %v2478 = vpop.permute.xlu0 %2477
    %v2479 = vmul.f32 %v2472, %v238
    %v2480 = vmul.f32 %v2474, %v238
    %v2481 = vmul.f32 %v2476, %v238
    %v2482 = vmul.f32 %v2478, %v238
    %2483 = vrot.lane.b32.xlu0 %v2223, 112
    %v2484 = vpop.permute.xlu0 %2483
    %2485 = vrot.lane.b32.xlu0 %v2224, 112
    %v2486 = vpop.permute.xlu0 %2485
    %2487 = vrot.lane.b32.xlu0 %v2225, 112
    %v2488 = vpop.permute.xlu0 %2487
    %2489 = vrot.lane.b32.xlu0 %v2226, 112
    %v2490 = vpop.permute.xlu0 %2489
    %v2491 = vmul.f32 %v2484, %v244
    %v2492 = vmul.f32 %v2486, %v244
    %v2493 = vmul.f32 %v2488, %v244
    %v2494 = vmul.f32 %v2490, %v244
    %2495 = vrot.lane.b32.xlu0 %v2223, 111
    %v2496 = vpop.permute.xlu0 %2495
    %2497 = vrot.lane.b32.xlu0 %v2224, 111
    %v2498 = vpop.permute.xlu0 %2497
    %2499 = vrot.lane.b32.xlu0 %v2225, 111
    %v2500 = vpop.permute.xlu0 %2499
    %2501 = vrot.lane.b32.xlu0 %v2226, 111
    %v2502 = vpop.permute.xlu0 %2501
    %v2503 = vmul.f32 %v2496, %v250
    %v2504 = vmul.f32 %v2498, %v250
    %v2505 = vmul.f32 %v2500, %v250
    %v2506 = vmul.f32 %v2502, %v250
    %2507 = vrot.lane.b32.xlu0 %v2223, 110
    %v2508 = vpop.permute.xlu0 %2507
    %2509 = vrot.lane.b32.xlu0 %v2224, 110
    %v2510 = vpop.permute.xlu0 %2509
    %2511 = vrot.lane.b32.xlu0 %v2225, 110
    %v2512 = vpop.permute.xlu0 %2511
    %2513 = vrot.lane.b32.xlu0 %v2226, 110
    %v2514 = vpop.permute.xlu0 %2513
    %v2515 = vmul.f32 %v2508, %v256
    %v2516 = vmul.f32 %v2510, %v256
    %v2517 = vmul.f32 %v2512, %v256
    %v2518 = vmul.f32 %v2514, %v256
    %v2519 = vpack.c.bf16 %v2236, %v2235
    %v2520 = vpack.c.bf16 %v2238, %v2237
    %v2521 = vpack.c.bf16 %v2248, %v2247
    %v2522 = vpack.c.bf16 %v2250, %v2249
    %v2523 = vpack.c.bf16 %v2260, %v2259
    %v2524 = vpack.c.bf16 %v2262, %v2261
    %v2525 = vpack.c.bf16 %v2272, %v2271
    %v2526 = vpack.c.bf16 %v2274, %v2273
    %v2527 = vpack.c.bf16 %v2284, %v2283
    %v2528 = vpack.c.bf16 %v2286, %v2285
    %v2529 = vpack.c.bf16 %v2296, %v2295
    %v2530 = vpack.c.bf16 %v2298, %v2297
    %v2531 = vpack.c.bf16 %v2308, %v2307
    %v2532 = vpack.c.bf16 %v2310, %v2309
    %v2533 = vpack.c.bf16 %v2320, %v2319
    %v2534 = vpack.c.bf16 %v2322, %v2321
    %v2535 = vpack.c.bf16 %v2332, %v2331
    %v2536 = vpack.c.bf16 %v2334, %v2333
    %v2537 = vpack.c.bf16 %v2344, %v2343
    %v2538 = vpack.c.bf16 %v2346, %v2345
    %v2539 = vpack.c.bf16 %v2356, %v2355
    %v2540 = vpack.c.bf16 %v2358, %v2357
    %v2541 = vpack.c.bf16 %v2368, %v2367
    %v2542 = vpack.c.bf16 %v2370, %v2369
    %v2543 = vpack.c.bf16 %v2372, %v2371
    %v2544 = vpack.c.bf16 %v2374, %v2373
    %v2545 = vpack.c.bf16 %v2384, %v2383
    %v2546 = vpack.c.bf16 %v2386, %v2385
    %v2547 = vpack.c.bf16 %v2396, %v2395
    %v2548 = vpack.c.bf16 %v2398, %v2397
    %v2549 = vpack.c.bf16 %v2408, %v2407
    %v2550 = vpack.c.bf16 %v2410, %v2409
    %v2551 = vpack.c.bf16 %v2420, %v2419
    %v2552 = vpack.c.bf16 %v2422, %v2421
    %v2553 = vpack.c.bf16 %v2432, %v2431
    %v2554 = vpack.c.bf16 %v2434, %v2433
    %v2555 = vpack.c.bf16 %v2444, %v2443
    %v2556 = vpack.c.bf16 %v2446, %v2445
    %v2557 = vpack.c.bf16 %v2456, %v2455
    %v2558 = vpack.c.bf16 %v2458, %v2457
    %v2559 = vpack.c.bf16 %v2468, %v2467
    %v2560 = vpack.c.bf16 %v2470, %v2469
    %v2561 = vpack.c.bf16 %v2480, %v2479
    %v2562 = vpack.c.bf16 %v2482, %v2481
    %v2563 = vpack.c.bf16 %v2492, %v2491
    %v2564 = vpack.c.bf16 %v2494, %v2493
    %v2565 = vpack.c.bf16 %v2504, %v2503
    %v2566 = vpack.c.bf16 %v2506, %v2505
    %v2567 = vpack.c.bf16 %v2516, %v2515
    %v2568 = vpack.c.bf16 %v2518, %v2517
    %2569 = vmatpush.bf16.msra.mxu0 %v2526
    %2570 = vmatpush.bf16.msra.mxu0 %v2525
    %2571 = vmatpush.bf16.msra.mxu0 %v2524
    %2572 = vmatpush.bf16.msra.mxu0 %v2523
    %2573 = vmatpush.bf16.msra.mxu0 %v2522
    %2574 = vmatpush.bf16.msra.mxu0 %v2521
    %2575 = vmatpush.bf16.msra.mxu0 %v2520
    %2576 = vmatpush.bf16.msra.mxu0 %v2519
    %2577 = vmatmul.bf16.gmra.mxu0 %v1226
    %v2578 = vpop.f32.mrf.mxu0
    %v2579 = vadd.f32 0.0, %v2578
    %v2580 = vpop.f32.mrf.mxu0
    %v2581 = vadd.f32 0.0, %v2580
    %2582 = vmatmul.bf16.gmra.mxu0 %v1233
    %v2583 = vpop.f32.mrf.mxu0
    %v2584 = vadd.f32 0.0, %v2583
    %v2585 = vpop.f32.mrf.mxu0
    %v2586 = vadd.f32 0.0, %v2585
    %2587 = vdwg.mxu0
    %2588 = vmatpush.bf16.msra.mxu0 %v2534
    %2589 = vmatpush.bf16.msra.mxu0 %v2533
    %2590 = vmatpush.bf16.msra.mxu0 %v2532
    %2591 = vmatpush.bf16.msra.mxu0 %v2531
    %2592 = vmatpush.bf16.msra.mxu0 %v2530
    %2593 = vmatpush.bf16.msra.mxu0 %v2529
    %2594 = vmatpush.bf16.msra.mxu0 %v2528
    %2595 = vmatpush.bf16.msra.mxu0 %v2527
    %2596 = vmatmul.bf16.gmra.mxu0 %v1227
    %v2597 = vpop.f32.mrf.mxu0
    %v2598 = vadd.f32 %v2579, %v2597
    %v2599 = vpop.f32.mrf.mxu0
    %v2600 = vadd.f32 %v2581, %v2599
    %2601 = vmatmul.bf16.gmra.mxu0 %v1234
    %v2602 = vpop.f32.mrf.mxu0
    %v2603 = vadd.f32 %v2584, %v2602
    %v2604 = vpop.f32.mrf.mxu0
    %v2605 = vadd.f32 %v2586, %v2604
    %2606 = vdwg.mxu0
    %2607 = vmatpush.bf16.msra.mxu0 %v2542
    %2608 = vmatpush.bf16.msra.mxu0 %v2541
    %2609 = vmatpush.bf16.msra.mxu0 %v2540
    %2610 = vmatpush.bf16.msra.mxu0 %v2539
    %2611 = vmatpush.bf16.msra.mxu0 %v2538
    %2612 = vmatpush.bf16.msra.mxu0 %v2537
    %2613 = vmatpush.bf16.msra.mxu0 %v2536
    %2614 = vmatpush.bf16.msra.mxu0 %v2535
    %2615 = vmatmul.bf16.gmra.mxu0 %v1228
    %v2616 = vpop.f32.mrf.mxu0
    %v2617 = vadd.f32 %v2598, %v2616
    %v2618 = vpop.f32.mrf.mxu0
    %v2619 = vadd.f32 %v2600, %v2618
    %2620 = vmatmul.bf16.gmra.mxu0 %v1235
    %v2621 = vpop.f32.mrf.mxu0
    %v2622 = vadd.f32 %v2603, %v2621
    %v2623 = vpop.f32.mrf.mxu0
    %v2624 = vadd.f32 %v2605, %v2623
    %2625 = vdwg.mxu0
    %2626 = vmatpush.bf16.msra.mxu0 %v2550
    %2627 = vmatpush.bf16.msra.mxu0 %v2549
    %2628 = vmatpush.bf16.msra.mxu0 %v2548
    %2629 = vmatpush.bf16.msra.mxu0 %v2547
    %2630 = vmatpush.bf16.msra.mxu0 %v2546
    %2631 = vmatpush.bf16.msra.mxu0 %v2545
    %2632 = vmatpush.bf16.msra.mxu0 %v2544
    %2633 = vmatpush.bf16.msra.mxu0 %v2543
    %2634 = vmatmul.bf16.gmra.mxu0 %v1229
    %v2635 = vpop.f32.mrf.mxu0
    %v2636 = vadd.f32 %v2617, %v2635
    %v2637 = vpop.f32.mrf.mxu0
    %v2638 = vadd.f32 %v2619, %v2637
    %2639 = vmatmul.bf16.gmra.mxu0 %v1236
    %v2640 = vpop.f32.mrf.mxu0
    %v2641 = vadd.f32 %v2622, %v2640
    %v2642 = vpop.f32.mrf.mxu0
    %v2643 = vadd.f32 %v2624, %v2642
    %2644 = vdwg.mxu0
    %2645 = vmatpush.bf16.msra.mxu0 %v2558
    %2646 = vmatpush.bf16.msra.mxu0 %v2557
    %2647 = vmatpush.bf16.msra.mxu0 %v2556
    %2648 = vmatpush.bf16.msra.mxu0 %v2555
    %2649 = vmatpush.bf16.msra.mxu0 %v2554
    %2650 = vmatpush.bf16.msra.mxu0 %v2553
    %2651 = vmatpush.bf16.msra.mxu0 %v2552
    %2652 = vmatpush.bf16.msra.mxu0 %v2551
    %2653 = vmatmul.bf16.gmra.mxu0 %v1230
    %v2654 = vpop.f32.mrf.mxu0
    %v2655 = vadd.f32 %v2636, %v2654
    %v2656 = vpop.f32.mrf.mxu0
    %v2657 = vadd.f32 %v2638, %v2656
    %2658 = vmatmul.bf16.gmra.mxu0 %v1237
    %v2659 = vpop.f32.mrf.mxu0
    %v2660 = vadd.f32 %v2641, %v2659
    %v2661 = vpop.f32.mrf.mxu0
    %v2662 = vadd.f32 %v2643, %v2661
    %2663 = vdwg.mxu0
    %2664 = vmatpush.bf16.msra.mxu0 %v2566
    %2665 = vmatpush.bf16.msra.mxu0 %v2565
    %2666 = vmatpush.bf16.msra.mxu0 %v2564
    %2667 = vmatpush.bf16.msra.mxu0 %v2563
    %2668 = vmatpush.bf16.msra.mxu0 %v2562
    %2669 = vmatpush.bf16.msra.mxu0 %v2561
    %2670 = vmatpush.bf16.msra.mxu0 %v2560
    %2671 = vmatpush.bf16.msra.mxu0 %v2559
    %2672 = vmatmul.bf16.gmra.mxu0 %v1231
    %v2673 = vpop.f32.mrf.mxu0
    %v2674 = vadd.f32 %v2655, %v2673
    %v2675 = vpop.f32.mrf.mxu0
    %v2676 = vadd.f32 %v2657, %v2675
    %2677 = vmatmul.bf16.gmra.mxu0 %v1238
    %v2678 = vpop.f32.mrf.mxu0
    %v2679 = vadd.f32 %v2660, %v2678
    %v2680 = vpop.f32.mrf.mxu0
    %v2681 = vadd.f32 %v2662, %v2680
    %2682 = vdwg.mxu0
    %2683 = vmatpush.bf16.msra.mxu0 0
    %2684 = vmatpush.bf16.msra.mxu0 0
    %2685 = vmatpush.bf16.msra.mxu0 0
    %2686 = vmatpush.bf16.msra.mxu0 0
    %2687 = vmatpush.bf16.msra.mxu0 0
    %2688 = vmatpush.bf16.msra.mxu0 0
    %2689 = vmatpush.bf16.msra.mxu0 %v2568
    %2690 = vmatpush.bf16.msra.mxu0 %v2567
    %2691 = vmatmul.bf16.gmra.mxu0 %v1254
    %v2692 = vpop.f32.mrf.mxu0
    %v2693 = vadd.f32 %v2674, %v2692
    %v2694 = vpop.f32.mrf.mxu0
    %v2695 = vadd.f32 %v2676, %v2694
    %2696 = vmatmul.bf16.gmra.mxu0 %v1257
    %v2697 = vpop.f32.mrf.mxu0
    %v2698 = vadd.f32 %v2679, %v2697
    %v2699 = vpop.f32.mrf.mxu0
    %v2700 = vadd.f32 %v2681, %v2699
    %2701 = vdwg.mxu0
    %2702 = vadd.xlane.f32.xlu0 %v2693
    %v2703 = vpop.xlane.xlu0 %2702
    %2704 = vadd.xlane.f32.xlu0 %v2695
    %v2705 = vpop.xlane.xlu0 %2704
    %2706 = vadd.xlane.f32.xlu0 %v2698
    %v2707 = vpop.xlane.xlu0 %2706
    %2708 = vadd.xlane.f32.xlu0 %v2700
    %v2709 = vpop.xlane.xlu0 %2708
    %v2710 = vmul.f32 %v2703, %v331
    %v2711 = vmul.f32 %v2705, %v331
    %v2712 = vmul.f32 %v2707, %v331
    %v2713 = vmul.f32 %v2709, %v331
    %v2714 = vsub.f32 %v2693, %v2710
    %v2715 = vsub.f32 %v2695, %v2711
    %v2716 = vsub.f32 %v2698, %v2712
    %v2717 = vsub.f32 %v2700, %v2713
    %v2718 = vmul.f32 %v2714, %v2714
    %v2719 = vmul.f32 %v2715, %v2715
    %v2720 = vmul.f32 %v2716, %v2716
    %v2721 = vmul.f32 %v2717, %v2717
    %2722 = vadd.xlane.f32.xlu0 %v2718
    %v2723 = vpop.xlane.xlu0 %2722
    %2724 = vadd.xlane.f32.xlu0 %v2719
    %v2725 = vpop.xlane.xlu0 %2724
    %2726 = vadd.xlane.f32.xlu0 %v2720
    %v2727 = vpop.xlane.xlu0 %2726
    %2728 = vadd.xlane.f32.xlu0 %v2721
    %v2729 = vpop.xlane.xlu0 %2728
    %v2730 = vmul.f32 %v2723, %v331
    %v2731 = vmul.f32 %v2725, %v331
    %v2732 = vmul.f32 %v2727, %v331
    %v2733 = vmul.f32 %v2729, %v331
    %v2734 = vadd.f32 %v2730, 1e-05
    %v2735 = vadd.f32 %v2731, 1e-05
    %v2736 = vadd.f32 %v2732, 1e-05
    %v2737 = vadd.f32 %v2733, 1e-05
    %v2738 = vrsqrt.pop %v2734
    %v2739 = vmul.f32 %v2738, %v2734
    %v2740 = vmul.f32 %v2739, %v2738
    %v2741 = vmul.f32 0.5, %v2740
    %v2742 = vsub.f32 1.5, %v2741
    %v2743 = vmul.f32 %v2738, %v2742
    %vm2744 = vweird.f32 %v2734
    %vm2745 = vweird.f32 %v2738
    %vm2746 = vmor %vm2744, %vm2745
    %v2747 = vsel %vm2746, %v2738, %v2743
    %v2748 = vrsqrt.pop %v2735
    %v2749 = vmul.f32 %v2748, %v2735
    %v2750 = vmul.f32 %v2749, %v2748
    %v2751 = vmul.f32 0.5, %v2750
    %v2752 = vsub.f32 1.5, %v2751
    %v2753 = vmul.f32 %v2748, %v2752
    %vm2754 = vweird.f32 %v2735
    %vm2755 = vweird.f32 %v2748
    %vm2756 = vmor %vm2754, %vm2755
    %v2757 = vsel %vm2756, %v2748, %v2753
    %v2758 = vrsqrt.pop %v2736
    %v2759 = vmul.f32 %v2758, %v2736
    %v2760 = vmul.f32 %v2759, %v2758
    %v2761 = vmul.f32 0.5, %v2760
    %v2762 = vsub.f32 1.5, %v2761
    %v2763 = vmul.f32 %v2758, %v2762
    %vm2764 = vweird.f32 %v2736
    %vm2765 = vweird.f32 %v2758
    %vm2766 = vmor %vm2764, %vm2765
    %v2767 = vsel %vm2766, %v2758, %v2763
    %v2768 = vrsqrt.pop %v2737
    %v2769 = vmul.f32 %v2768, %v2737
    %v2770 = vmul.f32 %v2769, %v2768
    %v2771 = vmul.f32 0.5, %v2770
    %v2772 = vsub.f32 1.5, %v2771
    %v2773 = vmul.f32 %v2768, %v2772
    %vm2774 = vweird.f32 %v2737
    %vm2775 = vweird.f32 %v2768
    %vm2776 = vmor %vm2774, %vm2775
    %v2777 = vsel %vm2776, %v2768, %v2773
    %v2778 = vmul.f32 %v2714, %v2747
    %v2779 = vmul.f32 %v2715, %v2757
    %v2780 = vmul.f32 %v2716, %v2767
    %v2781 = vmul.f32 %v2717, %v2777
    %v2782 = vmul.f32 %v2778, %v1479
    %v2783 = vmul.f32 %v2779, %v1484
    %v2784 = vmul.f32 %v2780, %v1489
    %v2785 = vmul.f32 %v2781, %v1494
    %v2786 = vadd.f32 %v2782, %v1502
    %v2787 = vadd.f32 %v2783, %v1506
    %v2788 = vadd.f32 %v2784, %v1510
    %v2789 = vadd.f32 %v2785, %v1514
    %v2790 = vtanh.pop %v2786
    %v2791 = vtanh.pop %v2787
    %v2792 = vtanh.pop %v2788
    %v2793 = vtanh.pop %v2789
    %2794 = vrot.lane.b32.xlu0 %v2790, 18
    %v2795 = vpop.permute.xlu0 %2794
    %2796 = vrot.lane.b32.xlu0 %v2791, 18
    %v2797 = vpop.permute.xlu0 %2796
    %2798 = vrot.lane.b32.xlu0 %v2792, 18
    %v2799 = vpop.permute.xlu0 %2798
    %2800 = vrot.lane.b32.xlu0 %v2793, 18
    %v2801 = vpop.permute.xlu0 %2800
    %v2802 = vmul.f32 %v2795, %v114
    %v2803 = vmul.f32 %v2797, %v114
    %v2804 = vmul.f32 %v2799, %v114
    %v2805 = vmul.f32 %v2801, %v114
    %2806 = vrot.lane.b32.xlu0 %v2790, 17
    %v2807 = vpop.permute.xlu0 %2806
    %2808 = vrot.lane.b32.xlu0 %v2791, 17
    %v2809 = vpop.permute.xlu0 %2808
    %2810 = vrot.lane.b32.xlu0 %v2792, 17
    %v2811 = vpop.permute.xlu0 %2810
    %2812 = vrot.lane.b32.xlu0 %v2793, 17
    %v2813 = vpop.permute.xlu0 %2812
    %v2814 = vmul.f32 %v2807, %v120
    %v2815 = vmul.f32 %v2809, %v120
    %v2816 = vmul.f32 %v2811, %v120
    %v2817 = vmul.f32 %v2813, %v120
    %2818 = vrot.lane.b32.xlu0 %v2790, 16
    %v2819 = vpop.permute.xlu0 %2818
    %2820 = vrot.lane.b32.xlu0 %v2791, 16
    %v2821 = vpop.permute.xlu0 %2820
    %2822 = vrot.lane.b32.xlu0 %v2792, 16
    %v2823 = vpop.permute.xlu0 %2822
    %2824 = vrot.lane.b32.xlu0 %v2793, 16
    %v2825 = vpop.permute.xlu0 %2824
    %v2826 = vmul.f32 %v2819, %v126
    %v2827 = vmul.f32 %v2821, %v126
    %v2828 = vmul.f32 %v2823, %v126
    %v2829 = vmul.f32 %v2825, %v126
    %2830 = vrot.lane.b32.xlu0 %v2790, 15
    %v2831 = vpop.permute.xlu0 %2830
    %2832 = vrot.lane.b32.xlu0 %v2791, 15
    %v2833 = vpop.permute.xlu0 %2832
    %2834 = vrot.lane.b32.xlu0 %v2792, 15
    %v2835 = vpop.permute.xlu0 %2834
    %2836 = vrot.lane.b32.xlu0 %v2793, 15
    %v2837 = vpop.permute.xlu0 %2836
    %v2838 = vmul.f32 %v2831, %v132
    %v2839 = vmul.f32 %v2833, %v132
    %v2840 = vmul.f32 %v2835, %v132
    %v2841 = vmul.f32 %v2837, %v132
    %2842 = vrot.lane.b32.xlu0 %v2790, 14
    %v2843 = vpop.permute.xlu0 %2842
    %2844 = vrot.lane.b32.xlu0 %v2791, 14
    %v2845 = vpop.permute.xlu0 %2844
    %2846 = vrot.lane.b32.xlu0 %v2792, 14
    %v2847 = vpop.permute.xlu0 %2846
    %2848 = vrot.lane.b32.xlu0 %v2793, 14
    %v2849 = vpop.permute.xlu0 %2848
    %v2850 = vmul.f32 %v2843, %v138
    %v2851 = vmul.f32 %v2845, %v138
    %v2852 = vmul.f32 %v2847, %v138
    %v2853 = vmul.f32 %v2849, %v138
    %2854 = vrot.lane.b32.xlu0 %v2790, 10
    %v2855 = vpop.permute.xlu0 %2854
    %2856 = vrot.lane.b32.xlu0 %v2791, 10
    %v2857 = vpop.permute.xlu0 %2856
    %2858 = vrot.lane.b32.xlu0 %v2792, 10
    %v2859 = vpop.permute.xlu0 %2858
    %2860 = vrot.lane.b32.xlu0 %v2793, 10
    %v2861 = vpop.permute.xlu0 %2860
    %v2862 = vmul.f32 %v2855, %v144
    %v2863 = vmul.f32 %v2857, %v144
    %v2864 = vmul.f32 %v2859, %v144
    %v2865 = vmul.f32 %v2861, %v144
    %2866 = vrot.lane.b32.xlu0 %v2790, 9
    %v2867 = vpop.permute.xlu0 %2866
    %2868 = vrot.lane.b32.xlu0 %v2791, 9
    %v2869 = vpop.permute.xlu0 %2868
    %2870 = vrot.lane.b32.xlu0 %v2792, 9
    %v2871 = vpop.permute.xlu0 %2870
    %2872 = vrot.lane.b32.xlu0 %v2793, 9
    %v2873 = vpop.permute.xlu0 %2872
    %v2874 = vmul.f32 %v2867, %v150
    %v2875 = vmul.f32 %v2869, %v150
    %v2876 = vmul.f32 %v2871, %v150
    %v2877 = vmul.f32 %v2873, %v150
    %2878 = vrot.lane.b32.xlu0 %v2790, 8
    %v2879 = vpop.permute.xlu0 %2878
    %2880 = vrot.lane.b32.xlu0 %v2791, 8
    %v2881 = vpop.permute.xlu0 %2880
    %2882 = vrot.lane.b32.xlu0 %v2792, 8
    %v2883 = vpop.permute.xlu0 %2882
    %2884 = vrot.lane.b32.xlu0 %v2793, 8
    %v2885 = vpop.permute.xlu0 %2884
    %v2886 = vmul.f32 %v2879, %v156
    %v2887 = vmul.f32 %v2881, %v156
    %v2888 = vmul.f32 %v2883, %v156
    %v2889 = vmul.f32 %v2885, %v156
    %2890 = vrot.lane.b32.xlu0 %v2790, 7
    %v2891 = vpop.permute.xlu0 %2890
    %2892 = vrot.lane.b32.xlu0 %v2791, 7
    %v2893 = vpop.permute.xlu0 %2892
    %2894 = vrot.lane.b32.xlu0 %v2792, 7
    %v2895 = vpop.permute.xlu0 %2894
    %2896 = vrot.lane.b32.xlu0 %v2793, 7
    %v2897 = vpop.permute.xlu0 %2896
    %v2898 = vmul.f32 %v2891, %v162
    %v2899 = vmul.f32 %v2893, %v162
    %v2900 = vmul.f32 %v2895, %v162
    %v2901 = vmul.f32 %v2897, %v162
    %2902 = vrot.lane.b32.xlu0 %v2790, 6
    %v2903 = vpop.permute.xlu0 %2902
    %2904 = vrot.lane.b32.xlu0 %v2791, 6
    %v2905 = vpop.permute.xlu0 %2904
    %2906 = vrot.lane.b32.xlu0 %v2792, 6
    %v2907 = vpop.permute.xlu0 %2906
    %2908 = vrot.lane.b32.xlu0 %v2793, 6
    %v2909 = vpop.permute.xlu0 %2908
    %v2910 = vmul.f32 %v2903, %v168
    %v2911 = vmul.f32 %v2905, %v168
    %v2912 = vmul.f32 %v2907, %v168
    %v2913 = vmul.f32 %v2909, %v168
    %2914 = vrot.lane.b32.xlu0 %v2790, 2
    %v2915 = vpop.permute.xlu0 %2914
    %2916 = vrot.lane.b32.xlu0 %v2791, 2
    %v2917 = vpop.permute.xlu0 %2916
    %2918 = vrot.lane.b32.xlu0 %v2792, 2
    %v2919 = vpop.permute.xlu0 %2918
    %2920 = vrot.lane.b32.xlu0 %v2793, 2
    %v2921 = vpop.permute.xlu0 %2920
    %v2922 = vmul.f32 %v2915, %v174
    %v2923 = vmul.f32 %v2917, %v174
    %v2924 = vmul.f32 %v2919, %v174
    %v2925 = vmul.f32 %v2921, %v174
    %2926 = vrot.lane.b32.xlu0 %v2790, 1
    %v2927 = vpop.permute.xlu0 %2926
    %2928 = vrot.lane.b32.xlu0 %v2791, 1
    %v2929 = vpop.permute.xlu0 %2928
    %2930 = vrot.lane.b32.xlu0 %v2792, 1
    %v2931 = vpop.permute.xlu0 %2930
    %2932 = vrot.lane.b32.xlu0 %v2793, 1
    %v2933 = vpop.permute.xlu0 %2932
    %v2934 = vmul.f32 %v2927, %v180
    %v2935 = vmul.f32 %v2929, %v180
    %v2936 = vmul.f32 %v2931, %v180
    %v2937 = vmul.f32 %v2933, %v180
    %v2938 = vmul.f32 %v2790, %v184
    %v2939 = vmul.f32 %v2791, %v184
    %v2940 = vmul.f32 %v2792, %v184
    %v2941 = vmul.f32 %v2793, %v184
    %2942 = vrot.lane.b32.xlu0 %v2790, 127
    %v2943 = vpop.permute.xlu0 %2942
    %2944 = vrot.lane.b32.xlu0 %v2791, 127
    %v2945 = vpop.permute.xlu0 %2944
    %2946 = vrot.lane.b32.xlu0 %v2792, 127
    %v2947 = vpop.permute.xlu0 %2946
    %2948 = vrot.lane.b32.xlu0 %v2793, 127
    %v2949 = vpop.permute.xlu0 %2948
    %v2950 = vmul.f32 %v2943, %v190
    %v2951 = vmul.f32 %v2945, %v190
    %v2952 = vmul.f32 %v2947, %v190
    %v2953 = vmul.f32 %v2949, %v190
    %2954 = vrot.lane.b32.xlu0 %v2790, 126
    %v2955 = vpop.permute.xlu0 %2954
    %2956 = vrot.lane.b32.xlu0 %v2791, 126
    %v2957 = vpop.permute.xlu0 %2956
    %2958 = vrot.lane.b32.xlu0 %v2792, 126
    %v2959 = vpop.permute.xlu0 %2958
    %2960 = vrot.lane.b32.xlu0 %v2793, 126
    %v2961 = vpop.permute.xlu0 %2960
    %v2962 = vmul.f32 %v2955, %v196
    %v2963 = vmul.f32 %v2957, %v196
    %v2964 = vmul.f32 %v2959, %v196
    %v2965 = vmul.f32 %v2961, %v196
    %2966 = vrot.lane.b32.xlu0 %v2790, 122
    %v2967 = vpop.permute.xlu0 %2966
    %2968 = vrot.lane.b32.xlu0 %v2791, 122
    %v2969 = vpop.permute.xlu0 %2968
    %2970 = vrot.lane.b32.xlu0 %v2792, 122
    %v2971 = vpop.permute.xlu0 %2970
    %2972 = vrot.lane.b32.xlu0 %v2793, 122
    %v2973 = vpop.permute.xlu0 %2972
    %v2974 = vmul.f32 %v2967, %v202
    %v2975 = vmul.f32 %v2969, %v202
    %v2976 = vmul.f32 %v2971, %v202
    %v2977 = vmul.f32 %v2973, %v202
    %2978 = vrot.lane.b32.xlu0 %v2790, 121
    %v2979 = vpop.permute.xlu0 %2978
    %2980 = vrot.lane.b32.xlu0 %v2791, 121
    %v2981 = vpop.permute.xlu0 %2980
    %2982 = vrot.lane.b32.xlu0 %v2792, 121
    %v2983 = vpop.permute.xlu0 %2982
    %2984 = vrot.lane.b32.xlu0 %v2793, 121
    %v2985 = vpop.permute.xlu0 %2984
    %v2986 = vmul.f32 %v2979, %v208
    %v2987 = vmul.f32 %v2981, %v208
    %v2988 = vmul.f32 %v2983, %v208
    %v2989 = vmul.f32 %v2985, %v208
    %2990 = vrot.lane.b32.xlu0 %v2790, 120
    %v2991 = vpop.permute.xlu0 %2990
    %2992 = vrot.lane.b32.xlu0 %v2791, 120
    %v2993 = vpop.permute.xlu0 %2992
    %2994 = vrot.lane.b32.xlu0 %v2792, 120
    %v2995 = vpop.permute.xlu0 %2994
    %2996 = vrot.lane.b32.xlu0 %v2793, 120
    %v2997 = vpop.permute.xlu0 %2996
    %v2998 = vmul.f32 %v2991, %v214
    %v2999 = vmul.f32 %v2993, %v214
    %v3000 = vmul.f32 %v2995, %v214
    %v3001 = vmul.f32 %v2997, %v214
    %3002 = vrot.lane.b32.xlu0 %v2790, 119
    %v3003 = vpop.permute.xlu0 %3002
    %3004 = vrot.lane.b32.xlu0 %v2791, 119
    %v3005 = vpop.permute.xlu0 %3004
    %3006 = vrot.lane.b32.xlu0 %v2792, 119
    %v3007 = vpop.permute.xlu0 %3006
    %3008 = vrot.lane.b32.xlu0 %v2793, 119
    %v3009 = vpop.permute.xlu0 %3008
    %v3010 = vmul.f32 %v3003, %v220
    %v3011 = vmul.f32 %v3005, %v220
    %v3012 = vmul.f32 %v3007, %v220
    %v3013 = vmul.f32 %v3009, %v220
    %3014 = vrot.lane.b32.xlu0 %v2790, 118
    %v3015 = vpop.permute.xlu0 %3014
    %3016 = vrot.lane.b32.xlu0 %v2791, 118
    %v3017 = vpop.permute.xlu0 %3016
    %3018 = vrot.lane.b32.xlu0 %v2792, 118
    %v3019 = vpop.permute.xlu0 %3018
    %3020 = vrot.lane.b32.xlu0 %v2793, 118
    %v3021 = vpop.permute.xlu0 %3020
    %v3022 = vmul.f32 %v3015, %v226
    %v3023 = vmul.f32 %v3017, %v226
    %v3024 = vmul.f32 %v3019, %v226
    %v3025 = vmul.f32 %v3021, %v226
    %3026 = vrot.lane.b32.xlu0 %v2790, 114
    %v3027 = vpop.permute.xlu0 %3026
    %3028 = vrot.lane.b32.xlu0 %v2791, 114
    %v3029 = vpop.permute.xlu0 %3028
    %3030 = vrot.lane.b32.xlu0 %v2792, 114
    %v3031 = vpop.permute.xlu0 %3030
    %3032 = vrot.lane.b32.xlu0 %v2793, 114
    %v3033 = vpop.permute.xlu0 %3032
    %v3034 = vmul.f32 %v3027, %v232
    %v3035 = vmul.f32 %v3029, %v232
    %v3036 = vmul.f32 %v3031, %v232
    %v3037 = vmul.f32 %v3033, %v232
    %3038 = vrot.lane.b32.xlu0 %v2790, 113
    %v3039 = vpop.permute.xlu0 %3038
    %3040 = vrot.lane.b32.xlu0 %v2791, 113
    %v3041 = vpop.permute.xlu0 %3040
    %3042 = vrot.lane.b32.xlu0 %v2792, 113
    %v3043 = vpop.permute.xlu0 %3042
    %3044 = vrot.lane.b32.xlu0 %v2793, 113
    %v3045 = vpop.permute.xlu0 %3044
    %v3046 = vmul.f32 %v3039, %v238
    %v3047 = vmul.f32 %v3041, %v238
    %v3048 = vmul.f32 %v3043, %v238
    %v3049 = vmul.f32 %v3045, %v238
    %3050 = vrot.lane.b32.xlu0 %v2790, 112
    %v3051 = vpop.permute.xlu0 %3050
    %3052 = vrot.lane.b32.xlu0 %v2791, 112
    %v3053 = vpop.permute.xlu0 %3052
    %3054 = vrot.lane.b32.xlu0 %v2792, 112
    %v3055 = vpop.permute.xlu0 %3054
    %3056 = vrot.lane.b32.xlu0 %v2793, 112
    %v3057 = vpop.permute.xlu0 %3056
    %v3058 = vmul.f32 %v3051, %v244
    %v3059 = vmul.f32 %v3053, %v244
    %v3060 = vmul.f32 %v3055, %v244
    %v3061 = vmul.f32 %v3057, %v244
    %3062 = vrot.lane.b32.xlu0 %v2790, 111
    %v3063 = vpop.permute.xlu0 %3062
    %3064 = vrot.lane.b32.xlu0 %v2791, 111
    %v3065 = vpop.permute.xlu0 %3064
    %3066 = vrot.lane.b32.xlu0 %v2792, 111
    %v3067 = vpop.permute.xlu0 %3066
    %3068 = vrot.lane.b32.xlu0 %v2793, 111
    %v3069 = vpop.permute.xlu0 %3068
    %v3070 = vmul.f32 %v3063, %v250
    %v3071 = vmul.f32 %v3065, %v250
    %v3072 = vmul.f32 %v3067, %v250
    %v3073 = vmul.f32 %v3069, %v250
    %3074 = vrot.lane.b32.xlu0 %v2790, 110
    %v3075 = vpop.permute.xlu0 %3074
    %3076 = vrot.lane.b32.xlu0 %v2791, 110
    %v3077 = vpop.permute.xlu0 %3076
    %3078 = vrot.lane.b32.xlu0 %v2792, 110
    %v3079 = vpop.permute.xlu0 %3078
    %3080 = vrot.lane.b32.xlu0 %v2793, 110
    %v3081 = vpop.permute.xlu0 %3080
    %v3082 = vmul.f32 %v3075, %v256
    %v3083 = vmul.f32 %v3077, %v256
    %v3084 = vmul.f32 %v3079, %v256
    %v3085 = vmul.f32 %v3081, %v256
    %v3086 = vpack.c.bf16 %v2803, %v2802
    %v3087 = vpack.c.bf16 %v2805, %v2804
    %v3088 = vpack.c.bf16 %v2815, %v2814
    %v3089 = vpack.c.bf16 %v2817, %v2816
    %v3090 = vpack.c.bf16 %v2827, %v2826
    %v3091 = vpack.c.bf16 %v2829, %v2828
    %v3092 = vpack.c.bf16 %v2839, %v2838
    %v3093 = vpack.c.bf16 %v2841, %v2840
    %v3094 = vpack.c.bf16 %v2851, %v2850
    %v3095 = vpack.c.bf16 %v2853, %v2852
    %v3096 = vpack.c.bf16 %v2863, %v2862
    %v3097 = vpack.c.bf16 %v2865, %v2864
    %v3098 = vpack.c.bf16 %v2875, %v2874
    %v3099 = vpack.c.bf16 %v2877, %v2876
    %v3100 = vpack.c.bf16 %v2887, %v2886
    %v3101 = vpack.c.bf16 %v2889, %v2888
    %v3102 = vpack.c.bf16 %v2899, %v2898
    %v3103 = vpack.c.bf16 %v2901, %v2900
    %v3104 = vpack.c.bf16 %v2911, %v2910
    %v3105 = vpack.c.bf16 %v2913, %v2912
    %v3106 = vpack.c.bf16 %v2923, %v2922
    %v3107 = vpack.c.bf16 %v2925, %v2924
    %v3108 = vpack.c.bf16 %v2935, %v2934
    %v3109 = vpack.c.bf16 %v2937, %v2936
    %v3110 = vpack.c.bf16 %v2939, %v2938
    %v3111 = vpack.c.bf16 %v2941, %v2940
    %v3112 = vpack.c.bf16 %v2951, %v2950
    %v3113 = vpack.c.bf16 %v2953, %v2952
    %v3114 = vpack.c.bf16 %v2963, %v2962
    %v3115 = vpack.c.bf16 %v2965, %v2964
    %v3116 = vpack.c.bf16 %v2975, %v2974
    %v3117 = vpack.c.bf16 %v2977, %v2976
    %v3118 = vpack.c.bf16 %v2987, %v2986
    %v3119 = vpack.c.bf16 %v2989, %v2988
    %v3120 = vpack.c.bf16 %v2999, %v2998
    %v3121 = vpack.c.bf16 %v3001, %v3000
    %v3122 = vpack.c.bf16 %v3011, %v3010
    %v3123 = vpack.c.bf16 %v3013, %v3012
    %v3124 = vpack.c.bf16 %v3023, %v3022
    %v3125 = vpack.c.bf16 %v3025, %v3024
    %v3126 = vpack.c.bf16 %v3035, %v3034
    %v3127 = vpack.c.bf16 %v3037, %v3036
    %v3128 = vpack.c.bf16 %v3047, %v3046
    %v3129 = vpack.c.bf16 %v3049, %v3048
    %v3130 = vpack.c.bf16 %v3059, %v3058
    %v3131 = vpack.c.bf16 %v3061, %v3060
    %v3132 = vpack.c.bf16 %v3071, %v3070
    %v3133 = vpack.c.bf16 %v3073, %v3072
    %v3134 = vpack.c.bf16 %v3083, %v3082
    %v3135 = vpack.c.bf16 %v3085, %v3084
    %3136 = vmatpush.bf16.msra.mxu0 %v3093
    %3137 = vmatpush.bf16.msra.mxu0 %v3092
    %3138 = vmatpush.bf16.msra.mxu0 %v3091
    %3139 = vmatpush.bf16.msra.mxu0 %v3090
    %3140 = vmatpush.bf16.msra.mxu0 %v3089
    %3141 = vmatpush.bf16.msra.mxu0 %v3088
    %3142 = vmatpush.bf16.msra.mxu0 %v3087
    %3143 = vmatpush.bf16.msra.mxu0 %v3086
    %3144 = vmatmul.bf16.gmra.mxu0 %v1926
    %v3145 = vpop.f32.mrf.mxu0
    %v3146 = vadd.f32 0.0, %v3145
    %v3147 = vpop.f32.mrf.mxu0
    %v3148 = vadd.f32 0.0, %v3147
    %3149 = vmatmul.bf16.gmra.mxu0 %v1933
    %v3150 = vpop.f32.mrf.mxu0
    %v3151 = vadd.f32 0.0, %v3150
    %v3152 = vpop.f32.mrf.mxu0
    %v3153 = vadd.f32 0.0, %v3152
    %3154 = vdwg.mxu0
    %3155 = vmatpush.bf16.msra.mxu0 %v3101
    %3156 = vmatpush.bf16.msra.mxu0 %v3100
    %3157 = vmatpush.bf16.msra.mxu0 %v3099
    %3158 = vmatpush.bf16.msra.mxu0 %v3098
    %3159 = vmatpush.bf16.msra.mxu0 %v3097
    %3160 = vmatpush.bf16.msra.mxu0 %v3096
    %3161 = vmatpush.bf16.msra.mxu0 %v3095
    %3162 = vmatpush.bf16.msra.mxu0 %v3094
    %3163 = vmatmul.bf16.gmra.mxu0 %v1927
    %v3164 = vpop.f32.mrf.mxu0
    %v3165 = vadd.f32 %v3146, %v3164
    %v3166 = vpop.f32.mrf.mxu0
    %v3167 = vadd.f32 %v3148, %v3166
    %3168 = vmatmul.bf16.gmra.mxu0 %v1934
    %v3169 = vpop.f32.mrf.mxu0
    %v3170 = vadd.f32 %v3151, %v3169
    %v3171 = vpop.f32.mrf.mxu0
    %v3172 = vadd.f32 %v3153, %v3171
    %3173 = vdwg.mxu0
    %3174 = vmatpush.bf16.msra.mxu0 %v3109
    %3175 = vmatpush.bf16.msra.mxu0 %v3108
    %3176 = vmatpush.bf16.msra.mxu0 %v3107
    %3177 = vmatpush.bf16.msra.mxu0 %v3106
    %3178 = vmatpush.bf16.msra.mxu0 %v3105
    %3179 = vmatpush.bf16.msra.mxu0 %v3104
    %3180 = vmatpush.bf16.msra.mxu0 %v3103
    %3181 = vmatpush.bf16.msra.mxu0 %v3102
    %3182 = vmatmul.bf16.gmra.mxu0 %v1928
    %v3183 = vpop.f32.mrf.mxu0
    %v3184 = vadd.f32 %v3165, %v3183
    %v3185 = vpop.f32.mrf.mxu0
    %v3186 = vadd.f32 %v3167, %v3185
    %3187 = vmatmul.bf16.gmra.mxu0 %v1935
    %v3188 = vpop.f32.mrf.mxu0
    %v3189 = vadd.f32 %v3170, %v3188
    %v3190 = vpop.f32.mrf.mxu0
    %v3191 = vadd.f32 %v3172, %v3190
    %3192 = vdwg.mxu0
    %3193 = vmatpush.bf16.msra.mxu0 %v3117
    %3194 = vmatpush.bf16.msra.mxu0 %v3116
    %3195 = vmatpush.bf16.msra.mxu0 %v3115
    %3196 = vmatpush.bf16.msra.mxu0 %v3114
    %3197 = vmatpush.bf16.msra.mxu0 %v3113
    %3198 = vmatpush.bf16.msra.mxu0 %v3112
    %3199 = vmatpush.bf16.msra.mxu0 %v3111
    %3200 = vmatpush.bf16.msra.mxu0 %v3110
    %3201 = vmatmul.bf16.gmra.mxu0 %v1929
    %v3202 = vpop.f32.mrf.mxu0
    %v3203 = vadd.f32 %v3184, %v3202
    %v3204 = vpop.f32.mrf.mxu0
    %v3205 = vadd.f32 %v3186, %v3204
    %3206 = vmatmul.bf16.gmra.mxu0 %v1936
    %v3207 = vpop.f32.mrf.mxu0
    %v3208 = vadd.f32 %v3189, %v3207
    %v3209 = vpop.f32.mrf.mxu0
    %v3210 = vadd.f32 %v3191, %v3209
    %3211 = vdwg.mxu0
    %3212 = vmatpush.bf16.msra.mxu0 %v3125
    %3213 = vmatpush.bf16.msra.mxu0 %v3124
    %3214 = vmatpush.bf16.msra.mxu0 %v3123
    %3215 = vmatpush.bf16.msra.mxu0 %v3122
    %3216 = vmatpush.bf16.msra.mxu0 %v3121
    %3217 = vmatpush.bf16.msra.mxu0 %v3120
    %3218 = vmatpush.bf16.msra.mxu0 %v3119
    %3219 = vmatpush.bf16.msra.mxu0 %v3118
    %3220 = vmatmul.bf16.gmra.mxu0 %v1930
    %v3221 = vpop.f32.mrf.mxu0
    %v3222 = vadd.f32 %v3203, %v3221
    %v3223 = vpop.f32.mrf.mxu0
    %v3224 = vadd.f32 %v3205, %v3223
    %3225 = vmatmul.bf16.gmra.mxu0 %v1937
    %v3226 = vpop.f32.mrf.mxu0
    %v3227 = vadd.f32 %v3208, %v3226
    %v3228 = vpop.f32.mrf.mxu0
    %v3229 = vadd.f32 %v3210, %v3228
    %3230 = vdwg.mxu0
    %3231 = vmatpush.bf16.msra.mxu0 %v3133
    %3232 = vmatpush.bf16.msra.mxu0 %v3132
    %3233 = vmatpush.bf16.msra.mxu0 %v3131
    %3234 = vmatpush.bf16.msra.mxu0 %v3130
    %3235 = vmatpush.bf16.msra.mxu0 %v3129
    %3236 = vmatpush.bf16.msra.mxu0 %v3128
    %3237 = vmatpush.bf16.msra.mxu0 %v3127
    %3238 = vmatpush.bf16.msra.mxu0 %v3126
    %3239 = vmatmul.bf16.gmra.mxu0 %v1931
    %v3240 = vpop.f32.mrf.mxu0
    %v3241 = vadd.f32 %v3222, %v3240
    %v3242 = vpop.f32.mrf.mxu0
    %v3243 = vadd.f32 %v3224, %v3242
    %3244 = vmatmul.bf16.gmra.mxu0 %v1938
    %v3245 = vpop.f32.mrf.mxu0
    %v3246 = vadd.f32 %v3227, %v3245
    %v3247 = vpop.f32.mrf.mxu0
    %v3248 = vadd.f32 %v3229, %v3247
    %3249 = vdwg.mxu0
    %3250 = vmatpush.bf16.msra.mxu0 0
    %3251 = vmatpush.bf16.msra.mxu0 0
    %3252 = vmatpush.bf16.msra.mxu0 0
    %3253 = vmatpush.bf16.msra.mxu0 0
    %3254 = vmatpush.bf16.msra.mxu0 0
    %3255 = vmatpush.bf16.msra.mxu0 0
    %3256 = vmatpush.bf16.msra.mxu0 %v3135
    %3257 = vmatpush.bf16.msra.mxu0 %v3134
    %3258 = vmatmul.bf16.gmra.mxu0 %v1953
    %v3259 = vpop.f32.mrf.mxu0
    %v3260 = vadd.f32 %v3241, %v3259
    %v3261 = vpop.f32.mrf.mxu0
    %v3262 = vadd.f32 %v3243, %v3261
    %3263 = vmatmul.bf16.gmra.mxu0 %v1956
    %v3264 = vpop.f32.mrf.mxu0
    %v3265 = vadd.f32 %v3246, %v3264
    %v3266 = vpop.f32.mrf.mxu0
    %v3267 = vadd.f32 %v3248, %v3266
    %3268 = vdwg.mxu0
    %3269 = vadd.xlane.f32.xlu0 %v3260
    %v3270 = vpop.xlane.xlu0 %3269
    %3271 = vadd.xlane.f32.xlu0 %v3262
    %v3272 = vpop.xlane.xlu0 %3271
    %3273 = vadd.xlane.f32.xlu0 %v3265
    %v3274 = vpop.xlane.xlu0 %3273
    %3275 = vadd.xlane.f32.xlu0 %v3267
    %v3276 = vpop.xlane.xlu0 %3275
    %v3277 = vmul.f32 %v3270, %v331
    %v3278 = vmul.f32 %v3272, %v331
    %v3279 = vmul.f32 %v3274, %v331
    %v3280 = vmul.f32 %v3276, %v331
    %v3281 = vsub.f32 %v3260, %v3277
    %v3282 = vsub.f32 %v3262, %v3278
    %v3283 = vsub.f32 %v3265, %v3279
    %v3284 = vsub.f32 %v3267, %v3280
    %v3285 = vmul.f32 %v3281, %v3281
    %v3286 = vmul.f32 %v3282, %v3282
    %v3287 = vmul.f32 %v3283, %v3283
    %v3288 = vmul.f32 %v3284, %v3284
    %3289 = vadd.xlane.f32.xlu0 %v3285
    %v3290 = vpop.xlane.xlu0 %3289
    %3291 = vadd.xlane.f32.xlu0 %v3286
    %v3292 = vpop.xlane.xlu0 %3291
    %3293 = vadd.xlane.f32.xlu0 %v3287
    %v3294 = vpop.xlane.xlu0 %3293
    %3295 = vadd.xlane.f32.xlu0 %v3288
    %v3296 = vpop.xlane.xlu0 %3295
    %v3297 = vmul.f32 %v3290, %v331
    %v3298 = vmul.f32 %v3292, %v331
    %v3299 = vmul.f32 %v3294, %v331
    %v3300 = vmul.f32 %v3296, %v331
    %v3301 = vadd.f32 %v3297, 1e-05
    %v3302 = vadd.f32 %v3298, 1e-05
    %v3303 = vadd.f32 %v3299, 1e-05
    %v3304 = vadd.f32 %v3300, 1e-05
    %v3305 = vrsqrt.pop %v3301
    %v3306 = vmul.f32 %v3305, %v3301
    %v3307 = vmul.f32 %v3306, %v3305
    %v3308 = vmul.f32 0.5, %v3307
    %v3309 = vsub.f32 1.5, %v3308
    %v3310 = vmul.f32 %v3305, %v3309
    %vm3311 = vweird.f32 %v3301
    %vm3312 = vweird.f32 %v3305
    %vm3313 = vmor %vm3311, %vm3312
    %v3314 = vsel %vm3313, %v3305, %v3310
    %v3315 = vrsqrt.pop %v3302
    %v3316 = vmul.f32 %v3315, %v3302
    %v3317 = vmul.f32 %v3316, %v3315
    %v3318 = vmul.f32 0.5, %v3317
    %v3319 = vsub.f32 1.5, %v3318
    %v3320 = vmul.f32 %v3315, %v3319
    %vm3321 = vweird.f32 %v3302
    %vm3322 = vweird.f32 %v3315
    %vm3323 = vmor %vm3321, %vm3322
    %v3324 = vsel %vm3323, %v3315, %v3320
    %v3325 = vrsqrt.pop %v3303
    %v3326 = vmul.f32 %v3325, %v3303
    %v3327 = vmul.f32 %v3326, %v3325
    %v3328 = vmul.f32 0.5, %v3327
    %v3329 = vsub.f32 1.5, %v3328
    %v3330 = vmul.f32 %v3325, %v3329
    %vm3331 = vweird.f32 %v3303
    %vm3332 = vweird.f32 %v3325
    %vm3333 = vmor %vm3331, %vm3332
    %v3334 = vsel %vm3333, %v3325, %v3330
    %v3335 = vrsqrt.pop %v3304
    %v3336 = vmul.f32 %v3335, %v3304
    %v3337 = vmul.f32 %v3336, %v3335
    %v3338 = vmul.f32 0.5, %v3337
    %v3339 = vsub.f32 1.5, %v3338
    %v3340 = vmul.f32 %v3335, %v3339
    %vm3341 = vweird.f32 %v3304
    %vm3342 = vweird.f32 %v3335
    %vm3343 = vmor %vm3341, %vm3342
    %v3344 = vsel %vm3343, %v3335, %v3340
    %v3345 = vmul.f32 %v3281, %v3314
    %v3346 = vmul.f32 %v3282, %v3324
    %v3347 = vmul.f32 %v3283, %v3334
    %v3348 = vmul.f32 %v3284, %v3344
    %v3349 = vmul.f32 %v3345, %v2178
    %v3350 = vmul.f32 %v3346, %v2183
    %v3351 = vmul.f32 %v3347, %v2188
    %v3352 = vmul.f32 %v3348, %v2193
    %v3353 = vadd.f32 %v3349, %v2201
    %v3354 = vadd.f32 %v3350, %v2205
    %v3355 = vadd.f32 %v3351, %v2209
    %v3356 = vadd.f32 %v3352, %v2213
    %v3357 = vtanh.pop %v3353
    %v3358 = vtanh.pop %v3354
    %v3359 = vtanh.pop %v3355
    %v3360 = vtanh.pop %v3356
    %v3361 = vadd.f32 %v3357, %v2223
    %v3362 = vadd.f32 %v3358, %v2224
    %v3363 = vadd.f32 %v3359, %v2225
    %v3364 = vadd.f32 %v3360, %v2226
    %3365 = vrot.lane.b32.xlu0 %v3361, 127
    %v3366 = vpop.permute.xlu0 %3365
    %3367 = vrot.lane.b32.xlu0 %v3362, 127
    %v3368 = vpop.permute.xlu0 %3367
    %3369 = vrot.lane.b32.xlu0 %v3363, 127
    %v3370 = vpop.permute.xlu0 %3369
    %3371 = vrot.lane.b32.xlu0 %v3364, 127
    %v3372 = vpop.permute.xlu0 %3371
    %3373 = vrot.lane.b32.xlu0 %v3361, 126
    %v3374 = vpop.permute.xlu0 %3373
    %3375 = vrot.lane.b32.xlu0 %v3362, 126
    %v3376 = vpop.permute.xlu0 %3375
    %3377 = vrot.lane.b32.xlu0 %v3363, 126
    %v3378 = vpop.permute.xlu0 %3377
    %3379 = vrot.lane.b32.xlu0 %v3364, 126
    %v3380 = vpop.permute.xlu0 %3379
    %3381 = vrot.lane.b32.xlu0 %v3361, 125
    %v3382 = vpop.permute.xlu0 %3381
    %3383 = vrot.lane.b32.xlu0 %v3362, 125
    %v3384 = vpop.permute.xlu0 %3383
    %3385 = vrot.lane.b32.xlu0 %v3363, 125
    %v3386 = vpop.permute.xlu0 %3385
    %3387 = vrot.lane.b32.xlu0 %v3364, 125
    %v3388 = vpop.permute.xlu0 %3387
    %3389 = vrot.lane.b32.xlu0 %v3361, 124
    %v3390 = vpop.permute.xlu0 %3389
    %3391 = vrot.lane.b32.xlu0 %v3362, 124
    %v3392 = vpop.permute.xlu0 %3391
    %3393 = vrot.lane.b32.xlu0 %v3363, 124
    %v3394 = vpop.permute.xlu0 %3393
    %3395 = vrot.lane.b32.xlu0 %v3364, 124
    %v3396 = vpop.permute.xlu0 %3395
    %3397 = vrot.lane.b32.xlu0 %v3361, 120
    %v3398 = vpop.permute.xlu0 %3397
    %3399 = vrot.lane.b32.xlu0 %v3362, 120
    %v3400 = vpop.permute.xlu0 %3399
    %3401 = vrot.lane.b32.xlu0 %v3363, 120
    %v3402 = vpop.permute.xlu0 %3401
    %3403 = vrot.lane.b32.xlu0 %v3364, 120
    %v3404 = vpop.permute.xlu0 %3403
    %3405 = vrot.lane.b32.xlu0 %v3361, 119
    %v3406 = vpop.permute.xlu0 %3405
    %3407 = vrot.lane.b32.xlu0 %v3362, 119
    %v3408 = vpop.permute.xlu0 %3407
    %3409 = vrot.lane.b32.xlu0 %v3363, 119
    %v3410 = vpop.permute.xlu0 %3409
    %3411 = vrot.lane.b32.xlu0 %v3364, 119
    %v3412 = vpop.permute.xlu0 %3411
    %3413 = vrot.lane.b32.xlu0 %v3361, 118
    %v3414 = vpop.permute.xlu0 %3413
    %3415 = vrot.lane.b32.xlu0 %v3362, 118
    %v3416 = vpop.permute.xlu0 %3415
    %3417 = vrot.lane.b32.xlu0 %v3363, 118
    %v3418 = vpop.permute.xlu0 %3417
    %3419 = vrot.lane.b32.xlu0 %v3364, 118
    %v3420 = vpop.permute.xlu0 %3419
    %3421 = vrot.lane.b32.xlu0 %v3361, 117
    %v3422 = vpop.permute.xlu0 %3421
    %3423 = vrot.lane.b32.xlu0 %v3362, 117
    %v3424 = vpop.permute.xlu0 %3423
    %3425 = vrot.lane.b32.xlu0 %v3363, 117
    %v3426 = vpop.permute.xlu0 %3425
    %3427 = vrot.lane.b32.xlu0 %v3364, 117
    %v3428 = vpop.permute.xlu0 %3427
    %3429 = vrot.lane.b32.xlu0 %v3361, 116
    %v3430 = vpop.permute.xlu0 %3429
    %3431 = vrot.lane.b32.xlu0 %v3362, 116
    %v3432 = vpop.permute.xlu0 %3431
    %3433 = vrot.lane.b32.xlu0 %v3363, 116
    %v3434 = vpop.permute.xlu0 %3433
    %3435 = vrot.lane.b32.xlu0 %v3364, 116
    %v3436 = vpop.permute.xlu0 %3435
    %3437 = vrot.lane.b32.xlu0 %v3361, 112
    %v3438 = vpop.permute.xlu0 %3437
    %3439 = vrot.lane.b32.xlu0 %v3362, 112
    %v3440 = vpop.permute.xlu0 %3439
    %3441 = vrot.lane.b32.xlu0 %v3363, 112
    %v3442 = vpop.permute.xlu0 %3441
    %3443 = vrot.lane.b32.xlu0 %v3364, 112
    %v3444 = vpop.permute.xlu0 %3443
    %3445 = vrot.lane.b32.xlu0 %v3361, 111
    %v3446 = vpop.permute.xlu0 %3445
    %3447 = vrot.lane.b32.xlu0 %v3362, 111
    %v3448 = vpop.permute.xlu0 %3447
    %3449 = vrot.lane.b32.xlu0 %v3363, 111
    %v3450 = vpop.permute.xlu0 %3449
    %3451 = vrot.lane.b32.xlu0 %v3364, 111
    %v3452 = vpop.permute.xlu0 %3451
    %3453 = vrot.lane.b32.xlu0 %v3361, 110
    %v3454 = vpop.permute.xlu0 %3453
    %3455 = vrot.lane.b32.xlu0 %v3362, 110
    %v3456 = vpop.permute.xlu0 %3455
    %3457 = vrot.lane.b32.xlu0 %v3363, 110
    %v3458 = vpop.permute.xlu0 %3457
    %3459 = vrot.lane.b32.xlu0 %v3364, 110
    %v3460 = vpop.permute.xlu0 %3459
    %3461 = vrot.lane.b32.xlu0 %v3361, 109
    %v3462 = vpop.permute.xlu0 %3461
    %3463 = vrot.lane.b32.xlu0 %v3362, 109
    %v3464 = vpop.permute.xlu0 %3463
    %3465 = vrot.lane.b32.xlu0 %v3363, 109
    %v3466 = vpop.permute.xlu0 %3465
    %3467 = vrot.lane.b32.xlu0 %v3364, 109
    %v3468 = vpop.permute.xlu0 %3467
    %3469 = vrot.lane.b32.xlu0 %v3361, 108
    %v3470 = vpop.permute.xlu0 %3469
    %3471 = vrot.lane.b32.xlu0 %v3362, 108
    %v3472 = vpop.permute.xlu0 %3471
    %3473 = vrot.lane.b32.xlu0 %v3363, 108
    %v3474 = vpop.permute.xlu0 %3473
    %3475 = vrot.lane.b32.xlu0 %v3364, 108
    %v3476 = vpop.permute.xlu0 %3475
    %3477 = vrot.lane.b32.xlu0 %v3361, 104
    %v3478 = vpop.permute.xlu0 %3477
    %3479 = vrot.lane.b32.xlu0 %v3362, 104
    %v3480 = vpop.permute.xlu0 %3479
    %3481 = vrot.lane.b32.xlu0 %v3363, 104
    %v3482 = vpop.permute.xlu0 %3481
    %3483 = vrot.lane.b32.xlu0 %v3364, 104
    %v3484 = vpop.permute.xlu0 %3483
    %3485 = vrot.lane.b32.xlu0 %v3361, 103
    %v3486 = vpop.permute.xlu0 %3485
    %3487 = vrot.lane.b32.xlu0 %v3362, 103
    %v3488 = vpop.permute.xlu0 %3487
    %3489 = vrot.lane.b32.xlu0 %v3363, 103
    %v3490 = vpop.permute.xlu0 %3489
    %3491 = vrot.lane.b32.xlu0 %v3364, 103
    %v3492 = vpop.permute.xlu0 %3491
    %3493 = vrot.lane.b32.xlu0 %v3361, 102
    %v3494 = vpop.permute.xlu0 %3493
    %3495 = vrot.lane.b32.xlu0 %v3362, 102
    %v3496 = vpop.permute.xlu0 %3495
    %3497 = vrot.lane.b32.xlu0 %v3363, 102
    %v3498 = vpop.permute.xlu0 %3497
    %3499 = vrot.lane.b32.xlu0 %v3364, 102
    %v3500 = vpop.permute.xlu0 %3499
    %3501 = vrot.lane.b32.xlu0 %v3361, 101
    %v3502 = vpop.permute.xlu0 %3501
    %3503 = vrot.lane.b32.xlu0 %v3362, 101
    %v3504 = vpop.permute.xlu0 %3503
    %3505 = vrot.lane.b32.xlu0 %v3363, 101
    %v3506 = vpop.permute.xlu0 %3505
    %3507 = vrot.lane.b32.xlu0 %v3364, 101
    %v3508 = vpop.permute.xlu0 %3507
    %3509 = vrot.lane.b32.xlu0 %v3361, 100
    %v3510 = vpop.permute.xlu0 %3509
    %3511 = vrot.lane.b32.xlu0 %v3362, 100
    %v3512 = vpop.permute.xlu0 %3511
    %3513 = vrot.lane.b32.xlu0 %v3363, 100
    %v3514 = vpop.permute.xlu0 %3513
    %3515 = vrot.lane.b32.xlu0 %v3364, 100
    %v3516 = vpop.permute.xlu0 %3515
    %3517 = vrot.lane.b32.xlu0 %v3361, 96
    %v3518 = vpop.permute.xlu0 %3517
    %3519 = vrot.lane.b32.xlu0 %v3362, 96
    %v3520 = vpop.permute.xlu0 %3519
    %3521 = vrot.lane.b32.xlu0 %v3363, 96
    %v3522 = vpop.permute.xlu0 %3521
    %3523 = vrot.lane.b32.xlu0 %v3364, 96
    %v3524 = vpop.permute.xlu0 %3523
    %3525 = vrot.lane.b32.xlu0 %v3361, 95
    %v3526 = vpop.permute.xlu0 %3525
    %3527 = vrot.lane.b32.xlu0 %v3362, 95
    %v3528 = vpop.permute.xlu0 %3527
    %3529 = vrot.lane.b32.xlu0 %v3363, 95
    %v3530 = vpop.permute.xlu0 %3529
    %3531 = vrot.lane.b32.xlu0 %v3364, 95
    %v3532 = vpop.permute.xlu0 %3531
    %3533 = vrot.lane.b32.xlu0 %v3361, 94
    %v3534 = vpop.permute.xlu0 %3533
    %3535 = vrot.lane.b32.xlu0 %v3362, 94
    %v3536 = vpop.permute.xlu0 %3535
    %3537 = vrot.lane.b32.xlu0 %v3363, 94
    %v3538 = vpop.permute.xlu0 %3537
    %3539 = vrot.lane.b32.xlu0 %v3364, 94
    %v3540 = vpop.permute.xlu0 %3539
    %3541 = vrot.lane.b32.xlu0 %v3361, 93
    %v3542 = vpop.permute.xlu0 %3541
    %3543 = vrot.lane.b32.xlu0 %v3362, 93
    %v3544 = vpop.permute.xlu0 %3543
    %3545 = vrot.lane.b32.xlu0 %v3363, 93
    %v3546 = vpop.permute.xlu0 %3545
    %3547 = vrot.lane.b32.xlu0 %v3364, 93
    %v3548 = vpop.permute.xlu0 %3547
    %3549 = vrot.lane.b32.xlu0 %v3361, 92
    %v3550 = vpop.permute.xlu0 %3549
    %3551 = vrot.lane.b32.xlu0 %v3362, 92
    %v3552 = vpop.permute.xlu0 %3551
    %3553 = vrot.lane.b32.xlu0 %v3363, 92
    %v3554 = vpop.permute.xlu0 %3553
    %3555 = vrot.lane.b32.xlu0 %v3364, 92
    %v3556 = vpop.permute.xlu0 %3555
    %v3557 = vpack.c.bf16 %v3362, %v3361
    %v3558 = vpack.c.bf16 %v3364, %v3363
    %v3559 = vpack.c.bf16 %v3368, %v3366
    %v3560 = vpack.c.bf16 %v3372, %v3370
    %v3561 = vpack.c.bf16 %v3376, %v3374
    %v3562 = vpack.c.bf16 %v3380, %v3378
    %v3563 = vpack.c.bf16 %v3384, %v3382
    %v3564 = vpack.c.bf16 %v3388, %v3386
    %v3565 = vpack.c.bf16 %v3392, %v3390
    %v3566 = vpack.c.bf16 %v3396, %v3394
    %v3567 = vpack.c.bf16 %v3400, %v3398
    %v3568 = vpack.c.bf16 %v3404, %v3402
    %v3569 = vpack.c.bf16 %v3408, %v3406
    %v3570 = vpack.c.bf16 %v3412, %v3410
    %v3571 = vpack.c.bf16 %v3416, %v3414
    %v3572 = vpack.c.bf16 %v3420, %v3418
    %v3573 = vpack.c.bf16 %v3424, %v3422
    %v3574 = vpack.c.bf16 %v3428, %v3426
    %v3575 = vpack.c.bf16 %v3432, %v3430
    %v3576 = vpack.c.bf16 %v3436, %v3434
    %v3577 = vpack.c.bf16 %v3440, %v3438
    %v3578 = vpack.c.bf16 %v3444, %v3442
    %v3579 = vpack.c.bf16 %v3448, %v3446
    %v3580 = vpack.c.bf16 %v3452, %v3450
    %v3581 = vpack.c.bf16 %v3456, %v3454
    %v3582 = vpack.c.bf16 %v3460, %v3458
    %v3583 = vpack.c.bf16 %v3464, %v3462
    %v3584 = vpack.c.bf16 %v3468, %v3466
    %v3585 = vpack.c.bf16 %v3472, %v3470
    %v3586 = vpack.c.bf16 %v3476, %v3474
    %v3587 = vpack.c.bf16 %v3480, %v3478
    %v3588 = vpack.c.bf16 %v3484, %v3482
    %v3589 = vpack.c.bf16 %v3488, %v3486
    %v3590 = vpack.c.bf16 %v3492, %v3490
    %v3591 = vpack.c.bf16 %v3496, %v3494
    %v3592 = vpack.c.bf16 %v3500, %v3498
    %v3593 = vpack.c.bf16 %v3504, %v3502
    %v3594 = vpack.c.bf16 %v3508, %v3506
    %v3595 = vpack.c.bf16 %v3512, %v3510
    %v3596 = vpack.c.bf16 %v3516, %v3514
    %v3597 = vpack.c.bf16 %v3520, %v3518
    %v3598 = vpack.c.bf16 %v3524, %v3522
    %v3599 = vpack.c.bf16 %v3528, %v3526
    %v3600 = vpack.c.bf16 %v3532, %v3530
    %v3601 = vpack.c.bf16 %v3536, %v3534
    %v3602 = vpack.c.bf16 %v3540, %v3538
    %v3603 = vpack.c.bf16 %v3544, %v3542
    %v3604 = vpack.c.bf16 %v3548, %v3546
    %v3605 = vpack.c.bf16 %v3552, %v3550
    %v3606 = vpack.c.bf16 %v3556, %v3554
    %v3607 = vld [vmem:[%s2] sm:$0xf]
    %v3608 = vld [vmem:[%s2 + $0x4] sm:$0xf]
    %v3609 = vld [vmem:[%s2 + $0x8] sm:$0xf]
    %v3610 = vld [vmem:[%s2 + $0xc] sm:$0xf]
    %v3611 = vld [vmem:[%s2 + $0x10] sm:$0xf]
    %v3612 = vld [vmem:[%s2 + $0x14] sm:$0xf]
    %v3613 = vld [vmem:[%s2 + $0x18] sm:$0xf]
    %v3614 = vld [vmem:[%s2 + $0x1c] sm:$0xf]
    %v3615 = vld [vmem:[%s2 + $0x20] sm:$0xf]
    %v3616 = vld [vmem:[%s2 + $0x24] sm:$0xf]
    %v3617 = vld [vmem:[%s2 + $0x28] sm:$0xf]
    %v3618 = vld [vmem:[%s2 + $0x2c] sm:$0xf]
    %v3619 = vld [vmem:[%s2 + $0x30] sm:$0xf]
    %v3620 = vld [vmem:[%s2 + $0x34] sm:$0xf]
    %v3621 = vld [vmem:[%s2 + $0x38] sm:$0xf]
    %v3622 = vld [vmem:[%s2 + $0x3c] sm:$0xf]
    %v3639 = vunpack.c.l.b16 %v3607
    %v3640 = vunpack.c.l.b16 %v3608
    %v3641 = vunpack.c.l.b16 %v3609
    %v3642 = vunpack.c.l.b16 %v3610
    %v3643 = vunpack.c.l.b16 %v3611
    %v3644 = vunpack.c.l.b16 %v3612
    %v3645 = vunpack.c.l.b16 %v3613
    %v3646 = vunpack.c.l.b16 %v3614
    %v3647 = vunpack.c.l.b16 %v3615
    %v3648 = vunpack.c.l.b16 %v3616
    %v3649 = vunpack.c.l.b16 %v3617
    %v3650 = vunpack.c.l.b16 %v3618
    %v3651 = vunpack.c.l.b16 %v3619
    %v3652 = vunpack.c.l.b16 %v3620
    %v3653 = vunpack.c.l.b16 %v3621
    %v3654 = vunpack.c.l.b16 %v3622
    %v3655 = vpack.c.b16 %v3640, %v3639
    %v3656 = vpack.c.b16 %v3642, %v3641
    %v3657 = vpack.c.b16 %v3644, %v3643
    %v3658 = vpack.c.b16 %v3646, %v3645
    %v3659 = vpack.c.b16 %v3648, %v3647
    %v3660 = vpack.c.b16 %v3650, %v3649
    %v3661 = vpack.c.b16 %v3652, %v3651
    %v3662 = vpack.c.b16 %v3654, %v3653
    %3671 = vmatpush.bf16.msra.mxu0 %v3662
    %3672 = vmatpush.bf16.msra.mxu0 %v3661
    %3673 = vmatpush.bf16.msra.mxu0 %v3660
    %3674 = vmatpush.bf16.msra.mxu0 %v3659
    %3675 = vmatpush.bf16.msra.mxu0 %v3658
    %3676 = vmatpush.bf16.msra.mxu0 %v3657
    %3677 = vmatpush.bf16.msra.mxu0 %v3656
    %3678 = vmatpush.bf16.msra.mxu0 %v3655
    %3679 = vmatmul.bf16.gmra.mxu0 %v3557
    %v3680 = vpop.f32.mrf.mxu0
    %v3681 = vadd.f32 0.0, %v3680
    %v3682 = vpop.f32.mrf.mxu0
    %v3683 = vadd.f32 0.0, %v3682
    %3684 = vmatmul.bf16.gmra.mxu0 %v3558
    %v3685 = vpop.f32.mrf.mxu0
    %v3686 = vadd.f32 0.0, %v3685
    %v3687 = vpop.f32.mrf.mxu0
    %v3688 = vadd.f32 0.0, %v3687
    %3689 = vmatmul.bf16.gmra.mxu0 %v3559
    %v3690 = vpop.f32.mrf.mxu0
    %v3691 = vadd.f32 0.0, %v3690
    %v3692 = vpop.f32.mrf.mxu0
    %v3693 = vadd.f32 0.0, %v3692
    %3694 = vmatmul.bf16.gmra.mxu0 %v3560
    %v3695 = vpop.f32.mrf.mxu0
    %v3696 = vadd.f32 0.0, %v3695
    %v3697 = vpop.f32.mrf.mxu0
    %v3698 = vadd.f32 0.0, %v3697
    %3699 = vmatmul.bf16.gmra.mxu0 %v3561
    %v3700 = vpop.f32.mrf.mxu0
    %v3701 = vadd.f32 0.0, %v3700
    %v3702 = vpop.f32.mrf.mxu0
    %v3703 = vadd.f32 0.0, %v3702
    %3704 = vmatmul.bf16.gmra.mxu0 %v3562
    %v3705 = vpop.f32.mrf.mxu0
    %v3706 = vadd.f32 0.0, %v3705
    %v3707 = vpop.f32.mrf.mxu0
    %v3708 = vadd.f32 0.0, %v3707
    %3709 = vmatmul.bf16.gmra.mxu0 %v3563
    %v3710 = vpop.f32.mrf.mxu0
    %v3711 = vadd.f32 0.0, %v3710
    %v3712 = vpop.f32.mrf.mxu0
    %v3713 = vadd.f32 0.0, %v3712
    %3714 = vmatmul.bf16.gmra.mxu0 %v3564
    %v3715 = vpop.f32.mrf.mxu0
    %v3716 = vadd.f32 0.0, %v3715
    %v3717 = vpop.f32.mrf.mxu0
    %v3718 = vadd.f32 0.0, %v3717
    %3719 = vmatmul.bf16.gmra.mxu0 %v3565
    %v3720 = vpop.f32.mrf.mxu0
    %v3721 = vadd.f32 0.0, %v3720
    %v3722 = vpop.f32.mrf.mxu0
    %v3723 = vadd.f32 0.0, %v3722
    %3724 = vmatmul.bf16.gmra.mxu0 %v3566
    %v3725 = vpop.f32.mrf.mxu0
    %v3726 = vadd.f32 0.0, %v3725
    %v3727 = vpop.f32.mrf.mxu0
    %v3728 = vadd.f32 0.0, %v3727
    %3729 = vmatmul.bf16.gmra.mxu0 %v3567
    %v3730 = vpop.f32.mrf.mxu0
    %v3731 = vadd.f32 0.0, %v3730
    %v3732 = vpop.f32.mrf.mxu0
    %v3733 = vadd.f32 0.0, %v3732
    %3734 = vmatmul.bf16.gmra.mxu0 %v3568
    %v3735 = vpop.f32.mrf.mxu0
    %v3736 = vadd.f32 0.0, %v3735
    %v3737 = vpop.f32.mrf.mxu0
    %v3738 = vadd.f32 0.0, %v3737
    %3739 = vmatmul.bf16.gmra.mxu0 %v3569
    %v3740 = vpop.f32.mrf.mxu0
    %v3741 = vadd.f32 0.0, %v3740
    %v3742 = vpop.f32.mrf.mxu0
    %v3743 = vadd.f32 0.0, %v3742
    %3744 = vmatmul.bf16.gmra.mxu0 %v3570
    %v3745 = vpop.f32.mrf.mxu0
    %v3746 = vadd.f32 0.0, %v3745
    %v3747 = vpop.f32.mrf.mxu0
    %v3748 = vadd.f32 0.0, %v3747
    %3749 = vmatmul.bf16.gmra.mxu0 %v3571
    %v3750 = vpop.f32.mrf.mxu0
    %v3751 = vadd.f32 0.0, %v3750
    %v3752 = vpop.f32.mrf.mxu0
    %v3753 = vadd.f32 0.0, %v3752
    %3754 = vmatmul.bf16.gmra.mxu0 %v3572
    %v3755 = vpop.f32.mrf.mxu0
    %v3756 = vadd.f32 0.0, %v3755
    %v3757 = vpop.f32.mrf.mxu0
    %v3758 = vadd.f32 0.0, %v3757
    %3759 = vmatmul.bf16.gmra.mxu0 %v3573
    %v3760 = vpop.f32.mrf.mxu0
    %v3761 = vadd.f32 0.0, %v3760
    %v3762 = vpop.f32.mrf.mxu0
    %v3763 = vadd.f32 0.0, %v3762
    %3764 = vmatmul.bf16.gmra.mxu0 %v3574
    %v3765 = vpop.f32.mrf.mxu0
    %v3766 = vadd.f32 0.0, %v3765
    %v3767 = vpop.f32.mrf.mxu0
    %v3768 = vadd.f32 0.0, %v3767
    %3769 = vmatmul.bf16.gmra.mxu0 %v3575
    %v3770 = vpop.f32.mrf.mxu0
    %v3771 = vadd.f32 0.0, %v3770
    %v3772 = vpop.f32.mrf.mxu0
    %v3773 = vadd.f32 0.0, %v3772
    %3774 = vmatmul.bf16.gmra.mxu0 %v3576
    %v3775 = vpop.f32.mrf.mxu0
    %v3776 = vadd.f32 0.0, %v3775
    %v3777 = vpop.f32.mrf.mxu0
    %v3778 = vadd.f32 0.0, %v3777
    %3779 = vmatmul.bf16.gmra.mxu0 %v3577
    %v3780 = vpop.f32.mrf.mxu0
    %v3781 = vadd.f32 0.0, %v3780
    %v3782 = vpop.f32.mrf.mxu0
    %v3783 = vadd.f32 0.0, %v3782
    %3784 = vmatmul.bf16.gmra.mxu0 %v3578
    %v3785 = vpop.f32.mrf.mxu0
    %v3786 = vadd.f32 0.0, %v3785
    %v3787 = vpop.f32.mrf.mxu0
    %v3788 = vadd.f32 0.0, %v3787
    %3789 = vmatmul.bf16.gmra.mxu0 %v3579
    %v3790 = vpop.f32.mrf.mxu0
    %v3791 = vadd.f32 0.0, %v3790
    %v3792 = vpop.f32.mrf.mxu0
    %v3793 = vadd.f32 0.0, %v3792
    %3794 = vmatmul.bf16.gmra.mxu0 %v3580
    %v3795 = vpop.f32.mrf.mxu0
    %v3796 = vadd.f32 0.0, %v3795
    %v3797 = vpop.f32.mrf.mxu0
    %v3798 = vadd.f32 0.0, %v3797
    %3799 = vmatmul.bf16.gmra.mxu0 %v3581
    %v3800 = vpop.f32.mrf.mxu0
    %v3801 = vadd.f32 0.0, %v3800
    %v3802 = vpop.f32.mrf.mxu0
    %v3803 = vadd.f32 0.0, %v3802
    %3804 = vmatmul.bf16.gmra.mxu0 %v3582
    %v3805 = vpop.f32.mrf.mxu0
    %v3806 = vadd.f32 0.0, %v3805
    %v3807 = vpop.f32.mrf.mxu0
    %v3808 = vadd.f32 0.0, %v3807
    %3809 = vmatmul.bf16.gmra.mxu0 %v3583
    %v3810 = vpop.f32.mrf.mxu0
    %v3811 = vadd.f32 0.0, %v3810
    %v3812 = vpop.f32.mrf.mxu0
    %v3813 = vadd.f32 0.0, %v3812
    %3814 = vmatmul.bf16.gmra.mxu0 %v3584
    %v3815 = vpop.f32.mrf.mxu0
    %v3816 = vadd.f32 0.0, %v3815
    %v3817 = vpop.f32.mrf.mxu0
    %v3818 = vadd.f32 0.0, %v3817
    %3819 = vmatmul.bf16.gmra.mxu0 %v3585
    %v3820 = vpop.f32.mrf.mxu0
    %v3821 = vadd.f32 0.0, %v3820
    %v3822 = vpop.f32.mrf.mxu0
    %v3823 = vadd.f32 0.0, %v3822
    %3824 = vmatmul.bf16.gmra.mxu0 %v3586
    %v3825 = vpop.f32.mrf.mxu0
    %v3826 = vadd.f32 0.0, %v3825
    %v3827 = vpop.f32.mrf.mxu0
    %v3828 = vadd.f32 0.0, %v3827
    %3829 = vmatmul.bf16.gmra.mxu0 %v3587
    %v3830 = vpop.f32.mrf.mxu0
    %v3831 = vadd.f32 0.0, %v3830
    %v3832 = vpop.f32.mrf.mxu0
    %v3833 = vadd.f32 0.0, %v3832
    %3834 = vmatmul.bf16.gmra.mxu0 %v3588
    %v3835 = vpop.f32.mrf.mxu0
    %v3836 = vadd.f32 0.0, %v3835
    %v3837 = vpop.f32.mrf.mxu0
    %v3838 = vadd.f32 0.0, %v3837
    %3839 = vmatmul.bf16.gmra.mxu0 %v3589
    %v3840 = vpop.f32.mrf.mxu0
    %v3841 = vadd.f32 0.0, %v3840
    %v3842 = vpop.f32.mrf.mxu0
    %v3843 = vadd.f32 0.0, %v3842
    %3844 = vmatmul.bf16.gmra.mxu0 %v3590
    %v3845 = vpop.f32.mrf.mxu0
    %v3846 = vadd.f32 0.0, %v3845
    %v3847 = vpop.f32.mrf.mxu0
    %v3848 = vadd.f32 0.0, %v3847
    %3849 = vmatmul.bf16.gmra.mxu0 %v3591
    %v3850 = vpop.f32.mrf.mxu0
    %v3851 = vadd.f32 0.0, %v3850
    %v3852 = vpop.f32.mrf.mxu0
    %v3853 = vadd.f32 0.0, %v3852
    %3854 = vmatmul.bf16.gmra.mxu0 %v3592
    %v3855 = vpop.f32.mrf.mxu0
    %v3856 = vadd.f32 0.0, %v3855
    %v3857 = vpop.f32.mrf.mxu0
    %v3858 = vadd.f32 0.0, %v3857
    %3859 = vmatmul.bf16.gmra.mxu0 %v3593
    %v3860 = vpop.f32.mrf.mxu0
    %v3861 = vadd.f32 0.0, %v3860
    %v3862 = vpop.f32.mrf.mxu0
    %v3863 = vadd.f32 0.0, %v3862
    %3864 = vmatmul.bf16.gmra.mxu0 %v3594
    %v3865 = vpop.f32.mrf.mxu0
    %v3866 = vadd.f32 0.0, %v3865
    %v3867 = vpop.f32.mrf.mxu0
    %v3868 = vadd.f32 0.0, %v3867
    %3869 = vmatmul.bf16.gmra.mxu0 %v3595
    %v3870 = vpop.f32.mrf.mxu0
    %v3871 = vadd.f32 0.0, %v3870
    %v3872 = vpop.f32.mrf.mxu0
    %v3873 = vadd.f32 0.0, %v3872
    %3874 = vmatmul.bf16.gmra.mxu0 %v3596
    %v3875 = vpop.f32.mrf.mxu0
    %v3876 = vadd.f32 0.0, %v3875
    %v3877 = vpop.f32.mrf.mxu0
    %v3878 = vadd.f32 0.0, %v3877
    %3879 = vmatmul.bf16.gmra.mxu0 %v3597
    %v3880 = vpop.f32.mrf.mxu0
    %v3881 = vadd.f32 0.0, %v3880
    %v3882 = vpop.f32.mrf.mxu0
    %v3883 = vadd.f32 0.0, %v3882
    %3884 = vmatmul.bf16.gmra.mxu0 %v3598
    %v3885 = vpop.f32.mrf.mxu0
    %v3886 = vadd.f32 0.0, %v3885
    %v3887 = vpop.f32.mrf.mxu0
    %v3888 = vadd.f32 0.0, %v3887
    %3889 = vmatmul.bf16.gmra.mxu0 %v3599
    %v3890 = vpop.f32.mrf.mxu0
    %v3891 = vadd.f32 0.0, %v3890
    %v3892 = vpop.f32.mrf.mxu0
    %v3893 = vadd.f32 0.0, %v3892
    %3894 = vmatmul.bf16.gmra.mxu0 %v3600
    %v3895 = vpop.f32.mrf.mxu0
    %v3896 = vadd.f32 0.0, %v3895
    %v3897 = vpop.f32.mrf.mxu0
    %v3898 = vadd.f32 0.0, %v3897
    %3899 = vmatmul.bf16.gmra.mxu0 %v3601
    %v3900 = vpop.f32.mrf.mxu0
    %v3901 = vadd.f32 0.0, %v3900
    %v3902 = vpop.f32.mrf.mxu0
    %v3903 = vadd.f32 0.0, %v3902
    %3904 = vmatmul.bf16.gmra.mxu0 %v3602
    %v3905 = vpop.f32.mrf.mxu0
    %v3906 = vadd.f32 0.0, %v3905
    %v3907 = vpop.f32.mrf.mxu0
    %v3908 = vadd.f32 0.0, %v3907
    %3909 = vmatmul.bf16.gmra.mxu0 %v3603
    %v3910 = vpop.f32.mrf.mxu0
    %v3911 = vadd.f32 0.0, %v3910
    %v3912 = vpop.f32.mrf.mxu0
    %v3913 = vadd.f32 0.0, %v3912
    %3914 = vmatmul.bf16.gmra.mxu0 %v3604
    %v3915 = vpop.f32.mrf.mxu0
    %v3916 = vadd.f32 0.0, %v3915
    %v3917 = vpop.f32.mrf.mxu0
    %v3918 = vadd.f32 0.0, %v3917
    %3919 = vmatmul.bf16.gmra.mxu0 %v3605
    %v3920 = vpop.f32.mrf.mxu0
    %v3921 = vadd.f32 0.0, %v3920
    %v3922 = vpop.f32.mrf.mxu0
    %v3923 = vadd.f32 0.0, %v3922
    %3924 = vmatmul.bf16.gmra.mxu0 %v3606
    %v3925 = vpop.f32.mrf.mxu0
    %v3926 = vadd.f32 0.0, %v3925
    %v3927 = vpop.f32.mrf.mxu0
    %v3928 = vadd.f32 0.0, %v3927
    %3929 = vdwg.mxu0
    %v3930 = vld [vmem:[%s8] sm:$0xff]
    %v3931 = vld [vmem:[%s8 + $0x8] sm:$0xff]
    %v3932 = vld [vmem:[%s8 + $0x10] sm:$0xff]
    %v3933 = vld [vmem:[%s8 + $0x18] sm:$0xf]
    %v3934 = vld [vmem:[%s8 + $0x1c] sm:$0xff]
    %v3935 = vld [vmem:[%s8 + $0x24] sm:$0xff]
    %v3936 = vld [vmem:[%s8 + $0x2c] sm:$0xff]
    %v3937 = vld [vmem:[%s8 + $0x34] sm:$0xf]
    %v3938 = vld [vmem:[%s8 + $0x38] sm:$0xff]
    %v3939 = vld [vmem:[%s8 + $0x40] sm:$0xff]
    %v3940 = vld [vmem:[%s8 + $0x48] sm:$0xff]
    %v3941 = vld [vmem:[%s8 + $0x50] sm:$0xf]
    %v3942 = vld [vmem:[%s8 + $0x54] sm:$0xff]
    %v3943 = vld [vmem:[%s8 + $0x5c] sm:$0xff]
    %v3944 = vld [vmem:[%s8 + $0x64] sm:$0xff]
    %v3945 = vld [vmem:[%s8 + $0x6c] sm:$0xf]
    %v3946 = vld [vmem:[%s8 + $0x70] sm:$0xff]
    %v3947 = vld [vmem:[%s8 + $0x78] sm:$0xff]
    %v3948 = vld [vmem:[%s8 + $0x80] sm:$0xff]
    %v3949 = vld [vmem:[%s8 + $0x88] sm:$0xf]
    %v3950 = vld [vmem:[%s8 + $0x8c] sm:$0xff]
    %v3951 = vld [vmem:[%s8 + $0x94] sm:$0xff]
    %v3952 = vld [vmem:[%s8 + $0x9c] sm:$0xff]
    %v3953 = vld [vmem:[%s8 + $0xa4] sm:$0xf]
    %v3954 = vld [vmem:[%s8 + $0xa8] sm:$0xff]
    %v3955 = vld [vmem:[%s8 + $0xb0] sm:$0xff]
    %v3956 = vld [vmem:[%s8 + $0xb8] sm:$0xff]
    %v3957 = vld [vmem:[%s8 + $0xc0] sm:$0xf]
    %v3958 = vld [vmem:[%s8 + $0xc4] sm:$0xff]
    %v3959 = vld [vmem:[%s8 + $0xcc] sm:$0xff]
    %v3960 = vld [vmem:[%s8 + $0xd4] sm:$0xff]
    %v3961 = vld [vmem:[%s8 + $0xdc] sm:$0xf]
    %v3962 = vpack.c.bf16 %v3683, %v3681
    %v3963 = vpack.c.bf16 %v3688, %v3686
    %v3964 = vpack.c.bf16 %v3693, %v3691
    %v3965 = vpack.c.bf16 %v3698, %v3696
    %v3966 = vpack.c.bf16 %v3703, %v3701
    %v3967 = vpack.c.bf16 %v3708, %v3706
    %v3968 = vpack.c.bf16 %v3713, %v3711
    %v3969 = vpack.c.bf16 %v3718, %v3716
    %v3970 = vpack.c.bf16 %v3723, %v3721
    %v3971 = vpack.c.bf16 %v3728, %v3726
    %v3972 = vpack.c.bf16 %v3733, %v3731
    %v3973 = vpack.c.bf16 %v3738, %v3736
    %v3974 = vpack.c.bf16 %v3743, %v3741
    %v3975 = vpack.c.bf16 %v3748, %v3746
    %v3976 = vpack.c.bf16 %v3753, %v3751
    %v3977 = vpack.c.bf16 %v3758, %v3756
    %v3978 = vpack.c.bf16 %v3763, %v3761
    %v3979 = vpack.c.bf16 %v3768, %v3766
    %v3980 = vpack.c.bf16 %v3773, %v3771
    %v3981 = vpack.c.bf16 %v3778, %v3776
    %v3982 = vpack.c.bf16 %v3783, %v3781
    %v3983 = vpack.c.bf16 %v3788, %v3786
    %v3984 = vpack.c.bf16 %v3793, %v3791
    %v3985 = vpack.c.bf16 %v3798, %v3796
    %v3986 = vpack.c.bf16 %v3803, %v3801
    %v3987 = vpack.c.bf16 %v3808, %v3806
    %v3988 = vpack.c.bf16 %v3813, %v3811
    %v3989 = vpack.c.bf16 %v3818, %v3816
    %v3990 = vpack.c.bf16 %v3823, %v3821
    %v3991 = vpack.c.bf16 %v3828, %v3826
    %v3992 = vpack.c.bf16 %v3833, %v3831
    %v3993 = vpack.c.bf16 %v3838, %v3836
    %v3994 = vpack.c.bf16 %v3843, %v3841
    %v3995 = vpack.c.bf16 %v3848, %v3846
    %v3996 = vpack.c.bf16 %v3853, %v3851
    %v3997 = vpack.c.bf16 %v3858, %v3856
    %v3998 = vpack.c.bf16 %v3863, %v3861
    %v3999 = vpack.c.bf16 %v3868, %v3866
    %v4000 = vpack.c.bf16 %v3873, %v3871
    %v4001 = vpack.c.bf16 %v3878, %v3876
    %v4002 = vpack.c.bf16 %v3883, %v3881
    %v4003 = vpack.c.bf16 %v3888, %v3886
    %v4004 = vpack.c.bf16 %v3893, %v3891
    %v4005 = vpack.c.bf16 %v3898, %v3896
    %v4006 = vpack.c.bf16 %v3903, %v3901
    %v4007 = vpack.c.bf16 %v3908, %v3906
    %v4008 = vpack.c.bf16 %v3913, %v3911
    %v4009 = vpack.c.bf16 %v3918, %v3916
    %v4010 = vpack.c.bf16 %v3923, %v3921
    %v4011 = vpack.c.bf16 %v3928, %v3926
    %v4044 = vunpack.c.l.b16 %v3930
    %v4045 = vunpack.c.h.b16 %v3930
    %v4046 = vunpack.c.l.b16 %v3931
    %v4047 = vunpack.c.h.b16 %v3931
    %v4048 = vunpack.c.l.b16 %v3932
    %v4049 = vunpack.c.h.b16 %v3932
    %v4050 = vunpack.c.l.b16 %v3933
    %v4051 = vunpack.c.l.b16 %v3934
    %v4052 = vunpack.c.h.b16 %v3934
    %v4053 = vunpack.c.l.b16 %v3935
    %v4054 = vunpack.c.h.b16 %v3935
    %v4055 = vunpack.c.l.b16 %v3936
    %v4056 = vunpack.c.h.b16 %v3936
    %v4057 = vunpack.c.l.b16 %v3937
    %v4058 = vunpack.c.l.b16 %v3938
    %v4059 = vunpack.c.h.b16 %v3938
    %v4060 = vunpack.c.l.b16 %v3939
    %v4061 = vunpack.c.h.b16 %v3939
    %v4062 = vunpack.c.l.b16 %v3940
    %v4063 = vunpack.c.h.b16 %v3940
    %v4064 = vunpack.c.l.b16 %v3941
    %v4065 = vunpack.c.l.b16 %v3942
    %v4066 = vunpack.c.h.b16 %v3942
    %v4067 = vunpack.c.l.b16 %v3943
    %v4068 = vunpack.c.h.b16 %v3943
    %v4069 = vunpack.c.l.b16 %v3944
    %v4070 = vunpack.c.h.b16 %v3944
    %v4071 = vunpack.c.l.b16 %v3945
    %v4072 = vunpack.c.l.b16 %v3946
    %v4073 = vunpack.c.h.b16 %v3946
    %v4074 = vunpack.c.l.b16 %v3947
    %v4075 = vunpack.c.h.b16 %v3947
    %v4076 = vunpack.c.l.b16 %v3948
    %v4077 = vunpack.c.h.b16 %v3948
    %v4078 = vunpack.c.l.b16 %v3949
    %v4079 = vunpack.c.l.b16 %v3950
    %v4080 = vunpack.c.h.b16 %v3950
    %v4081 = vunpack.c.l.b16 %v3951
    %v4082 = vunpack.c.h.b16 %v3951
    %v4083 = vunpack.c.l.b16 %v3952
    %v4084 = vunpack.c.h.b16 %v3952
    %v4085 = vunpack.c.l.b16 %v3953
    %v4086 = vunpack.c.l.b16 %v3954
    %v4087 = vunpack.c.h.b16 %v3954
    %v4088 = vunpack.c.l.b16 %v3955
    %v4089 = vunpack.c.h.b16 %v3955
    %v4090 = vunpack.c.l.b16 %v3956
    %v4091 = vunpack.c.h.b16 %v3956
    %v4092 = vunpack.c.l.b16 %v3957
    %v4093 = vunpack.c.l.b16 %v3958
    %v4094 = vunpack.c.h.b16 %v3958
    %v4095 = vunpack.c.l.b16 %v3959
    %v4096 = vunpack.c.h.b16 %v3959
    %v4097 = vunpack.c.l.b16 %v3960
    %v4098 = vunpack.c.h.b16 %v3960
    %v4099 = vunpack.c.l.b16 %v3961
    %v4100 = vpack.c.b16 %v4051, %v4044
    %v4101 = vpack.c.b16 %v4052, %v4045
    %v4102 = vpack.c.b16 %v4053, %v4046
    %v4103 = vpack.c.b16 %v4054, %v4047
    %v4104 = vpack.c.b16 %v4055, %v4048
    %v4105 = vpack.c.b16 %v4056, %v4049
    %v4106 = vpack.c.b16 %v4057, %v4050
    %v4107 = vpack.c.b16 %v4065, %v4058
    %v4108 = vpack.c.b16 %v4066, %v4059
    %v4109 = vpack.c.b16 %v4067, %v4060
    %v4110 = vpack.c.b16 %v4068, %v4061
    %v4111 = vpack.c.b16 %v4069, %v4062
    %v4112 = vpack.c.b16 %v4070, %v4063
    %v4113 = vpack.c.b16 %v4071, %v4064
    %v4114 = vpack.c.b16 %v4079, %v4072
    %v4115 = vpack.c.b16 %v4080, %v4073
    %v4116 = vpack.c.b16 %v4081, %v4074
    %v4117 = vpack.c.b16 %v4082, %v4075
    %v4118 = vpack.c.b16 %v4083, %v4076
    %v4119 = vpack.c.b16 %v4084, %v4077
    %v4120 = vpack.c.b16 %v4085, %v4078
    %v4121 = vpack.c.b16 %v4093, %v4086
    %v4122 = vpack.c.b16 %v4094, %v4087
    %v4123 = vpack.c.b16 %v4095, %v4088
    %v4124 = vpack.c.b16 %v4096, %v4089
    %v4125 = vpack.c.b16 %v4097, %v4090
    %v4126 = vpack.c.b16 %v4098, %v4091
    %v4127 = vpack.c.b16 %v4099, %v4092
    %v4153 = vsel %vm1252, %v4106, 0
    %v4156 = vsel %vm1252, %v4113, 0
    %v4159 = vsel %vm1252, %v4120, 0
    %v4162 = vsel %vm1252, %v4127, 0
    %4164 = vmatpush.bf16.msra.mxu0 %v3969
    %4165 = vmatpush.bf16.msra.mxu0 %v3968
    %4166 = vmatpush.bf16.msra.mxu0 %v3967
    %4167 = vmatpush.bf16.msra.mxu0 %v3966
    %4168 = vmatpush.bf16.msra.mxu0 %v3965
    %4169 = vmatpush.bf16.msra.mxu0 %v3964
    %4170 = vmatpush.bf16.msra.mxu0 %v3963
    %4171 = vmatpush.bf16.msra.mxu0 %v3962
    %4172 = vmatmul.bf16.gmra.mxu0 %v4100
    %v4173 = vpop.f32.mrf.mxu0
    %v4174 = vadd.f32 0.0, %v4173
    %v4175 = vpop.f32.mrf.mxu0
    %v4176 = vadd.f32 0.0, %v4175
    %4177 = vmatmul.bf16.gmra.mxu0 %v4107
    %v4178 = vpop.f32.mrf.mxu0
    %v4179 = vadd.f32 0.0, %v4178
    %v4180 = vpop.f32.mrf.mxu0
    %v4181 = vadd.f32 0.0, %v4180
    %4182 = vmatmul.bf16.gmra.mxu0 %v4114
    %v4183 = vpop.f32.mrf.mxu0
    %v4184 = vadd.f32 0.0, %v4183
    %v4185 = vpop.f32.mrf.mxu0
    %v4186 = vadd.f32 0.0, %v4185
    %4187 = vmatmul.bf16.gmra.mxu0 %v4121
    %v4188 = vpop.f32.mrf.mxu0
    %v4189 = vadd.f32 0.0, %v4188
    %v4190 = vpop.f32.mrf.mxu0
    %v4191 = vadd.f32 0.0, %v4190
    %4192 = vdwg.mxu0
    %4193 = vmatpush.bf16.msra.mxu0 %v3977
    %4194 = vmatpush.bf16.msra.mxu0 %v3976
    %4195 = vmatpush.bf16.msra.mxu0 %v3975
    %4196 = vmatpush.bf16.msra.mxu0 %v3974
    %4197 = vmatpush.bf16.msra.mxu0 %v3973
    %4198 = vmatpush.bf16.msra.mxu0 %v3972
    %4199 = vmatpush.bf16.msra.mxu0 %v3971
    %4200 = vmatpush.bf16.msra.mxu0 %v3970
    %4201 = vmatmul.bf16.gmra.mxu0 %v4101
    %v4202 = vpop.f32.mrf.mxu0
    %v4203 = vadd.f32 %v4174, %v4202
    %v4204 = vpop.f32.mrf.mxu0
    %v4205 = vadd.f32 %v4176, %v4204
    %4206 = vmatmul.bf16.gmra.mxu0 %v4108
    %v4207 = vpop.f32.mrf.mxu0
    %v4208 = vadd.f32 %v4179, %v4207
    %v4209 = vpop.f32.mrf.mxu0
    %v4210 = vadd.f32 %v4181, %v4209
    %4211 = vmatmul.bf16.gmra.mxu0 %v4115
    %v4212 = vpop.f32.mrf.mxu0
    %v4213 = vadd.f32 %v4184, %v4212
    %v4214 = vpop.f32.mrf.mxu0
    %v4215 = vadd.f32 %v4186, %v4214
    %4216 = vmatmul.bf16.gmra.mxu0 %v4122
    %v4217 = vpop.f32.mrf.mxu0
    %v4218 = vadd.f32 %v4189, %v4217
    %v4219 = vpop.f32.mrf.mxu0
    %v4220 = vadd.f32 %v4191, %v4219
    %4221 = vdwg.mxu0
    %4222 = vmatpush.bf16.msra.mxu0 %v3985
    %4223 = vmatpush.bf16.msra.mxu0 %v3984
    %4224 = vmatpush.bf16.msra.mxu0 %v3983
    %4225 = vmatpush.bf16.msra.mxu0 %v3982
    %4226 = vmatpush.bf16.msra.mxu0 %v3981
    %4227 = vmatpush.bf16.msra.mxu0 %v3980
    %4228 = vmatpush.bf16.msra.mxu0 %v3979
    %4229 = vmatpush.bf16.msra.mxu0 %v3978
    %4230 = vmatmul.bf16.gmra.mxu0 %v4102
    %v4231 = vpop.f32.mrf.mxu0
    %v4232 = vadd.f32 %v4203, %v4231
    %v4233 = vpop.f32.mrf.mxu0
    %v4234 = vadd.f32 %v4205, %v4233
    %4235 = vmatmul.bf16.gmra.mxu0 %v4109
    %v4236 = vpop.f32.mrf.mxu0
    %v4237 = vadd.f32 %v4208, %v4236
    %v4238 = vpop.f32.mrf.mxu0
    %v4239 = vadd.f32 %v4210, %v4238
    %4240 = vmatmul.bf16.gmra.mxu0 %v4116
    %v4241 = vpop.f32.mrf.mxu0
    %v4242 = vadd.f32 %v4213, %v4241
    %v4243 = vpop.f32.mrf.mxu0
    %v4244 = vadd.f32 %v4215, %v4243
    %4245 = vmatmul.bf16.gmra.mxu0 %v4123
    %v4246 = vpop.f32.mrf.mxu0
    %v4247 = vadd.f32 %v4218, %v4246
    %v4248 = vpop.f32.mrf.mxu0
    %v4249 = vadd.f32 %v4220, %v4248
    %4250 = vdwg.mxu0
    %4251 = vmatpush.bf16.msra.mxu0 %v3993
    %4252 = vmatpush.bf16.msra.mxu0 %v3992
    %4253 = vmatpush.bf16.msra.mxu0 %v3991
    %4254 = vmatpush.bf16.msra.mxu0 %v3990
    %4255 = vmatpush.bf16.msra.mxu0 %v3989
    %4256 = vmatpush.bf16.msra.mxu0 %v3988
    %4257 = vmatpush.bf16.msra.mxu0 %v3987
    %4258 = vmatpush.bf16.msra.mxu0 %v3986
    %4259 = vmatmul.bf16.gmra.mxu0 %v4103
    %v4260 = vpop.f32.mrf.mxu0
    %v4261 = vadd.f32 %v4232, %v4260
    %v4262 = vpop.f32.mrf.mxu0
    %v4263 = vadd.f32 %v4234, %v4262
    %4264 = vmatmul.bf16.gmra.mxu0 %v4110
    %v4265 = vpop.f32.mrf.mxu0
    %v4266 = vadd.f32 %v4237, %v4265
    %v4267 = vpop.f32.mrf.mxu0
    %v4268 = vadd.f32 %v4239, %v4267
    %4269 = vmatmul.bf16.gmra.mxu0 %v4117
    %v4270 = vpop.f32.mrf.mxu0
    %v4271 = vadd.f32 %v4242, %v4270
    %v4272 = vpop.f32.mrf.mxu0
    %v4273 = vadd.f32 %v4244, %v4272
    %4274 = vmatmul.bf16.gmra.mxu0 %v4124
    %v4275 = vpop.f32.mrf.mxu0
    %v4276 = vadd.f32 %v4247, %v4275
    %v4277 = vpop.f32.mrf.mxu0
    %v4278 = vadd.f32 %v4249, %v4277
    %4279 = vdwg.mxu0
    %4280 = vmatpush.bf16.msra.mxu0 %v4001
    %4281 = vmatpush.bf16.msra.mxu0 %v4000
    %4282 = vmatpush.bf16.msra.mxu0 %v3999
    %4283 = vmatpush.bf16.msra.mxu0 %v3998
    %4284 = vmatpush.bf16.msra.mxu0 %v3997
    %4285 = vmatpush.bf16.msra.mxu0 %v3996
    %4286 = vmatpush.bf16.msra.mxu0 %v3995
    %4287 = vmatpush.bf16.msra.mxu0 %v3994
    %4288 = vmatmul.bf16.gmra.mxu0 %v4104
    %v4289 = vpop.f32.mrf.mxu0
    %v4290 = vadd.f32 %v4261, %v4289
    %v4291 = vpop.f32.mrf.mxu0
    %v4292 = vadd.f32 %v4263, %v4291
    %4293 = vmatmul.bf16.gmra.mxu0 %v4111
    %v4294 = vpop.f32.mrf.mxu0
    %v4295 = vadd.f32 %v4266, %v4294
    %v4296 = vpop.f32.mrf.mxu0
    %v4297 = vadd.f32 %v4268, %v4296
    %4298 = vmatmul.bf16.gmra.mxu0 %v4118
    %v4299 = vpop.f32.mrf.mxu0
    %v4300 = vadd.f32 %v4271, %v4299
    %v4301 = vpop.f32.mrf.mxu0
    %v4302 = vadd.f32 %v4273, %v4301
    %4303 = vmatmul.bf16.gmra.mxu0 %v4125
    %v4304 = vpop.f32.mrf.mxu0
    %v4305 = vadd.f32 %v4276, %v4304
    %v4306 = vpop.f32.mrf.mxu0
    %v4307 = vadd.f32 %v4278, %v4306
    %4308 = vdwg.mxu0
    %4309 = vmatpush.bf16.msra.mxu0 %v4009
    %4310 = vmatpush.bf16.msra.mxu0 %v4008
    %4311 = vmatpush.bf16.msra.mxu0 %v4007
    %4312 = vmatpush.bf16.msra.mxu0 %v4006
    %4313 = vmatpush.bf16.msra.mxu0 %v4005
    %4314 = vmatpush.bf16.msra.mxu0 %v4004
    %4315 = vmatpush.bf16.msra.mxu0 %v4003
    %4316 = vmatpush.bf16.msra.mxu0 %v4002
    %4317 = vmatmul.bf16.gmra.mxu0 %v4105
    %v4318 = vpop.f32.mrf.mxu0
    %v4319 = vadd.f32 %v4290, %v4318
    %v4320 = vpop.f32.mrf.mxu0
    %v4321 = vadd.f32 %v4292, %v4320
    %4322 = vmatmul.bf16.gmra.mxu0 %v4112
    %v4323 = vpop.f32.mrf.mxu0
    %v4324 = vadd.f32 %v4295, %v4323
    %v4325 = vpop.f32.mrf.mxu0
    %v4326 = vadd.f32 %v4297, %v4325
    %4327 = vmatmul.bf16.gmra.mxu0 %v4119
    %v4328 = vpop.f32.mrf.mxu0
    %v4329 = vadd.f32 %v4300, %v4328
    %v4330 = vpop.f32.mrf.mxu0
    %v4331 = vadd.f32 %v4302, %v4330
    %4332 = vmatmul.bf16.gmra.mxu0 %v4126
    %v4333 = vpop.f32.mrf.mxu0
    %v4334 = vadd.f32 %v4305, %v4333
    %v4335 = vpop.f32.mrf.mxu0
    %v4336 = vadd.f32 %v4307, %v4335
    %4337 = vdwg.mxu0
    %4338 = vmatpush.bf16.msra.mxu0 0
    %4339 = vmatpush.bf16.msra.mxu0 0
    %4340 = vmatpush.bf16.msra.mxu0 0
    %4341 = vmatpush.bf16.msra.mxu0 0
    %4342 = vmatpush.bf16.msra.mxu0 0
    %4343 = vmatpush.bf16.msra.mxu0 0
    %4344 = vmatpush.bf16.msra.mxu0 %v4011
    %4345 = vmatpush.bf16.msra.mxu0 %v4010
    %4346 = vmatmul.bf16.gmra.mxu0 %v4153
    %v4347 = vpop.f32.mrf.mxu0
    %v4348 = vadd.f32 %v4319, %v4347
    %v4349 = vpop.f32.mrf.mxu0
    %v4350 = vadd.f32 %v4321, %v4349
    %4351 = vmatmul.bf16.gmra.mxu0 %v4156
    %v4352 = vpop.f32.mrf.mxu0
    %v4353 = vadd.f32 %v4324, %v4352
    %v4354 = vpop.f32.mrf.mxu0
    %v4355 = vadd.f32 %v4326, %v4354
    %4356 = vmatmul.bf16.gmra.mxu0 %v4159
    %v4357 = vpop.f32.mrf.mxu0
    %v4358 = vadd.f32 %v4329, %v4357
    %v4359 = vpop.f32.mrf.mxu0
    %v4360 = vadd.f32 %v4331, %v4359
    %4361 = vmatmul.bf16.gmra.mxu0 %v4162
    %v4362 = vpop.f32.mrf.mxu0
    %v4363 = vadd.f32 %v4334, %v4362
    %v4364 = vpop.f32.mrf.mxu0
    %v4365 = vadd.f32 %v4336, %v4364
    %4366 = vdwg.mxu0
    %v4367 = vld [vmem:[%s14] sm:$0xff]
    %v4368 = vld [vmem:[%s14 + $0x8] sm:$0xff]
    %v4369 = vld [vmem:[%s14 + $0x10] sm:$0xff]
    %v4370 = vld [vmem:[%s14 + $0x18] sm:$0xff]
    %v4371 = vld [vmem:[%s14 + $0x20] sm:$0xff]
    %v4372 = vld [vmem:[%s14 + $0x28] sm:$0xff]
    %v4373 = vld [vmem:[%s14 + $0x30] sm:$0xff]
    %v4374 = vld [vmem:[%s14 + $0x38] sm:$0xff]
    %v4375 = vsel %vm1252, %v4348, 0.0
    %4376 = vadd.xlane.f32.xlu0 %v4375
    %v4377 = vpop.xlane.xlu0 %4376
    %v4378 = vsel %vm1252, %v4350, 0.0
    %4379 = vadd.xlane.f32.xlu0 %v4378
    %v4380 = vpop.xlane.xlu0 %4379
    %v4381 = vsel %vm1252, %v4353, 0.0
    %4382 = vadd.xlane.f32.xlu0 %v4381
    %v4383 = vpop.xlane.xlu0 %4382
    %v4384 = vsel %vm1252, %v4355, 0.0
    %4385 = vadd.xlane.f32.xlu0 %v4384
    %v4386 = vpop.xlane.xlu0 %4385
    %v4387 = vsel %vm1252, %v4358, 0.0
    %4388 = vadd.xlane.f32.xlu0 %v4387
    %v4389 = vpop.xlane.xlu0 %4388
    %v4390 = vsel %vm1252, %v4360, 0.0
    %4391 = vadd.xlane.f32.xlu0 %v4390
    %v4392 = vpop.xlane.xlu0 %4391
    %v4393 = vsel %vm1252, %v4363, 0.0
    %4394 = vadd.xlane.f32.xlu0 %v4393
    %v4395 = vpop.xlane.xlu0 %4394
    %v4396 = vsel %vm1252, %v4365, 0.0
    %4397 = vadd.xlane.f32.xlu0 %v4396
    %v4398 = vpop.xlane.xlu0 %4397
    %v4399 = vrcp.pop 32.0
    %v4400 = vmul.f32 32.0, %v4399
    %v4401 = vsub.f32 1.0, %v4400
    %v4402 = vmul.f32 %v4399, %v4401
    %v4403 = vadd.f32 %v4399, %v4402
    %vm4404 = vweird.f32 %v4399
    %v4405 = vsel %vm4404, %v4399, %v4403
    %v4406 = vmul.f32 %v4377, %v4405
    %v4407 = vmul.f32 %v4380, %v4405
    %v4408 = vmul.f32 %v4383, %v4405
    %v4409 = vmul.f32 %v4386, %v4405
    %v4410 = vmul.f32 %v4389, %v4405
    %v4411 = vmul.f32 %v4392, %v4405
    %v4412 = vmul.f32 %v4395, %v4405
    %v4413 = vmul.f32 %v4398, %v4405
    %v4414 = vsub.f32 %v4348, %v4406
    %v4415 = vsub.f32 %v4350, %v4407
    %v4416 = vsub.f32 %v4353, %v4408
    %v4417 = vsub.f32 %v4355, %v4409
    %v4418 = vsub.f32 %v4358, %v4410
    %v4419 = vsub.f32 %v4360, %v4411
    %v4420 = vsub.f32 %v4363, %v4412
    %v4421 = vsub.f32 %v4365, %v4413
    %v4422 = vmul.f32 %v4414, %v4414
    %v4423 = vmul.f32 %v4415, %v4415
    %v4424 = vmul.f32 %v4416, %v4416
    %v4425 = vmul.f32 %v4417, %v4417
    %v4426 = vmul.f32 %v4418, %v4418
    %v4427 = vmul.f32 %v4419, %v4419
    %v4428 = vmul.f32 %v4420, %v4420
    %v4429 = vmul.f32 %v4421, %v4421
    %v4430 = vsel %vm1252, %v4422, 0.0
    %4431 = vadd.xlane.f32.xlu0 %v4430
    %v4432 = vpop.xlane.xlu0 %4431
    %v4433 = vsel %vm1252, %v4423, 0.0
    %4434 = vadd.xlane.f32.xlu0 %v4433
    %v4435 = vpop.xlane.xlu0 %4434
    %v4436 = vsel %vm1252, %v4424, 0.0
    %4437 = vadd.xlane.f32.xlu0 %v4436
    %v4438 = vpop.xlane.xlu0 %4437
    %v4439 = vsel %vm1252, %v4425, 0.0
    %4440 = vadd.xlane.f32.xlu0 %v4439
    %v4441 = vpop.xlane.xlu0 %4440
    %v4442 = vsel %vm1252, %v4426, 0.0
    %4443 = vadd.xlane.f32.xlu0 %v4442
    %v4444 = vpop.xlane.xlu0 %4443
    %v4445 = vsel %vm1252, %v4427, 0.0
    %4446 = vadd.xlane.f32.xlu0 %v4445
    %v4447 = vpop.xlane.xlu0 %4446
    %v4448 = vsel %vm1252, %v4428, 0.0
    %4449 = vadd.xlane.f32.xlu0 %v4448
    %v4450 = vpop.xlane.xlu0 %4449
    %v4451 = vsel %vm1252, %v4429, 0.0
    %4452 = vadd.xlane.f32.xlu0 %v4451
    %v4453 = vpop.xlane.xlu0 %4452
    %v4454 = vmul.f32 %v4432, %v4405
    %v4455 = vmul.f32 %v4435, %v4405
    %v4456 = vmul.f32 %v4438, %v4405
    %v4457 = vmul.f32 %v4441, %v4405
    %v4458 = vmul.f32 %v4444, %v4405
    %v4459 = vmul.f32 %v4447, %v4405
    %v4460 = vmul.f32 %v4450, %v4405
    %v4461 = vmul.f32 %v4453, %v4405
    %v4462 = vadd.f32 %v4454, 1e-05
    %v4463 = vadd.f32 %v4455, 1e-05
    %v4464 = vadd.f32 %v4456, 1e-05
    %v4465 = vadd.f32 %v4457, 1e-05
    %v4466 = vadd.f32 %v4458, 1e-05
    %v4467 = vadd.f32 %v4459, 1e-05
    %v4468 = vadd.f32 %v4460, 1e-05
    %v4469 = vadd.f32 %v4461, 1e-05
    %v4470 = vrsqrt.pop %v4462
    %v4471 = vmul.f32 %v4470, %v4462
    %v4472 = vmul.f32 %v4471, %v4470
    %v4473 = vmul.f32 0.5, %v4472
    %v4474 = vsub.f32 1.5, %v4473
    %v4475 = vmul.f32 %v4470, %v4474
    %vm4476 = vweird.f32 %v4462
    %vm4477 = vweird.f32 %v4470
    %vm4478 = vmor %vm4476, %vm4477
    %v4479 = vsel %vm4478, %v4470, %v4475
    %v4480 = vrsqrt.pop %v4463
    %v4481 = vmul.f32 %v4480, %v4463
    %v4482 = vmul.f32 %v4481, %v4480
    %v4483 = vmul.f32 0.5, %v4482
    %v4484 = vsub.f32 1.5, %v4483
    %v4485 = vmul.f32 %v4480, %v4484
    %vm4486 = vweird.f32 %v4463
    %vm4487 = vweird.f32 %v4480
    %vm4488 = vmor %vm4486, %vm4487
    %v4489 = vsel %vm4488, %v4480, %v4485
    %v4490 = vrsqrt.pop %v4464
    %v4491 = vmul.f32 %v4490, %v4464
    %v4492 = vmul.f32 %v4491, %v4490
    %v4493 = vmul.f32 0.5, %v4492
    %v4494 = vsub.f32 1.5, %v4493
    %v4495 = vmul.f32 %v4490, %v4494
    %vm4496 = vweird.f32 %v4464
    %vm4497 = vweird.f32 %v4490
    %vm4498 = vmor %vm4496, %vm4497
    %v4499 = vsel %vm4498, %v4490, %v4495
    %v4500 = vrsqrt.pop %v4465
    %v4501 = vmul.f32 %v4500, %v4465
    %v4502 = vmul.f32 %v4501, %v4500
    %v4503 = vmul.f32 0.5, %v4502
    %v4504 = vsub.f32 1.5, %v4503
    %v4505 = vmul.f32 %v4500, %v4504
    %vm4506 = vweird.f32 %v4465
    %vm4507 = vweird.f32 %v4500
    %vm4508 = vmor %vm4506, %vm4507
    %v4509 = vsel %vm4508, %v4500, %v4505
    %v4510 = vrsqrt.pop %v4466
    %v4511 = vmul.f32 %v4510, %v4466
    %v4512 = vmul.f32 %v4511, %v4510
    %v4513 = vmul.f32 0.5, %v4512
    %v4514 = vsub.f32 1.5, %v4513
    %v4515 = vmul.f32 %v4510, %v4514
    %vm4516 = vweird.f32 %v4466
    %vm4517 = vweird.f32 %v4510
    %vm4518 = vmor %vm4516, %vm4517
    %v4519 = vsel %vm4518, %v4510, %v4515
    %v4520 = vrsqrt.pop %v4467
    %v4521 = vmul.f32 %v4520, %v4467
    %v4522 = vmul.f32 %v4521, %v4520
    %v4523 = vmul.f32 0.5, %v4522
    %v4524 = vsub.f32 1.5, %v4523
    %v4525 = vmul.f32 %v4520, %v4524
    %vm4526 = vweird.f32 %v4467
    %vm4527 = vweird.f32 %v4520
    %vm4528 = vmor %vm4526, %vm4527
    %v4529 = vsel %vm4528, %v4520, %v4525
    %v4530 = vrsqrt.pop %v4468
    %v4531 = vmul.f32 %v4530, %v4468
    %v4532 = vmul.f32 %v4531, %v4530
    %v4533 = vmul.f32 0.5, %v4532
    %v4534 = vsub.f32 1.5, %v4533
    %v4535 = vmul.f32 %v4530, %v4534
    %vm4536 = vweird.f32 %v4468
    %vm4537 = vweird.f32 %v4530
    %vm4538 = vmor %vm4536, %vm4537
    %v4539 = vsel %vm4538, %v4530, %v4535
    %v4540 = vrsqrt.pop %v4469
    %v4541 = vmul.f32 %v4540, %v4469
    %v4542 = vmul.f32 %v4541, %v4540
    %v4543 = vmul.f32 0.5, %v4542
    %v4544 = vsub.f32 1.5, %v4543
    %v4545 = vmul.f32 %v4540, %v4544
    %vm4546 = vweird.f32 %v4469
    %vm4547 = vweird.f32 %v4540
    %vm4548 = vmor %vm4546, %vm4547
    %v4549 = vsel %vm4548, %v4540, %v4545
    %v4550 = vmul.f32 %v4414, %v4479
    %v4551 = vmul.f32 %v4415, %v4489
    %v4552 = vmul.f32 %v4416, %v4499
    %v4553 = vmul.f32 %v4417, %v4509
    %v4554 = vmul.f32 %v4418, %v4519
    %v4555 = vmul.f32 %v4419, %v4529
    %v4556 = vmul.f32 %v4420, %v4539
    %v4557 = vmul.f32 %v4421, %v4549
    %4559 = vset.pattern.permute.xlu0 0
    %4560 = vperm.xlu0 %4559, %v4367
    %v4561 = vpop.permute.xlu0 %4560
    %4564 = vset.pattern.permute.xlu0 0
    %4565 = vperm.xlu0 %4564, %v4368
    %v4566 = vpop.permute.xlu0 %4565
    %4569 = vset.pattern.permute.xlu0 0
    %4570 = vperm.xlu0 %4569, %v4369
    %v4571 = vpop.permute.xlu0 %4570
    %4574 = vset.pattern.permute.xlu0 0
    %4575 = vperm.xlu0 %4574, %v4370
    %v4576 = vpop.permute.xlu0 %4575
    %4579 = vset.pattern.permute.xlu0 0
    %4580 = vperm.xlu0 %4579, %v4371
    %v4581 = vpop.permute.xlu0 %4580
    %4584 = vset.pattern.permute.xlu0 0
    %4585 = vperm.xlu0 %4584, %v4372
    %v4586 = vpop.permute.xlu0 %4585
    %4589 = vset.pattern.permute.xlu0 0
    %4590 = vperm.xlu0 %4589, %v4373
    %v4591 = vpop.permute.xlu0 %4590
    %4594 = vset.pattern.permute.xlu0 0
    %4595 = vperm.xlu0 %4594, %v4374
    %v4596 = vpop.permute.xlu0 %4595
    %v4598 = vmul.f32 %v4550, %v4561
    %v4599 = vmul.f32 %v4551, %v4566
    %v4600 = vmul.f32 %v4552, %v4571
    %v4601 = vmul.f32 %v4553, %v4576
    %v4602 = vmul.f32 %v4554, %v4581
    %v4603 = vmul.f32 %v4555, %v4586
    %v4604 = vmul.f32 %v4556, %v4591
    %v4605 = vmul.f32 %v4557, %v4596
    %4606 = vset.pattern.permute.xlu0 1
    %4607 = vperm.xlu0 %4606, %v4367
    %v4608 = vpop.permute.xlu0 %4607
    %4610 = vset.pattern.permute.xlu0 1
    %4611 = vperm.xlu0 %4610, %v4368
    %v4612 = vpop.permute.xlu0 %4611
    %4614 = vset.pattern.permute.xlu0 1
    %4615 = vperm.xlu0 %4614, %v4369
    %v4616 = vpop.permute.xlu0 %4615
    %4618 = vset.pattern.permute.xlu0 1
    %4619 = vperm.xlu0 %4618, %v4370
    %v4620 = vpop.permute.xlu0 %4619
    %4622 = vset.pattern.permute.xlu0 1
    %4623 = vperm.xlu0 %4622, %v4371
    %v4624 = vpop.permute.xlu0 %4623
    %4626 = vset.pattern.permute.xlu0 1
    %4627 = vperm.xlu0 %4626, %v4372
    %v4628 = vpop.permute.xlu0 %4627
    %4630 = vset.pattern.permute.xlu0 1
    %4631 = vperm.xlu0 %4630, %v4373
    %v4632 = vpop.permute.xlu0 %4631
    %4634 = vset.pattern.permute.xlu0 1
    %4635 = vperm.xlu0 %4634, %v4374
    %v4636 = vpop.permute.xlu0 %4635
    %v4638 = vadd.f32 %v4598, %v4608
    %v4639 = vadd.f32 %v4599, %v4612
    %v4640 = vadd.f32 %v4600, %v4616
    %v4641 = vadd.f32 %v4601, %v4620
    %v4642 = vadd.f32 %v4602, %v4624
    %v4643 = vadd.f32 %v4603, %v4628
    %v4644 = vadd.f32 %v4604, %v4632
    %v4645 = vadd.f32 %v4605, %v4636
    %v4646 = vtanh.pop %v4638
    %v4647 = vtanh.pop %v4639
    %v4648 = vtanh.pop %v4640
    %v4649 = vtanh.pop %v4641
    %v4650 = vtanh.pop %v4642
    %v4651 = vtanh.pop %v4643
    %v4652 = vtanh.pop %v4644
    %v4653 = vtanh.pop %v4645
    %vm4654 = vcmask 1047808
    %4655 = vrot.lane.b32.xlu0 %v4646, 32
    %v4656 = vpop.permute.xlu0 %4655
    %v4657 = vsel %vm4654, %v4656, %v4646
    %4658 = vrot.lane.b32.xlu0 %v4647, 32
    %v4659 = vpop.permute.xlu0 %4658
    %v4660 = vsel %vm4654, %v4659, %v4647
    %4661 = vrot.lane.b32.xlu0 %v4648, 32
    %v4662 = vpop.permute.xlu0 %4661
    %v4663 = vsel %vm4654, %v4662, %v4648
    %4664 = vrot.lane.b32.xlu0 %v4649, 32
    %v4665 = vpop.permute.xlu0 %4664
    %v4666 = vsel %vm4654, %v4665, %v4649
    %4667 = vrot.lane.b32.xlu0 %v4650, 32
    %v4668 = vpop.permute.xlu0 %4667
    %v4669 = vsel %vm4654, %v4668, %v4650
    %4670 = vrot.lane.b32.xlu0 %v4651, 32
    %v4671 = vpop.permute.xlu0 %4670
    %v4672 = vsel %vm4654, %v4671, %v4651
    %4673 = vrot.lane.b32.xlu0 %v4652, 32
    %v4674 = vpop.permute.xlu0 %4673
    %v4675 = vsel %vm4654, %v4674, %v4652
    %4676 = vrot.lane.b32.xlu0 %v4653, 32
    %v4677 = vpop.permute.xlu0 %4676
    %v4678 = vsel %vm4654, %v4677, %v4653
    %4679 = vrot.lane.b32.xlu0 %v4657, 32
    %v4680 = vpop.permute.xlu0 %4679
    %4681 = vrot.lane.b32.xlu0 %v4660, 32
    %v4682 = vpop.permute.xlu0 %4681
    %4683 = vrot.lane.b32.xlu0 %v4663, 32
    %v4684 = vpop.permute.xlu0 %4683
    %4685 = vrot.lane.b32.xlu0 %v4666, 32
    %v4686 = vpop.permute.xlu0 %4685
    %4687 = vrot.lane.b32.xlu0 %v4669, 32
    %v4688 = vpop.permute.xlu0 %4687
    %4689 = vrot.lane.b32.xlu0 %v4672, 32
    %v4690 = vpop.permute.xlu0 %4689
    %4691 = vrot.lane.b32.xlu0 %v4675, 32
    %v4692 = vpop.permute.xlu0 %4691
    %4693 = vrot.lane.b32.xlu0 %v4678, 32
    %v4694 = vpop.permute.xlu0 %4693
    %v4695 = vsel %vm4654, %v4680, %v4646
    %v4696 = vsel %vm4654, %v4682, %v4647
    %v4697 = vsel %vm4654, %v4684, %v4648
    %v4698 = vsel %vm4654, %v4686, %v4649
    %v4699 = vsel %vm4654, %v4688, %v4650
    %v4700 = vsel %vm4654, %v4690, %v4651
    %v4701 = vsel %vm4654, %v4692, %v4652
    %v4702 = vsel %vm4654, %v4694, %v4653
    %4711 = vrot.lane.b32.xlu0 %v4695, 127
    %v4712 = vpop.permute.xlu0 %4711
    %4713 = vrot.lane.b32.xlu0 %v4696, 127
    %v4714 = vpop.permute.xlu0 %4713
    %4715 = vrot.lane.b32.xlu0 %v4697, 127
    %v4716 = vpop.permute.xlu0 %4715
    %4717 = vrot.lane.b32.xlu0 %v4698, 127
    %v4718 = vpop.permute.xlu0 %4717
    %4719 = vrot.lane.b32.xlu0 %v4699, 127
    %v4720 = vpop.permute.xlu0 %4719
    %4721 = vrot.lane.b32.xlu0 %v4700, 127
    %v4722 = vpop.permute.xlu0 %4721
    %4723 = vrot.lane.b32.xlu0 %v4701, 127
    %v4724 = vpop.permute.xlu0 %4723
    %4725 = vrot.lane.b32.xlu0 %v4702, 127
    %v4726 = vpop.permute.xlu0 %4725
    %4735 = vrot.lane.b32.xlu0 %v4695, 126
    %v4736 = vpop.permute.xlu0 %4735
    %4737 = vrot.lane.b32.xlu0 %v4696, 126
    %v4738 = vpop.permute.xlu0 %4737
    %4739 = vrot.lane.b32.xlu0 %v4697, 126
    %v4740 = vpop.permute.xlu0 %4739
    %4741 = vrot.lane.b32.xlu0 %v4698, 126
    %v4742 = vpop.permute.xlu0 %4741
    %4743 = vrot.lane.b32.xlu0 %v4699, 126
    %v4744 = vpop.permute.xlu0 %4743
    %4745 = vrot.lane.b32.xlu0 %v4700, 126
    %v4746 = vpop.permute.xlu0 %4745
    %4747 = vrot.lane.b32.xlu0 %v4701, 126
    %v4748 = vpop.permute.xlu0 %4747
    %4749 = vrot.lane.b32.xlu0 %v4702, 126
    %v4750 = vpop.permute.xlu0 %4749
    %4759 = vrot.lane.b32.xlu0 %v4695, 125
    %v4760 = vpop.permute.xlu0 %4759
    %4761 = vrot.lane.b32.xlu0 %v4696, 125
    %v4762 = vpop.permute.xlu0 %4761
    %4763 = vrot.lane.b32.xlu0 %v4697, 125
    %v4764 = vpop.permute.xlu0 %4763
    %4765 = vrot.lane.b32.xlu0 %v4698, 125
    %v4766 = vpop.permute.xlu0 %4765
    %4767 = vrot.lane.b32.xlu0 %v4699, 125
    %v4768 = vpop.permute.xlu0 %4767
    %4769 = vrot.lane.b32.xlu0 %v4700, 125
    %v4770 = vpop.permute.xlu0 %4769
    %4771 = vrot.lane.b32.xlu0 %v4701, 125
    %v4772 = vpop.permute.xlu0 %4771
    %4773 = vrot.lane.b32.xlu0 %v4702, 125
    %v4774 = vpop.permute.xlu0 %4773
    %4783 = vrot.lane.b32.xlu0 %v4695, 124
    %v4784 = vpop.permute.xlu0 %4783
    %4785 = vrot.lane.b32.xlu0 %v4696, 124
    %v4786 = vpop.permute.xlu0 %4785
    %4787 = vrot.lane.b32.xlu0 %v4697, 124
    %v4788 = vpop.permute.xlu0 %4787
    %4789 = vrot.lane.b32.xlu0 %v4698, 124
    %v4790 = vpop.permute.xlu0 %4789
    %4791 = vrot.lane.b32.xlu0 %v4699, 124
    %v4792 = vpop.permute.xlu0 %4791
    %4793 = vrot.lane.b32.xlu0 %v4700, 124
    %v4794 = vpop.permute.xlu0 %4793
    %4795 = vrot.lane.b32.xlu0 %v4701, 124
    %v4796 = vpop.permute.xlu0 %4795
    %4797 = vrot.lane.b32.xlu0 %v4702, 124
    %v4798 = vpop.permute.xlu0 %4797
    %4807 = vrot.lane.b32.xlu0 %v4695, 123
    %v4808 = vpop.permute.xlu0 %4807
    %4809 = vrot.lane.b32.xlu0 %v4696, 123
    %v4810 = vpop.permute.xlu0 %4809
    %4811 = vrot.lane.b32.xlu0 %v4697, 123
    %v4812 = vpop.permute.xlu0 %4811
    %4813 = vrot.lane.b32.xlu0 %v4698, 123
    %v4814 = vpop.permute.xlu0 %4813
    %4815 = vrot.lane.b32.xlu0 %v4699, 123
    %v4816 = vpop.permute.xlu0 %4815
    %4817 = vrot.lane.b32.xlu0 %v4700, 123
    %v4818 = vpop.permute.xlu0 %4817
    %4819 = vrot.lane.b32.xlu0 %v4701, 123
    %v4820 = vpop.permute.xlu0 %4819
    %4821 = vrot.lane.b32.xlu0 %v4702, 123
    %v4822 = vpop.permute.xlu0 %4821
    %4831 = vrot.lane.b32.xlu0 %v4695, 122
    %v4832 = vpop.permute.xlu0 %4831
    %4833 = vrot.lane.b32.xlu0 %v4696, 122
    %v4834 = vpop.permute.xlu0 %4833
    %4835 = vrot.lane.b32.xlu0 %v4697, 122
    %v4836 = vpop.permute.xlu0 %4835
    %4837 = vrot.lane.b32.xlu0 %v4698, 122
    %v4838 = vpop.permute.xlu0 %4837
    %4839 = vrot.lane.b32.xlu0 %v4699, 122
    %v4840 = vpop.permute.xlu0 %4839
    %4841 = vrot.lane.b32.xlu0 %v4700, 122
    %v4842 = vpop.permute.xlu0 %4841
    %4843 = vrot.lane.b32.xlu0 %v4701, 122
    %v4844 = vpop.permute.xlu0 %4843
    %4845 = vrot.lane.b32.xlu0 %v4702, 122
    %v4846 = vpop.permute.xlu0 %4845
    %4855 = vrot.lane.b32.xlu0 %v4695, 121
    %v4856 = vpop.permute.xlu0 %4855
    %4857 = vrot.lane.b32.xlu0 %v4696, 121
    %v4858 = vpop.permute.xlu0 %4857
    %4859 = vrot.lane.b32.xlu0 %v4697, 121
    %v4860 = vpop.permute.xlu0 %4859
    %4861 = vrot.lane.b32.xlu0 %v4698, 121
    %v4862 = vpop.permute.xlu0 %4861
    %4863 = vrot.lane.b32.xlu0 %v4699, 121
    %v4864 = vpop.permute.xlu0 %4863
    %4865 = vrot.lane.b32.xlu0 %v4700, 121
    %v4866 = vpop.permute.xlu0 %4865
    %4867 = vrot.lane.b32.xlu0 %v4701, 121
    %v4868 = vpop.permute.xlu0 %4867
    %4869 = vrot.lane.b32.xlu0 %v4702, 121
    %v4870 = vpop.permute.xlu0 %4869
    %4879 = vrot.lane.b32.xlu0 %v4695, 120
    %v4880 = vpop.permute.xlu0 %4879
    %4881 = vrot.lane.b32.xlu0 %v4696, 120
    %v4882 = vpop.permute.xlu0 %4881
    %4883 = vrot.lane.b32.xlu0 %v4697, 120
    %v4884 = vpop.permute.xlu0 %4883
    %4885 = vrot.lane.b32.xlu0 %v4698, 120
    %v4886 = vpop.permute.xlu0 %4885
    %4887 = vrot.lane.b32.xlu0 %v4699, 120
    %v4888 = vpop.permute.xlu0 %4887
    %4889 = vrot.lane.b32.xlu0 %v4700, 120
    %v4890 = vpop.permute.xlu0 %4889
    %4891 = vrot.lane.b32.xlu0 %v4701, 120
    %v4892 = vpop.permute.xlu0 %4891
    %4893 = vrot.lane.b32.xlu0 %v4702, 120
    %v4894 = vpop.permute.xlu0 %4893
    %4903 = vrot.lane.b32.xlu0 %v4695, 119
    %v4904 = vpop.permute.xlu0 %4903
    %4905 = vrot.lane.b32.xlu0 %v4696, 119
    %v4906 = vpop.permute.xlu0 %4905
    %4907 = vrot.lane.b32.xlu0 %v4697, 119
    %v4908 = vpop.permute.xlu0 %4907
    %4909 = vrot.lane.b32.xlu0 %v4698, 119
    %v4910 = vpop.permute.xlu0 %4909
    %4911 = vrot.lane.b32.xlu0 %v4699, 119
    %v4912 = vpop.permute.xlu0 %4911
    %4913 = vrot.lane.b32.xlu0 %v4700, 119
    %v4914 = vpop.permute.xlu0 %4913
    %4915 = vrot.lane.b32.xlu0 %v4701, 119
    %v4916 = vpop.permute.xlu0 %4915
    %4917 = vrot.lane.b32.xlu0 %v4702, 119
    %v4918 = vpop.permute.xlu0 %4917
    %4927 = vrot.lane.b32.xlu0 %v4695, 118
    %v4928 = vpop.permute.xlu0 %4927
    %4929 = vrot.lane.b32.xlu0 %v4696, 118
    %v4930 = vpop.permute.xlu0 %4929
    %4931 = vrot.lane.b32.xlu0 %v4697, 118
    %v4932 = vpop.permute.xlu0 %4931
    %4933 = vrot.lane.b32.xlu0 %v4698, 118
    %v4934 = vpop.permute.xlu0 %4933
    %4935 = vrot.lane.b32.xlu0 %v4699, 118
    %v4936 = vpop.permute.xlu0 %4935
    %4937 = vrot.lane.b32.xlu0 %v4700, 118
    %v4938 = vpop.permute.xlu0 %4937
    %4939 = vrot.lane.b32.xlu0 %v4701, 118
    %v4940 = vpop.permute.xlu0 %4939
    %4941 = vrot.lane.b32.xlu0 %v4702, 118
    %v4942 = vpop.permute.xlu0 %4941
    %4951 = vrot.lane.b32.xlu0 %v4695, 117
    %v4952 = vpop.permute.xlu0 %4951
    %4953 = vrot.lane.b32.xlu0 %v4696, 117
    %v4954 = vpop.permute.xlu0 %4953
    %4955 = vrot.lane.b32.xlu0 %v4697, 117
    %v4956 = vpop.permute.xlu0 %4955
    %4957 = vrot.lane.b32.xlu0 %v4698, 117
    %v4958 = vpop.permute.xlu0 %4957
    %4959 = vrot.lane.b32.xlu0 %v4699, 117
    %v4960 = vpop.permute.xlu0 %4959
    %4961 = vrot.lane.b32.xlu0 %v4700, 117
    %v4962 = vpop.permute.xlu0 %4961
    %4963 = vrot.lane.b32.xlu0 %v4701, 117
    %v4964 = vpop.permute.xlu0 %4963
    %4965 = vrot.lane.b32.xlu0 %v4702, 117
    %v4966 = vpop.permute.xlu0 %4965
    %4975 = vrot.lane.b32.xlu0 %v4695, 116
    %v4976 = vpop.permute.xlu0 %4975
    %4977 = vrot.lane.b32.xlu0 %v4696, 116
    %v4978 = vpop.permute.xlu0 %4977
    %4979 = vrot.lane.b32.xlu0 %v4697, 116
    %v4980 = vpop.permute.xlu0 %4979
    %4981 = vrot.lane.b32.xlu0 %v4698, 116
    %v4982 = vpop.permute.xlu0 %4981
    %4983 = vrot.lane.b32.xlu0 %v4699, 116
    %v4984 = vpop.permute.xlu0 %4983
    %4985 = vrot.lane.b32.xlu0 %v4700, 116
    %v4986 = vpop.permute.xlu0 %4985
    %4987 = vrot.lane.b32.xlu0 %v4701, 116
    %v4988 = vpop.permute.xlu0 %4987
    %4989 = vrot.lane.b32.xlu0 %v4702, 116
    %v4990 = vpop.permute.xlu0 %4989
    %4999 = vrot.lane.b32.xlu0 %v4695, 115
    %v5000 = vpop.permute.xlu0 %4999
    %5001 = vrot.lane.b32.xlu0 %v4696, 115
    %v5002 = vpop.permute.xlu0 %5001
    %5003 = vrot.lane.b32.xlu0 %v4697, 115
    %v5004 = vpop.permute.xlu0 %5003
    %5005 = vrot.lane.b32.xlu0 %v4698, 115
    %v5006 = vpop.permute.xlu0 %5005
    %5007 = vrot.lane.b32.xlu0 %v4699, 115
    %v5008 = vpop.permute.xlu0 %5007
    %5009 = vrot.lane.b32.xlu0 %v4700, 115
    %v5010 = vpop.permute.xlu0 %5009
    %5011 = vrot.lane.b32.xlu0 %v4701, 115
    %v5012 = vpop.permute.xlu0 %5011
    %5013 = vrot.lane.b32.xlu0 %v4702, 115
    %v5014 = vpop.permute.xlu0 %5013
    %5023 = vrot.lane.b32.xlu0 %v4695, 114
    %v5024 = vpop.permute.xlu0 %5023
    %5025 = vrot.lane.b32.xlu0 %v4696, 114
    %v5026 = vpop.permute.xlu0 %5025
    %5027 = vrot.lane.b32.xlu0 %v4697, 114
    %v5028 = vpop.permute.xlu0 %5027
    %5029 = vrot.lane.b32.xlu0 %v4698, 114
    %v5030 = vpop.permute.xlu0 %5029
    %5031 = vrot.lane.b32.xlu0 %v4699, 114
    %v5032 = vpop.permute.xlu0 %5031
    %5033 = vrot.lane.b32.xlu0 %v4700, 114
    %v5034 = vpop.permute.xlu0 %5033
    %5035 = vrot.lane.b32.xlu0 %v4701, 114
    %v5036 = vpop.permute.xlu0 %5035
    %5037 = vrot.lane.b32.xlu0 %v4702, 114
    %v5038 = vpop.permute.xlu0 %5037
    %5047 = vrot.lane.b32.xlu0 %v4695, 113
    %v5048 = vpop.permute.xlu0 %5047
    %5049 = vrot.lane.b32.xlu0 %v4696, 113
    %v5050 = vpop.permute.xlu0 %5049
    %5051 = vrot.lane.b32.xlu0 %v4697, 113
    %v5052 = vpop.permute.xlu0 %5051
    %5053 = vrot.lane.b32.xlu0 %v4698, 113
    %v5054 = vpop.permute.xlu0 %5053
    %5055 = vrot.lane.b32.xlu0 %v4699, 113
    %v5056 = vpop.permute.xlu0 %5055
    %5057 = vrot.lane.b32.xlu0 %v4700, 113
    %v5058 = vpop.permute.xlu0 %5057
    %5059 = vrot.lane.b32.xlu0 %v4701, 113
    %v5060 = vpop.permute.xlu0 %5059
    %5061 = vrot.lane.b32.xlu0 %v4702, 113
    %v5062 = vpop.permute.xlu0 %5061
    %v5071 = vpack.c.bf16 %v4647, %v4646
    %v5072 = vpack.c.bf16 %v4649, %v4648
    %v5073 = vpack.c.bf16 %v4651, %v4650
    %v5074 = vpack.c.bf16 %v4653, %v4652
    %v5075 = vpack.c.bf16 %v4714, %v4712
    %v5076 = vpack.c.bf16 %v4718, %v4716
    %v5077 = vpack.c.bf16 %v4722, %v4720
    %v5078 = vpack.c.bf16 %v4726, %v4724
    %v5079 = vpack.c.bf16 %v4738, %v4736
    %v5080 = vpack.c.bf16 %v4742, %v4740
    %v5081 = vpack.c.bf16 %v4746, %v4744
    %v5082 = vpack.c.bf16 %v4750, %v4748
    %v5083 = vpack.c.bf16 %v4762, %v4760
    %v5084 = vpack.c.bf16 %v4766, %v4764
    %v5085 = vpack.c.bf16 %v4770, %v4768
    %v5086 = vpack.c.bf16 %v4774, %v4772
    %v5087 = vpack.c.bf16 %v4786, %v4784
    %v5088 = vpack.c.bf16 %v4790, %v4788
    %v5089 = vpack.c.bf16 %v4794, %v4792
    %v5090 = vpack.c.bf16 %v4798, %v4796
    %v5091 = vpack.c.bf16 %v4810, %v4808
    %v5092 = vpack.c.bf16 %v4814, %v4812
    %v5093 = vpack.c.bf16 %v4818, %v4816
    %v5094 = vpack.c.bf16 %v4822, %v4820
    %v5095 = vpack.c.bf16 %v4834, %v4832
    %v5096 = vpack.c.bf16 %v4838, %v4836
    %v5097 = vpack.c.bf16 %v4842, %v4840
    %v5098 = vpack.c.bf16 %v4846, %v4844
    %v5099 = vpack.c.bf16 %v4858, %v4856
    %v5100 = vpack.c.bf16 %v4862, %v4860
    %v5101 = vpack.c.bf16 %v4866, %v4864
    %v5102 = vpack.c.bf16 %v4870, %v4868
    %v5103 = vpack.c.bf16 %v4882, %v4880
    %v5104 = vpack.c.bf16 %v4886, %v4884
    %v5105 = vpack.c.bf16 %v4890, %v4888
    %v5106 = vpack.c.bf16 %v4894, %v4892
    %v5107 = vpack.c.bf16 %v4906, %v4904
    %v5108 = vpack.c.bf16 %v4910, %v4908
    %v5109 = vpack.c.bf16 %v4914, %v4912
    %v5110 = vpack.c.bf16 %v4918, %v4916
    %v5111 = vpack.c.bf16 %v4930, %v4928
    %v5112 = vpack.c.bf16 %v4934, %v4932
    %v5113 = vpack.c.bf16 %v4938, %v4936
    %v5114 = vpack.c.bf16 %v4942, %v4940
    %v5115 = vpack.c.bf16 %v4954, %v4952
    %v5116 = vpack.c.bf16 %v4958, %v4956
    %v5117 = vpack.c.bf16 %v4962, %v4960
    %v5118 = vpack.c.bf16 %v4966, %v4964
    %v5119 = vpack.c.bf16 %v4978, %v4976
    %v5120 = vpack.c.bf16 %v4982, %v4980
    %v5121 = vpack.c.bf16 %v4986, %v4984
    %v5122 = vpack.c.bf16 %v4990, %v4988
    %v5123 = vpack.c.bf16 %v5002, %v5000
    %v5124 = vpack.c.bf16 %v5006, %v5004
    %v5125 = vpack.c.bf16 %v5010, %v5008
    %v5126 = vpack.c.bf16 %v5014, %v5012
    %v5127 = vpack.c.bf16 %v5026, %v5024
    %v5128 = vpack.c.bf16 %v5030, %v5028
    %v5129 = vpack.c.bf16 %v5034, %v5032
    %v5130 = vpack.c.bf16 %v5038, %v5036
    %v5131 = vpack.c.bf16 %v5050, %v5048
    %v5132 = vpack.c.bf16 %v5054, %v5052
    %v5133 = vpack.c.bf16 %v5058, %v5056
    %v5134 = vpack.c.bf16 %v5062, %v5060
    %v5135 = vld [vmem:[%s3] sm:$0xf]
    %v5136 = vld [vmem:[%s3 + $0x4] sm:$0xf]
    %v5137 = vld [vmem:[%s3 + $0x8] sm:$0xf]
    %v5138 = vld [vmem:[%s3 + $0xc] sm:$0xf]
    %v5143 = vunpack.c.l.b16 %v5135
    %v5144 = vunpack.c.l.b16 %v5136
    %v5145 = vunpack.c.l.b16 %v5137
    %v5146 = vunpack.c.l.b16 %v5138
    %v5147 = vpack.c.b16 %v5144, %v5143
    %v5148 = vpack.c.b16 %v5146, %v5145
    %v5152 = vsel %vm1252, %v5071, 0
    %v5155 = vsel %vm1252, %v5072, 0
    %v5158 = vsel %vm1252, %v5073, 0
    %v5161 = vsel %vm1252, %v5074, 0
    %v5164 = vsel %vm1252, %v5075, 0
    %v5167 = vsel %vm1252, %v5076, 0
    %v5170 = vsel %vm1252, %v5077, 0
    %v5173 = vsel %vm1252, %v5078, 0
    %v5176 = vsel %vm1252, %v5079, 0
    %v5179 = vsel %vm1252, %v5080, 0
    %v5182 = vsel %vm1252, %v5081, 0
    %v5185 = vsel %vm1252, %v5082, 0
    %v5188 = vsel %vm1252, %v5083, 0
    %v5191 = vsel %vm1252, %v5084, 0
    %v5194 = vsel %vm1252, %v5085, 0
    %v5197 = vsel %vm1252, %v5086, 0
    %v5200 = vsel %vm1252, %v5087, 0
    %v5203 = vsel %vm1252, %v5088, 0
    %v5206 = vsel %vm1252, %v5089, 0
    %v5209 = vsel %vm1252, %v5090, 0
    %v5212 = vsel %vm1252, %v5091, 0
    %v5215 = vsel %vm1252, %v5092, 0
    %v5218 = vsel %vm1252, %v5093, 0
    %v5221 = vsel %vm1252, %v5094, 0
    %v5224 = vsel %vm1252, %v5095, 0
    %v5227 = vsel %vm1252, %v5096, 0
    %v5230 = vsel %vm1252, %v5097, 0
    %v5233 = vsel %vm1252, %v5098, 0
    %v5236 = vsel %vm1252, %v5099, 0
    %v5239 = vsel %vm1252, %v5100, 0
    %v5242 = vsel %vm1252, %v5101, 0
    %v5245 = vsel %vm1252, %v5102, 0
    %v5248 = vsel %vm1252, %v5103, 0
    %v5251 = vsel %vm1252, %v5104, 0
    %v5254 = vsel %vm1252, %v5105, 0
    %v5257 = vsel %vm1252, %v5106, 0
    %v5260 = vsel %vm1252, %v5107, 0
    %v5263 = vsel %vm1252, %v5108, 0
    %v5266 = vsel %vm1252, %v5109, 0
    %v5269 = vsel %vm1252, %v5110, 0
    %v5272 = vsel %vm1252, %v5111, 0
    %v5275 = vsel %vm1252, %v5112, 0
    %v5278 = vsel %vm1252, %v5113, 0
    %v5281 = vsel %vm1252, %v5114, 0
    %v5284 = vsel %vm1252, %v5115, 0
    %v5287 = vsel %vm1252, %v5116, 0
    %v5290 = vsel %vm1252, %v5117, 0
    %v5293 = vsel %vm1252, %v5118, 0
    %v5296 = vsel %vm1252, %v5119, 0
    %v5299 = vsel %vm1252, %v5120, 0
    %v5302 = vsel %vm1252, %v5121, 0
    %v5305 = vsel %vm1252, %v5122, 0
    %v5308 = vsel %vm1252, %v5123, 0
    %v5311 = vsel %vm1252, %v5124, 0
    %v5314 = vsel %vm1252, %v5125, 0
    %v5317 = vsel %vm1252, %v5126, 0
    %v5320 = vsel %vm1252, %v5127, 0
    %v5323 = vsel %vm1252, %v5128, 0
    %v5326 = vsel %vm1252, %v5129, 0
    %v5329 = vsel %vm1252, %v5130, 0
    %v5332 = vsel %vm1252, %v5131, 0
    %v5335 = vsel %vm1252, %v5132, 0
    %v5338 = vsel %vm1252, %v5133, 0
    %v5341 = vsel %vm1252, %v5134, 0
    %5343 = vmatpush.bf16.msra.mxu0 0
    %5344 = vmatpush.bf16.msra.mxu0 0
    %5345 = vmatpush.bf16.msra.mxu0 0
    %5346 = vmatpush.bf16.msra.mxu0 0
    %5347 = vmatpush.bf16.msra.mxu0 0
    %5348 = vmatpush.bf16.msra.mxu0 0
    %5349 = vmatpush.bf16.msra.mxu0 %v5148
    %5350 = vmatpush.bf16.msra.mxu0 %v5147
    %5351 = vmatmul.bf16.gmra.mxu0 %v5152
    %v5352 = vpop.f32.mrf.mxu0
    %v5353 = vadd.f32 0.0, %v5352
    %v5354 = vpop.f32.mrf.mxu0
    %v5355 = vadd.f32 0.0, %v5354
    %5356 = vmatmul.bf16.gmra.mxu0 %v5155
    %v5357 = vpop.f32.mrf.mxu0
    %v5358 = vadd.f32 0.0, %v5357
    %v5359 = vpop.f32.mrf.mxu0
    %v5360 = vadd.f32 0.0, %v5359
    %5361 = vmatmul.bf16.gmra.mxu0 %v5158
    %v5362 = vpop.f32.mrf.mxu0
    %v5363 = vadd.f32 0.0, %v5362
    %v5364 = vpop.f32.mrf.mxu0
    %v5365 = vadd.f32 0.0, %v5364
    %5366 = vmatmul.bf16.gmra.mxu0 %v5161
    %v5367 = vpop.f32.mrf.mxu0
    %v5368 = vadd.f32 0.0, %v5367
    %v5369 = vpop.f32.mrf.mxu0
    %v5370 = vadd.f32 0.0, %v5369
    %5371 = vmatmul.bf16.gmra.mxu0 %v5164
    %v5372 = vpop.f32.mrf.mxu0
    %v5373 = vadd.f32 0.0, %v5372
    %v5374 = vpop.f32.mrf.mxu0
    %v5375 = vadd.f32 0.0, %v5374
    %5376 = vmatmul.bf16.gmra.mxu0 %v5167
    %v5377 = vpop.f32.mrf.mxu0
    %v5378 = vadd.f32 0.0, %v5377
    %v5379 = vpop.f32.mrf.mxu0
    %v5380 = vadd.f32 0.0, %v5379
    %5381 = vmatmul.bf16.gmra.mxu0 %v5170
    %v5382 = vpop.f32.mrf.mxu0
    %v5383 = vadd.f32 0.0, %v5382
    %v5384 = vpop.f32.mrf.mxu0
    %v5385 = vadd.f32 0.0, %v5384
    %5386 = vmatmul.bf16.gmra.mxu0 %v5173
    %v5387 = vpop.f32.mrf.mxu0
    %v5388 = vadd.f32 0.0, %v5387
    %v5389 = vpop.f32.mrf.mxu0
    %v5390 = vadd.f32 0.0, %v5389
    %5391 = vmatmul.bf16.gmra.mxu0 %v5176
    %v5392 = vpop.f32.mrf.mxu0
    %v5393 = vadd.f32 0.0, %v5392
    %v5394 = vpop.f32.mrf.mxu0
    %v5395 = vadd.f32 0.0, %v5394
    %5396 = vmatmul.bf16.gmra.mxu0 %v5179
    %v5397 = vpop.f32.mrf.mxu0
    %v5398 = vadd.f32 0.0, %v5397
    %v5399 = vpop.f32.mrf.mxu0
    %v5400 = vadd.f32 0.0, %v5399
    %5401 = vmatmul.bf16.gmra.mxu0 %v5182
    %v5402 = vpop.f32.mrf.mxu0
    %v5403 = vadd.f32 0.0, %v5402
    %v5404 = vpop.f32.mrf.mxu0
    %v5405 = vadd.f32 0.0, %v5404
    %5406 = vmatmul.bf16.gmra.mxu0 %v5185
    %v5407 = vpop.f32.mrf.mxu0
    %v5408 = vadd.f32 0.0, %v5407
    %v5409 = vpop.f32.mrf.mxu0
    %v5410 = vadd.f32 0.0, %v5409
    %5411 = vmatmul.bf16.gmra.mxu0 %v5188
    %v5412 = vpop.f32.mrf.mxu0
    %v5413 = vadd.f32 0.0, %v5412
    %v5414 = vpop.f32.mrf.mxu0
    %v5415 = vadd.f32 0.0, %v5414
    %5416 = vmatmul.bf16.gmra.mxu0 %v5191
    %v5417 = vpop.f32.mrf.mxu0
    %v5418 = vadd.f32 0.0, %v5417
    %v5419 = vpop.f32.mrf.mxu0
    %v5420 = vadd.f32 0.0, %v5419
    %5421 = vmatmul.bf16.gmra.mxu0 %v5194
    %v5422 = vpop.f32.mrf.mxu0
    %v5423 = vadd.f32 0.0, %v5422
    %v5424 = vpop.f32.mrf.mxu0
    %v5425 = vadd.f32 0.0, %v5424
    %5426 = vmatmul.bf16.gmra.mxu0 %v5197
    %v5427 = vpop.f32.mrf.mxu0
    %v5428 = vadd.f32 0.0, %v5427
    %v5429 = vpop.f32.mrf.mxu0
    %v5430 = vadd.f32 0.0, %v5429
    %5431 = vmatmul.bf16.gmra.mxu0 %v5200
    %v5432 = vpop.f32.mrf.mxu0
    %v5433 = vadd.f32 0.0, %v5432
    %v5434 = vpop.f32.mrf.mxu0
    %v5435 = vadd.f32 0.0, %v5434
    %5436 = vmatmul.bf16.gmra.mxu0 %v5203
    %v5437 = vpop.f32.mrf.mxu0
    %v5438 = vadd.f32 0.0, %v5437
    %v5439 = vpop.f32.mrf.mxu0
    %v5440 = vadd.f32 0.0, %v5439
    %5441 = vmatmul.bf16.gmra.mxu0 %v5206
    %v5442 = vpop.f32.mrf.mxu0
    %v5443 = vadd.f32 0.0, %v5442
    %v5444 = vpop.f32.mrf.mxu0
    %v5445 = vadd.f32 0.0, %v5444
    %5446 = vmatmul.bf16.gmra.mxu0 %v5209
    %v5447 = vpop.f32.mrf.mxu0
    %v5448 = vadd.f32 0.0, %v5447
    %v5449 = vpop.f32.mrf.mxu0
    %v5450 = vadd.f32 0.0, %v5449
    %5451 = vmatmul.bf16.gmra.mxu0 %v5212
    %v5452 = vpop.f32.mrf.mxu0
    %v5453 = vadd.f32 0.0, %v5452
    %v5454 = vpop.f32.mrf.mxu0
    %v5455 = vadd.f32 0.0, %v5454
    %5456 = vmatmul.bf16.gmra.mxu0 %v5215
    %v5457 = vpop.f32.mrf.mxu0
    %v5458 = vadd.f32 0.0, %v5457
    %v5459 = vpop.f32.mrf.mxu0
    %v5460 = vadd.f32 0.0, %v5459
    %5461 = vmatmul.bf16.gmra.mxu0 %v5218
    %v5462 = vpop.f32.mrf.mxu0
    %v5463 = vadd.f32 0.0, %v5462
    %v5464 = vpop.f32.mrf.mxu0
    %v5465 = vadd.f32 0.0, %v5464
    %5466 = vmatmul.bf16.gmra.mxu0 %v5221
    %v5467 = vpop.f32.mrf.mxu0
    %v5468 = vadd.f32 0.0, %v5467
    %v5469 = vpop.f32.mrf.mxu0
    %v5470 = vadd.f32 0.0, %v5469
    %5471 = vmatmul.bf16.gmra.mxu0 %v5224
    %v5472 = vpop.f32.mrf.mxu0
    %v5473 = vadd.f32 0.0, %v5472
    %v5474 = vpop.f32.mrf.mxu0
    %v5475 = vadd.f32 0.0, %v5474
    %5476 = vmatmul.bf16.gmra.mxu0 %v5227
    %v5477 = vpop.f32.mrf.mxu0
    %v5478 = vadd.f32 0.0, %v5477
    %v5479 = vpop.f32.mrf.mxu0
    %v5480 = vadd.f32 0.0, %v5479
    %5481 = vmatmul.bf16.gmra.mxu0 %v5230
    %v5482 = vpop.f32.mrf.mxu0
    %v5483 = vadd.f32 0.0, %v5482
    %v5484 = vpop.f32.mrf.mxu0
    %v5485 = vadd.f32 0.0, %v5484
    %5486 = vmatmul.bf16.gmra.mxu0 %v5233
    %v5487 = vpop.f32.mrf.mxu0
    %v5488 = vadd.f32 0.0, %v5487
    %v5489 = vpop.f32.mrf.mxu0
    %v5490 = vadd.f32 0.0, %v5489
    %5491 = vmatmul.bf16.gmra.mxu0 %v5236
    %v5492 = vpop.f32.mrf.mxu0
    %v5493 = vadd.f32 0.0, %v5492
    %v5494 = vpop.f32.mrf.mxu0
    %v5495 = vadd.f32 0.0, %v5494
    %5496 = vmatmul.bf16.gmra.mxu0 %v5239
    %v5497 = vpop.f32.mrf.mxu0
    %v5498 = vadd.f32 0.0, %v5497
    %v5499 = vpop.f32.mrf.mxu0
    %v5500 = vadd.f32 0.0, %v5499
    %5501 = vmatmul.bf16.gmra.mxu0 %v5242
    %v5502 = vpop.f32.mrf.mxu0
    %v5503 = vadd.f32 0.0, %v5502
    %v5504 = vpop.f32.mrf.mxu0
    %v5505 = vadd.f32 0.0, %v5504
    %5506 = vmatmul.bf16.gmra.mxu0 %v5245
    %v5507 = vpop.f32.mrf.mxu0
    %v5508 = vadd.f32 0.0, %v5507
    %v5509 = vpop.f32.mrf.mxu0
    %v5510 = vadd.f32 0.0, %v5509
    %5511 = vmatmul.bf16.gmra.mxu0 %v5248
    %v5512 = vpop.f32.mrf.mxu0
    %v5513 = vadd.f32 0.0, %v5512
    %v5514 = vpop.f32.mrf.mxu0
    %v5515 = vadd.f32 0.0, %v5514
    %5516 = vmatmul.bf16.gmra.mxu0 %v5251
    %v5517 = vpop.f32.mrf.mxu0
    %v5518 = vadd.f32 0.0, %v5517
    %v5519 = vpop.f32.mrf.mxu0
    %v5520 = vadd.f32 0.0, %v5519
    %5521 = vmatmul.bf16.gmra.mxu0 %v5254
    %v5522 = vpop.f32.mrf.mxu0
    %v5523 = vadd.f32 0.0, %v5522
    %v5524 = vpop.f32.mrf.mxu0
    %v5525 = vadd.f32 0.0, %v5524
    %5526 = vmatmul.bf16.gmra.mxu0 %v5257
    %v5527 = vpop.f32.mrf.mxu0
    %v5528 = vadd.f32 0.0, %v5527
    %v5529 = vpop.f32.mrf.mxu0
    %v5530 = vadd.f32 0.0, %v5529
    %5531 = vmatmul.bf16.gmra.mxu0 %v5260
    %v5532 = vpop.f32.mrf.mxu0
    %v5533 = vadd.f32 0.0, %v5532
    %v5534 = vpop.f32.mrf.mxu0
    %v5535 = vadd.f32 0.0, %v5534
    %5536 = vmatmul.bf16.gmra.mxu0 %v5263
    %v5537 = vpop.f32.mrf.mxu0
    %v5538 = vadd.f32 0.0, %v5537
    %v5539 = vpop.f32.mrf.mxu0
    %v5540 = vadd.f32 0.0, %v5539
    %5541 = vmatmul.bf16.gmra.mxu0 %v5266
    %v5542 = vpop.f32.mrf.mxu0
    %v5543 = vadd.f32 0.0, %v5542
    %v5544 = vpop.f32.mrf.mxu0
    %v5545 = vadd.f32 0.0, %v5544
    %5546 = vmatmul.bf16.gmra.mxu0 %v5269
    %v5547 = vpop.f32.mrf.mxu0
    %v5548 = vadd.f32 0.0, %v5547
    %v5549 = vpop.f32.mrf.mxu0
    %v5550 = vadd.f32 0.0, %v5549
    %5551 = vmatmul.bf16.gmra.mxu0 %v5272
    %v5552 = vpop.f32.mrf.mxu0
    %v5553 = vadd.f32 0.0, %v5552
    %v5554 = vpop.f32.mrf.mxu0
    %v5555 = vadd.f32 0.0, %v5554
    %5556 = vmatmul.bf16.gmra.mxu0 %v5275
    %v5557 = vpop.f32.mrf.mxu0
    %v5558 = vadd.f32 0.0, %v5557
    %v5559 = vpop.f32.mrf.mxu0
    %v5560 = vadd.f32 0.0, %v5559
    %5561 = vmatmul.bf16.gmra.mxu0 %v5278
    %v5562 = vpop.f32.mrf.mxu0
    %v5563 = vadd.f32 0.0, %v5562
    %v5564 = vpop.f32.mrf.mxu0
    %v5565 = vadd.f32 0.0, %v5564
    %5566 = vmatmul.bf16.gmra.mxu0 %v5281
    %v5567 = vpop.f32.mrf.mxu0
    %v5568 = vadd.f32 0.0, %v5567
    %v5569 = vpop.f32.mrf.mxu0
    %v5570 = vadd.f32 0.0, %v5569
    %5571 = vmatmul.bf16.gmra.mxu0 %v5284
    %v5572 = vpop.f32.mrf.mxu0
    %v5573 = vadd.f32 0.0, %v5572
    %v5574 = vpop.f32.mrf.mxu0
    %v5575 = vadd.f32 0.0, %v5574
    %5576 = vmatmul.bf16.gmra.mxu0 %v5287
    %v5577 = vpop.f32.mrf.mxu0
    %v5578 = vadd.f32 0.0, %v5577
    %v5579 = vpop.f32.mrf.mxu0
    %v5580 = vadd.f32 0.0, %v5579
    %5581 = vmatmul.bf16.gmra.mxu0 %v5290
    %v5582 = vpop.f32.mrf.mxu0
    %v5583 = vadd.f32 0.0, %v5582
    %v5584 = vpop.f32.mrf.mxu0
    %v5585 = vadd.f32 0.0, %v5584
    %5586 = vmatmul.bf16.gmra.mxu0 %v5293
    %v5587 = vpop.f32.mrf.mxu0
    %v5588 = vadd.f32 0.0, %v5587
    %v5589 = vpop.f32.mrf.mxu0
    %v5590 = vadd.f32 0.0, %v5589
    %5591 = vmatmul.bf16.gmra.mxu0 %v5296
    %v5592 = vpop.f32.mrf.mxu0
    %v5593 = vadd.f32 0.0, %v5592
    %v5594 = vpop.f32.mrf.mxu0
    %v5595 = vadd.f32 0.0, %v5594
    %5596 = vmatmul.bf16.gmra.mxu0 %v5299
    %v5597 = vpop.f32.mrf.mxu0
    %v5598 = vadd.f32 0.0, %v5597
    %v5599 = vpop.f32.mrf.mxu0
    %v5600 = vadd.f32 0.0, %v5599
    %5601 = vmatmul.bf16.gmra.mxu0 %v5302
    %v5602 = vpop.f32.mrf.mxu0
    %v5603 = vadd.f32 0.0, %v5602
    %v5604 = vpop.f32.mrf.mxu0
    %v5605 = vadd.f32 0.0, %v5604
    %5606 = vmatmul.bf16.gmra.mxu0 %v5305
    %v5607 = vpop.f32.mrf.mxu0
    %v5608 = vadd.f32 0.0, %v5607
    %v5609 = vpop.f32.mrf.mxu0
    %v5610 = vadd.f32 0.0, %v5609
    %5611 = vmatmul.bf16.gmra.mxu0 %v5308
    %v5612 = vpop.f32.mrf.mxu0
    %v5613 = vadd.f32 0.0, %v5612
    %v5614 = vpop.f32.mrf.mxu0
    %v5615 = vadd.f32 0.0, %v5614
    %5616 = vmatmul.bf16.gmra.mxu0 %v5311
    %v5617 = vpop.f32.mrf.mxu0
    %v5618 = vadd.f32 0.0, %v5617
    %v5619 = vpop.f32.mrf.mxu0
    %v5620 = vadd.f32 0.0, %v5619
    %5621 = vmatmul.bf16.gmra.mxu0 %v5314
    %v5622 = vpop.f32.mrf.mxu0
    %v5623 = vadd.f32 0.0, %v5622
    %v5624 = vpop.f32.mrf.mxu0
    %v5625 = vadd.f32 0.0, %v5624
    %5626 = vmatmul.bf16.gmra.mxu0 %v5317
    %v5627 = vpop.f32.mrf.mxu0
    %v5628 = vadd.f32 0.0, %v5627
    %v5629 = vpop.f32.mrf.mxu0
    %v5630 = vadd.f32 0.0, %v5629
    %5631 = vmatmul.bf16.gmra.mxu0 %v5320
    %v5632 = vpop.f32.mrf.mxu0
    %v5633 = vadd.f32 0.0, %v5632
    %v5634 = vpop.f32.mrf.mxu0
    %v5635 = vadd.f32 0.0, %v5634
    %5636 = vmatmul.bf16.gmra.mxu0 %v5323
    %v5637 = vpop.f32.mrf.mxu0
    %v5638 = vadd.f32 0.0, %v5637
    %v5639 = vpop.f32.mrf.mxu0
    %v5640 = vadd.f32 0.0, %v5639
    %5641 = vmatmul.bf16.gmra.mxu0 %v5326
    %v5642 = vpop.f32.mrf.mxu0
    %v5643 = vadd.f32 0.0, %v5642
    %v5644 = vpop.f32.mrf.mxu0
    %v5645 = vadd.f32 0.0, %v5644
    %5646 = vmatmul.bf16.gmra.mxu0 %v5329
    %v5647 = vpop.f32.mrf.mxu0
    %v5648 = vadd.f32 0.0, %v5647
    %v5649 = vpop.f32.mrf.mxu0
    %v5650 = vadd.f32 0.0, %v5649
    %5651 = vmatmul.bf16.gmra.mxu0 %v5332
    %v5652 = vpop.f32.mrf.mxu0
    %v5653 = vadd.f32 0.0, %v5652
    %v5654 = vpop.f32.mrf.mxu0
    %v5655 = vadd.f32 0.0, %v5654
    %5656 = vmatmul.bf16.gmra.mxu0 %v5335
    %v5657 = vpop.f32.mrf.mxu0
    %v5658 = vadd.f32 0.0, %v5657
    %v5659 = vpop.f32.mrf.mxu0
    %v5660 = vadd.f32 0.0, %v5659
    %5661 = vmatmul.bf16.gmra.mxu0 %v5338
    %v5662 = vpop.f32.mrf.mxu0
    %v5663 = vadd.f32 0.0, %v5662
    %v5664 = vpop.f32.mrf.mxu0
    %v5665 = vadd.f32 0.0, %v5664
    %5666 = vmatmul.bf16.gmra.mxu0 %v5341
    %v5667 = vpop.f32.mrf.mxu0
    %v5668 = vadd.f32 0.0, %v5667
    %v5669 = vpop.f32.mrf.mxu0
    %v5670 = vadd.f32 0.0, %v5669
    %5671 = vdwg.mxu0
    %v5672 = vld [vmem:[#allocation3] sm:$0xff]
    %v5673 = vld [vmem:[#allocation3 + $0x8] sm:$0xff]
    %v5674 = vld [vmem:[#allocation3 + $0x10] sm:$0xff]
    %v5675 = vld [vmem:[#allocation3 + $0x18] sm:$0xff]
    %v5676 = vld [vmem:[#allocation3 + $0x20] sm:$0xff]
    %v5677 = vld [vmem:[#allocation3 + $0x28] sm:$0xff]
    %v5678 = vld [vmem:[#allocation3 + $0x30] sm:$0xff]
    %v5679 = vld [vmem:[#allocation3 + $0x38] sm:$0xff]
    %v5680 = vld [vmem:[#allocation3 + $0x40] sm:$0xff]
    %v5681 = vld [vmem:[#allocation3 + $0x48] sm:$0xff]
    %v5682 = vld [vmem:[#allocation3 + $0x50] sm:$0xff]
    %v5683 = vld [vmem:[#allocation3 + $0x58] sm:$0xff]
    %v5684 = vld [vmem:[#allocation3 + $0x60] sm:$0xff]
    %v5685 = vld [vmem:[#allocation3 + $0x68] sm:$0xff]
    %v5686 = vld [vmem:[#allocation3 + $0x70] sm:$0xff]
    %v5687 = vld [vmem:[#allocation3 + $0x78] sm:$0xff]
    %v5688 = vld [vmem:[#allocation3 + $0x80] sm:$0xff]
    %v5689 = vld [vmem:[#allocation3 + $0x88] sm:$0xff]
    %v5690 = vld [vmem:[#allocation3 + $0x90] sm:$0xff]
    %v5691 = vld [vmem:[#allocation3 + $0x98] sm:$0xff]
    %v5692 = vld [vmem:[#allocation3 + $0xa0] sm:$0xff]
    %v5693 = vld [vmem:[#allocation3 + $0xa8] sm:$0xff]
    %v5694 = vld [vmem:[#allocation3 + $0xb0] sm:$0xff]
    %v5695 = vld [vmem:[#allocation3 + $0xb8] sm:$0xff]
    %v5696 = vld [vmem:[#allocation3 + $0xc0] sm:$0xff]
    %v5697 = vld [vmem:[#allocation3 + $0xc8] sm:$0xff]
    %v5698 = vld [vmem:[#allocation3 + $0xd0] sm:$0xff]
    %v5699 = vld [vmem:[#allocation3 + $0xd8] sm:$0xff]
    %v5700 = vld [vmem:[#allocation3 + $0xe0] sm:$0xff]
    %v5701 = vld [vmem:[#allocation3 + $0xe8] sm:$0xff]
    %v5702 = vld [vmem:[#allocation3 + $0xf0] sm:$0xff]
    %v5703 = vld [vmem:[#allocation3 + $0xf8] sm:$0xff]
    %v5704 = vld [vmem:[#allocation3 + $0x100] sm:$0xff]
    %v5705 = vld [vmem:[#allocation3 + $0x108] sm:$0xff]
    %v5706 = vld [vmem:[#allocation3 + $0x110] sm:$0xff]
    %v5707 = vld [vmem:[#allocation3 + $0x118] sm:$0xff]
    %v5708 = vld [vmem:[#allocation3 + $0x120] sm:$0xff]
    %v5709 = vld [vmem:[#allocation3 + $0x128] sm:$0xff]
    %v5710 = vld [vmem:[#allocation3 + $0x130] sm:$0xff]
    %v5711 = vld [vmem:[#allocation3 + $0x138] sm:$0xff]
    %v5712 = vld [vmem:[#allocation3 + $0x140] sm:$0xff]
    %v5713 = vld [vmem:[#allocation3 + $0x148] sm:$0xff]
    %v5714 = vld [vmem:[#allocation3 + $0x150] sm:$0xff]
    %v5715 = vld [vmem:[#allocation3 + $0x158] sm:$0xff]
    %v5716 = vld [vmem:[#allocation3 + $0x160] sm:$0xff]
    %v5717 = vld [vmem:[#allocation3 + $0x168] sm:$0xff]
    %v5718 = vld [vmem:[#allocation3 + $0x170] sm:$0xff]
    %v5719 = vld [vmem:[#allocation3 + $0x178] sm:$0xff]
    %v5720 = vld [vmem:[#allocation3 + $0x180] sm:$0xff]
    %v5721 = vld [vmem:[#allocation3 + $0x188] sm:$0xff]
    %v5722 = vld [vmem:[#allocation3 + $0x190] sm:$0xff]
    %v5723 = vld [vmem:[#allocation3 + $0x198] sm:$0xff]
    %v5724 = vld [vmem:[#allocation3 + $0x1a0] sm:$0xff]
    %v5725 = vld [vmem:[#allocation3 + $0x1a8] sm:$0xff]
    %v5726 = vld [vmem:[#allocation3 + $0x1b0] sm:$0xff]
    %v5727 = vld [vmem:[#allocation3 + $0x1b8] sm:$0xff]
    %v5728 = vld [vmem:[#allocation3 + $0x1c0] sm:$0xff]
    %v5729 = vld [vmem:[#allocation3 + $0x1c8] sm:$0xff]
    %v5730 = vld [vmem:[#allocation3 + $0x1d0] sm:$0xff]
    %v5731 = vld [vmem:[#allocation3 + $0x1d8] sm:$0xff]
    %v5732 = vld [vmem:[#allocation3 + $0x1e0] sm:$0xff]
    %v5733 = vld [vmem:[#allocation3 + $0x1e8] sm:$0xff]
    %v5734 = vld [vmem:[#allocation3 + $0x1f0] sm:$0xff]
    %v5735 = vld [vmem:[#allocation3 + $0x1f8] sm:$0xff]
    %v5736 = vld [vmem:[#allocation3 + $0x200] sm:$0xff]
    %v5737 = vld [vmem:[#allocation3 + $0x208] sm:$0xff]
    %v5738 = vld [vmem:[#allocation3 + $0x210] sm:$0xff]
    %v5739 = vld [vmem:[#allocation3 + $0x218] sm:$0xff]
    %v5740 = vld [vmem:[#allocation3 + $0x220] sm:$0xff]
    %v5741 = vld [vmem:[#allocation3 + $0x228] sm:$0xff]
    %v5742 = vld [vmem:[#allocation3 + $0x230] sm:$0xff]
    %v5743 = vld [vmem:[#allocation3 + $0x238] sm:$0xff]
    %v5744 = vld [vmem:[#allocation3 + $0x240] sm:$0xff]
    %v5745 = vld [vmem:[#allocation3 + $0x248] sm:$0xff]
    %v5746 = vld [vmem:[#allocation3 + $0x250] sm:$0xff]
    %v5747 = vld [vmem:[#allocation3 + $0x258] sm:$0xff]
    %v5748 = vld [vmem:[#allocation3 + $0x260] sm:$0xff]
    %v5749 = vld [vmem:[#allocation3 + $0x268] sm:$0xff]
    %v5750 = vld [vmem:[#allocation3 + $0x270] sm:$0xff]
    %v5751 = vld [vmem:[#allocation3 + $0x278] sm:$0xff]
    %v5752 = vld [vmem:[#allocation3 + $0x280] sm:$0xff]
    %v5753 = vld [vmem:[#allocation3 + $0x288] sm:$0xff]
    %v5754 = vld [vmem:[#allocation3 + $0x290] sm:$0xff]
    %v5755 = vld [vmem:[#allocation3 + $0x298] sm:$0xff]
    %v5756 = vld [vmem:[#allocation3 + $0x2a0] sm:$0xff]
    %v5757 = vld [vmem:[#allocation3 + $0x2a8] sm:$0xff]
    %v5758 = vld [vmem:[#allocation3 + $0x2b0] sm:$0xff]
    %v5759 = vld [vmem:[#allocation3 + $0x2b8] sm:$0xff]
    %v5760 = vld [vmem:[#allocation3 + $0x2c0] sm:$0xff]
    %v5761 = vld [vmem:[#allocation3 + $0x2c8] sm:$0xff]
    %v5762 = vld [vmem:[#allocation3 + $0x2d0] sm:$0xff]
    %v5763 = vld [vmem:[#allocation3 + $0x2d8] sm:$0xff]
    %v5764 = vld [vmem:[#allocation3 + $0x2e0] sm:$0xff]
    %v5765 = vld [vmem:[#allocation3 + $0x2e8] sm:$0xff]
    %v5766 = vld [vmem:[#allocation3 + $0x2f0] sm:$0xff]
    %v5767 = vld [vmem:[#allocation3 + $0x2f8] sm:$0xff]
    %v5768 = vld [vmem:[#allocation3 + $0x300] sm:$0xff]
    %v5769 = vld [vmem:[#allocation3 + $0x308] sm:$0xff]
    %v5770 = vld [vmem:[#allocation3 + $0x310] sm:$0xff]
    %v5771 = vld [vmem:[#allocation3 + $0x318] sm:$0xff]
    %v5772 = vld [vmem:[#allocation3 + $0x320] sm:$0xff]
    %v5773 = vld [vmem:[#allocation3 + $0x328] sm:$0xff]
    %v5774 = vld [vmem:[#allocation3 + $0x330] sm:$0xff]
    %v5775 = vld [vmem:[#allocation3 + $0x338] sm:$0xff]
    %v5776 = vld [vmem:[#allocation3 + $0x340] sm:$0xff]
    %v5777 = vld [vmem:[#allocation3 + $0x348] sm:$0xff]
    %v5778 = vld [vmem:[#allocation3 + $0x350] sm:$0xff]
    %v5779 = vld [vmem:[#allocation3 + $0x358] sm:$0xff]
    %v5780 = vld [vmem:[#allocation3 + $0x360] sm:$0xff]
    %v5781 = vld [vmem:[#allocation3 + $0x368] sm:$0xff]
    %v5782 = vld [vmem:[#allocation3 + $0x370] sm:$0xff]
    %v5783 = vld [vmem:[#allocation3 + $0x378] sm:$0xff]
    %v5784 = vld [vmem:[#allocation3 + $0x380] sm:$0xff]
    %v5785 = vld [vmem:[#allocation3 + $0x388] sm:$0xff]
    %v5786 = vld [vmem:[#allocation3 + $0x390] sm:$0xff]
    %v5787 = vld [vmem:[#allocation3 + $0x398] sm:$0xff]
    %v5788 = vld [vmem:[#allocation3 + $0x3a0] sm:$0xff]
    %v5789 = vld [vmem:[#allocation3 + $0x3a8] sm:$0xff]
    %v5790 = vld [vmem:[#allocation3 + $0x3b0] sm:$0xff]
    %v5791 = vld [vmem:[#allocation3 + $0x3b8] sm:$0xff]
    %v5792 = vld [vmem:[#allocation3 + $0x3c0] sm:$0xff]
    %v5793 = vld [vmem:[#allocation3 + $0x3c8] sm:$0xff]
    %v5794 = vld [vmem:[#allocation3 + $0x3d0] sm:$0xff]
    %v5795 = vld [vmem:[#allocation3 + $0x3d8] sm:$0xff]
    %v5796 = vld [vmem:[#allocation3 + $0x3e0] sm:$0xff]
    %v5797 = vld [vmem:[#allocation3 + $0x3e8] sm:$0xff]
    %v5798 = vld [vmem:[#allocation3 + $0x3f0] sm:$0xff]
    %v5799 = vld [vmem:[#allocation3 + $0x3f8] sm:$0xff]
    %v5800 = vpack.c.bf16 %v5355, %v5353
    %v5801 = vpack.c.bf16 %v5360, %v5358
    %v5802 = vpack.c.bf16 %v5365, %v5363
    %v5803 = vpack.c.bf16 %v5370, %v5368
    %v5804 = vpack.c.bf16 %v5375, %v5373
    %v5805 = vpack.c.bf16 %v5380, %v5378
    %v5806 = vpack.c.bf16 %v5385, %v5383
    %v5807 = vpack.c.bf16 %v5390, %v5388
    %v5808 = vpack.c.bf16 %v5395, %v5393
    %v5809 = vpack.c.bf16 %v5400, %v5398
    %v5810 = vpack.c.bf16 %v5405, %v5403
    %v5811 = vpack.c.bf16 %v5410, %v5408
    %v5812 = vpack.c.bf16 %v5415, %v5413
    %v5813 = vpack.c.bf16 %v5420, %v5418
    %v5814 = vpack.c.bf16 %v5425, %v5423
    %v5815 = vpack.c.bf16 %v5430, %v5428
    %v5816 = vpack.c.bf16 %v5435, %v5433
    %v5817 = vpack.c.bf16 %v5440, %v5438
    %v5818 = vpack.c.bf16 %v5445, %v5443
    %v5819 = vpack.c.bf16 %v5450, %v5448
    %v5820 = vpack.c.bf16 %v5455, %v5453
    %v5821 = vpack.c.bf16 %v5460, %v5458
    %v5822 = vpack.c.bf16 %v5465, %v5463
    %v5823 = vpack.c.bf16 %v5470, %v5468
    %v5824 = vpack.c.bf16 %v5475, %v5473
    %v5825 = vpack.c.bf16 %v5480, %v5478
    %v5826 = vpack.c.bf16 %v5485, %v5483
    %v5827 = vpack.c.bf16 %v5490, %v5488
    %v5828 = vpack.c.bf16 %v5495, %v5493
    %v5829 = vpack.c.bf16 %v5500, %v5498
    %v5830 = vpack.c.bf16 %v5505, %v5503
    %v5831 = vpack.c.bf16 %v5510, %v5508
    %v5832 = vpack.c.bf16 %v5515, %v5513
    %v5833 = vpack.c.bf16 %v5520, %v5518
    %v5834 = vpack.c.bf16 %v5525, %v5523
    %v5835 = vpack.c.bf16 %v5530, %v5528
    %v5836 = vpack.c.bf16 %v5535, %v5533
    %v5837 = vpack.c.bf16 %v5540, %v5538
    %v5838 = vpack.c.bf16 %v5545, %v5543
    %v5839 = vpack.c.bf16 %v5550, %v5548
    %v5840 = vpack.c.bf16 %v5555, %v5553
    %v5841 = vpack.c.bf16 %v5560, %v5558
    %v5842 = vpack.c.bf16 %v5565, %v5563
    %v5843 = vpack.c.bf16 %v5570, %v5568
    %v5844 = vpack.c.bf16 %v5575, %v5573
    %v5845 = vpack.c.bf16 %v5580, %v5578
    %v5846 = vpack.c.bf16 %v5585, %v5583
    %v5847 = vpack.c.bf16 %v5590, %v5588
    %v5848 = vpack.c.bf16 %v5595, %v5593
    %v5849 = vpack.c.bf16 %v5600, %v5598
    %v5850 = vpack.c.bf16 %v5605, %v5603
    %v5851 = vpack.c.bf16 %v5610, %v5608
    %v5852 = vpack.c.bf16 %v5615, %v5613
    %v5853 = vpack.c.bf16 %v5620, %v5618
    %v5854 = vpack.c.bf16 %v5625, %v5623
    %v5855 = vpack.c.bf16 %v5630, %v5628
    %v5856 = vpack.c.bf16 %v5635, %v5633
    %v5857 = vpack.c.bf16 %v5640, %v5638
    %v5858 = vpack.c.bf16 %v5645, %v5643
    %v5859 = vpack.c.bf16 %v5650, %v5648
    %v5860 = vpack.c.bf16 %v5655, %v5653
    %v5861 = vpack.c.bf16 %v5660, %v5658
    %v5862 = vpack.c.bf16 %v5665, %v5663
    %v5863 = vpack.c.bf16 %v5670, %v5668
    %v5992 = vunpack.c.l.b16 %v5672
    %v5993 = vunpack.c.h.b16 %v5672
    %v5994 = vunpack.c.l.b16 %v5673
    %v5995 = vunpack.c.h.b16 %v5673
    %v5996 = vunpack.c.l.b16 %v5674
    %v5997 = vunpack.c.h.b16 %v5674
    %v5998 = vunpack.c.l.b16 %v5675
    %v5999 = vunpack.c.h.b16 %v5675
    %v6000 = vunpack.c.l.b16 %v5676
    %v6001 = vunpack.c.h.b16 %v5676
    %v6002 = vunpack.c.l.b16 %v5677
    %v6003 = vunpack.c.h.b16 %v5677
    %v6004 = vunpack.c.l.b16 %v5678
    %v6005 = vunpack.c.h.b16 %v5678
    %v6006 = vunpack.c.l.b16 %v5679
    %v6007 = vunpack.c.h.b16 %v5679
    %v6008 = vunpack.c.l.b16 %v5680
    %v6009 = vunpack.c.h.b16 %v5680
    %v6010 = vunpack.c.l.b16 %v5681
    %v6011 = vunpack.c.h.b16 %v5681
    %v6012 = vunpack.c.l.b16 %v5682
    %v6013 = vunpack.c.h.b16 %v5682
    %v6014 = vunpack.c.l.b16 %v5683
    %v6015 = vunpack.c.h.b16 %v5683
    %v6016 = vunpack.c.l.b16 %v5684
    %v6017 = vunpack.c.h.b16 %v5684
    %v6018 = vunpack.c.l.b16 %v5685
    %v6019 = vunpack.c.h.b16 %v5685
    %v6020 = vunpack.c.l.b16 %v5686
    %v6021 = vunpack.c.h.b16 %v5686
    %v6022 = vunpack.c.l.b16 %v5687
    %v6023 = vunpack.c.h.b16 %v5687
    %v6024 = vunpack.c.l.b16 %v5688
    %v6025 = vunpack.c.h.b16 %v5688
    %v6026 = vunpack.c.l.b16 %v5689
    %v6027 = vunpack.c.h.b16 %v5689
    %v6028 = vunpack.c.l.b16 %v5690
    %v6029 = vunpack.c.h.b16 %v5690
    %v6030 = vunpack.c.l.b16 %v5691
    %v6031 = vunpack.c.h.b16 %v5691
    %v6032 = vunpack.c.l.b16 %v5692
    %v6033 = vunpack.c.h.b16 %v5692
    %v6034 = vunpack.c.l.b16 %v5693
    %v6035 = vunpack.c.h.b16 %v5693
    %v6036 = vunpack.c.l.b16 %v5694
    %v6037 = vunpack.c.h.b16 %v5694
    %v6038 = vunpack.c.l.b16 %v5695
    %v6039 = vunpack.c.h.b16 %v5695
    %v6040 = vunpack.c.l.b16 %v5696
    %v6041 = vunpack.c.h.b16 %v5696
    %v6042 = vunpack.c.l.b16 %v5697
    %v6043 = vunpack.c.h.b16 %v5697
    %v6044 = vunpack.c.l.b16 %v5698
    %v6045 = vunpack.c.h.b16 %v5698
    %v6046 = vunpack.c.l.b16 %v5699
    %v6047 = vunpack.c.h.b16 %v5699
    %v6048 = vunpack.c.l.b16 %v5700
    %v6049 = vunpack.c.h.b16 %v5700
    %v6050 = vunpack.c.l.b16 %v5701
    %v6051 = vunpack.c.h.b16 %v5701
    %v6052 = vunpack.c.l.b16 %v5702
    %v6053 = vunpack.c.h.b16 %v5702
    %v6054 = vunpack.c.l.b16 %v5703
    %v6055 = vunpack.c.h.b16 %v5703
    %v6056 = vunpack.c.l.b16 %v5704
    %v6057 = vunpack.c.h.b16 %v5704
    %v6058 = vunpack.c.l.b16 %v5705
    %v6059 = vunpack.c.h.b16 %v5705
    %v6060 = vunpack.c.l.b16 %v5706
    %v6061 = vunpack.c.h.b16 %v5706
    %v6062 = vunpack.c.l.b16 %v5707
    %v6063 = vunpack.c.h.b16 %v5707
    %v6064 = vunpack.c.l.b16 %v5708
    %v6065 = vunpack.c.h.b16 %v5708
    %v6066 = vunpack.c.l.b16 %v5709
    %v6067 = vunpack.c.h.b16 %v5709
    %v6068 = vunpack.c.l.b16 %v5710
    %v6069 = vunpack.c.h.b16 %v5710
    %v6070 = vunpack.c.l.b16 %v5711
    %v6071 = vunpack.c.h.b16 %v5711
    %v6072 = vunpack.c.l.b16 %v5712
    %v6073 = vunpack.c.h.b16 %v5712
    %v6074 = vunpack.c.l.b16 %v5713
    %v6075 = vunpack.c.h.b16 %v5713
    %v6076 = vunpack.c.l.b16 %v5714
    %v6077 = vunpack.c.h.b16 %v5714
    %v6078 = vunpack.c.l.b16 %v5715
    %v6079 = vunpack.c.h.b16 %v5715
    %v6080 = vunpack.c.l.b16 %v5716
    %v6081 = vunpack.c.h.b16 %v5716
    %v6082 = vunpack.c.l.b16 %v5717
    %v6083 = vunpack.c.h.b16 %v5717
    %v6084 = vunpack.c.l.b16 %v5718
    %v6085 = vunpack.c.h.b16 %v5718
    %v6086 = vunpack.c.l.b16 %v5719
    %v6087 = vunpack.c.h.b16 %v5719
    %v6088 = vunpack.c.l.b16 %v5720
    %v6089 = vunpack.c.h.b16 %v5720
    %v6090 = vunpack.c.l.b16 %v5721
    %v6091 = vunpack.c.h.b16 %v5721
    %v6092 = vunpack.c.l.b16 %v5722
    %v6093 = vunpack.c.h.b16 %v5722
    %v6094 = vunpack.c.l.b16 %v5723
    %v6095 = vunpack.c.h.b16 %v5723
    %v6096 = vunpack.c.l.b16 %v5724
    %v6097 = vunpack.c.h.b16 %v5724
    %v6098 = vunpack.c.l.b16 %v5725
    %v6099 = vunpack.c.h.b16 %v5725
    %v6100 = vunpack.c.l.b16 %v5726
    %v6101 = vunpack.c.h.b16 %v5726
    %v6102 = vunpack.c.l.b16 %v5727
    %v6103 = vunpack.c.h.b16 %v5727
    %v6104 = vunpack.c.l.b16 %v5728
    %v6105 = vunpack.c.h.b16 %v5728
    %v6106 = vunpack.c.l.b16 %v5729
    %v6107 = vunpack.c.h.b16 %v5729
    %v6108 = vunpack.c.l.b16 %v5730
    %v6109 = vunpack.c.h.b16 %v5730
    %v6110 = vunpack.c.l.b16 %v5731
    %v6111 = vunpack.c.h.b16 %v5731
    %v6112 = vunpack.c.l.b16 %v5732
    %v6113 = vunpack.c.h.b16 %v5732
    %v6114 = vunpack.c.l.b16 %v5733
    %v6115 = vunpack.c.h.b16 %v5733
    %v6116 = vunpack.c.l.b16 %v5734
    %v6117 = vunpack.c.h.b16 %v5734
    %v6118 = vunpack.c.l.b16 %v5735
    %v6119 = vunpack.c.h.b16 %v5735
    %v6120 = vunpack.c.l.b16 %v5736
    %v6121 = vunpack.c.h.b16 %v5736
    %v6122 = vunpack.c.l.b16 %v5737
    %v6123 = vunpack.c.h.b16 %v5737
    %v6124 = vunpack.c.l.b16 %v5738
    %v6125 = vunpack.c.h.b16 %v5738
    %v6126 = vunpack.c.l.b16 %v5739
    %v6127 = vunpack.c.h.b16 %v5739
    %v6128 = vunpack.c.l.b16 %v5740
    %v6129 = vunpack.c.h.b16 %v5740
    %v6130 = vunpack.c.l.b16 %v5741
    %v6131 = vunpack.c.h.b16 %v5741
    %v6132 = vunpack.c.l.b16 %v5742
    %v6133 = vunpack.c.h.b16 %v5742
    %v6134 = vunpack.c.l.b16 %v5743
    %v6135 = vunpack.c.h.b16 %v5743
    %v6136 = vunpack.c.l.b16 %v5744
    %v6137 = vunpack.c.h.b16 %v5744
    %v6138 = vunpack.c.l.b16 %v5745
    %v6139 = vunpack.c.h.b16 %v5745
    %v6140 = vunpack.c.l.b16 %v5746
    %v6141 = vunpack.c.h.b16 %v5746
    %v6142 = vunpack.c.l.b16 %v5747
    %v6143 = vunpack.c.h.b16 %v5747
    %v6144 = vunpack.c.l.b16 %v5748
    %v6145 = vunpack.c.h.b16 %v5748
    %v6146 = vunpack.c.l.b16 %v5749
    %v6147 = vunpack.c.h.b16 %v5749
    %v6148 = vunpack.c.l.b16 %v5750
    %v6149 = vunpack.c.h.b16 %v5750
    %v6150 = vunpack.c.l.b16 %v5751
    %v6151 = vunpack.c.h.b16 %v5751
    %v6152 = vunpack.c.l.b16 %v5752
    %v6153 = vunpack.c.h.b16 %v5752
    %v6154 = vunpack.c.l.b16 %v5753
    %v6155 = vunpack.c.h.b16 %v5753
    %v6156 = vunpack.c.l.b16 %v5754
    %v6157 = vunpack.c.h.b16 %v5754
    %v6158 = vunpack.c.l.b16 %v5755
    %v6159 = vunpack.c.h.b16 %v5755
    %v6160 = vunpack.c.l.b16 %v5756
    %v6161 = vunpack.c.h.b16 %v5756
    %v6162 = vunpack.c.l.b16 %v5757
    %v6163 = vunpack.c.h.b16 %v5757
    %v6164 = vunpack.c.l.b16 %v5758
    %v6165 = vunpack.c.h.b16 %v5758
    %v6166 = vunpack.c.l.b16 %v5759
    %v6167 = vunpack.c.h.b16 %v5759
    %v6168 = vunpack.c.l.b16 %v5760
    %v6169 = vunpack.c.h.b16 %v5760
    %v6170 = vunpack.c.l.b16 %v5761
    %v6171 = vunpack.c.h.b16 %v5761
    %v6172 = vunpack.c.l.b16 %v5762
    %v6173 = vunpack.c.h.b16 %v5762
    %v6174 = vunpack.c.l.b16 %v5763
    %v6175 = vunpack.c.h.b16 %v5763
    %v6176 = vunpack.c.l.b16 %v5764
    %v6177 = vunpack.c.h.b16 %v5764
    %v6178 = vunpack.c.l.b16 %v5765
    %v6179 = vunpack.c.h.b16 %v5765
    %v6180 = vunpack.c.l.b16 %v5766
    %v6181 = vunpack.c.h.b16 %v5766
    %v6182 = vunpack.c.l.b16 %v5767
    %v6183 = vunpack.c.h.b16 %v5767
    %v6184 = vunpack.c.l.b16 %v5768
    %v6185 = vunpack.c.h.b16 %v5768
    %v6186 = vunpack.c.l.b16 %v5769
    %v6187 = vunpack.c.h.b16 %v5769
    %v6188 = vunpack.c.l.b16 %v5770
    %v6189 = vunpack.c.h.b16 %v5770
    %v6190 = vunpack.c.l.b16 %v5771
    %v6191 = vunpack.c.h.b16 %v5771
    %v6192 = vunpack.c.l.b16 %v5772
    %v6193 = vunpack.c.h.b16 %v5772
    %v6194 = vunpack.c.l.b16 %v5773
    %v6195 = vunpack.c.h.b16 %v5773
    %v6196 = vunpack.c.l.b16 %v5774
    %v6197 = vunpack.c.h.b16 %v5774
    %v6198 = vunpack.c.l.b16 %v5775
    %v6199 = vunpack.c.h.b16 %v5775
    %v6200 = vunpack.c.l.b16 %v5776
    %v6201 = vunpack.c.h.b16 %v5776
    %v6202 = vunpack.c.l.b16 %v5777
    %v6203 = vunpack.c.h.b16 %v5777
    %v6204 = vunpack.c.l.b16 %v5778
    %v6205 = vunpack.c.h.b16 %v5778
    %v6206 = vunpack.c.l.b16 %v5779
    %v6207 = vunpack.c.h.b16 %v5779
    %v6208 = vunpack.c.l.b16 %v5780
    %v6209 = vunpack.c.h.b16 %v5780
    %v6210 = vunpack.c.l.b16 %v5781
    %v6211 = vunpack.c.h.b16 %v5781
    %v6212 = vunpack.c.l.b16 %v5782
    %v6213 = vunpack.c.h.b16 %v5782
    %v6214 = vunpack.c.l.b16 %v5783
    %v6215 = vunpack.c.h.b16 %v5783
    %v6216 = vunpack.c.l.b16 %v5784
    %v6217 = vunpack.c.h.b16 %v5784
    %v6218 = vunpack.c.l.b16 %v5785
    %v6219 = vunpack.c.h.b16 %v5785
    %v6220 = vunpack.c.l.b16 %v5786
    %v6221 = vunpack.c.h.b16 %v5786
    %v6222 = vunpack.c.l.b16 %v5787
    %v6223 = vunpack.c.h.b16 %v5787
    %v6224 = vunpack.c.l.b16 %v5788
    %v6225 = vunpack.c.h.b16 %v5788
    %v6226 = vunpack.c.l.b16 %v5789
    %v6227 = vunpack.c.h.b16 %v5789
    %v6228 = vunpack.c.l.b16 %v5790
    %v6229 = vunpack.c.h.b16 %v5790
    %v6230 = vunpack.c.l.b16 %v5791
    %v6231 = vunpack.c.h.b16 %v5791
    %v6232 = vunpack.c.l.b16 %v5792
    %v6233 = vunpack.c.h.b16 %v5792
    %v6234 = vunpack.c.l.b16 %v5793
    %v6235 = vunpack.c.h.b16 %v5793
    %v6236 = vunpack.c.l.b16 %v5794
    %v6237 = vunpack.c.h.b16 %v5794
    %v6238 = vunpack.c.l.b16 %v5795
    %v6239 = vunpack.c.h.b16 %v5795
    %v6240 = vunpack.c.l.b16 %v5796
    %v6241 = vunpack.c.h.b16 %v5796
    %v6242 = vunpack.c.l.b16 %v5797
    %v6243 = vunpack.c.h.b16 %v5797
    %v6244 = vunpack.c.l.b16 %v5798
    %v6245 = vunpack.c.h.b16 %v5798
    %v6246 = vunpack.c.l.b16 %v5799
    %v6247 = vunpack.c.h.b16 %v5799
    %v6248 = vpack.c.b16 %v6000, %v5992
    %v6249 = vpack.c.b16 %v6001, %v5993
    %v6250 = vpack.c.b16 %v6002, %v5994
    %v6251 = vpack.c.b16 %v6003, %v5995
    %v6252 = vpack.c.b16 %v6004, %v5996
    %v6253 = vpack.c.b16 %v6005, %v5997
    %v6254 = vpack.c.b16 %v6006, %v5998
    %v6255 = vpack.c.b16 %v6007, %v5999
    %v6256 = vpack.c.b16 %v6016, %v6008
    %v6257 = vpack.c.b16 %v6017, %v6009
    %v6258 = vpack.c.b16 %v6018, %v6010
    %v6259 = vpack.c.b16 %v6019, %v6011
    %v6260 = vpack.c.b16 %v6020, %v6012
    %v6261 = vpack.c.b16 %v6021, %v6013
    %v6262 = vpack.c.b16 %v6022, %v6014
    %v6263 = vpack.c.b16 %v6023, %v6015
    %v6264 = vpack.c.b16 %v6032, %v6024
    %v6265 = vpack.c.b16 %v6033, %v6025
    %v6266 = vpack.c.b16 %v6034, %v6026
    %v6267 = vpack.c.b16 %v6035, %v6027
    %v6268 = vpack.c.b16 %v6036, %v6028
    %v6269 = vpack.c.b16 %v6037, %v6029
    %v6270 = vpack.c.b16 %v6038, %v6030
    %v6271 = vpack.c.b16 %v6039, %v6031
    %v6272 = vpack.c.b16 %v6048, %v6040
    %v6273 = vpack.c.b16 %v6049, %v6041
    %v6274 = vpack.c.b16 %v6050, %v6042
    %v6275 = vpack.c.b16 %v6051, %v6043
    %v6276 = vpack.c.b16 %v6052, %v6044
    %v6277 = vpack.c.b16 %v6053, %v6045
    %v6278 = vpack.c.b16 %v6054, %v6046
    %v6279 = vpack.c.b16 %v6055, %v6047
    %v6280 = vpack.c.b16 %v6064, %v6056
    %v6281 = vpack.c.b16 %v6065, %v6057
    %v6282 = vpack.c.b16 %v6066, %v6058
    %v6283 = vpack.c.b16 %v6067, %v6059
    %v6284 = vpack.c.b16 %v6068, %v6060
    %v6285 = vpack.c.b16 %v6069, %v6061
    %v6286 = vpack.c.b16 %v6070, %v6062
    %v6287 = vpack.c.b16 %v6071, %v6063
    %v6288 = vpack.c.b16 %v6080, %v6072
    %v6289 = vpack.c.b16 %v6081, %v6073
    %v6290 = vpack.c.b16 %v6082, %v6074
    %v6291 = vpack.c.b16 %v6083, %v6075
    %v6292 = vpack.c.b16 %v6084, %v6076
    %v6293 = vpack.c.b16 %v6085, %v6077
    %v6294 = vpack.c.b16 %v6086, %v6078
    %v6295 = vpack.c.b16 %v6087, %v6079
    %v6296 = vpack.c.b16 %v6096, %v6088
    %v6297 = vpack.c.b16 %v6097, %v6089
    %v6298 = vpack.c.b16 %v6098, %v6090
    %v6299 = vpack.c.b16 %v6099, %v6091
    %v6300 = vpack.c.b16 %v6100, %v6092
    %v6301 = vpack.c.b16 %v6101, %v6093
    %v6302 = vpack.c.b16 %v6102, %v6094
    %v6303 = vpack.c.b16 %v6103, %v6095
    %v6304 = vpack.c.b16 %v6112, %v6104
    %v6305 = vpack.c.b16 %v6113, %v6105
    %v6306 = vpack.c.b16 %v6114, %v6106
    %v6307 = vpack.c.b16 %v6115, %v6107
    %v6308 = vpack.c.b16 %v6116, %v6108
    %v6309 = vpack.c.b16 %v6117, %v6109
    %v6310 = vpack.c.b16 %v6118, %v6110
    %v6311 = vpack.c.b16 %v6119, %v6111
    %v6312 = vpack.c.b16 %v6128, %v6120
    %v6313 = vpack.c.b16 %v6129, %v6121
    %v6314 = vpack.c.b16 %v6130, %v6122
    %v6315 = vpack.c.b16 %v6131, %v6123
    %v6316 = vpack.c.b16 %v6132, %v6124
    %v6317 = vpack.c.b16 %v6133, %v6125
    %v6318 = vpack.c.b16 %v6134, %v6126
    %v6319 = vpack.c.b16 %v6135, %v6127
    %v6320 = vpack.c.b16 %v6144, %v6136
    %v6321 = vpack.c.b16 %v6145, %v6137
    %v6322 = vpack.c.b16 %v6146, %v6138
    %v6323 = vpack.c.b16 %v6147, %v6139
    %v6324 = vpack.c.b16 %v6148, %v6140
    %v6325 = vpack.c.b16 %v6149, %v6141
    %v6326 = vpack.c.b16 %v6150, %v6142
    %v6327 = vpack.c.b16 %v6151, %v6143
    %v6328 = vpack.c.b16 %v6160, %v6152
    %v6329 = vpack.c.b16 %v6161, %v6153
    %v6330 = vpack.c.b16 %v6162, %v6154
    %v6331 = vpack.c.b16 %v6163, %v6155
    %v6332 = vpack.c.b16 %v6164, %v6156
    %v6333 = vpack.c.b16 %v6165, %v6157
    %v6334 = vpack.c.b16 %v6166, %v6158
    %v6335 = vpack.c.b16 %v6167, %v6159
    %v6336 = vpack.c.b16 %v6176, %v6168
    %v6337 = vpack.c.b16 %v6177, %v6169
    %v6338 = vpack.c.b16 %v6178, %v6170
    %v6339 = vpack.c.b16 %v6179, %v6171
    %v6340 = vpack.c.b16 %v6180, %v6172
    %v6341 = vpack.c.b16 %v6181, %v6173
    %v6342 = vpack.c.b16 %v6182, %v6174
    %v6343 = vpack.c.b16 %v6183, %v6175
    %v6344 = vpack.c.b16 %v6192, %v6184
    %v6345 = vpack.c.b16 %v6193, %v6185
    %v6346 = vpack.c.b16 %v6194, %v6186
    %v6347 = vpack.c.b16 %v6195, %v6187
    %v6348 = vpack.c.b16 %v6196, %v6188
    %v6349 = vpack.c.b16 %v6197, %v6189
    %v6350 = vpack.c.b16 %v6198, %v6190
    %v6351 = vpack.c.b16 %v6199, %v6191
    %v6352 = vpack.c.b16 %v6208, %v6200
    %v6353 = vpack.c.b16 %v6209, %v6201
    %v6354 = vpack.c.b16 %v6210, %v6202
    %v6355 = vpack.c.b16 %v6211, %v6203
    %v6356 = vpack.c.b16 %v6212, %v6204
    %v6357 = vpack.c.b16 %v6213, %v6205
    %v6358 = vpack.c.b16 %v6214, %v6206
    %v6359 = vpack.c.b16 %v6215, %v6207
    %v6360 = vpack.c.b16 %v6224, %v6216
    %v6361 = vpack.c.b16 %v6225, %v6217
    %v6362 = vpack.c.b16 %v6226, %v6218
    %v6363 = vpack.c.b16 %v6227, %v6219
    %v6364 = vpack.c.b16 %v6228, %v6220
    %v6365 = vpack.c.b16 %v6229, %v6221
    %v6366 = vpack.c.b16 %v6230, %v6222
    %v6367 = vpack.c.b16 %v6231, %v6223
    %v6368 = vpack.c.b16 %v6240, %v6232
    %v6369 = vpack.c.b16 %v6241, %v6233
    %v6370 = vpack.c.b16 %v6242, %v6234
    %v6371 = vpack.c.b16 %v6243, %v6235
    %v6372 = vpack.c.b16 %v6244, %v6236
    %v6373 = vpack.c.b16 %v6245, %v6237
    %v6374 = vpack.c.b16 %v6246, %v6238
    %v6375 = vpack.c.b16 %v6247, %v6239
    %6504 = vmatpush.bf16.msra.mxu0 %v5807
    %6505 = vmatpush.bf16.msra.mxu0 %v5806
    %6506 = vmatpush.bf16.msra.mxu0 %v5805
    %6507 = vmatpush.bf16.msra.mxu0 %v5804
    %6508 = vmatpush.bf16.msra.mxu0 %v5803
    %6509 = vmatpush.bf16.msra.mxu0 %v5802
    %6510 = vmatpush.bf16.msra.mxu0 %v5801
    %6511 = vmatpush.bf16.msra.mxu0 %v5800
    %6512 = vmatmul.bf16.gmra.mxu0 %v6248
    %v6513 = vpop.f32.mrf.mxu0
    %v6514 = vadd.f32 0.0, %v6513
    %v6515 = vpop.f32.mrf.mxu0
    %v6516 = vadd.f32 0.0, %v6515
    %6517 = vmatmul.bf16.gmra.mxu0 %v6256
    %v6518 = vpop.f32.mrf.mxu0
    %v6519 = vadd.f32 0.0, %v6518
    %v6520 = vpop.f32.mrf.mxu0
    %v6521 = vadd.f32 0.0, %v6520
    %6522 = vmatmul.bf16.gmra.mxu0 %v6264
    %v6523 = vpop.f32.mrf.mxu0
    %v6524 = vadd.f32 0.0, %v6523
    %v6525 = vpop.f32.mrf.mxu0
    %v6526 = vadd.f32 0.0, %v6525
    %6527 = vmatmul.bf16.gmra.mxu0 %v6272
    %v6528 = vpop.f32.mrf.mxu0
    %v6529 = vadd.f32 0.0, %v6528
    %v6530 = vpop.f32.mrf.mxu0
    %v6531 = vadd.f32 0.0, %v6530
    %6532 = vmatmul.bf16.gmra.mxu0 %v6280
    %v6533 = vpop.f32.mrf.mxu0
    %v6534 = vadd.f32 0.0, %v6533
    %v6535 = vpop.f32.mrf.mxu0
    %v6536 = vadd.f32 0.0, %v6535
    %6537 = vmatmul.bf16.gmra.mxu0 %v6288
    %v6538 = vpop.f32.mrf.mxu0
    %v6539 = vadd.f32 0.0, %v6538
    %v6540 = vpop.f32.mrf.mxu0
    %v6541 = vadd.f32 0.0, %v6540
    %6542 = vmatmul.bf16.gmra.mxu0 %v6296
    %v6543 = vpop.f32.mrf.mxu0
    %v6544 = vadd.f32 0.0, %v6543
    %v6545 = vpop.f32.mrf.mxu0
    %v6546 = vadd.f32 0.0, %v6545
    %6547 = vmatmul.bf16.gmra.mxu0 %v6304
    %v6548 = vpop.f32.mrf.mxu0
    %v6549 = vadd.f32 0.0, %v6548
    %v6550 = vpop.f32.mrf.mxu0
    %v6551 = vadd.f32 0.0, %v6550
    %6552 = vmatmul.bf16.gmra.mxu0 %v6312
    %v6553 = vpop.f32.mrf.mxu0
    %v6554 = vadd.f32 0.0, %v6553
    %v6555 = vpop.f32.mrf.mxu0
    %v6556 = vadd.f32 0.0, %v6555
    %6557 = vmatmul.bf16.gmra.mxu0 %v6320
    %v6558 = vpop.f32.mrf.mxu0
    %v6559 = vadd.f32 0.0, %v6558
    %v6560 = vpop.f32.mrf.mxu0
    %v6561 = vadd.f32 0.0, %v6560
    %6562 = vmatmul.bf16.gmra.mxu0 %v6328
    %v6563 = vpop.f32.mrf.mxu0
    %v6564 = vadd.f32 0.0, %v6563
    %v6565 = vpop.f32.mrf.mxu0
    %v6566 = vadd.f32 0.0, %v6565
    %6567 = vmatmul.bf16.gmra.mxu0 %v6336
    %v6568 = vpop.f32.mrf.mxu0
    %v6569 = vadd.f32 0.0, %v6568
    %v6570 = vpop.f32.mrf.mxu0
    %v6571 = vadd.f32 0.0, %v6570
    %6572 = vmatmul.bf16.gmra.mxu0 %v6344
    %v6573 = vpop.f32.mrf.mxu0
    %v6574 = vadd.f32 0.0, %v6573
    %v6575 = vpop.f32.mrf.mxu0
    %v6576 = vadd.f32 0.0, %v6575
    %6577 = vmatmul.bf16.gmra.mxu0 %v6352
    %v6578 = vpop.f32.mrf.mxu0
    %v6579 = vadd.f32 0.0, %v6578
    %v6580 = vpop.f32.mrf.mxu0
    %v6581 = vadd.f32 0.0, %v6580
    %6582 = vmatmul.bf16.gmra.mxu0 %v6360
    %v6583 = vpop.f32.mrf.mxu0
    %v6584 = vadd.f32 0.0, %v6583
    %v6585 = vpop.f32.mrf.mxu0
    %v6586 = vadd.f32 0.0, %v6585
    %6587 = vmatmul.bf16.gmra.mxu0 %v6368
    %v6588 = vpop.f32.mrf.mxu0
    %v6589 = vadd.f32 0.0, %v6588
    %v6590 = vpop.f32.mrf.mxu0
    %v6591 = vadd.f32 0.0, %v6590
    %6592 = vdwg.mxu0
    %6593 = vmatpush.bf16.msra.mxu0 %v5815
    %6594 = vmatpush.bf16.msra.mxu0 %v5814
    %6595 = vmatpush.bf16.msra.mxu0 %v5813
    %6596 = vmatpush.bf16.msra.mxu0 %v5812
    %6597 = vmatpush.bf16.msra.mxu0 %v5811
    %6598 = vmatpush.bf16.msra.mxu0 %v5810
    %6599 = vmatpush.bf16.msra.mxu0 %v5809
    %6600 = vmatpush.bf16.msra.mxu0 %v5808
    %6601 = vmatmul.bf16.gmra.mxu0 %v6249
    %v6602 = vpop.f32.mrf.mxu0
    %v6603 = vadd.f32 %v6514, %v6602
    %v6604 = vpop.f32.mrf.mxu0
    %v6605 = vadd.f32 %v6516, %v6604
    %6606 = vmatmul.bf16.gmra.mxu0 %v6257
    %v6607 = vpop.f32.mrf.mxu0
    %v6608 = vadd.f32 %v6519, %v6607
    %v6609 = vpop.f32.mrf.mxu0
    %v6610 = vadd.f32 %v6521, %v6609
    %6611 = vmatmul.bf16.gmra.mxu0 %v6265
    %v6612 = vpop.f32.mrf.mxu0
    %v6613 = vadd.f32 %v6524, %v6612
    %v6614 = vpop.f32.mrf.mxu0
    %v6615 = vadd.f32 %v6526, %v6614
    %6616 = vmatmul.bf16.gmra.mxu0 %v6273
    %v6617 = vpop.f32.mrf.mxu0
    %v6618 = vadd.f32 %v6529, %v6617
    %v6619 = vpop.f32.mrf.mxu0
    %v6620 = vadd.f32 %v6531, %v6619
    %6621 = vmatmul.bf16.gmra.mxu0 %v6281
    %v6622 = vpop.f32.mrf.mxu0
    %v6623 = vadd.f32 %v6534, %v6622
    %v6624 = vpop.f32.mrf.mxu0
    %v6625 = vadd.f32 %v6536, %v6624
    %6626 = vmatmul.bf16.gmra.mxu0 %v6289
    %v6627 = vpop.f32.mrf.mxu0
    %v6628 = vadd.f32 %v6539, %v6627
    %v6629 = vpop.f32.mrf.mxu0
    %v6630 = vadd.f32 %v6541, %v6629
    %6631 = vmatmul.bf16.gmra.mxu0 %v6297
    %v6632 = vpop.f32.mrf.mxu0
    %v6633 = vadd.f32 %v6544, %v6632
    %v6634 = vpop.f32.mrf.mxu0
    %v6635 = vadd.f32 %v6546, %v6634
    %6636 = vmatmul.bf16.gmra.mxu0 %v6305
    %v6637 = vpop.f32.mrf.mxu0
    %v6638 = vadd.f32 %v6549, %v6637
    %v6639 = vpop.f32.mrf.mxu0
    %v6640 = vadd.f32 %v6551, %v6639
    %6641 = vmatmul.bf16.gmra.mxu0 %v6313
    %v6642 = vpop.f32.mrf.mxu0
    %v6643 = vadd.f32 %v6554, %v6642
    %v6644 = vpop.f32.mrf.mxu0
    %v6645 = vadd.f32 %v6556, %v6644
    %6646 = vmatmul.bf16.gmra.mxu0 %v6321
    %v6647 = vpop.f32.mrf.mxu0
    %v6648 = vadd.f32 %v6559, %v6647
    %v6649 = vpop.f32.mrf.mxu0
    %v6650 = vadd.f32 %v6561, %v6649
    %6651 = vmatmul.bf16.gmra.mxu0 %v6329
    %v6652 = vpop.f32.mrf.mxu0
    %v6653 = vadd.f32 %v6564, %v6652
    %v6654 = vpop.f32.mrf.mxu0
    %v6655 = vadd.f32 %v6566, %v6654
    %6656 = vmatmul.bf16.gmra.mxu0 %v6337
    %v6657 = vpop.f32.mrf.mxu0
    %v6658 = vadd.f32 %v6569, %v6657
    %v6659 = vpop.f32.mrf.mxu0
    %v6660 = vadd.f32 %v6571, %v6659
    %6661 = vmatmul.bf16.gmra.mxu0 %v6345
    %v6662 = vpop.f32.mrf.mxu0
    %v6663 = vadd.f32 %v6574, %v6662
    %v6664 = vpop.f32.mrf.mxu0
    %v6665 = vadd.f32 %v6576, %v6664
    %6666 = vmatmul.bf16.gmra.mxu0 %v6353
    %v6667 = vpop.f32.mrf.mxu0
    %v6668 = vadd.f32 %v6579, %v6667
    %v6669 = vpop.f32.mrf.mxu0
    %v6670 = vadd.f32 %v6581, %v6669
    %6671 = vmatmul.bf16.gmra.mxu0 %v6361
    %v6672 = vpop.f32.mrf.mxu0
    %v6673 = vadd.f32 %v6584, %v6672
    %v6674 = vpop.f32.mrf.mxu0
    %v6675 = vadd.f32 %v6586, %v6674
    %6676 = vmatmul.bf16.gmra.mxu0 %v6369
    %v6677 = vpop.f32.mrf.mxu0
    %v6678 = vadd.f32 %v6589, %v6677
    %v6679 = vpop.f32.mrf.mxu0
    %v6680 = vadd.f32 %v6591, %v6679
    %6681 = vdwg.mxu0
    %6682 = vmatpush.bf16.msra.mxu0 %v5823
    %6683 = vmatpush.bf16.msra.mxu0 %v5822
    %6684 = vmatpush.bf16.msra.mxu0 %v5821
    %6685 = vmatpush.bf16.msra.mxu0 %v5820
    %6686 = vmatpush.bf16.msra.mxu0 %v5819
    %6687 = vmatpush.bf16.msra.mxu0 %v5818
    %6688 = vmatpush.bf16.msra.mxu0 %v5817
    %6689 = vmatpush.bf16.msra.mxu0 %v5816
    %6690 = vmatmul.bf16.gmra.mxu0 %v6250
    %v6691 = vpop.f32.mrf.mxu0
    %v6692 = vadd.f32 %v6603, %v6691
    %v6693 = vpop.f32.mrf.mxu0
    %v6694 = vadd.f32 %v6605, %v6693
    %6695 = vmatmul.bf16.gmra.mxu0 %v6258
    %v6696 = vpop.f32.mrf.mxu0
    %v6697 = vadd.f32 %v6608, %v6696
    %v6698 = vpop.f32.mrf.mxu0
    %v6699 = vadd.f32 %v6610, %v6698
    %6700 = vmatmul.bf16.gmra.mxu0 %v6266
    %v6701 = vpop.f32.mrf.mxu0
    %v6702 = vadd.f32 %v6613, %v6701
    %v6703 = vpop.f32.mrf.mxu0
    %v6704 = vadd.f32 %v6615, %v6703
    %6705 = vmatmul.bf16.gmra.mxu0 %v6274
    %v6706 = vpop.f32.mrf.mxu0
    %v6707 = vadd.f32 %v6618, %v6706
    %v6708 = vpop.f32.mrf.mxu0
    %v6709 = vadd.f32 %v6620, %v6708
    %6710 = vmatmul.bf16.gmra.mxu0 %v6282
    %v6711 = vpop.f32.mrf.mxu0
    %v6712 = vadd.f32 %v6623, %v6711
    %v6713 = vpop.f32.mrf.mxu0
    %v6714 = vadd.f32 %v6625, %v6713
    %6715 = vmatmul.bf16.gmra.mxu0 %v6290
    %v6716 = vpop.f32.mrf.mxu0
    %v6717 = vadd.f32 %v6628, %v6716
    %v6718 = vpop.f32.mrf.mxu0
    %v6719 = vadd.f32 %v6630, %v6718
    %6720 = vmatmul.bf16.gmra.mxu0 %v6298
    %v6721 = vpop.f32.mrf.mxu0
    %v6722 = vadd.f32 %v6633, %v6721
    %v6723 = vpop.f32.mrf.mxu0
    %v6724 = vadd.f32 %v6635, %v6723
    %6725 = vmatmul.bf16.gmra.mxu0 %v6306
    %v6726 = vpop.f32.mrf.mxu0
    %v6727 = vadd.f32 %v6638, %v6726
    %v6728 = vpop.f32.mrf.mxu0
    %v6729 = vadd.f32 %v6640, %v6728
    %6730 = vmatmul.bf16.gmra.mxu0 %v6314
    %v6731 = vpop.f32.mrf.mxu0
    %v6732 = vadd.f32 %v6643, %v6731
    %v6733 = vpop.f32.mrf.mxu0
    %v6734 = vadd.f32 %v6645, %v6733
    %6735 = vmatmul.bf16.gmra.mxu0 %v6322
    %v6736 = vpop.f32.mrf.mxu0
    %v6737 = vadd.f32 %v6648, %v6736
    %v6738 = vpop.f32.mrf.mxu0
    %v6739 = vadd.f32 %v6650, %v6738
    %6740 = vmatmul.bf16.gmra.mxu0 %v6330
    %v6741 = vpop.f32.mrf.mxu0
    %v6742 = vadd.f32 %v6653, %v6741
    %v6743 = vpop.f32.mrf.mxu0
    %v6744 = vadd.f32 %v6655, %v6743
    %6745 = vmatmul.bf16.gmra.mxu0 %v6338
    %v6746 = vpop.f32.mrf.mxu0
    %v6747 = vadd.f32 %v6658, %v6746
    %v6748 = vpop.f32.mrf.mxu0
    %v6749 = vadd.f32 %v6660, %v6748
    %6750 = vmatmul.bf16.gmra.mxu0 %v6346
    %v6751 = vpop.f32.mrf.mxu0
    %v6752 = vadd.f32 %v6663, %v6751
    %v6753 = vpop.f32.mrf.mxu0
    %v6754 = vadd.f32 %v6665, %v6753
    %6755 = vmatmul.bf16.gmra.mxu0 %v6354
    %v6756 = vpop.f32.mrf.mxu0
    %v6757 = vadd.f32 %v6668, %v6756
    %v6758 = vpop.f32.mrf.mxu0
    %v6759 = vadd.f32 %v6670, %v6758
    %6760 = vmatmul.bf16.gmra.mxu0 %v6362
    %v6761 = vpop.f32.mrf.mxu0
    %v6762 = vadd.f32 %v6673, %v6761
    %v6763 = vpop.f32.mrf.mxu0
    %v6764 = vadd.f32 %v6675, %v6763
    %6765 = vmatmul.bf16.gmra.mxu0 %v6370
    %v6766 = vpop.f32.mrf.mxu0
    %v6767 = vadd.f32 %v6678, %v6766
    %v6768 = vpop.f32.mrf.mxu0
    %v6769 = vadd.f32 %v6680, %v6768
    %6770 = vdwg.mxu0
    %6771 = vmatpush.bf16.msra.mxu0 %v5831
    %6772 = vmatpush.bf16.msra.mxu0 %v5830
    %6773 = vmatpush.bf16.msra.mxu0 %v5829
    %6774 = vmatpush.bf16.msra.mxu0 %v5828
    %6775 = vmatpush.bf16.msra.mxu0 %v5827
    %6776 = vmatpush.bf16.msra.mxu0 %v5826
    %6777 = vmatpush.bf16.msra.mxu0 %v5825
    %6778 = vmatpush.bf16.msra.mxu0 %v5824
    %6779 = vmatmul.bf16.gmra.mxu0 %v6251
    %v6780 = vpop.f32.mrf.mxu0
    %v6781 = vadd.f32 %v6692, %v6780
    %v6782 = vpop.f32.mrf.mxu0
    %v6783 = vadd.f32 %v6694, %v6782
    %6784 = vmatmul.bf16.gmra.mxu0 %v6259
    %v6785 = vpop.f32.mrf.mxu0
    %v6786 = vadd.f32 %v6697, %v6785
    %v6787 = vpop.f32.mrf.mxu0
    %v6788 = vadd.f32 %v6699, %v6787
    %6789 = vmatmul.bf16.gmra.mxu0 %v6267
    %v6790 = vpop.f32.mrf.mxu0
    %v6791 = vadd.f32 %v6702, %v6790
    %v6792 = vpop.f32.mrf.mxu0
    %v6793 = vadd.f32 %v6704, %v6792
    %6794 = vmatmul.bf16.gmra.mxu0 %v6275
    %v6795 = vpop.f32.mrf.mxu0
    %v6796 = vadd.f32 %v6707, %v6795
    %v6797 = vpop.f32.mrf.mxu0
    %v6798 = vadd.f32 %v6709, %v6797
    %6799 = vmatmul.bf16.gmra.mxu0 %v6283
    %v6800 = vpop.f32.mrf.mxu0
    %v6801 = vadd.f32 %v6712, %v6800
    %v6802 = vpop.f32.mrf.mxu0
    %v6803 = vadd.f32 %v6714, %v6802
    %6804 = vmatmul.bf16.gmra.mxu0 %v6291
    %v6805 = vpop.f32.mrf.mxu0
    %v6806 = vadd.f32 %v6717, %v6805
    %v6807 = vpop.f32.mrf.mxu0
    %v6808 = vadd.f32 %v6719, %v6807
    %6809 = vmatmul.bf16.gmra.mxu0 %v6299
    %v6810 = vpop.f32.mrf.mxu0
    %v6811 = vadd.f32 %v6722, %v6810
    %v6812 = vpop.f32.mrf.mxu0
    %v6813 = vadd.f32 %v6724, %v6812
    %6814 = vmatmul.bf16.gmra.mxu0 %v6307
    %v6815 = vpop.f32.mrf.mxu0
    %v6816 = vadd.f32 %v6727, %v6815
    %v6817 = vpop.f32.mrf.mxu0
    %v6818 = vadd.f32 %v6729, %v6817
    %6819 = vmatmul.bf16.gmra.mxu0 %v6315
    %v6820 = vpop.f32.mrf.mxu0
    %v6821 = vadd.f32 %v6732, %v6820
    %v6822 = vpop.f32.mrf.mxu0
    %v6823 = vadd.f32 %v6734, %v6822
    %6824 = vmatmul.bf16.gmra.mxu0 %v6323
    %v6825 = vpop.f32.mrf.mxu0
    %v6826 = vadd.f32 %v6737, %v6825
    %v6827 = vpop.f32.mrf.mxu0
    %v6828 = vadd.f32 %v6739, %v6827
    %6829 = vmatmul.bf16.gmra.mxu0 %v6331
    %v6830 = vpop.f32.mrf.mxu0
    %v6831 = vadd.f32 %v6742, %v6830
    %v6832 = vpop.f32.mrf.mxu0
    %v6833 = vadd.f32 %v6744, %v6832
    %6834 = vmatmul.bf16.gmra.mxu0 %v6339
    %v6835 = vpop.f32.mrf.mxu0
    %v6836 = vadd.f32 %v6747, %v6835
    %v6837 = vpop.f32.mrf.mxu0
    %v6838 = vadd.f32 %v6749, %v6837
    %6839 = vmatmul.bf16.gmra.mxu0 %v6347
    %v6840 = vpop.f32.mrf.mxu0
    %v6841 = vadd.f32 %v6752, %v6840
    %v6842 = vpop.f32.mrf.mxu0
    %v6843 = vadd.f32 %v6754, %v6842
    %6844 = vmatmul.bf16.gmra.mxu0 %v6355
    %v6845 = vpop.f32.mrf.mxu0
    %v6846 = vadd.f32 %v6757, %v6845
    %v6847 = vpop.f32.mrf.mxu0
    %v6848 = vadd.f32 %v6759, %v6847
    %6849 = vmatmul.bf16.gmra.mxu0 %v6363
    %v6850 = vpop.f32.mrf.mxu0
    %v6851 = vadd.f32 %v6762, %v6850
    %v6852 = vpop.f32.mrf.mxu0
    %v6853 = vadd.f32 %v6764, %v6852
    %6854 = vmatmul.bf16.gmra.mxu0 %v6371
    %v6855 = vpop.f32.mrf.mxu0
    %v6856 = vadd.f32 %v6767, %v6855
    %v6857 = vpop.f32.mrf.mxu0
    %v6858 = vadd.f32 %v6769, %v6857
    %6859 = vdwg.mxu0
    %6860 = vmatpush.bf16.msra.mxu0 %v5839
    %6861 = vmatpush.bf16.msra.mxu0 %v5838
    %6862 = vmatpush.bf16.msra.mxu0 %v5837
    %6863 = vmatpush.bf16.msra.mxu0 %v5836
    %6864 = vmatpush.bf16.msra.mxu0 %v5835
    %6865 = vmatpush.bf16.msra.mxu0 %v5834
    %6866 = vmatpush.bf16.msra.mxu0 %v5833
    %6867 = vmatpush.bf16.msra.mxu0 %v5832
    %6868 = vmatmul.bf16.gmra.mxu0 %v6252
    %v6869 = vpop.f32.mrf.mxu0
    %v6870 = vadd.f32 %v6781, %v6869
    %v6871 = vpop.f32.mrf.mxu0
    %v6872 = vadd.f32 %v6783, %v6871
    %6873 = vmatmul.bf16.gmra.mxu0 %v6260
    %v6874 = vpop.f32.mrf.mxu0
    %v6875 = vadd.f32 %v6786, %v6874
    %v6876 = vpop.f32.mrf.mxu0
    %v6877 = vadd.f32 %v6788, %v6876
    %6878 = vmatmul.bf16.gmra.mxu0 %v6268
    %v6879 = vpop.f32.mrf.mxu0
    %v6880 = vadd.f32 %v6791, %v6879
    %v6881 = vpop.f32.mrf.mxu0
    %v6882 = vadd.f32 %v6793, %v6881
    %6883 = vmatmul.bf16.gmra.mxu0 %v6276
    %v6884 = vpop.f32.mrf.mxu0
    %v6885 = vadd.f32 %v6796, %v6884
    %v6886 = vpop.f32.mrf.mxu0
    %v6887 = vadd.f32 %v6798, %v6886
    %6888 = vmatmul.bf16.gmra.mxu0 %v6284
    %v6889 = vpop.f32.mrf.mxu0
    %v6890 = vadd.f32 %v6801, %v6889
    %v6891 = vpop.f32.mrf.mxu0
    %v6892 = vadd.f32 %v6803, %v6891
    %6893 = vmatmul.bf16.gmra.mxu0 %v6292
    %v6894 = vpop.f32.mrf.mxu0
    %v6895 = vadd.f32 %v6806, %v6894
    %v6896 = vpop.f32.mrf.mxu0
    %v6897 = vadd.f32 %v6808, %v6896
    %6898 = vmatmul.bf16.gmra.mxu0 %v6300
    %v6899 = vpop.f32.mrf.mxu0
    %v6900 = vadd.f32 %v6811, %v6899
    %v6901 = vpop.f32.mrf.mxu0
    %v6902 = vadd.f32 %v6813, %v6901
    %6903 = vmatmul.bf16.gmra.mxu0 %v6308
    %v6904 = vpop.f32.mrf.mxu0
    %v6905 = vadd.f32 %v6816, %v6904
    %v6906 = vpop.f32.mrf.mxu0
    %v6907 = vadd.f32 %v6818, %v6906
    %6908 = vmatmul.bf16.gmra.mxu0 %v6316
    %v6909 = vpop.f32.mrf.mxu0
    %v6910 = vadd.f32 %v6821, %v6909
    %v6911 = vpop.f32.mrf.mxu0
    %v6912 = vadd.f32 %v6823, %v6911
    %6913 = vmatmul.bf16.gmra.mxu0 %v6324
    %v6914 = vpop.f32.mrf.mxu0
    %v6915 = vadd.f32 %v6826, %v6914
    %v6916 = vpop.f32.mrf.mxu0
    %v6917 = vadd.f32 %v6828, %v6916
    %6918 = vmatmul.bf16.gmra.mxu0 %v6332
    %v6919 = vpop.f32.mrf.mxu0
    %v6920 = vadd.f32 %v6831, %v6919
    %v6921 = vpop.f32.mrf.mxu0
    %v6922 = vadd.f32 %v6833, %v6921
    %6923 = vmatmul.bf16.gmra.mxu0 %v6340
    %v6924 = vpop.f32.mrf.mxu0
    %v6925 = vadd.f32 %v6836, %v6924
    %v6926 = vpop.f32.mrf.mxu0
    %v6927 = vadd.f32 %v6838, %v6926
    %6928 = vmatmul.bf16.gmra.mxu0 %v6348
    %v6929 = vpop.f32.mrf.mxu0
    %v6930 = vadd.f32 %v6841, %v6929
    %v6931 = vpop.f32.mrf.mxu0
    %v6932 = vadd.f32 %v6843, %v6931
    %6933 = vmatmul.bf16.gmra.mxu0 %v6356
    %v6934 = vpop.f32.mrf.mxu0
    %v6935 = vadd.f32 %v6846, %v6934
    %v6936 = vpop.f32.mrf.mxu0
    %v6937 = vadd.f32 %v6848, %v6936
    %6938 = vmatmul.bf16.gmra.mxu0 %v6364
    %v6939 = vpop.f32.mrf.mxu0
    %v6940 = vadd.f32 %v6851, %v6939
    %v6941 = vpop.f32.mrf.mxu0
    %v6942 = vadd.f32 %v6853, %v6941
    %6943 = vmatmul.bf16.gmra.mxu0 %v6372
    %v6944 = vpop.f32.mrf.mxu0
    %v6945 = vadd.f32 %v6856, %v6944
    %v6946 = vpop.f32.mrf.mxu0
    %v6947 = vadd.f32 %v6858, %v6946
    %6948 = vdwg.mxu0
    %6949 = vmatpush.bf16.msra.mxu0 %v5847
    %6950 = vmatpush.bf16.msra.mxu0 %v5846
    %6951 = vmatpush.bf16.msra.mxu0 %v5845
    %6952 = vmatpush.bf16.msra.mxu0 %v5844
    %6953 = vmatpush.bf16.msra.mxu0 %v5843
    %6954 = vmatpush.bf16.msra.mxu0 %v5842
    %6955 = vmatpush.bf16.msra.mxu0 %v5841
    %6956 = vmatpush.bf16.msra.mxu0 %v5840
    %6957 = vmatmul.bf16.gmra.mxu0 %v6253
    %v6958 = vpop.f32.mrf.mxu0
    %v6959 = vadd.f32 %v6870, %v6958
    %v6960 = vpop.f32.mrf.mxu0
    %v6961 = vadd.f32 %v6872, %v6960
    %6962 = vmatmul.bf16.gmra.mxu0 %v6261
    %v6963 = vpop.f32.mrf.mxu0
    %v6964 = vadd.f32 %v6875, %v6963
    %v6965 = vpop.f32.mrf.mxu0
    %v6966 = vadd.f32 %v6877, %v6965
    %6967 = vmatmul.bf16.gmra.mxu0 %v6269
    %v6968 = vpop.f32.mrf.mxu0
    %v6969 = vadd.f32 %v6880, %v6968
    %v6970 = vpop.f32.mrf.mxu0
    %v6971 = vadd.f32 %v6882, %v6970
    %6972 = vmatmul.bf16.gmra.mxu0 %v6277
    %v6973 = vpop.f32.mrf.mxu0
    %v6974 = vadd.f32 %v6885, %v6973
    %v6975 = vpop.f32.mrf.mxu0
    %v6976 = vadd.f32 %v6887, %v6975
    %6977 = vmatmul.bf16.gmra.mxu0 %v6285
    %v6978 = vpop.f32.mrf.mxu0
    %v6979 = vadd.f32 %v6890, %v6978
    %v6980 = vpop.f32.mrf.mxu0
    %v6981 = vadd.f32 %v6892, %v6980
    %6982 = vmatmul.bf16.gmra.mxu0 %v6293
    %v6983 = vpop.f32.mrf.mxu0
    %v6984 = vadd.f32 %v6895, %v6983
    %v6985 = vpop.f32.mrf.mxu0
    %v6986 = vadd.f32 %v6897, %v6985
    %6987 = vmatmul.bf16.gmra.mxu0 %v6301
    %v6988 = vpop.f32.mrf.mxu0
    %v6989 = vadd.f32 %v6900, %v6988
    %v6990 = vpop.f32.mrf.mxu0
    %v6991 = vadd.f32 %v6902, %v6990
    %6992 = vmatmul.bf16.gmra.mxu0 %v6309
    %v6993 = vpop.f32.mrf.mxu0
    %v6994 = vadd.f32 %v6905, %v6993
    %v6995 = vpop.f32.mrf.mxu0
    %v6996 = vadd.f32 %v6907, %v6995
    %6997 = vmatmul.bf16.gmra.mxu0 %v6317
    %v6998 = vpop.f32.mrf.mxu0
    %v6999 = vadd.f32 %v6910, %v6998
    %v7000 = vpop.f32.mrf.mxu0
    %v7001 = vadd.f32 %v6912, %v7000
    %7002 = vmatmul.bf16.gmra.mxu0 %v6325
    %v7003 = vpop.f32.mrf.mxu0
    %v7004 = vadd.f32 %v6915, %v7003
    %v7005 = vpop.f32.mrf.mxu0
    %v7006 = vadd.f32 %v6917, %v7005
    %7007 = vmatmul.bf16.gmra.mxu0 %v6333
    %v7008 = vpop.f32.mrf.mxu0
    %v7009 = vadd.f32 %v6920, %v7008
    %v7010 = vpop.f32.mrf.mxu0
    %v7011 = vadd.f32 %v6922, %v7010
    %7012 = vmatmul.bf16.gmra.mxu0 %v6341
    %v7013 = vpop.f32.mrf.mxu0
    %v7014 = vadd.f32 %v6925, %v7013
    %v7015 = vpop.f32.mrf.mxu0
    %v7016 = vadd.f32 %v6927, %v7015
    %7017 = vmatmul.bf16.gmra.mxu0 %v6349
    %v7018 = vpop.f32.mrf.mxu0
    %v7019 = vadd.f32 %v6930, %v7018
    %v7020 = vpop.f32.mrf.mxu0
    %v7021 = vadd.f32 %v6932, %v7020
    %7022 = vmatmul.bf16.gmra.mxu0 %v6357
    %v7023 = vpop.f32.mrf.mxu0
    %v7024 = vadd.f32 %v6935, %v7023
    %v7025 = vpop.f32.mrf.mxu0
    %v7026 = vadd.f32 %v6937, %v7025
    %7027 = vmatmul.bf16.gmra.mxu0 %v6365
    %v7028 = vpop.f32.mrf.mxu0
    %v7029 = vadd.f32 %v6940, %v7028
    %v7030 = vpop.f32.mrf.mxu0
    %v7031 = vadd.f32 %v6942, %v7030
    %7032 = vmatmul.bf16.gmra.mxu0 %v6373
    %v7033 = vpop.f32.mrf.mxu0
    %v7034 = vadd.f32 %v6945, %v7033
    %v7035 = vpop.f32.mrf.mxu0
    %v7036 = vadd.f32 %v6947, %v7035
    %7037 = vdwg.mxu0
    %7038 = vmatpush.bf16.msra.mxu0 %v5855
    %7039 = vmatpush.bf16.msra.mxu0 %v5854
    %7040 = vmatpush.bf16.msra.mxu0 %v5853
    %7041 = vmatpush.bf16.msra.mxu0 %v5852
    %7042 = vmatpush.bf16.msra.mxu0 %v5851
    %7043 = vmatpush.bf16.msra.mxu0 %v5850
    %7044 = vmatpush.bf16.msra.mxu0 %v5849
    %7045 = vmatpush.bf16.msra.mxu0 %v5848
    %7046 = vmatmul.bf16.gmra.mxu0 %v6254
    %v7047 = vpop.f32.mrf.mxu0
    %v7048 = vadd.f32 %v6959, %v7047
    %v7049 = vpop.f32.mrf.mxu0
    %v7050 = vadd.f32 %v6961, %v7049
    %7051 = vmatmul.bf16.gmra.mxu0 %v6262
    %v7052 = vpop.f32.mrf.mxu0
    %v7053 = vadd.f32 %v6964, %v7052
    %v7054 = vpop.f32.mrf.mxu0
    %v7055 = vadd.f32 %v6966, %v7054
    %7056 = vmatmul.bf16.gmra.mxu0 %v6270
    %v7057 = vpop.f32.mrf.mxu0
    %v7058 = vadd.f32 %v6969, %v7057
    %v7059 = vpop.f32.mrf.mxu0
    %v7060 = vadd.f32 %v6971, %v7059
    %7061 = vmatmul.bf16.gmra.mxu0 %v6278
    %v7062 = vpop.f32.mrf.mxu0
    %v7063 = vadd.f32 %v6974, %v7062
    %v7064 = vpop.f32.mrf.mxu0
    %v7065 = vadd.f32 %v6976, %v7064
    %7066 = vmatmul.bf16.gmra.mxu0 %v6286
    %v7067 = vpop.f32.mrf.mxu0
    %v7068 = vadd.f32 %v6979, %v7067
    %v7069 = vpop.f32.mrf.mxu0
    %v7070 = vadd.f32 %v6981, %v7069
    %7071 = vmatmul.bf16.gmra.mxu0 %v6294
    %v7072 = vpop.f32.mrf.mxu0
    %v7073 = vadd.f32 %v6984, %v7072
    %v7074 = vpop.f32.mrf.mxu0
    %v7075 = vadd.f32 %v6986, %v7074
    %7076 = vmatmul.bf16.gmra.mxu0 %v6302
    %v7077 = vpop.f32.mrf.mxu0
    %v7078 = vadd.f32 %v6989, %v7077
    %v7079 = vpop.f32.mrf.mxu0
    %v7080 = vadd.f32 %v6991, %v7079
    %7081 = vmatmul.bf16.gmra.mxu0 %v6310
    %v7082 = vpop.f32.mrf.mxu0
    %v7083 = vadd.f32 %v6994, %v7082
    %v7084 = vpop.f32.mrf.mxu0
    %v7085 = vadd.f32 %v6996, %v7084
    %7086 = vmatmul.bf16.gmra.mxu0 %v6318
    %v7087 = vpop.f32.mrf.mxu0
    %v7088 = vadd.f32 %v6999, %v7087
    %v7089 = vpop.f32.mrf.mxu0
    %v7090 = vadd.f32 %v7001, %v7089
    %7091 = vmatmul.bf16.gmra.mxu0 %v6326
    %v7092 = vpop.f32.mrf.mxu0
    %v7093 = vadd.f32 %v7004, %v7092
    %v7094 = vpop.f32.mrf.mxu0
    %v7095 = vadd.f32 %v7006, %v7094
    %7096 = vmatmul.bf16.gmra.mxu0 %v6334
    %v7097 = vpop.f32.mrf.mxu0
    %v7098 = vadd.f32 %v7009, %v7097
    %v7099 = vpop.f32.mrf.mxu0
    %v7100 = vadd.f32 %v7011, %v7099
    %7101 = vmatmul.bf16.gmra.mxu0 %v6342
    %v7102 = vpop.f32.mrf.mxu0
    %v7103 = vadd.f32 %v7014, %v7102
    %v7104 = vpop.f32.mrf.mxu0
    %v7105 = vadd.f32 %v7016, %v7104
    %7106 = vmatmul.bf16.gmra.mxu0 %v6350
    %v7107 = vpop.f32.mrf.mxu0
    %v7108 = vadd.f32 %v7019, %v7107
    %v7109 = vpop.f32.mrf.mxu0
    %v7110 = vadd.f32 %v7021, %v7109
    %7111 = vmatmul.bf16.gmra.mxu0 %v6358
    %v7112 = vpop.f32.mrf.mxu0
    %v7113 = vadd.f32 %v7024, %v7112
    %v7114 = vpop.f32.mrf.mxu0
    %v7115 = vadd.f32 %v7026, %v7114
    %7116 = vmatmul.bf16.gmra.mxu0 %v6366
    %v7117 = vpop.f32.mrf.mxu0
    %v7118 = vadd.f32 %v7029, %v7117
    %v7119 = vpop.f32.mrf.mxu0
    %v7120 = vadd.f32 %v7031, %v7119
    %7121 = vmatmul.bf16.gmra.mxu0 %v6374
    %v7122 = vpop.f32.mrf.mxu0
    %v7123 = vadd.f32 %v7034, %v7122
    %v7124 = vpop.f32.mrf.mxu0
    %v7125 = vadd.f32 %v7036, %v7124
    %7126 = vdwg.mxu0
    %7127 = vmatpush.bf16.msra.mxu0 %v5863
    %7128 = vmatpush.bf16.msra.mxu0 %v5862
    %7129 = vmatpush.bf16.msra.mxu0 %v5861
    %7130 = vmatpush.bf16.msra.mxu0 %v5860
    %7131 = vmatpush.bf16.msra.mxu0 %v5859
    %7132 = vmatpush.bf16.msra.mxu0 %v5858
    %7133 = vmatpush.bf16.msra.mxu0 %v5857
    %7134 = vmatpush.bf16.msra.mxu0 %v5856
    %7135 = vmatmul.bf16.gmra.mxu0 %v6255
    %v7136 = vpop.f32.mrf.mxu0
    %v7137 = vadd.f32 %v7048, %v7136
    %v7138 = vpop.f32.mrf.mxu0
    %v7139 = vadd.f32 %v7050, %v7138
    %7140 = vmatmul.bf16.gmra.mxu0 %v6263
    %v7141 = vpop.f32.mrf.mxu0
    %v7142 = vadd.f32 %v7053, %v7141
    %v7143 = vpop.f32.mrf.mxu0
    %v7144 = vadd.f32 %v7055, %v7143
    %7145 = vmatmul.bf16.gmra.mxu0 %v6271
    %v7146 = vpop.f32.mrf.mxu0
    %v7147 = vadd.f32 %v7058, %v7146
    %v7148 = vpop.f32.mrf.mxu0
    %v7149 = vadd.f32 %v7060, %v7148
    %7150 = vmatmul.bf16.gmra.mxu0 %v6279
    %v7151 = vpop.f32.mrf.mxu0
    %v7152 = vadd.f32 %v7063, %v7151
    %v7153 = vpop.f32.mrf.mxu0
    %v7154 = vadd.f32 %v7065, %v7153
    %7155 = vmatmul.bf16.gmra.mxu0 %v6287
    %v7156 = vpop.f32.mrf.mxu0
    %v7157 = vadd.f32 %v7068, %v7156
    %v7158 = vpop.f32.mrf.mxu0
    %v7159 = vadd.f32 %v7070, %v7158
    %7160 = vmatmul.bf16.gmra.mxu0 %v6295
    %v7161 = vpop.f32.mrf.mxu0
    %v7162 = vadd.f32 %v7073, %v7161
    %v7163 = vpop.f32.mrf.mxu0
    %v7164 = vadd.f32 %v7075, %v7163
    %7165 = vmatmul.bf16.gmra.mxu0 %v6303
    %v7166 = vpop.f32.mrf.mxu0
    %v7167 = vadd.f32 %v7078, %v7166
    %v7168 = vpop.f32.mrf.mxu0
    %v7169 = vadd.f32 %v7080, %v7168
    %7170 = vmatmul.bf16.gmra.mxu0 %v6311
    %v7171 = vpop.f32.mrf.mxu0
    %v7172 = vadd.f32 %v7083, %v7171
    %v7173 = vpop.f32.mrf.mxu0
    %v7174 = vadd.f32 %v7085, %v7173
    %7175 = vmatmul.bf16.gmra.mxu0 %v6319
    %v7176 = vpop.f32.mrf.mxu0
    %v7177 = vadd.f32 %v7088, %v7176
    %v7178 = vpop.f32.mrf.mxu0
    %v7179 = vadd.f32 %v7090, %v7178
    %7180 = vmatmul.bf16.gmra.mxu0 %v6327
    %v7181 = vpop.f32.mrf.mxu0
    %v7182 = vadd.f32 %v7093, %v7181
    %v7183 = vpop.f32.mrf.mxu0
    %v7184 = vadd.f32 %v7095, %v7183
    %7185 = vmatmul.bf16.gmra.mxu0 %v6335
    %v7186 = vpop.f32.mrf.mxu0
    %v7187 = vadd.f32 %v7098, %v7186
    %v7188 = vpop.f32.mrf.mxu0
    %v7189 = vadd.f32 %v7100, %v7188
    %7190 = vmatmul.bf16.gmra.mxu0 %v6343
    %v7191 = vpop.f32.mrf.mxu0
    %v7192 = vadd.f32 %v7103, %v7191
    %v7193 = vpop.f32.mrf.mxu0
    %v7194 = vadd.f32 %v7105, %v7193
    %7195 = vmatmul.bf16.gmra.mxu0 %v6351
    %v7196 = vpop.f32.mrf.mxu0
    %v7197 = vadd.f32 %v7108, %v7196
    %v7198 = vpop.f32.mrf.mxu0
    %v7199 = vadd.f32 %v7110, %v7198
    %7200 = vmatmul.bf16.gmra.mxu0 %v6359
    %v7201 = vpop.f32.mrf.mxu0
    %v7202 = vadd.f32 %v7113, %v7201
    %v7203 = vpop.f32.mrf.mxu0
    %v7204 = vadd.f32 %v7115, %v7203
    %7205 = vmatmul.bf16.gmra.mxu0 %v6367
    %v7206 = vpop.f32.mrf.mxu0
    %v7207 = vadd.f32 %v7118, %v7206
    %v7208 = vpop.f32.mrf.mxu0
    %v7209 = vadd.f32 %v7120, %v7208
    %7210 = vmatmul.bf16.gmra.mxu0 %v6375
    %v7211 = vpop.f32.mrf.mxu0
    %v7212 = vadd.f32 %v7123, %v7211
    %v7213 = vpop.f32.mrf.mxu0
    %v7214 = vadd.f32 %v7125, %v7213
    %7215 = vdwg.mxu0
    %v7216 = vld [vmem:[%s15] sm:$0xff]
    %v7217 = vld [vmem:[%s15 + $0x8] sm:$0xff]
    %v7218 = vld [vmem:[%s15 + $0x10] sm:$0xff]
    %v7219 = vld [vmem:[%s15 + $0x18] sm:$0xff]
    %v7220 = vld [vmem:[%s15 + $0x20] sm:$0xff]
    %v7221 = vld [vmem:[%s15 + $0x28] sm:$0xff]
    %v7222 = vld [vmem:[%s15 + $0x30] sm:$0xff]
    %v7223 = vld [vmem:[%s15 + $0x38] sm:$0xff]
    %v7224 = vld [vmem:[%s15 + $0x40] sm:$0xff]
    %v7225 = vld [vmem:[%s15 + $0x48] sm:$0xff]
    %v7226 = vld [vmem:[%s15 + $0x50] sm:$0xff]
    %v7227 = vld [vmem:[%s15 + $0x58] sm:$0xff]
    %v7228 = vld [vmem:[%s15 + $0x60] sm:$0xff]
    %v7229 = vld [vmem:[%s15 + $0x68] sm:$0xff]
    %v7230 = vld [vmem:[%s15 + $0x70] sm:$0xff]
    %v7231 = vld [vmem:[%s15 + $0x78] sm:$0xff]
    %v7232 = vld [vmem:[%s15 + $0x80] sm:$0xff]
    %v7233 = vld [vmem:[%s15 + $0x88] sm:$0xff]
    %v7234 = vld [vmem:[%s15 + $0x90] sm:$0xff]
    %v7235 = vld [vmem:[%s15 + $0x98] sm:$0xff]
    %v7236 = vld [vmem:[%s15 + $0xa0] sm:$0xff]
    %v7237 = vld [vmem:[%s15 + $0xa8] sm:$0xff]
    %v7238 = vld [vmem:[%s15 + $0xb0] sm:$0xff]
    %v7239 = vld [vmem:[%s15 + $0xb8] sm:$0xff]
    %v7240 = vld [vmem:[%s15 + $0xc0] sm:$0xff]
    %v7241 = vld [vmem:[%s15 + $0xc8] sm:$0xff]
    %v7242 = vld [vmem:[%s15 + $0xd0] sm:$0xff]
    %v7243 = vld [vmem:[%s15 + $0xd8] sm:$0xff]
    %v7244 = vld [vmem:[%s15 + $0xe0] sm:$0xff]
    %v7245 = vld [vmem:[%s15 + $0xe8] sm:$0xff]
    %v7246 = vld [vmem:[%s15 + $0xf0] sm:$0xff]
    %v7247 = vld [vmem:[%s15 + $0xf8] sm:$0xff]
    %vm7248 = vcmask 15360
    %v7249 = vsel %vm7248, %v7137, 0.0
    %7250 = vadd.xlane.f32.xlu0 %v7249
    %v7251 = vpop.xlane.xlu0 %7250
    %v7252 = vsel %vm7248, %v7139, 0.0
    %7253 = vadd.xlane.f32.xlu0 %v7252
    %v7254 = vpop.xlane.xlu0 %7253
    %v7255 = vsel %vm7248, %v7142, 0.0
    %7256 = vadd.xlane.f32.xlu0 %v7255
    %v7257 = vpop.xlane.xlu0 %7256
    %v7258 = vsel %vm7248, %v7144, 0.0
    %7259 = vadd.xlane.f32.xlu0 %v7258
    %v7260 = vpop.xlane.xlu0 %7259
    %v7261 = vsel %vm7248, %v7147, 0.0
    %7262 = vadd.xlane.f32.xlu0 %v7261
    %v7263 = vpop.xlane.xlu0 %7262
    %v7264 = vsel %vm7248, %v7149, 0.0
    %7265 = vadd.xlane.f32.xlu0 %v7264
    %v7266 = vpop.xlane.xlu0 %7265
    %v7267 = vsel %vm7248, %v7152, 0.0
    %7268 = vadd.xlane.f32.xlu0 %v7267
    %v7269 = vpop.xlane.xlu0 %7268
    %v7270 = vsel %vm7248, %v7154, 0.0
    %7271 = vadd.xlane.f32.xlu0 %v7270
    %v7272 = vpop.xlane.xlu0 %7271
    %v7273 = vsel %vm7248, %v7157, 0.0
    %7274 = vadd.xlane.f32.xlu0 %v7273
    %v7275 = vpop.xlane.xlu0 %7274
    %v7276 = vsel %vm7248, %v7159, 0.0
    %7277 = vadd.xlane.f32.xlu0 %v7276
    %v7278 = vpop.xlane.xlu0 %7277
    %v7279 = vsel %vm7248, %v7162, 0.0
    %7280 = vadd.xlane.f32.xlu0 %v7279
    %v7281 = vpop.xlane.xlu0 %7280
    %v7282 = vsel %vm7248, %v7164, 0.0
    %7283 = vadd.xlane.f32.xlu0 %v7282
    %v7284 = vpop.xlane.xlu0 %7283
    %v7285 = vsel %vm7248, %v7167, 0.0
    %7286 = vadd.xlane.f32.xlu0 %v7285
    %v7287 = vpop.xlane.xlu0 %7286
    %v7288 = vsel %vm7248, %v7169, 0.0
    %7289 = vadd.xlane.f32.xlu0 %v7288
    %v7290 = vpop.xlane.xlu0 %7289
    %v7291 = vsel %vm7248, %v7172, 0.0
    %7292 = vadd.xlane.f32.xlu0 %v7291
    %v7293 = vpop.xlane.xlu0 %7292
    %v7294 = vsel %vm7248, %v7174, 0.0
    %7295 = vadd.xlane.f32.xlu0 %v7294
    %v7296 = vpop.xlane.xlu0 %7295
    %v7297 = vsel %vm7248, %v7177, 0.0
    %7298 = vadd.xlane.f32.xlu0 %v7297
    %v7299 = vpop.xlane.xlu0 %7298
    %v7300 = vsel %vm7248, %v7179, 0.0
    %7301 = vadd.xlane.f32.xlu0 %v7300
    %v7302 = vpop.xlane.xlu0 %7301
    %v7303 = vsel %vm7248, %v7182, 0.0
    %7304 = vadd.xlane.f32.xlu0 %v7303
    %v7305 = vpop.xlane.xlu0 %7304
    %v7306 = vsel %vm7248, %v7184, 0.0
    %7307 = vadd.xlane.f32.xlu0 %v7306
    %v7308 = vpop.xlane.xlu0 %7307
    %v7309 = vsel %vm7248, %v7187, 0.0
    %7310 = vadd.xlane.f32.xlu0 %v7309
    %v7311 = vpop.xlane.xlu0 %7310
    %v7312 = vsel %vm7248, %v7189, 0.0
    %7313 = vadd.xlane.f32.xlu0 %v7312
    %v7314 = vpop.xlane.xlu0 %7313
    %v7315 = vsel %vm7248, %v7192, 0.0
    %7316 = vadd.xlane.f32.xlu0 %v7315
    %v7317 = vpop.xlane.xlu0 %7316
    %v7318 = vsel %vm7248, %v7194, 0.0
    %7319 = vadd.xlane.f32.xlu0 %v7318
    %v7320 = vpop.xlane.xlu0 %7319
    %v7321 = vsel %vm7248, %v7197, 0.0
    %7322 = vadd.xlane.f32.xlu0 %v7321
    %v7323 = vpop.xlane.xlu0 %7322
    %v7324 = vsel %vm7248, %v7199, 0.0
    %7325 = vadd.xlane.f32.xlu0 %v7324
    %v7326 = vpop.xlane.xlu0 %7325
    %v7327 = vsel %vm7248, %v7202, 0.0
    %7328 = vadd.xlane.f32.xlu0 %v7327
    %v7329 = vpop.xlane.xlu0 %7328
    %v7330 = vsel %vm7248, %v7204, 0.0
    %7331 = vadd.xlane.f32.xlu0 %v7330
    %v7332 = vpop.xlane.xlu0 %7331
    %v7333 = vsel %vm7248, %v7207, 0.0
    %7334 = vadd.xlane.f32.xlu0 %v7333
    %v7335 = vpop.xlane.xlu0 %7334
    %v7336 = vsel %vm7248, %v7209, 0.0
    %7337 = vadd.xlane.f32.xlu0 %v7336
    %v7338 = vpop.xlane.xlu0 %7337
    %v7339 = vsel %vm7248, %v7212, 0.0
    %7340 = vadd.xlane.f32.xlu0 %v7339
    %v7341 = vpop.xlane.xlu0 %7340
    %v7342 = vsel %vm7248, %v7214, 0.0
    %7343 = vadd.xlane.f32.xlu0 %v7342
    %v7344 = vpop.xlane.xlu0 %7343
    %v7345 = vrcp.pop 2.0
    %v7346 = vmul.f32 2.0, %v7345
    %v7347 = vsub.f32 1.0, %v7346
    %v7348 = vmul.f32 %v7345, %v7347
    %v7349 = vadd.f32 %v7345, %v7348
    %vm7350 = vweird.f32 %v7345
    %v7351 = vsel %vm7350, %v7345, %v7349
    %v7352 = vmul.f32 %v7251, %v7351
    %v7353 = vmul.f32 %v7254, %v7351
    %v7354 = vmul.f32 %v7257, %v7351
    %v7355 = vmul.f32 %v7260, %v7351
    %v7356 = vmul.f32 %v7263, %v7351
    %v7357 = vmul.f32 %v7266, %v7351
    %v7358 = vmul.f32 %v7269, %v7351
    %v7359 = vmul.f32 %v7272, %v7351
    %v7360 = vmul.f32 %v7275, %v7351
    %v7361 = vmul.f32 %v7278, %v7351
    %v7362 = vmul.f32 %v7281, %v7351
    %v7363 = vmul.f32 %v7284, %v7351
    %v7364 = vmul.f32 %v7287, %v7351
    %v7365 = vmul.f32 %v7290, %v7351
    %v7366 = vmul.f32 %v7293, %v7351
    %v7367 = vmul.f32 %v7296, %v7351
    %v7368 = vmul.f32 %v7299, %v7351
    %v7369 = vmul.f32 %v7302, %v7351
    %v7370 = vmul.f32 %v7305, %v7351
    %v7371 = vmul.f32 %v7308, %v7351
    %v7372 = vmul.f32 %v7311, %v7351
    %v7373 = vmul.f32 %v7314, %v7351
    %v7374 = vmul.f32 %v7317, %v7351
    %v7375 = vmul.f32 %v7320, %v7351
    %v7376 = vmul.f32 %v7323, %v7351
    %v7377 = vmul.f32 %v7326, %v7351
    %v7378 = vmul.f32 %v7329, %v7351
    %v7379 = vmul.f32 %v7332, %v7351
    %v7380 = vmul.f32 %v7335, %v7351
    %v7381 = vmul.f32 %v7338, %v7351
    %v7382 = vmul.f32 %v7341, %v7351
    %v7383 = vmul.f32 %v7344, %v7351
    %v7384 = vsub.f32 %v7137, %v7352
    %v7385 = vsub.f32 %v7139, %v7353
    %v7386 = vsub.f32 %v7142, %v7354
    %v7387 = vsub.f32 %v7144, %v7355
    %v7388 = vsub.f32 %v7147, %v7356
    %v7389 = vsub.f32 %v7149, %v7357
    %v7390 = vsub.f32 %v7152, %v7358
    %v7391 = vsub.f32 %v7154, %v7359
    %v7392 = vsub.f32 %v7157, %v7360
    %v7393 = vsub.f32 %v7159, %v7361
    %v7394 = vsub.f32 %v7162, %v7362
    %v7395 = vsub.f32 %v7164, %v7363
    %v7396 = vsub.f32 %v7167, %v7364
    %v7397 = vsub.f32 %v7169, %v7365
    %v7398 = vsub.f32 %v7172, %v7366
    %v7399 = vsub.f32 %v7174, %v7367
    %v7400 = vsub.f32 %v7177, %v7368
    %v7401 = vsub.f32 %v7179, %v7369
    %v7402 = vsub.f32 %v7182, %v7370
    %v7403 = vsub.f32 %v7184, %v7371
    %v7404 = vsub.f32 %v7187, %v7372
    %v7405 = vsub.f32 %v7189, %v7373
    %v7406 = vsub.f32 %v7192, %v7374
    %v7407 = vsub.f32 %v7194, %v7375
    %v7408 = vsub.f32 %v7197, %v7376
    %v7409 = vsub.f32 %v7199, %v7377
    %v7410 = vsub.f32 %v7202, %v7378
    %v7411 = vsub.f32 %v7204, %v7379
    %v7412 = vsub.f32 %v7207, %v7380
    %v7413 = vsub.f32 %v7209, %v7381
    %v7414 = vsub.f32 %v7212, %v7382
    %v7415 = vsub.f32 %v7214, %v7383
    %v7416 = vmul.f32 %v7384, %v7384
    %v7417 = vmul.f32 %v7385, %v7385
    %v7418 = vmul.f32 %v7386, %v7386
    %v7419 = vmul.f32 %v7387, %v7387
    %v7420 = vmul.f32 %v7388, %v7388
    %v7421 = vmul.f32 %v7389, %v7389
    %v7422 = vmul.f32 %v7390, %v7390
    %v7423 = vmul.f32 %v7391, %v7391
    %v7424 = vmul.f32 %v7392, %v7392
    %v7425 = vmul.f32 %v7393, %v7393
    %v7426 = vmul.f32 %v7394, %v7394
    %v7427 = vmul.f32 %v7395, %v7395
    %v7428 = vmul.f32 %v7396, %v7396
    %v7429 = vmul.f32 %v7397, %v7397
    %v7430 = vmul.f32 %v7398, %v7398
    %v7431 = vmul.f32 %v7399, %v7399
    %v7432 = vmul.f32 %v7400, %v7400
    %v7433 = vmul.f32 %v7401, %v7401
    %v7434 = vmul.f32 %v7402, %v7402
    %v7435 = vmul.f32 %v7403, %v7403
    %v7436 = vmul.f32 %v7404, %v7404
    %v7437 = vmul.f32 %v7405, %v7405
    %v7438 = vmul.f32 %v7406, %v7406
    %v7439 = vmul.f32 %v7407, %v7407
    %v7440 = vmul.f32 %v7408, %v7408
    %v7441 = vmul.f32 %v7409, %v7409
    %v7442 = vmul.f32 %v7410, %v7410
    %v7443 = vmul.f32 %v7411, %v7411
    %v7444 = vmul.f32 %v7412, %v7412
    %v7445 = vmul.f32 %v7413, %v7413
    %v7446 = vmul.f32 %v7414, %v7414
    %v7447 = vmul.f32 %v7415, %v7415
    %v7448 = vsel %vm7248, %v7416, 0.0
    %7449 = vadd.xlane.f32.xlu0 %v7448
    %v7450 = vpop.xlane.xlu0 %7449
    %v7451 = vsel %vm7248, %v7417, 0.0
    %7452 = vadd.xlane.f32.xlu0 %v7451
    %v7453 = vpop.xlane.xlu0 %7452
    %v7454 = vsel %vm7248, %v7418, 0.0
    %7455 = vadd.xlane.f32.xlu0 %v7454
    %v7456 = vpop.xlane.xlu0 %7455
    %v7457 = vsel %vm7248, %v7419, 0.0
    %7458 = vadd.xlane.f32.xlu0 %v7457
    %v7459 = vpop.xlane.xlu0 %7458
    %v7460 = vsel %vm7248, %v7420, 0.0
    %7461 = vadd.xlane.f32.xlu0 %v7460
    %v7462 = vpop.xlane.xlu0 %7461
    %v7463 = vsel %vm7248, %v7421, 0.0
    %7464 = vadd.xlane.f32.xlu0 %v7463
    %v7465 = vpop.xlane.xlu0 %7464
    %v7466 = vsel %vm7248, %v7422, 0.0
    %7467 = vadd.xlane.f32.xlu0 %v7466
    %v7468 = vpop.xlane.xlu0 %7467
    %v7469 = vsel %vm7248, %v7423, 0.0
    %7470 = vadd.xlane.f32.xlu0 %v7469
    %v7471 = vpop.xlane.xlu0 %7470
    %v7472 = vsel %vm7248, %v7424, 0.0
    %7473 = vadd.xlane.f32.xlu0 %v7472
    %v7474 = vpop.xlane.xlu0 %7473
    %v7475 = vsel %vm7248, %v7425, 0.0
    %7476 = vadd.xlane.f32.xlu0 %v7475
    %v7477 = vpop.xlane.xlu0 %7476
    %v7478 = vsel %vm7248, %v7426, 0.0
    %7479 = vadd.xlane.f32.xlu0 %v7478
    %v7480 = vpop.xlane.xlu0 %7479
    %v7481 = vsel %vm7248, %v7427, 0.0
    %7482 = vadd.xlane.f32.xlu0 %v7481
    %v7483 = vpop.xlane.xlu0 %7482
    %v7484 = vsel %vm7248, %v7428, 0.0
    %7485 = vadd.xlane.f32.xlu0 %v7484
    %v7486 = vpop.xlane.xlu0 %7485
    %v7487 = vsel %vm7248, %v7429, 0.0
    %7488 = vadd.xlane.f32.xlu0 %v7487
    %v7489 = vpop.xlane.xlu0 %7488
    %v7490 = vsel %vm7248, %v7430, 0.0
    %7491 = vadd.xlane.f32.xlu0 %v7490
    %v7492 = vpop.xlane.xlu0 %7491
    %v7493 = vsel %vm7248, %v7431, 0.0
    %7494 = vadd.xlane.f32.xlu0 %v7493
    %v7495 = vpop.xlane.xlu0 %7494
    %v7496 = vsel %vm7248, %v7432, 0.0
    %7497 = vadd.xlane.f32.xlu0 %v7496
    %v7498 = vpop.xlane.xlu0 %7497
    %v7499 = vsel %vm7248, %v7433, 0.0
    %7500 = vadd.xlane.f32.xlu0 %v7499
    %v7501 = vpop.xlane.xlu0 %7500
    %v7502 = vsel %vm7248, %v7434, 0.0
    %7503 = vadd.xlane.f32.xlu0 %v7502
    %v7504 = vpop.xlane.xlu0 %7503
    %v7505 = vsel %vm7248, %v7435, 0.0
    %7506 = vadd.xlane.f32.xlu0 %v7505
    %v7507 = vpop.xlane.xlu0 %7506
    %v7508 = vsel %vm7248, %v7436, 0.0
    %7509 = vadd.xlane.f32.xlu0 %v7508
    %v7510 = vpop.xlane.xlu0 %7509
    %v7511 = vsel %vm7248, %v7437, 0.0
    %7512 = vadd.xlane.f32.xlu0 %v7511
    %v7513 = vpop.xlane.xlu0 %7512
    %v7514 = vsel %vm7248, %v7438, 0.0
    %7515 = vadd.xlane.f32.xlu0 %v7514
    %v7516 = vpop.xlane.xlu0 %7515
    %v7517 = vsel %vm7248, %v7439, 0.0
    %7518 = vadd.xlane.f32.xlu0 %v7517
    %v7519 = vpop.xlane.xlu0 %7518
    %v7520 = vsel %vm7248, %v7440, 0.0
    %7521 = vadd.xlane.f32.xlu0 %v7520
    %v7522 = vpop.xlane.xlu0 %7521
    %v7523 = vsel %vm7248, %v7441, 0.0
    %7524 = vadd.xlane.f32.xlu0 %v7523
    %v7525 = vpop.xlane.xlu0 %7524
    %v7526 = vsel %vm7248, %v7442, 0.0
    %7527 = vadd.xlane.f32.xlu0 %v7526
    %v7528 = vpop.xlane.xlu0 %7527
    %v7529 = vsel %vm7248, %v7443, 0.0
    %7530 = vadd.xlane.f32.xlu0 %v7529
    %v7531 = vpop.xlane.xlu0 %7530
    %v7532 = vsel %vm7248, %v7444, 0.0
    %7533 = vadd.xlane.f32.xlu0 %v7532
    %v7534 = vpop.xlane.xlu0 %7533
    %v7535 = vsel %vm7248, %v7445, 0.0
    %7536 = vadd.xlane.f32.xlu0 %v7535
    %v7537 = vpop.xlane.xlu0 %7536
    %v7538 = vsel %vm7248, %v7446, 0.0
    %7539 = vadd.xlane.f32.xlu0 %v7538
    %v7540 = vpop.xlane.xlu0 %7539
    %v7541 = vsel %vm7248, %v7447, 0.0
    %7542 = vadd.xlane.f32.xlu0 %v7541
    %v7543 = vpop.xlane.xlu0 %7542
    %v7544 = vmul.f32 %v7450, %v7351
    %v7545 = vmul.f32 %v7453, %v7351
    %v7546 = vmul.f32 %v7456, %v7351
    %v7547 = vmul.f32 %v7459, %v7351
    %v7548 = vmul.f32 %v7462, %v7351
    %v7549 = vmul.f32 %v7465, %v7351
    %v7550 = vmul.f32 %v7468, %v7351
    %v7551 = vmul.f32 %v7471, %v7351
    %v7552 = vmul.f32 %v7474, %v7351
    %v7553 = vmul.f32 %v7477, %v7351
    %v7554 = vmul.f32 %v7480, %v7351
    %v7555 = vmul.f32 %v7483, %v7351
    %v7556 = vmul.f32 %v7486, %v7351
    %v7557 = vmul.f32 %v7489, %v7351
    %v7558 = vmul.f32 %v7492, %v7351
    %v7559 = vmul.f32 %v7495, %v7351
    %v7560 = vmul.f32 %v7498, %v7351
    %v7561 = vmul.f32 %v7501, %v7351
    %v7562 = vmul.f32 %v7504, %v7351
    %v7563 = vmul.f32 %v7507, %v7351
    %v7564 = vmul.f32 %v7510, %v7351
    %v7565 = vmul.f32 %v7513, %v7351
    %v7566 = vmul.f32 %v7516, %v7351
    %v7567 = vmul.f32 %v7519, %v7351
    %v7568 = vmul.f32 %v7522, %v7351
    %v7569 = vmul.f32 %v7525, %v7351
    %v7570 = vmul.f32 %v7528, %v7351
    %v7571 = vmul.f32 %v7531, %v7351
    %v7572 = vmul.f32 %v7534, %v7351
    %v7573 = vmul.f32 %v7537, %v7351
    %v7574 = vmul.f32 %v7540, %v7351
    %v7575 = vmul.f32 %v7543, %v7351
    %v7576 = vadd.f32 %v7544, 1e-05
    %v7577 = vadd.f32 %v7545, 1e-05
    %v7578 = vadd.f32 %v7546, 1e-05
    %v7579 = vadd.f32 %v7547, 1e-05
    %v7580 = vadd.f32 %v7548, 1e-05
    %v7581 = vadd.f32 %v7549, 1e-05
    %v7582 = vadd.f32 %v7550, 1e-05
    %v7583 = vadd.f32 %v7551, 1e-05
    %v7584 = vadd.f32 %v7552, 1e-05
    %v7585 = vadd.f32 %v7553, 1e-05
    %v7586 = vadd.f32 %v7554, 1e-05
    %v7587 = vadd.f32 %v7555, 1e-05
    %v7588 = vadd.f32 %v7556, 1e-05
    %v7589 = vadd.f32 %v7557, 1e-05
    %v7590 = vadd.f32 %v7558, 1e-05
    %v7591 = vadd.f32 %v7559, 1e-05
    %v7592 = vadd.f32 %v7560, 1e-05
    %v7593 = vadd.f32 %v7561, 1e-05
    %v7594 = vadd.f32 %v7562, 1e-05
    %v7595 = vadd.f32 %v7563, 1e-05
    %v7596 = vadd.f32 %v7564, 1e-05
    %v7597 = vadd.f32 %v7565, 1e-05
    %v7598 = vadd.f32 %v7566, 1e-05
    %v7599 = vadd.f32 %v7567, 1e-05
    %v7600 = vadd.f32 %v7568, 1e-05
    %v7601 = vadd.f32 %v7569, 1e-05
    %v7602 = vadd.f32 %v7570, 1e-05
    %v7603 = vadd.f32 %v7571, 1e-05
    %v7604 = vadd.f32 %v7572, 1e-05
    %v7605 = vadd.f32 %v7573, 1e-05
    %v7606 = vadd.f32 %v7574, 1e-05
    %v7607 = vadd.f32 %v7575, 1e-05
    %v7608 = vrsqrt.pop %v7576
    %v7609 = vmul.f32 %v7608, %v7576
    %v7610 = vmul.f32 %v7609, %v7608
    %v7611 = vmul.f32 0.5, %v7610
    %v7612 = vsub.f32 1.5, %v7611
    %v7613 = vmul.f32 %v7608, %v7612
    %vm7614 = vweird.f32 %v7576
    %vm7615 = vweird.f32 %v7608
    %vm7616 = vmor %vm7614, %vm7615
    %v7617 = vsel %vm7616, %v7608, %v7613
    %v7618 = vrsqrt.pop %v7577
    %v7619 = vmul.f32 %v7618, %v7577
    %v7620 = vmul.f32 %v7619, %v7618
    %v7621 = vmul.f32 0.5, %v7620
    %v7622 = vsub.f32 1.5, %v7621
    %v7623 = vmul.f32 %v7618, %v7622
    %vm7624 = vweird.f32 %v7577
    %vm7625 = vweird.f32 %v7618
    %vm7626 = vmor %vm7624, %vm7625
    %v7627 = vsel %vm7626, %v7618, %v7623
    %v7628 = vrsqrt.pop %v7578
    %v7629 = vmul.f32 %v7628, %v7578
    %v7630 = vmul.f32 %v7629, %v7628
    %v7631 = vmul.f32 0.5, %v7630
    %v7632 = vsub.f32 1.5, %v7631
    %v7633 = vmul.f32 %v7628, %v7632
    %vm7634 = vweird.f32 %v7578
    %vm7635 = vweird.f32 %v7628
    %vm7636 = vmor %vm7634, %vm7635
    %v7637 = vsel %vm7636, %v7628, %v7633
    %v7638 = vrsqrt.pop %v7579
    %v7639 = vmul.f32 %v7638, %v7579
    %v7640 = vmul.f32 %v7639, %v7638
    %v7641 = vmul.f32 0.5, %v7640
    %v7642 = vsub.f32 1.5, %v7641
    %v7643 = vmul.f32 %v7638, %v7642
    %vm7644 = vweird.f32 %v7579
    %vm7645 = vweird.f32 %v7638
    %vm7646 = vmor %vm7644, %vm7645
    %v7647 = vsel %vm7646, %v7638, %v7643
    %v7648 = vrsqrt.pop %v7580
    %v7649 = vmul.f32 %v7648, %v7580
    %v7650 = vmul.f32 %v7649, %v7648
    %v7651 = vmul.f32 0.5, %v7650
    %v7652 = vsub.f32 1.5, %v7651
    %v7653 = vmul.f32 %v7648, %v7652
    %vm7654 = vweird.f32 %v7580
    %vm7655 = vweird.f32 %v7648
    %vm7656 = vmor %vm7654, %vm7655
    %v7657 = vsel %vm7656, %v7648, %v7653
    %v7658 = vrsqrt.pop %v7581
    %v7659 = vmul.f32 %v7658, %v7581
    %v7660 = vmul.f32 %v7659, %v7658
    %v7661 = vmul.f32 0.5, %v7660
    %v7662 = vsub.f32 1.5, %v7661
    %v7663 = vmul.f32 %v7658, %v7662
    %vm7664 = vweird.f32 %v7581
    %vm7665 = vweird.f32 %v7658
    %vm7666 = vmor %vm7664, %vm7665
    %v7667 = vsel %vm7666, %v7658, %v7663
    %v7668 = vrsqrt.pop %v7582
    %v7669 = vmul.f32 %v7668, %v7582
    %v7670 = vmul.f32 %v7669, %v7668
    %v7671 = vmul.f32 0.5, %v7670
    %v7672 = vsub.f32 1.5, %v7671
    %v7673 = vmul.f32 %v7668, %v7672
    %vm7674 = vweird.f32 %v7582
    %vm7675 = vweird.f32 %v7668
    %vm7676 = vmor %vm7674, %vm7675
    %v7677 = vsel %vm7676, %v7668, %v7673
    %v7678 = vrsqrt.pop %v7583
    %v7679 = vmul.f32 %v7678, %v7583
    %v7680 = vmul.f32 %v7679, %v7678
    %v7681 = vmul.f32 0.5, %v7680
    %v7682 = vsub.f32 1.5, %v7681
    %v7683 = vmul.f32 %v7678, %v7682
    %vm7684 = vweird.f32 %v7583
    %vm7685 = vweird.f32 %v7678
    %vm7686 = vmor %vm7684, %vm7685
    %v7687 = vsel %vm7686, %v7678, %v7683
    %v7688 = vrsqrt.pop %v7584
    %v7689 = vmul.f32 %v7688, %v7584
    %v7690 = vmul.f32 %v7689, %v7688
    %v7691 = vmul.f32 0.5, %v7690
    %v7692 = vsub.f32 1.5, %v7691
    %v7693 = vmul.f32 %v7688, %v7692
    %vm7694 = vweird.f32 %v7584
    %vm7695 = vweird.f32 %v7688
    %vm7696 = vmor %vm7694, %vm7695
    %v7697 = vsel %vm7696, %v7688, %v7693
    %v7698 = vrsqrt.pop %v7585
    %v7699 = vmul.f32 %v7698, %v7585
    %v7700 = vmul.f32 %v7699, %v7698
    %v7701 = vmul.f32 0.5, %v7700
    %v7702 = vsub.f32 1.5, %v7701
    %v7703 = vmul.f32 %v7698, %v7702
    %vm7704 = vweird.f32 %v7585
    %vm7705 = vweird.f32 %v7698
    %vm7706 = vmor %vm7704, %vm7705
    %v7707 = vsel %vm7706, %v7698, %v7703
    %v7708 = vrsqrt.pop %v7586
    %v7709 = vmul.f32 %v7708, %v7586
    %v7710 = vmul.f32 %v7709, %v7708
    %v7711 = vmul.f32 0.5, %v7710
    %v7712 = vsub.f32 1.5, %v7711
    %v7713 = vmul.f32 %v7708, %v7712
    %vm7714 = vweird.f32 %v7586
    %vm7715 = vweird.f32 %v7708
    %vm7716 = vmor %vm7714, %vm7715
    %v7717 = vsel %vm7716, %v7708, %v7713
    %v7718 = vrsqrt.pop %v7587
    %v7719 = vmul.f32 %v7718, %v7587
    %v7720 = vmul.f32 %v7719, %v7718
    %v7721 = vmul.f32 0.5, %v7720
    %v7722 = vsub.f32 1.5, %v7721
    %v7723 = vmul.f32 %v7718, %v7722
    %vm7724 = vweird.f32 %v7587
    %vm7725 = vweird.f32 %v7718
    %vm7726 = vmor %vm7724, %vm7725
    %v7727 = vsel %vm7726, %v7718, %v7723
    %v7728 = vrsqrt.pop %v7588
    %v7729 = vmul.f32 %v7728, %v7588
    %v7730 = vmul.f32 %v7729, %v7728
    %v7731 = vmul.f32 0.5, %v7730
    %v7732 = vsub.f32 1.5, %v7731
    %v7733 = vmul.f32 %v7728, %v7732
    %vm7734 = vweird.f32 %v7588
    %vm7735 = vweird.f32 %v7728
    %vm7736 = vmor %vm7734, %vm7735
    %v7737 = vsel %vm7736, %v7728, %v7733
    %v7738 = vrsqrt.pop %v7589
    %v7739 = vmul.f32 %v7738, %v7589
    %v7740 = vmul.f32 %v7739, %v7738
    %v7741 = vmul.f32 0.5, %v7740
    %v7742 = vsub.f32 1.5, %v7741
    %v7743 = vmul.f32 %v7738, %v7742
    %vm7744 = vweird.f32 %v7589
    %vm7745 = vweird.f32 %v7738
    %vm7746 = vmor %vm7744, %vm7745
    %v7747 = vsel %vm7746, %v7738, %v7743
    %v7748 = vrsqrt.pop %v7590
    %v7749 = vmul.f32 %v7748, %v7590
    %v7750 = vmul.f32 %v7749, %v7748
    %v7751 = vmul.f32 0.5, %v7750
    %v7752 = vsub.f32 1.5, %v7751
    %v7753 = vmul.f32 %v7748, %v7752
    %vm7754 = vweird.f32 %v7590
    %vm7755 = vweird.f32 %v7748
    %vm7756 = vmor %vm7754, %vm7755
    %v7757 = vsel %vm7756, %v7748, %v7753
    %v7758 = vrsqrt.pop %v7591
    %v7759 = vmul.f32 %v7758, %v7591
    %v7760 = vmul.f32 %v7759, %v7758
    %v7761 = vmul.f32 0.5, %v7760
    %v7762 = vsub.f32 1.5, %v7761
    %v7763 = vmul.f32 %v7758, %v7762
    %vm7764 = vweird.f32 %v7591
    %vm7765 = vweird.f32 %v7758
    %vm7766 = vmor %vm7764, %vm7765
    %v7767 = vsel %vm7766, %v7758, %v7763
    %v7768 = vrsqrt.pop %v7592
    %v7769 = vmul.f32 %v7768, %v7592
    %v7770 = vmul.f32 %v7769, %v7768
    %v7771 = vmul.f32 0.5, %v7770
    %v7772 = vsub.f32 1.5, %v7771
    %v7773 = vmul.f32 %v7768, %v7772
    %vm7774 = vweird.f32 %v7592
    %vm7775 = vweird.f32 %v7768
    %vm7776 = vmor %vm7774, %vm7775
    %v7777 = vsel %vm7776, %v7768, %v7773
    %v7778 = vrsqrt.pop %v7593
    %v7779 = vmul.f32 %v7778, %v7593
    %v7780 = vmul.f32 %v7779, %v7778
    %v7781 = vmul.f32 0.5, %v7780
    %v7782 = vsub.f32 1.5, %v7781
    %v7783 = vmul.f32 %v7778, %v7782
    %vm7784 = vweird.f32 %v7593
    %vm7785 = vweird.f32 %v7778
    %vm7786 = vmor %vm7784, %vm7785
    %v7787 = vsel %vm7786, %v7778, %v7783
    %v7788 = vrsqrt.pop %v7594
    %v7789 = vmul.f32 %v7788, %v7594
    %v7790 = vmul.f32 %v7789, %v7788
    %v7791 = vmul.f32 0.5, %v7790
    %v7792 = vsub.f32 1.5, %v7791
    %v7793 = vmul.f32 %v7788, %v7792
    %vm7794 = vweird.f32 %v7594
    %vm7795 = vweird.f32 %v7788
    %vm7796 = vmor %vm7794, %vm7795
    %v7797 = vsel %vm7796, %v7788, %v7793
    %v7798 = vrsqrt.pop %v7595
    %v7799 = vmul.f32 %v7798, %v7595
    %v7800 = vmul.f32 %v7799, %v7798
    %v7801 = vmul.f32 0.5, %v7800
    %v7802 = vsub.f32 1.5, %v7801
    %v7803 = vmul.f32 %v7798, %v7802
    %vm7804 = vweird.f32 %v7595
    %vm7805 = vweird.f32 %v7798
    %vm7806 = vmor %vm7804, %vm7805
    %v7807 = vsel %vm7806, %v7798, %v7803
    %v7808 = vrsqrt.pop %v7596
    %v7809 = vmul.f32 %v7808, %v7596
    %v7810 = vmul.f32 %v7809, %v7808
    %v7811 = vmul.f32 0.5, %v7810
    %v7812 = vsub.f32 1.5, %v7811
    %v7813 = vmul.f32 %v7808, %v7812
    %vm7814 = vweird.f32 %v7596
    %vm7815 = vweird.f32 %v7808
    %vm7816 = vmor %vm7814, %vm7815
    %v7817 = vsel %vm7816, %v7808, %v7813
    %v7818 = vrsqrt.pop %v7597
    %v7819 = vmul.f32 %v7818, %v7597
    %v7820 = vmul.f32 %v7819, %v7818
    %v7821 = vmul.f32 0.5, %v7820
    %v7822 = vsub.f32 1.5, %v7821
    %v7823 = vmul.f32 %v7818, %v7822
    %vm7824 = vweird.f32 %v7597
    %vm7825 = vweird.f32 %v7818
    %vm7826 = vmor %vm7824, %vm7825
    %v7827 = vsel %vm7826, %v7818, %v7823
    %v7828 = vrsqrt.pop %v7598
    %v7829 = vmul.f32 %v7828, %v7598
    %v7830 = vmul.f32 %v7829, %v7828
    %v7831 = vmul.f32 0.5, %v7830
    %v7832 = vsub.f32 1.5, %v7831
    %v7833 = vmul.f32 %v7828, %v7832
    %vm7834 = vweird.f32 %v7598
    %vm7835 = vweird.f32 %v7828
    %vm7836 = vmor %vm7834, %vm7835
    %v7837 = vsel %vm7836, %v7828, %v7833
    %v7838 = vrsqrt.pop %v7599
    %v7839 = vmul.f32 %v7838, %v7599
    %v7840 = vmul.f32 %v7839, %v7838
    %v7841 = vmul.f32 0.5, %v7840
    %v7842 = vsub.f32 1.5, %v7841
    %v7843 = vmul.f32 %v7838, %v7842
    %vm7844 = vweird.f32 %v7599
    %vm7845 = vweird.f32 %v7838
    %vm7846 = vmor %vm7844, %vm7845
    %v7847 = vsel %vm7846, %v7838, %v7843
    %v7848 = vrsqrt.pop %v7600
    %v7849 = vmul.f32 %v7848, %v7600
    %v7850 = vmul.f32 %v7849, %v7848
    %v7851 = vmul.f32 0.5, %v7850
    %v7852 = vsub.f32 1.5, %v7851
    %v7853 = vmul.f32 %v7848, %v7852
    %vm7854 = vweird.f32 %v7600
    %vm7855 = vweird.f32 %v7848
    %vm7856 = vmor %vm7854, %vm7855
    %v7857 = vsel %vm7856, %v7848, %v7853
    %v7858 = vrsqrt.pop %v7601
    %v7859 = vmul.f32 %v7858, %v7601
    %v7860 = vmul.f32 %v7859, %v7858
    %v7861 = vmul.f32 0.5, %v7860
    %v7862 = vsub.f32 1.5, %v7861
    %v7863 = vmul.f32 %v7858, %v7862
    %vm7864 = vweird.f32 %v7601
    %vm7865 = vweird.f32 %v7858
    %vm7866 = vmor %vm7864, %vm7865
    %v7867 = vsel %vm7866, %v7858, %v7863
    %v7868 = vrsqrt.pop %v7602
    %v7869 = vmul.f32 %v7868, %v7602
    %v7870 = vmul.f32 %v7869, %v7868
    %v7871 = vmul.f32 0.5, %v7870
    %v7872 = vsub.f32 1.5, %v7871
    %v7873 = vmul.f32 %v7868, %v7872
    %vm7874 = vweird.f32 %v7602
    %vm7875 = vweird.f32 %v7868
    %vm7876 = vmor %vm7874, %vm7875
    %v7877 = vsel %vm7876, %v7868, %v7873
    %v7878 = vrsqrt.pop %v7603
    %v7879 = vmul.f32 %v7878, %v7603
    %v7880 = vmul.f32 %v7879, %v7878
    %v7881 = vmul.f32 0.5, %v7880
    %v7882 = vsub.f32 1.5, %v7881
    %v7883 = vmul.f32 %v7878, %v7882
    %vm7884 = vweird.f32 %v7603
    %vm7885 = vweird.f32 %v7878
    %vm7886 = vmor %vm7884, %vm7885
    %v7887 = vsel %vm7886, %v7878, %v7883
    %v7888 = vrsqrt.pop %v7604
    %v7889 = vmul.f32 %v7888, %v7604
    %v7890 = vmul.f32 %v7889, %v7888
    %v7891 = vmul.f32 0.5, %v7890
    %v7892 = vsub.f32 1.5, %v7891
    %v7893 = vmul.f32 %v7888, %v7892
    %vm7894 = vweird.f32 %v7604
    %vm7895 = vweird.f32 %v7888
    %vm7896 = vmor %vm7894, %vm7895
    %v7897 = vsel %vm7896, %v7888, %v7893
    %v7898 = vrsqrt.pop %v7605
    %v7899 = vmul.f32 %v7898, %v7605
    %v7900 = vmul.f32 %v7899, %v7898
    %v7901 = vmul.f32 0.5, %v7900
    %v7902 = vsub.f32 1.5, %v7901
    %v7903 = vmul.f32 %v7898, %v7902
    %vm7904 = vweird.f32 %v7605
    %vm7905 = vweird.f32 %v7898
    %vm7906 = vmor %vm7904, %vm7905
    %v7907 = vsel %vm7906, %v7898, %v7903
    %v7908 = vrsqrt.pop %v7606
    %v7909 = vmul.f32 %v7908, %v7606
    %v7910 = vmul.f32 %v7909, %v7908
    %v7911 = vmul.f32 0.5, %v7910
    %v7912 = vsub.f32 1.5, %v7911
    %v7913 = vmul.f32 %v7908, %v7912
    %vm7914 = vweird.f32 %v7606
    %vm7915 = vweird.f32 %v7908
    %vm7916 = vmor %vm7914, %vm7915
    %v7917 = vsel %vm7916, %v7908, %v7913
    %v7918 = vrsqrt.pop %v7607
    %v7919 = vmul.f32 %v7918, %v7607
    %v7920 = vmul.f32 %v7919, %v7918
    %v7921 = vmul.f32 0.5, %v7920
    %v7922 = vsub.f32 1.5, %v7921
    %v7923 = vmul.f32 %v7918, %v7922
    %vm7924 = vweird.f32 %v7607
    %vm7925 = vweird.f32 %v7918
    %vm7926 = vmor %vm7924, %vm7925
    %v7927 = vsel %vm7926, %v7918, %v7923
    %v7928 = vmul.f32 %v7384, %v7617
    %v7929 = vmul.f32 %v7385, %v7627
    %v7930 = vmul.f32 %v7386, %v7637
    %v7931 = vmul.f32 %v7387, %v7647
    %v7932 = vmul.f32 %v7388, %v7657
    %v7933 = vmul.f32 %v7389, %v7667
    %v7934 = vmul.f32 %v7390, %v7677
    %v7935 = vmul.f32 %v7391, %v7687
    %v7936 = vmul.f32 %v7392, %v7697
    %v7937 = vmul.f32 %v7393, %v7707
    %v7938 = vmul.f32 %v7394, %v7717
    %v7939 = vmul.f32 %v7395, %v7727
    %v7940 = vmul.f32 %v7396, %v7737
    %v7941 = vmul.f32 %v7397, %v7747
    %v7942 = vmul.f32 %v7398, %v7757
    %v7943 = vmul.f32 %v7399, %v7767
    %v7944 = vmul.f32 %v7400, %v7777
    %v7945 = vmul.f32 %v7401, %v7787
    %v7946 = vmul.f32 %v7402, %v7797
    %v7947 = vmul.f32 %v7403, %v7807
    %v7948 = vmul.f32 %v7404, %v7817
    %v7949 = vmul.f32 %v7405, %v7827
    %v7950 = vmul.f32 %v7406, %v7837
    %v7951 = vmul.f32 %v7407, %v7847
    %v7952 = vmul.f32 %v7408, %v7857
    %v7953 = vmul.f32 %v7409, %v7867
    %v7954 = vmul.f32 %v7410, %v7877
    %v7955 = vmul.f32 %v7411, %v7887
    %v7956 = vmul.f32 %v7412, %v7897
    %v7957 = vmul.f32 %v7413, %v7907
    %v7958 = vmul.f32 %v7414, %v7917
    %v7959 = vmul.f32 %v7415, %v7927
    %7961 = vset.pattern.permute.xlu0 0
    %7962 = vperm.xlu0 %7961, %v7216
    %v7963 = vpop.permute.xlu0 %7962
    %7966 = vset.pattern.permute.xlu0 0
    %7967 = vperm.xlu0 %7966, %v7217
    %v7968 = vpop.permute.xlu0 %7967
    %7971 = vset.pattern.permute.xlu0 0
    %7972 = vperm.xlu0 %7971, %v7218
    %v7973 = vpop.permute.xlu0 %7972
    %7976 = vset.pattern.permute.xlu0 0
    %7977 = vperm.xlu0 %7976, %v7219
    %v7978 = vpop.permute.xlu0 %7977
    %7981 = vset.pattern.permute.xlu0 0
    %7982 = vperm.xlu0 %7981, %v7220
    %v7983 = vpop.permute.xlu0 %7982
    %7986 = vset.pattern.permute.xlu0 0
    %7987 = vperm.xlu0 %7986, %v7221
    %v7988 = vpop.permute.xlu0 %7987
    %7991 = vset.pattern.permute.xlu0 0
    %7992 = vperm.xlu0 %7991, %v7222
    %v7993 = vpop.permute.xlu0 %7992
    %7996 = vset.pattern.permute.xlu0 0
    %7997 = vperm.xlu0 %7996, %v7223
    %v7998 = vpop.permute.xlu0 %7997
    %8001 = vset.pattern.permute.xlu0 0
    %8002 = vperm.xlu0 %8001, %v7224
    %v8003 = vpop.permute.xlu0 %8002
    %8006 = vset.pattern.permute.xlu0 0
    %8007 = vperm.xlu0 %8006, %v7225
    %v8008 = vpop.permute.xlu0 %8007
    %8011 = vset.pattern.permute.xlu0 0
    %8012 = vperm.xlu0 %8011, %v7226
    %v8013 = vpop.permute.xlu0 %8012
    %8016 = vset.pattern.permute.xlu0 0
    %8017 = vperm.xlu0 %8016, %v7227
    %v8018 = vpop.permute.xlu0 %8017
    %8021 = vset.pattern.permute.xlu0 0
    %8022 = vperm.xlu0 %8021, %v7228
    %v8023 = vpop.permute.xlu0 %8022
    %8026 = vset.pattern.permute.xlu0 0
    %8027 = vperm.xlu0 %8026, %v7229
    %v8028 = vpop.permute.xlu0 %8027
    %8031 = vset.pattern.permute.xlu0 0
    %8032 = vperm.xlu0 %8031, %v7230
    %v8033 = vpop.permute.xlu0 %8032
    %8036 = vset.pattern.permute.xlu0 0
    %8037 = vperm.xlu0 %8036, %v7231
    %v8038 = vpop.permute.xlu0 %8037
    %8041 = vset.pattern.permute.xlu0 0
    %8042 = vperm.xlu0 %8041, %v7232
    %v8043 = vpop.permute.xlu0 %8042
    %8046 = vset.pattern.permute.xlu0 0
    %8047 = vperm.xlu0 %8046, %v7233
    %v8048 = vpop.permute.xlu0 %8047
    %8051 = vset.pattern.permute.xlu0 0
    %8052 = vperm.xlu0 %8051, %v7234
    %v8053 = vpop.permute.xlu0 %8052
    %8056 = vset.pattern.permute.xlu0 0
    %8057 = vperm.xlu0 %8056, %v7235
    %v8058 = vpop.permute.xlu0 %8057
    %8061 = vset.pattern.permute.xlu0 0
    %8062 = vperm.xlu0 %8061, %v7236
    %v8063 = vpop.permute.xlu0 %8062
    %8066 = vset.pattern.permute.xlu0 0
    %8067 = vperm.xlu0 %8066, %v7237
    %v8068 = vpop.permute.xlu0 %8067
    %8071 = vset.pattern.permute.xlu0 0
    %8072 = vperm.xlu0 %8071, %v7238
    %v8073 = vpop.permute.xlu0 %8072
    %8076 = vset.pattern.permute.xlu0 0
    %8077 = vperm.xlu0 %8076, %v7239
    %v8078 = vpop.permute.xlu0 %8077
    %8081 = vset.pattern.permute.xlu0 0
    %8082 = vperm.xlu0 %8081, %v7240
    %v8083 = vpop.permute.xlu0 %8082
    %8086 = vset.pattern.permute.xlu0 0
    %8087 = vperm.xlu0 %8086, %v7241
    %v8088 = vpop.permute.xlu0 %8087
    %8091 = vset.pattern.permute.xlu0 0
    %8092 = vperm.xlu0 %8091, %v7242
    %v8093 = vpop.permute.xlu0 %8092
    %8096 = vset.pattern.permute.xlu0 0
    %8097 = vperm.xlu0 %8096, %v7243
    %v8098 = vpop.permute.xlu0 %8097
    %8101 = vset.pattern.permute.xlu0 0
    %8102 = vperm.xlu0 %8101, %v7244
    %v8103 = vpop.permute.xlu0 %8102
    %8106 = vset.pattern.permute.xlu0 0
    %8107 = vperm.xlu0 %8106, %v7245
    %v8108 = vpop.permute.xlu0 %8107
    %8111 = vset.pattern.permute.xlu0 0
    %8112 = vperm.xlu0 %8111, %v7246
    %v8113 = vpop.permute.xlu0 %8112
    %8116 = vset.pattern.permute.xlu0 0
    %8117 = vperm.xlu0 %8116, %v7247
    %v8118 = vpop.permute.xlu0 %8117
    %v8120 = vmul.f32 %v7928, %v7963
    %v8121 = vmul.f32 %v7929, %v7968
    %v8122 = vmul.f32 %v7930, %v7973
    %v8123 = vmul.f32 %v7931, %v7978
    %v8124 = vmul.f32 %v7932, %v7983
    %v8125 = vmul.f32 %v7933, %v7988
    %v8126 = vmul.f32 %v7934, %v7993
    %v8127 = vmul.f32 %v7935, %v7998
    %v8128 = vmul.f32 %v7936, %v8003
    %v8129 = vmul.f32 %v7937, %v8008
    %v8130 = vmul.f32 %v7938, %v8013
    %v8131 = vmul.f32 %v7939, %v8018
    %v8132 = vmul.f32 %v7940, %v8023
    %v8133 = vmul.f32 %v7941, %v8028
    %v8134 = vmul.f32 %v7942, %v8033
    %v8135 = vmul.f32 %v7943, %v8038
    %v8136 = vmul.f32 %v7944, %v8043
    %v8137 = vmul.f32 %v7945, %v8048
    %v8138 = vmul.f32 %v7946, %v8053
    %v8139 = vmul.f32 %v7947, %v8058
    %v8140 = vmul.f32 %v7948, %v8063
    %v8141 = vmul.f32 %v7949, %v8068
    %v8142 = vmul.f32 %v7950, %v8073
    %v8143 = vmul.f32 %v7951, %v8078
    %v8144 = vmul.f32 %v7952, %v8083
    %v8145 = vmul.f32 %v7953, %v8088
    %v8146 = vmul.f32 %v7954, %v8093
    %v8147 = vmul.f32 %v7955, %v8098
    %v8148 = vmul.f32 %v7956, %v8103
    %v8149 = vmul.f32 %v7957, %v8108
    %v8150 = vmul.f32 %v7958, %v8113
    %v8151 = vmul.f32 %v7959, %v8118
    %8152 = vset.pattern.permute.xlu0 1
    %8153 = vperm.xlu0 %8152, %v7216
    %v8154 = vpop.permute.xlu0 %8153
    %8156 = vset.pattern.permute.xlu0 1
    %8157 = vperm.xlu0 %8156, %v7217
    %v8158 = vpop.permute.xlu0 %8157
    %8160 = vset.pattern.permute.xlu0 1
    %8161 = vperm.xlu0 %8160, %v7218
    %v8162 = vpop.permute.xlu0 %8161
    %8164 = vset.pattern.permute.xlu0 1
    %8165 = vperm.xlu0 %8164, %v7219
    %v8166 = vpop.permute.xlu0 %8165
    %8168 = vset.pattern.permute.xlu0 1
    %8169 = vperm.xlu0 %8168, %v7220
    %v8170 = vpop.permute.xlu0 %8169
    %8172 = vset.pattern.permute.xlu0 1
    %8173 = vperm.xlu0 %8172, %v7221
    %v8174 = vpop.permute.xlu0 %8173
    %8176 = vset.pattern.permute.xlu0 1
    %8177 = vperm.xlu0 %8176, %v7222
    %v8178 = vpop.permute.xlu0 %8177
    %8180 = vset.pattern.permute.xlu0 1
    %8181 = vperm.xlu0 %8180, %v7223
    %v8182 = vpop.permute.xlu0 %8181
    %8184 = vset.pattern.permute.xlu0 1
    %8185 = vperm.xlu0 %8184, %v7224
    %v8186 = vpop.permute.xlu0 %8185
    %8188 = vset.pattern.permute.xlu0 1
    %8189 = vperm.xlu0 %8188, %v7225
    %v8190 = vpop.permute.xlu0 %8189
    %8192 = vset.pattern.permute.xlu0 1
    %8193 = vperm.xlu0 %8192, %v7226
    %v8194 = vpop.permute.xlu0 %8193
    %8196 = vset.pattern.permute.xlu0 1
    %8197 = vperm.xlu0 %8196, %v7227
    %v8198 = vpop.permute.xlu0 %8197
    %8200 = vset.pattern.permute.xlu0 1
    %8201 = vperm.xlu0 %8200, %v7228
    %v8202 = vpop.permute.xlu0 %8201
    %8204 = vset.pattern.permute.xlu0 1
    %8205 = vperm.xlu0 %8204, %v7229
    %v8206 = vpop.permute.xlu0 %8205
    %8208 = vset.pattern.permute.xlu0 1
    %8209 = vperm.xlu0 %8208, %v7230
    %v8210 = vpop.permute.xlu0 %8209
    %8212 = vset.pattern.permute.xlu0 1
    %8213 = vperm.xlu0 %8212, %v7231
    %v8214 = vpop.permute.xlu0 %8213
    %8216 = vset.pattern.permute.xlu0 1
    %8217 = vperm.xlu0 %8216, %v7232
    %v8218 = vpop.permute.xlu0 %8217
    %8220 = vset.pattern.permute.xlu0 1
    %8221 = vperm.xlu0 %8220, %v7233
    %v8222 = vpop.permute.xlu0 %8221
    %8224 = vset.pattern.permute.xlu0 1
    %8225 = vperm.xlu0 %8224, %v7234
    %v8226 = vpop.permute.xlu0 %8225
    %8228 = vset.pattern.permute.xlu0 1
    %8229 = vperm.xlu0 %8228, %v7235
    %v8230 = vpop.permute.xlu0 %8229
    %8232 = vset.pattern.permute.xlu0 1
    %8233 = vperm.xlu0 %8232, %v7236
    %v8234 = vpop.permute.xlu0 %8233
    %8236 = vset.pattern.permute.xlu0 1
    %8237 = vperm.xlu0 %8236, %v7237
    %v8238 = vpop.permute.xlu0 %8237
    %8240 = vset.pattern.permute.xlu0 1
    %8241 = vperm.xlu0 %8240, %v7238
    %v8242 = vpop.permute.xlu0 %8241
    %8244 = vset.pattern.permute.xlu0 1
    %8245 = vperm.xlu0 %8244, %v7239
    %v8246 = vpop.permute.xlu0 %8245
    %8248 = vset.pattern.permute.xlu0 1
    %8249 = vperm.xlu0 %8248, %v7240
    %v8250 = vpop.permute.xlu0 %8249
    %8252 = vset.pattern.permute.xlu0 1
    %8253 = vperm.xlu0 %8252, %v7241
    %v8254 = vpop.permute.xlu0 %8253
    %8256 = vset.pattern.permute.xlu0 1
    %8257 = vperm.xlu0 %8256, %v7242
    %v8258 = vpop.permute.xlu0 %8257
    %8260 = vset.pattern.permute.xlu0 1
    %8261 = vperm.xlu0 %8260, %v7243
    %v8262 = vpop.permute.xlu0 %8261
    %8264 = vset.pattern.permute.xlu0 1
    %8265 = vperm.xlu0 %8264, %v7244
    %v8266 = vpop.permute.xlu0 %8265
    %8268 = vset.pattern.permute.xlu0 1
    %8269 = vperm.xlu0 %8268, %v7245
    %v8270 = vpop.permute.xlu0 %8269
    %8272 = vset.pattern.permute.xlu0 1
    %8273 = vperm.xlu0 %8272, %v7246
    %v8274 = vpop.permute.xlu0 %8273
    %8276 = vset.pattern.permute.xlu0 1
    %8277 = vperm.xlu0 %8276, %v7247
    %v8278 = vpop.permute.xlu0 %8277
    %v8280 = vadd.f32 %v8120, %v8154
    %v8281 = vadd.f32 %v8121, %v8158
    %v8282 = vadd.f32 %v8122, %v8162
    %v8283 = vadd.f32 %v8123, %v8166
    %v8284 = vadd.f32 %v8124, %v8170
    %v8285 = vadd.f32 %v8125, %v8174
    %v8286 = vadd.f32 %v8126, %v8178
    %v8287 = vadd.f32 %v8127, %v8182
    %v8288 = vadd.f32 %v8128, %v8186
    %v8289 = vadd.f32 %v8129, %v8190
    %v8290 = vadd.f32 %v8130, %v8194
    %v8291 = vadd.f32 %v8131, %v8198
    %v8292 = vadd.f32 %v8132, %v8202
    %v8293 = vadd.f32 %v8133, %v8206
    %v8294 = vadd.f32 %v8134, %v8210
    %v8295 = vadd.f32 %v8135, %v8214
    %v8296 = vadd.f32 %v8136, %v8218
    %v8297 = vadd.f32 %v8137, %v8222
    %v8298 = vadd.f32 %v8138, %v8226
    %v8299 = vadd.f32 %v8139, %v8230
    %v8300 = vadd.f32 %v8140, %v8234
    %v8301 = vadd.f32 %v8141, %v8238
    %v8302 = vadd.f32 %v8142, %v8242
    %v8303 = vadd.f32 %v8143, %v8246
    %v8304 = vadd.f32 %v8144, %v8250
    %v8305 = vadd.f32 %v8145, %v8254
    %v8306 = vadd.f32 %v8146, %v8258
    %v8307 = vadd.f32 %v8147, %v8262
    %v8308 = vadd.f32 %v8148, %v8266
    %v8309 = vadd.f32 %v8149, %v8270
    %v8310 = vadd.f32 %v8150, %v8274
    %v8311 = vadd.f32 %v8151, %v8278
    %v8312 = vtanh.pop %v8280
    %v8313 = vtanh.pop %v8281
    %v8314 = vtanh.pop %v8282
    %v8315 = vtanh.pop %v8283
    %v8316 = vtanh.pop %v8284
    %v8317 = vtanh.pop %v8285
    %v8318 = vtanh.pop %v8286
    %v8319 = vtanh.pop %v8287
    %v8320 = vtanh.pop %v8288
    %v8321 = vtanh.pop %v8289
    %v8322 = vtanh.pop %v8290
    %v8323 = vtanh.pop %v8291
    %v8324 = vtanh.pop %v8292
    %v8325 = vtanh.pop %v8293
    %v8326 = vtanh.pop %v8294
    %v8327 = vtanh.pop %v8295
    %v8328 = vtanh.pop %v8296
    %v8329 = vtanh.pop %v8297
    %v8330 = vtanh.pop %v8298
    %v8331 = vtanh.pop %v8299
    %v8332 = vtanh.pop %v8300
    %v8333 = vtanh.pop %v8301
    %v8334 = vtanh.pop %v8302
    %v8335 = vtanh.pop %v8303
    %v8336 = vtanh.pop %v8304
    %v8337 = vtanh.pop %v8305
    %v8338 = vtanh.pop %v8306
    %v8339 = vtanh.pop %v8307
    %v8340 = vtanh.pop %v8308
    %v8341 = vtanh.pop %v8309
    %v8342 = vtanh.pop %v8310
    %v8343 = vtanh.pop %v8311
    %v8344 = vld [vmem:[%s16] sm:$0xff]
    %v8345 = vld [vmem:[%s16 + $0x8] sm:$0xff]
    %v8346 = vld [vmem:[%s16 + $0x10] sm:$0xff]
    %v8347 = vld [vmem:[%s16 + $0x18] sm:$0xff]
    %v8348 = vld [vmem:[%s16 + $0x20] sm:$0xff]
    %v8349 = vld [vmem:[%s16 + $0x28] sm:$0xff]
    %v8350 = vld [vmem:[%s16 + $0x30] sm:$0xff]
    %v8351 = vld [vmem:[%s16 + $0x38] sm:$0xff]
    %v8352 = vld [vmem:[%s16 + $0x40] sm:$0xff]
    %v8353 = vld [vmem:[%s16 + $0x48] sm:$0xff]
    %v8354 = vld [vmem:[%s16 + $0x50] sm:$0xff]
    %v8355 = vld [vmem:[%s16 + $0x58] sm:$0xff]
    %v8356 = vld [vmem:[%s16 + $0x60] sm:$0xff]
    %v8357 = vld [vmem:[%s16 + $0x68] sm:$0xff]
    %v8358 = vld [vmem:[%s16 + $0x70] sm:$0xff]
    %v8359 = vld [vmem:[%s16 + $0x78] sm:$0xff]
    %v8360 = vpack.c.bf16 %v8313, %v8312
    %v8361 = vpack.c.bf16 %v8315, %v8314
    %v8362 = vpack.c.bf16 %v8317, %v8316
    %v8363 = vpack.c.bf16 %v8319, %v8318
    %v8364 = vpack.c.bf16 %v8321, %v8320
    %v8365 = vpack.c.bf16 %v8323, %v8322
    %v8366 = vpack.c.bf16 %v8325, %v8324
    %v8367 = vpack.c.bf16 %v8327, %v8326
    %v8368 = vpack.c.bf16 %v8329, %v8328
    %v8369 = vpack.c.bf16 %v8331, %v8330
    %v8370 = vpack.c.bf16 %v8333, %v8332
    %v8371 = vpack.c.bf16 %v8335, %v8334
    %v8372 = vpack.c.bf16 %v8337, %v8336
    %v8373 = vpack.c.bf16 %v8339, %v8338
    %v8374 = vpack.c.bf16 %v8341, %v8340
    %v8375 = vpack.c.bf16 %v8343, %v8342
    %v8376 = vld [vmem:[%s17] sm:$0xff]
    %v8377 = vld [vmem:[%s17 + $0x8] sm:$0xff]
    %v8378 = vld [vmem:[%s17 + $0x10] sm:$0xff]
    %v8379 = vld [vmem:[%s17 + $0x18] sm:$0xff]
    %v8380 = vld [vmem:[%s17 + $0x20] sm:$0xff]
    %v8381 = vld [vmem:[%s17 + $0x28] sm:$0xff]
    %v8382 = vld [vmem:[%s17 + $0x30] sm:$0xff]
    %v8383 = vld [vmem:[%s17 + $0x38] sm:$0xff]
    %v8384 = vld [vmem:[%s17 + $0x40] sm:$0xff]
    %v8385 = vld [vmem:[%s17 + $0x48] sm:$0xff]
    %v8386 = vld [vmem:[%s17 + $0x50] sm:$0xff]
    %v8387 = vld [vmem:[%s17 + $0x58] sm:$0xff]
    %v8388 = vld [vmem:[%s17 + $0x60] sm:$0xff]
    %v8389 = vld [vmem:[%s17 + $0x68] sm:$0xff]
    %v8390 = vld [vmem:[%s17 + $0x70] sm:$0xff]
    %v8391 = vld [vmem:[%s17 + $0x78] sm:$0xff]
    %8393 = vset.pattern.permute.xlu0 0
    %8394 = vperm.xlu0 %8393, %v8376
    %v8395 = vpop.permute.xlu0 %8394
    %8398 = vset.pattern.permute.xlu0 0
    %8399 = vperm.xlu0 %8398, %v8377
    %v8400 = vpop.permute.xlu0 %8399
    %8403 = vset.pattern.permute.xlu0 0
    %8404 = vperm.xlu0 %8403, %v8378
    %v8405 = vpop.permute.xlu0 %8404
    %8408 = vset.pattern.permute.xlu0 0
    %8409 = vperm.xlu0 %8408, %v8379
    %v8410 = vpop.permute.xlu0 %8409
    %8413 = vset.pattern.permute.xlu0 0
    %8414 = vperm.xlu0 %8413, %v8380
    %v8415 = vpop.permute.xlu0 %8414
    %8418 = vset.pattern.permute.xlu0 0
    %8419 = vperm.xlu0 %8418, %v8381
    %v8420 = vpop.permute.xlu0 %8419
    %8423 = vset.pattern.permute.xlu0 0
    %8424 = vperm.xlu0 %8423, %v8382
    %v8425 = vpop.permute.xlu0 %8424
    %8428 = vset.pattern.permute.xlu0 0
    %8429 = vperm.xlu0 %8428, %v8383
    %v8430 = vpop.permute.xlu0 %8429
    %8433 = vset.pattern.permute.xlu0 0
    %8434 = vperm.xlu0 %8433, %v8384
    %v8435 = vpop.permute.xlu0 %8434
    %8438 = vset.pattern.permute.xlu0 0
    %8439 = vperm.xlu0 %8438, %v8385
    %v8440 = vpop.permute.xlu0 %8439
    %8443 = vset.pattern.permute.xlu0 0
    %8444 = vperm.xlu0 %8443, %v8386
    %v8445 = vpop.permute.xlu0 %8444
    %8448 = vset.pattern.permute.xlu0 0
    %8449 = vperm.xlu0 %8448, %v8387
    %v8450 = vpop.permute.xlu0 %8449
    %8453 = vset.pattern.permute.xlu0 0
    %8454 = vperm.xlu0 %8453, %v8388
    %v8455 = vpop.permute.xlu0 %8454
    %8458 = vset.pattern.permute.xlu0 0
    %8459 = vperm.xlu0 %8458, %v8389
    %v8460 = vpop.permute.xlu0 %8459
    %8463 = vset.pattern.permute.xlu0 0
    %8464 = vperm.xlu0 %8463, %v8390
    %v8465 = vpop.permute.xlu0 %8464
    %8468 = vset.pattern.permute.xlu0 0
    %8469 = vperm.xlu0 %8468, %v8391
    %v8470 = vpop.permute.xlu0 %8469
    %v8488 = vunpack.c.l.b16 %v8344
    %v8489 = vunpack.c.h.b16 %v8344
    %v8490 = vunpack.c.l.b16 %v8345
    %v8491 = vunpack.c.h.b16 %v8345
    %v8492 = vunpack.c.l.b16 %v8346
    %v8493 = vunpack.c.h.b16 %v8346
    %v8494 = vunpack.c.l.b16 %v8347
    %v8495 = vunpack.c.h.b16 %v8347
    %v8496 = vunpack.c.l.b16 %v8348
    %v8497 = vunpack.c.h.b16 %v8348
    %v8498 = vunpack.c.l.b16 %v8349
    %v8499 = vunpack.c.h.b16 %v8349
    %v8500 = vunpack.c.l.b16 %v8350
    %v8501 = vunpack.c.h.b16 %v8350
    %v8502 = vunpack.c.l.b16 %v8351
    %v8503 = vunpack.c.h.b16 %v8351
    %v8504 = vunpack.c.l.b16 %v8352
    %v8505 = vunpack.c.h.b16 %v8352
    %v8506 = vunpack.c.l.b16 %v8353
    %v8507 = vunpack.c.h.b16 %v8353
    %v8508 = vunpack.c.l.b16 %v8354
    %v8509 = vunpack.c.h.b16 %v8354
    %v8510 = vunpack.c.l.b16 %v8355
    %v8511 = vunpack.c.h.b16 %v8355
    %v8512 = vunpack.c.l.b16 %v8356
    %v8513 = vunpack.c.h.b16 %v8356
    %v8514 = vunpack.c.l.b16 %v8357
    %v8515 = vunpack.c.h.b16 %v8357
    %v8516 = vunpack.c.l.b16 %v8358
    %v8517 = vunpack.c.h.b16 %v8358
    %v8518 = vunpack.c.l.b16 %v8359
    %v8519 = vunpack.c.h.b16 %v8359
    %v8520 = vpack.c.b16 %v8490, %v8488
    %v8521 = vpack.c.b16 %v8491, %v8489
    %v8522 = vpack.c.b16 %v8494, %v8492
    %v8523 = vpack.c.b16 %v8495, %v8493
    %v8524 = vpack.c.b16 %v8498, %v8496
    %v8525 = vpack.c.b16 %v8499, %v8497
    %v8526 = vpack.c.b16 %v8502, %v8500
    %v8527 = vpack.c.b16 %v8503, %v8501
    %v8528 = vpack.c.b16 %v8506, %v8504
    %v8529 = vpack.c.b16 %v8507, %v8505
    %v8530 = vpack.c.b16 %v8510, %v8508
    %v8531 = vpack.c.b16 %v8511, %v8509
    %v8532 = vpack.c.b16 %v8514, %v8512
    %v8533 = vpack.c.b16 %v8515, %v8513
    %v8534 = vpack.c.b16 %v8518, %v8516
    %v8535 = vpack.c.b16 %v8519, %v8517
    %8552 = vmatpush.bf16.msra.mxu0 %v8367
    %8553 = vmatpush.bf16.msra.mxu0 %v8366
    %8554 = vmatpush.bf16.msra.mxu0 %v8365
    %8555 = vmatpush.bf16.msra.mxu0 %v8364
    %8556 = vmatpush.bf16.msra.mxu0 %v8363
    %8557 = vmatpush.bf16.msra.mxu0 %v8362
    %8558 = vmatpush.bf16.msra.mxu0 %v8361
    %8559 = vmatpush.bf16.msra.mxu0 %v8360
    %8560 = vmatmul.bf16.gmra.mxu0 %v8520
    %v8561 = vpop.f32.mrf.mxu0
    %v8562 = vadd.f32 %v8395, %v8561
    %v8563 = vpop.f32.mrf.mxu0
    %v8564 = vadd.f32 %v8400, %v8563
    %8565 = vmatmul.bf16.gmra.mxu0 %v8522
    %v8566 = vpop.f32.mrf.mxu0
    %v8567 = vadd.f32 %v8405, %v8566
    %v8568 = vpop.f32.mrf.mxu0
    %v8569 = vadd.f32 %v8410, %v8568
    %8570 = vmatmul.bf16.gmra.mxu0 %v8524
    %v8571 = vpop.f32.mrf.mxu0
    %v8572 = vadd.f32 %v8415, %v8571
    %v8573 = vpop.f32.mrf.mxu0
    %v8574 = vadd.f32 %v8420, %v8573
    %8575 = vmatmul.bf16.gmra.mxu0 %v8526
    %v8576 = vpop.f32.mrf.mxu0
    %v8577 = vadd.f32 %v8425, %v8576
    %v8578 = vpop.f32.mrf.mxu0
    %v8579 = vadd.f32 %v8430, %v8578
    %8580 = vmatmul.bf16.gmra.mxu0 %v8528
    %v8581 = vpop.f32.mrf.mxu0
    %v8582 = vadd.f32 %v8435, %v8581
    %v8583 = vpop.f32.mrf.mxu0
    %v8584 = vadd.f32 %v8440, %v8583
    %8585 = vmatmul.bf16.gmra.mxu0 %v8530
    %v8586 = vpop.f32.mrf.mxu0
    %v8587 = vadd.f32 %v8445, %v8586
    %v8588 = vpop.f32.mrf.mxu0
    %v8589 = vadd.f32 %v8450, %v8588
    %8590 = vmatmul.bf16.gmra.mxu0 %v8532
    %v8591 = vpop.f32.mrf.mxu0
    %v8592 = vadd.f32 %v8455, %v8591
    %v8593 = vpop.f32.mrf.mxu0
    %v8594 = vadd.f32 %v8460, %v8593
    %8595 = vmatmul.bf16.gmra.mxu0 %v8534
    %v8596 = vpop.f32.mrf.mxu0
    %v8597 = vadd.f32 %v8465, %v8596
    %v8598 = vpop.f32.mrf.mxu0
    %v8599 = vadd.f32 %v8470, %v8598
    %8600 = vdwg.mxu0
    %8601 = vmatpush.bf16.msra.mxu0 %v8375
    %8602 = vmatpush.bf16.msra.mxu0 %v8374
    %8603 = vmatpush.bf16.msra.mxu0 %v8373
    %8604 = vmatpush.bf16.msra.mxu0 %v8372
    %8605 = vmatpush.bf16.msra.mxu0 %v8371
    %8606 = vmatpush.bf16.msra.mxu0 %v8370
    %8607 = vmatpush.bf16.msra.mxu0 %v8369
    %8608 = vmatpush.bf16.msra.mxu0 %v8368
    %8609 = vmatmul.bf16.gmra.mxu0 %v8521
    %v8610 = vpop.f32.mrf.mxu0
    %v8611 = vadd.f32 %v8562, %v8610
    %v8612 = vpop.f32.mrf.mxu0
    %v8613 = vadd.f32 %v8564, %v8612
    %8614 = vmatmul.bf16.gmra.mxu0 %v8523
    %v8615 = vpop.f32.mrf.mxu0
    %v8616 = vadd.f32 %v8567, %v8615
    %v8617 = vpop.f32.mrf.mxu0
    %v8618 = vadd.f32 %v8569, %v8617
    %8619 = vmatmul.bf16.gmra.mxu0 %v8525
    %v8620 = vpop.f32.mrf.mxu0
    %v8621 = vadd.f32 %v8572, %v8620
    %v8622 = vpop.f32.mrf.mxu0
    %v8623 = vadd.f32 %v8574, %v8622
    %8624 = vmatmul.bf16.gmra.mxu0 %v8527
    %v8625 = vpop.f32.mrf.mxu0
    %v8626 = vadd.f32 %v8577, %v8625
    %v8627 = vpop.f32.mrf.mxu0
    %v8628 = vadd.f32 %v8579, %v8627
    %8629 = vmatmul.bf16.gmra.mxu0 %v8529
    %v8630 = vpop.f32.mrf.mxu0
    %v8631 = vadd.f32 %v8582, %v8630
    %v8632 = vpop.f32.mrf.mxu0
    %v8633 = vadd.f32 %v8584, %v8632
    %8634 = vmatmul.bf16.gmra.mxu0 %v8531
    %v8635 = vpop.f32.mrf.mxu0
    %v8636 = vadd.f32 %v8587, %v8635
    %v8637 = vpop.f32.mrf.mxu0
    %v8638 = vadd.f32 %v8589, %v8637
    %8639 = vmatmul.bf16.gmra.mxu0 %v8533
    %v8640 = vpop.f32.mrf.mxu0
    %v8641 = vadd.f32 %v8592, %v8640
    %v8642 = vpop.f32.mrf.mxu0
    %v8643 = vadd.f32 %v8594, %v8642
    %8644 = vmatmul.bf16.gmra.mxu0 %v8535
    %v8645 = vpop.f32.mrf.mxu0
    %v8646 = vadd.f32 %v8597, %v8645
    %v8647 = vpop.f32.mrf.mxu0
    %v8648 = vadd.f32 %v8599, %v8647
    %8649 = vdwg.mxu0
    %v8650 = vld [vmem:[%s18] sm:$0xff]
    %v8651 = vld [vmem:[%s18 + $0x8] sm:$0xff]
    %v8652 = vld [vmem:[%s18 + $0x10] sm:$0xff]
    %v8653 = vld [vmem:[%s18 + $0x18] sm:$0xff]
    %v8654 = vld [vmem:[%s18 + $0x20] sm:$0xff]
    %v8655 = vld [vmem:[%s18 + $0x28] sm:$0xff]
    %v8656 = vld [vmem:[%s18 + $0x30] sm:$0xff]
    %v8657 = vld [vmem:[%s18 + $0x38] sm:$0xff]
    %v8658 = vld [vmem:[%s18 + $0x40] sm:$0xff]
    %v8659 = vld [vmem:[%s18 + $0x48] sm:$0xff]
    %v8660 = vld [vmem:[%s18 + $0x50] sm:$0xff]
    %v8661 = vld [vmem:[%s18 + $0x58] sm:$0xff]
    %v8662 = vld [vmem:[%s18 + $0x60] sm:$0xff]
    %v8663 = vld [vmem:[%s18 + $0x68] sm:$0xff]
    %v8664 = vld [vmem:[%s18 + $0x70] sm:$0xff]
    %v8665 = vld [vmem:[%s18 + $0x78] sm:$0xff]
    %8667 = vset.pattern.permute.xlu0 0
    %8668 = vperm.xlu0 %8667, %v8650
    %v8669 = vpop.permute.xlu0 %8668
    %8672 = vset.pattern.permute.xlu0 0
    %8673 = vperm.xlu0 %8672, %v8651
    %v8674 = vpop.permute.xlu0 %8673
    %8677 = vset.pattern.permute.xlu0 0
    %8678 = vperm.xlu0 %8677, %v8652
    %v8679 = vpop.permute.xlu0 %8678
    %8682 = vset.pattern.permute.xlu0 0
    %8683 = vperm.xlu0 %8682, %v8653
    %v8684 = vpop.permute.xlu0 %8683
    %8687 = vset.pattern.permute.xlu0 0
    %8688 = vperm.xlu0 %8687, %v8654
    %v8689 = vpop.permute.xlu0 %8688
    %8692 = vset.pattern.permute.xlu0 0
    %8693 = vperm.xlu0 %8692, %v8655
    %v8694 = vpop.permute.xlu0 %8693
    %8697 = vset.pattern.permute.xlu0 0
    %8698 = vperm.xlu0 %8697, %v8656
    %v8699 = vpop.permute.xlu0 %8698
    %8702 = vset.pattern.permute.xlu0 0
    %8703 = vperm.xlu0 %8702, %v8657
    %v8704 = vpop.permute.xlu0 %8703
    %8707 = vset.pattern.permute.xlu0 0
    %8708 = vperm.xlu0 %8707, %v8658
    %v8709 = vpop.permute.xlu0 %8708
    %8712 = vset.pattern.permute.xlu0 0
    %8713 = vperm.xlu0 %8712, %v8659
    %v8714 = vpop.permute.xlu0 %8713
    %8717 = vset.pattern.permute.xlu0 0
    %8718 = vperm.xlu0 %8717, %v8660
    %v8719 = vpop.permute.xlu0 %8718
    %8722 = vset.pattern.permute.xlu0 0
    %8723 = vperm.xlu0 %8722, %v8661
    %v8724 = vpop.permute.xlu0 %8723
    %8727 = vset.pattern.permute.xlu0 0
    %8728 = vperm.xlu0 %8727, %v8662
    %v8729 = vpop.permute.xlu0 %8728
    %8732 = vset.pattern.permute.xlu0 0
    %8733 = vperm.xlu0 %8732, %v8663
    %v8734 = vpop.permute.xlu0 %8733
    %8737 = vset.pattern.permute.xlu0 0
    %8738 = vperm.xlu0 %8737, %v8664
    %v8739 = vpop.permute.xlu0 %8738
    %8742 = vset.pattern.permute.xlu0 0
    %8743 = vperm.xlu0 %8742, %v8665
    %v8744 = vpop.permute.xlu0 %8743
    %v8746 = vmul.f32 %v8611, %v8669
    %v8747 = vmul.f32 %v8613, %v8674
    %v8748 = vmul.f32 %v8616, %v8679
    %v8749 = vmul.f32 %v8618, %v8684
    %v8750 = vmul.f32 %v8621, %v8689
    %v8751 = vmul.f32 %v8623, %v8694
    %v8752 = vmul.f32 %v8626, %v8699
    %v8753 = vmul.f32 %v8628, %v8704
    %v8754 = vmul.f32 %v8631, %v8709
    %v8755 = vmul.f32 %v8633, %v8714
    %v8756 = vmul.f32 %v8636, %v8719
    %v8757 = vmul.f32 %v8638, %v8724
    %v8758 = vmul.f32 %v8641, %v8729
    %v8759 = vmul.f32 %v8643, %v8734
    %v8760 = vmul.f32 %v8646, %v8739
    %v8761 = vmul.f32 %v8648, %v8744
    %v8762 = vsel %vm7248, %v8746, 0.0
    %v8763 = vsel %vm7248, %v8747, 0.0
    %v8764 = vadd.f32 %v8762, %v8763
    %v8765 = vsel %vm7248, %v8748, 0.0
    %v8766 = vadd.f32 %v8764, %v8765
    %v8767 = vsel %vm7248, %v8749, 0.0
    %v8768 = vadd.f32 %v8766, %v8767
    %v8769 = vsel %vm7248, %v8750, 0.0
    %v8770 = vadd.f32 %v8768, %v8769
    %v8771 = vsel %vm7248, %v8751, 0.0
    %v8772 = vadd.f32 %v8770, %v8771
    %v8773 = vsel %vm7248, %v8752, 0.0
    %v8774 = vadd.f32 %v8772, %v8773
    %v8775 = vsel %vm7248, %v8753, 0.0
    %v8776 = vadd.f32 %v8774, %v8775
    %v8777 = vsel %vm7248, %v8754, 0.0
    %v8778 = vadd.f32 %v8776, %v8777
    %v8779 = vsel %vm7248, %v8755, 0.0
    %v8780 = vadd.f32 %v8778, %v8779
    %v8781 = vsel %vm7248, %v8756, 0.0
    %v8782 = vadd.f32 %v8780, %v8781
    %v8783 = vsel %vm7248, %v8757, 0.0
    %v8784 = vadd.f32 %v8782, %v8783
    %v8785 = vsel %vm7248, %v8758, 0.0
    %v8786 = vadd.f32 %v8784, %v8785
    %v8787 = vsel %vm7248, %v8759, 0.0
    %v8788 = vadd.f32 %v8786, %v8787
    %v8789 = vsel %vm7248, %v8760, 0.0
    %v8790 = vadd.f32 %v8788, %v8789
    %v8791 = vsel %vm7248, %v8761, 0.0
    %v8792 = vadd.f32 %v8790, %v8791
    %v8793 = vrot.slane %v8792, 4
    %v8794 = vadd.f32 %v8792, %v8793
    %v8795 = vrot.slane %v8794, 2
    %v8796 = vadd.f32 %v8794, %v8795
    %v8797 = vrot.slane %v8796, 1
    %v8798 = vadd.f32 %v8796, %v8797
    %v8799 = vld [vmem:[#allocation2] sm:$0x1]
    %8801 = vset.pattern.permute.xlu0 0
    %8802 = vperm.xlu0 %8801, %v8799
    %v8803 = vpop.permute.xlu0 %8802
    %v8805 = vperm.slane %v8803, 0
    %v8806 = vadd.f32 %v8798, %v8805
    %v8807 = vtanh.pop %v8806
    %vm8808 = vcmask 8192
    %8809 = vst.msk [vmem:[#allocation6] sm:$0x1] %vm8808, %v8807
    // Predicated region
    $region86: #{forward.1} parent=1 // pred_check
      _
    $region87: #{forward.1} parent=1 // pred_check_branch
      %8811 = sbr.rel (0) target = $region89
    $region88: #{forward.1} parent=1 // pred_region
      %8813 = vsyncadd [#allocation5], 0
      %s8815 = sshll.u32 [#allocation6], 4
      %s8816 = int_to_ptr.vmem [resolvable:$true] %s8815
      %s8817 = sshll.u32 %s20, 4
      %s8818 = int_to_ptr.hbm [resolvable:$true] %s8817
      %8820 = dma.vmem_to_hbm [thread:$0]  %s8816, 16, %s8818, [#allocation5]
    $region89: #{forward.1} parent=1 // pred_fallthru
      _
    // Predicated region
    $region90: #{forward.1} parent=1 // pred_check
      _
    $region91: #{forward.1} parent=1 // pred_check_branch
      %8822 = sbr.rel (0) target = $region93
    $region92: #{forward.1} parent=1 // pred_region
      %8824 = dma.done [#allocation5], 16
    $region93: #{forward.1} parent=1 // pred_fallthru
      _
    %8825 = vsyncpa [#allocation4], 1
    %8826 = vsyncpa [#allocation5], 1

</llo_original>
